<compile_context>
chip_gen: v6e
topology: v6e:2x2x1
jax: 0.10.0
libtpu: 0.0.40
codegen_flags: <defaults>
</compile_context>

<pallas_src>
import jax
import jax.numpy as jnp
from jax import lax
from jax.experimental import pallas as pl
from jax.experimental.pallas import tpu as pltpu

EPS = 1e-5
LANES = 128


def _vmem_limit_bytes():
    # ~3/4 of physical VMEM per generation (v5e/v6e 128 MiB -> 96 MiB,
    # v7x 64 MiB -> 48 MiB); safe fallback if the query is unavailable.
    try:
        info = pltpu.get_tpu_info()
        cap = int(getattr(info, "vmem_capacity_bytes", 128 * 1024 * 1024))
        return max(32 * 1024 * 1024, (cap * 3) // 4)
    except Exception:
        return 64 * 1024 * 1024


def _round_up(v, m):
    return ((v + m - 1) // m) * m


def _pick_row_block(n_rows, width, target_m=1024, max_rows=16):
    """Largest divisor R of n_rows with R*width <= target_m and R <= max_rows."""
    best = 1
    for r in range(1, n_rows + 1):
        if n_rows % r == 0 and r <= max_rows and r * width <= target_m:
            best = r
    return best


def _pad_vec(v, cp):
    return jnp.zeros((1, cp), jnp.float32).at[0, :v.shape[0]].set(
        v.astype(jnp.float32))


def _bn_scale_shift(s, ss, count, gamma_p, beta_p):
    mean = s / count
    var = jnp.maximum(ss / count - mean * mean, 0.0)      # biased (train mode)
    scale = gamma_p * jax.lax.rsqrt(var + EPS)
    shift = beta_p - mean * scale
    return scale, shift


# ---------------------------------------------------------------------------
# Pallas kernels
# ---------------------------------------------------------------------------

def make_upconv_kernel(H, W, rb):
    """ConvTranspose2d(k=2,s=2): big-M matmul, rows emitted already interleaved.

    x_ref:  (1, H*W, inC)         bf16
    wt_ref: (2, inC, 2*outC)      bf16  [a][c, b*outC+o] = wt[c, o, a, b]
    bt_ref: (1, 2*outC)           f32
    up_ref: (1, H, 2, W, 2*outC)  bf16  [., i, a, j, b*outC+o] = up[2i+a, 2j+b, o]
    """
    def kernel(x_ref, wt_ref, bt_ref, up_ref):
        def body(bi, _):
            start = pl.multiple_of(bi * (rb * W), rb * W)
            rows = x_ref[0, pl.ds(start, rb * W), :]                 # (rb*W, inC)
            for a in range(2):
                res = (jnp.dot(rows, wt_ref[a],
                               preferred_element_type=jnp.float32)
                       + bt_ref[...]).astype(up_ref.dtype)           # (rb*W, 2outC)
                for r in range(rb):
                    up_ref[0, bi * rb + r, a, :, :] = res[r * W:(r + 1) * W]
            return 0
        lax.fori_loop(0, H // rb, body, 0)
    return kernel


def make_conv1_kernel(R):
    """Fused conv1(cat(up, x_down)) + bias + per-image BN1 sum/sumsq.

    up_ref: (1, H2, W2, Cu) bf16   xd_ref: (1, H2, W2, Cd) bf16
    wu_ref: (3, 3, Cu, Cp)  bf16   wd_ref: (3, 3, Cd, Cp)  bf16
    b_ref:  (1, Cp) f32
    y_ref:  (1, Ho, Wp, Cp) bf16 (width zero-padded to Wp)
    s_ref / ss_ref: (1, 1, Cp) f32 per-image stats.
    """
    def kernel(up_ref, xd_ref, wu_ref, wd_ref, b_ref, y_ref, s_ref, ss_ref):
        W2 = up_ref.shape[2]
        Wo = W2 - 2
        Cu, Cd = up_ref.shape[3], xd_ref.shape[3]
        Ho, Wp, Cp = y_ref.shape[1], y_ref.shape[2], y_ref.shape[3]
        Mv = R * W2 - 2

        def block(bi, carry):
            s_acc, ss_acc = carry
            p0 = bi * R
            acc = jnp.broadcast_to(b_ref[...], (Mv, Cp))    # bias-initialised f32
            for ki in range(3):
                su = up_ref[0, pl.ds(p0 + ki, R), :, :].reshape(R * W2, Cu)
                sd = xd_ref[0, pl.ds(p0 + ki, R), :, :].reshape(R * W2, Cd)
                for kj in range(3):
                    acc = acc + jnp.dot(su[kj:kj + Mv], wu_ref[ki, kj],
                                        preferred_element_type=jnp.float32)
                    acc = acc + jnp.dot(sd[kj:kj + Mv], wd_ref[ki, kj],
                                        preferred_element_type=jnp.float32)
            # valid-column mask for the BN statistics
            col = lax.broadcasted_iota(jnp.int32, (Mv, 1), 0) % W2
            masked = jnp.where(col < Wo, acc, 0.0)
            s_acc = s_acc + jnp.sum(masked, axis=0, keepdims=True)
            ss_acc = ss_acc + jnp.sum(masked * masked, axis=0, keepdims=True)
            # lane-dense, width-padded bf16 stores
            y_bf = acc.astype(y_ref.dtype)
            if Wp > Wo:
                zpad = jnp.zeros((Wp - Wo, Cp), y_ref.dtype)
            for r in range(R):
                row = y_bf[r * W2:r * W2 + Wo]
                if Wp > Wo:
                    row = jnp.concatenate([row, zpad], axis=0)
                y_ref[0, p0 + r, :, :] = row
            return s_acc, ss_acc

        zero = jnp.zeros((1, Cp), jnp.float32)
        s_tot, ss_tot = lax.fori_loop(0, Ho // R, block, (zero, zero))
        s_ref[0] = s_tot
        ss_ref[0] = ss_tot
    return kernel


def make_conv2_kernel(R, with_relu):
    """BN1(+ReLU) applied on the fly + conv2 + bias + per-image BN2 sum/sumsq.

    y1_ref: (1, Ho1, Wp1, Cp) bf16
    sc_ref / sh_ref / b_ref: (1, Cp) f32
    w_ref:  (3, 3, Cp, Cp) bf16
    y_ref:  (1, Ho2, Wo2, Cp) f32
    s_ref / ss_ref: (1, 1, Cp) f32 per-image stats.
    """
    def kernel(y1_ref, sc_ref, sh_ref, w_ref, b_ref, y_ref, s_ref, ss_ref):
        Wp1 = y1_ref.shape[2]
        Ho, Wout, Cp = y_ref.shape[1], y_ref.shape[2], y_ref.shape[3]
        Mv = R * Wp1 - 2
        sc = sc_ref[...]
        sh = sh_ref[...]

        def block(bi, carry):
            s_acc, ss_acc = carry
            p0 = bi * R
            acc = jnp.broadcast_to(b_ref[...], (Mv, Cp))
            for ki in range(3):
                raw = y1_ref[0, pl.ds(p0 + ki, R), :, :].reshape(R * Wp1, Cp)
                z = raw.astype(jnp.float32) * sc + sh          # BN1 affine
                if with_relu:
                    z = jnp.maximum(z, 0.0)
                z = z.astype(jnp.bfloat16)
                for kj in range(3):
                    acc = acc + jnp.dot(z[kj:kj + Mv], w_ref[ki, kj],
                                        preferred_element_type=jnp.float32)
            col = lax.broadcasted_iota(jnp.int32, (Mv, 1), 0) % Wp1
            masked = jnp.where(col < Wout, acc, 0.0)
            s_acc = s_acc + jnp.sum(masked, axis=0, keepdims=True)
            ss_acc = ss_acc + jnp.sum(masked * masked, axis=0, keepdims=True)
            for r in range(R):
                y_ref[0, p0 + r, :, :] = acc[r * Wp1:r * Wp1 + Wout]
            return s_acc, ss_acc

        zero = jnp.zeros((1, Cp), jnp.float32)
        s_tot, ss_tot = lax.fori_loop(0, Ho // R, block, (zero, zero))
        s_ref[0] = s_tot
        ss_ref[0] = ss_tot
    return kernel


# ---------------------------------------------------------------------------
# Wrapper (XLA: NCHW<->NHWC plumbing, O(C) BN math, fused BN2+ReLU epilogue)
# ---------------------------------------------------------------------------

def up_step_forward(x, x_down, params, *, with_relu=True):
    """x:(N,inC,H,W), x_down:(N,inC-outC,2H,2W) NCHW -> (N,outC,2H-4,2W-4)."""
    (wt, bt, w1, b1, g1, be1, w2, b2, g2, be2) = params
    inC, outC = wt.shape[0], wt.shape[1]
    assert inC > outC, "x_down must carry inC - outC skip channels"
    N, _, H, W = x.shape
    Cdn = inC - outC
    H2, W2 = 2 * H, 2 * W
    Ho1, Wo1 = H2 - 2, W2 - 2
    Ho2, Wo2 = Ho1 - 2, Wo1 - 2
    Cp = _round_up(max(outC, LANES), LANES)
    Wp1 = _round_up(Wo1, 16)                # bf16-friendly padded y1 width
    f32, bf16 = jnp.float32, jnp.bfloat16
    vmem = _vmem_limit_bytes()

    # Layout plumbing only (no compute): NCHW -> NHWC, flatten rows, bf16 cast.
    x_flat = jnp.transpose(x, (0, 2, 3, 1)).reshape(N, H * W, inC).astype(bf16)
    xd = jnp.transpose(x_down, (0, 2, 3, 1)).astype(bf16)       # (N,H2,W2,Cdn)

    # --- K0: ConvTranspose2d(k=2, s=2), rows emitted interleaved -------------
    wt_pl = jnp.transpose(wt, (2, 0, 3, 1)).reshape(2, inC, 2 * outC).astype(bf16)
    bt2 = jnp.tile(bt.astype(f32), 2).reshape(1, 2 * outC)
    rb = _pick_row_block(H, W)

    up4 = pl.pallas_call(
        make_upconv_kernel(H, W, rb),
        out_shape=jax.ShapeDtypeStruct((N, H, 2, W, 2 * outC), bf16),
        grid=(N,),
        in_specs=[pl.BlockSpec((1, H * W, inC), lambda n: (n, 0, 0)),
                  pl.BlockSpec((2, inC, 2 * outC), lambda n: (0, 0, 0)),
                  pl.BlockSpec((1, 2 * outC), lambda n: (0, 0))],
        out_specs=pl.BlockSpec((1, H, 2, W, 2 * outC),
                               lambda n: (n, 0, 0, 0, 0)),
        compiler_params=pltpu.CompilerParams(
            dimension_semantics=("parallel",), vmem_limit_bytes=vmem),
    )(x_flat, wt_pl, bt2)
    # Order-preserving (free) reshape to the standard NHWC up tensor.
    up = up4.reshape(N, H2, W2, outC)

    # --- K1: conv1(cat(up, x_down)) + bias + per-image BN1 stats -------------
    w1t = jnp.transpose(w1, (2, 3, 1, 0)).astype(f32)           # (3,3,inC,outC)
    w1u = jnp.zeros((3, 3, outC, Cp), f32).at[..., :outC].set(
        w1t[:, :, :outC, :]).astype(bf16)
    w1d = jnp.zeros((3, 3, Cdn, Cp), f32).at[..., :outC].set(
        w1t[:, :, outC:, :]).astype(bf16)
    b1p = _pad_vec(b1, Cp)
    R1 = _pick_row_block(Ho1, W2)

    y1, s1, ss1 = pl.pallas_call(
        make_conv1_kernel(R1),
        out_shape=(jax.ShapeDtypeStruct((N, Ho1, Wp1, Cp), bf16),
                   jax.ShapeDtypeStruct((N, 1, Cp), f32),
                   jax.ShapeDtypeStruct((N, 1, Cp), f32)),
        grid=(N,),
        in_specs=[pl.BlockSpec((1, H2, W2, outC), lambda n: (n, 0, 0, 0)),
                  pl.BlockSpec((1, H2, W2, Cdn), lambda n: (n, 0, 0, 0)),
                  pl.BlockSpec((3, 3, outC, Cp), lambda n: (0, 0, 0, 0)),
                  pl.BlockSpec((3, 3, Cdn, Cp), lambda n: (0, 0, 0, 0)),
                  pl.BlockSpec((1, Cp), lambda n: (0, 0))],
        out_specs=(pl.BlockSpec((1, Ho1, Wp1, Cp), lambda n: (n, 0, 0, 0)),
                   pl.BlockSpec((1, 1, Cp), lambda n: (n, 0, 0)),
                   pl.BlockSpec((1, 1, Cp), lambda n: (n, 0, 0))),
        compiler_params=pltpu.CompilerParams(
            dimension_semantics=("parallel",), vmem_limit_bytes=vmem),
    )(up, xd, w1u, w1d, b1p)

    sc1, sh1 = _bn_scale_shift(jnp.sum(s1, axis=0), jnp.sum(ss1, axis=0),
                               float(N * Ho1 * Wo1),
                               _pad_vec(g1, Cp), _pad_vec(be1, Cp))

    # --- K2: BN1(+ReLU) + conv2 + bias + per-image BN2 stats -----------------
    w2t = jnp.transpose(w2, (2, 3, 1, 0)).astype(f32)           # (3,3,outC,outC)
    w2p = jnp.zeros((3, 3, Cp, Cp), f32).at[:, :, :outC, :outC].set(
        w2t).astype(bf16)
    b2p = _pad_vec(b2, Cp)
    R2 = _pick_row_block(Ho2, Wp1)

    y2, s2, ss2 = pl.pallas_call(
        make_conv2_kernel(R2, with_relu),
        out_shape=(jax.ShapeDtypeStruct((N, Ho2, Wo2, Cp), f32),
                   jax.ShapeDtypeStruct((N, 1, Cp), f32),
                   jax.ShapeDtypeStruct((N, 1, Cp), f32)),
        grid=(N,),
        in_specs=[pl.BlockSpec((1, Ho1, Wp1, Cp), lambda n: (n, 0, 0, 0)),
                  pl.BlockSpec((1, Cp), lambda n: (0, 0)),
                  pl.BlockSpec((1, Cp), lambda n: (0, 0)),
                  pl.BlockSpec((3, 3, Cp, Cp), lambda n: (0, 0, 0, 0)),
                  pl.BlockSpec((1, Cp), lambda n: (0, 0))],
        out_specs=(pl.BlockSpec((1, Ho2, Wo2, Cp), lambda n: (n, 0, 0, 0)),
                   pl.BlockSpec((1, 1, Cp), lambda n: (n, 0, 0)),
                   pl.BlockSpec((1, 1, Cp), lambda n: (n, 0, 0))),
        compiler_params=pltpu.CompilerParams(
            dimension_semantics=("parallel",), vmem_limit_bytes=vmem),
    )(y1, sc1, sh1, w2p, b2p)

    sc2, sh2 = _bn_scale_shift(jnp.sum(s2, axis=0), jnp.sum(ss2, axis=0),
                               float(N * Ho2 * Wo2),
                               _pad_vec(g2, Cp), _pad_vec(be2, Cp))

    # --- BN2(+ReLU) fused by XLA with the channel slice + NHWC->NCHW ---------
    out = y2 * sc2 + sh2
    if with_relu:
        out = jnp.maximum(out, 0.0)
    out = out[..., :outC]
    return jnp.transpose(out, (0, 3, 1, 2))


up_step_forward_jit = jax.jit(up_step_forward, static_argnames=("with_relu",))


# ---------------------------------------------------------------------------
# Pure-JAX f32 reference (NCHW, explicit taps) for a self-check
# ---------------------------------------------------------------------------

def ref_upstep(x, x_down, params, with_relu=True):
    (wt, bt, w1, b1, g1, be1, w2, b2, g2, be2) = params
    N, inC, H, W = x.shape
    outC = wt.shape[1]

    up = jnp.zeros((N, outC, 2 * H, 2 * W), jnp.float32)
    for a in range(2):
        for b in range(2):
            y = jnp.einsum('nihw,io->nohw', x, wt[:, :, a, b])
            up = up.at[:, :, a::2, b::2].set(y)
    up = up + bt[None, :, None, None]
    xin = jnp.concatenate([up, x_down], axis=1)

    def conv3(xx, w, bb):
        Cout = w.shape[0]
        Nh, _, Hh, Ww = xx.shape
        Ho, Wo = Hh - 2, Ww - 2
        acc = jnp.zeros((Nh, Cout, Ho, Wo), jnp.float32)
        for ki in range(3):
            for kj in range(3):
                acc = acc + jnp.einsum('nihw,oi->nohw',
                                       xx[:, :, ki:ki + Ho, kj:kj + Wo],
                                       w[:, :, ki, kj])
        return acc + bb[None, :, None, None]

    def bn(xx, g, be):
        mean = jnp.mean(xx, axis=(0, 2, 3), keepdims=True)
        var = jnp.mean((xx - mean) ** 2, axis=(0, 2, 3), keepdims=True)
        return ((xx - mean) * jax.lax.rsqrt(var + EPS)
                * g[None, :, None, None] + be[None, :, None, None])

    z = bn(conv3(xin, w1, b1), g1, be1)
    if with_relu:
        z = jnp.maximum(z, 0.0)
    z = bn(conv3(z, w2, b2), g2, be2)
    if with_relu:
        z = jnp.maximum(z, 0.0)
    return z


# ---------------------------------------------------------------------------
# Deterministic parameter init + driver
# ---------------------------------------------------------------------------

def init_params(key, inC, outC):
    ks = jax.random.split(key, 8)
    s_t = (2.0 / (inC * 4)) ** 0.5
    s_1 = (2.0 / (inC * 9)) ** 0.5
    s_2 = (2.0 / (outC * 9)) ** 0.5
    wt = jax.random.normal(ks[0], (inC, outC, 2, 2), jnp.float32) * s_t
    bt = jax.random.normal(ks[1], (outC,), jnp.float32) * 0.1
    w1 = jax.random.normal(ks[2], (outC, inC, 3, 3), jnp.float32) * s_1
    b1 = jax.random.normal(ks[3], (outC,), jnp.float32) * 0.1
    w2 = jax.random.normal(ks[4], (outC, outC, 3, 3), jnp.float32) * s_2
    b2 = jax.random.normal(ks[5], (outC,), jnp.float32) * 0.1
    g1 = 1.0 + 0.1 * jax.random.normal(ks[6], (outC,), jnp.float32)
    be1 = jnp.zeros((outC,), jnp.float32) + 0.05
    g2 = 1.0 + 0.1 * jax.random.normal(ks[7], (outC,), jnp.float32)
    be2 = jnp.zeros((outC,), jnp.float32) - 0.05
    return (wt, bt, w1, b1, g1, be1, w2, b2, g2, be2)


if __name__ == "__main__":
    key = jax.random.PRNGKey(0)
    k_x, k_xd, k_p = jax.random.split(key, 3)

    N, inC, outC, H, W = 2, 8, 4, 8, 8
    x = jax.random.normal(k_x, (N, inC, H, W), jnp.float32)             # NCHW
    x_down = jax.random.normal(k_xd, (N, inC - outC, 2 * H, 2 * W), jnp.float32)
    params = init_params(k_p, inC, outC)

    out = up_step_forward_jit(x, x_down, params, with_relu=True)
    out = jax.block_until_ready(out)
    assert out.shape == (N, outC, 2 * H - 4, 2 * W - 4), out.shape

    ref = ref_upstep(x, x_down, params, with_relu=True)
    diff = jnp.abs(out - ref)
    err_max = float(jnp.max(diff))
    err_mean = float(jnp.mean(diff))
    # bf16 MXU operands (vs f32 reference) through two conv+BN stages.
    assert err_max < 1e-1, f"max |pallas - ref| = {err_max}"
    assert err_mean < 3e-2, f"mean |pallas - ref| = {err_mean}"

    print("KERNEL_OK")
</pallas_src>

<mosaic_0001>
module attributes {stable_mosaic.version = 11 : i64} {
  func.func @kernel(%arg0: i32, %arg1: memref<1x64x8xbf16, #tpu.memory_space<vmem>>, %arg2: memref<2x8x8xbf16, #tpu.memory_space<vmem>>, %arg3: memref<1x8xf32, #tpu.memory_space<vmem>>, %arg4: memref<1x8x2x8x8xbf16, #tpu.memory_space<vmem>>) attributes {dimension_semantics = [#tpu.dimension_semantics<parallel>], iteration_bounds = array<i64: 2>, scalar_prefetch = 0 : i64, scratch_operands = 0 : i64, tpu.core_type = #tpu.core_type<tc>, window_params = [{transform_indices = @transform_0, window_bounds = array<i64: 1, 64, 8>}, {pipeline_mode = #tpu.pipeline_mode<synchronous>, transform_indices = @transform_1, window_bounds = array<i64: 2, 8, 8>}, {pipeline_mode = #tpu.pipeline_mode<synchronous>, transform_indices = @transform_2, window_bounds = array<i64: 1, 8>}, {transform_indices = @transform_3, window_bounds = array<i64: 1, 8, 2, 8, 8>}]} {
    %c0_i32 = arith.constant 0 : i32
    %c64_i32 = arith.constant 64 : i32
    %0 = arith.muli %c0_i32, %c64_i32 : i32
    %1 = tpu.assume_multiple %0, 64 : i32
    %c0 = arith.constant 0 : index
    %2 = arith.index_cast %1 : i32 to index
    %c0_0 = arith.constant 0 : index
    %3 = vector.load %arg1[%c0, %2, %c0_0] : memref<1x64x8xbf16, #tpu.memory_space<vmem>>, vector<1x64x8xbf16>
    %4 = vector.shape_cast %3 : vector<1x64x8xbf16> to vector<64x8xbf16>
    %c0_1 = arith.constant 0 : index
    %c0_2 = arith.constant 0 : index
    %c0_3 = arith.constant 0 : index
    %5 = vector.load %arg2[%c0_1, %c0_2, %c0_3] : memref<2x8x8xbf16, #tpu.memory_space<vmem>>, vector<1x8x8xbf16>
    %6 = vector.shape_cast %5 : vector<1x8x8xbf16> to vector<8x8xbf16>
    %cst = arith.constant dense<0.000000e+00> : vector<64x8xf32>
    %7 = tpu.matmul %4, %6, %cst {dimension_numbers = #tpu.dot_dimension_numbers<[1], [0], [0], [1], [0, 0, 1, 1], [], []>} : vector<64x8xbf16>, vector<8x8xbf16>, vector<64x8xf32> -> vector<64x8xf32>
    %c0_4 = arith.constant 0 : index
    %c0_5 = arith.constant 0 : index
    %8 = vector.load %arg3[%c0_4, %c0_5] : memref<1x8xf32, #tpu.memory_space<vmem>>, vector<1x8xf32>
    %9 = vector.broadcast %8 : vector<1x8xf32> to vector<64x8xf32>
    %10 = arith.addf %7, %9 : vector<64x8xf32>
    %11 = arith.truncf %10 : vector<64x8xf32> to vector<64x8xbf16>
    %12 = vector.extract_strided_slice %11 {offsets = [0, 0], sizes = [8, 8], strides = [1, 1]} : vector<64x8xbf16> to vector<8x8xbf16>
    %c8_i32 = arith.constant 8 : i32
    %13 = arith.muli %c0_i32, %c8_i32 : i32
    %c0_i32_6 = arith.constant 0 : i32
    %14 = arith.addi %13, %c0_i32_6 : i32
    %c0_7 = arith.constant 0 : index
    %15 = arith.index_cast %14 : i32 to index
    %c0_8 = arith.constant 0 : index
    %c0_9 = arith.constant 0 : index
    %c0_10 = arith.constant 0 : index
    %16 = vector.load %arg4[%c0_7, %15, %c0_8, %c0_9, %c0_10] : memref<1x8x2x8x8xbf16, #tpu.memory_space<vmem>>, vector<1x1x1x8x8xbf16>
    %17 = vector.shape_cast %16 : vector<1x1x1x8x8xbf16> to vector<8x8xbf16>
    %18 = vector.shape_cast %12 : vector<8x8xbf16> to vector<1x1x1x8x8xbf16>
    tpu.vector_store %arg4[%c0_7, %15, %c0_8, %c0_9, %c0_10], %18 {strides = array<i32>} : memref<1x8x2x8x8xbf16, #tpu.memory_space<vmem>>, vector<1x1x1x8x8xbf16>,
    %19 = vector.extract_strided_slice %11 {offsets = [8, 0], sizes = [8, 8], strides = [1, 1]} : vector<64x8xbf16> to vector<8x8xbf16>
    %c8_i32_11 = arith.constant 8 : i32
    %20 = arith.muli %c0_i32, %c8_i32_11 : i32
    %c1_i32 = arith.constant 1 : i32
    %21 = arith.addi %20, %c1_i32 : i32
    %c0_12 = arith.constant 0 : index
    %22 = arith.index_cast %21 : i32 to index
    %c0_13 = arith.constant 0 : index
    %c0_14 = arith.constant 0 : index
    %c0_15 = arith.constant 0 : index
    %23 = vector.load %arg4[%c0_12, %22, %c0_13, %c0_14, %c0_15] : memref<1x8x2x8x8xbf16, #tpu.memory_space<vmem>>, vector<1x1x1x8x8xbf16>
    %24 = vector.shape_cast %23 : vector<1x1x1x8x8xbf16> to vector<8x8xbf16>
    %25 = vector.shape_cast %19 : vector<8x8xbf16> to vector<1x1x1x8x8xbf16>
    tpu.vector_store %arg4[%c0_12, %22, %c0_13, %c0_14, %c0_15], %25 {strides = array<i32>} : memref<1x8x2x8x8xbf16, #tpu.memory_space<vmem>>, vector<1x1x1x8x8xbf16>,
    %26 = vector.extract_strided_slice %11 {offsets = [16, 0], sizes = [8, 8], strides = [1, 1]} : vector<64x8xbf16> to vector<8x8xbf16>
    %c8_i32_16 = arith.constant 8 : i32
    %27 = arith.muli %c0_i32, %c8_i32_16 : i32
    %c2_i32 = arith.constant 2 : i32
    %28 = arith.addi %27, %c2_i32 : i32
    %c0_17 = arith.constant 0 : index
    %29 = arith.index_cast %28 : i32 to index
    %c0_18 = arith.constant 0 : index
    %c0_19 = arith.constant 0 : index
    %c0_20 = arith.constant 0 : index
    %30 = vector.load %arg4[%c0_17, %29, %c0_18, %c0_19, %c0_20] : memref<1x8x2x8x8xbf16, #tpu.memory_space<vmem>>, vector<1x1x1x8x8xbf16>
    %31 = vector.shape_cast %30 : vector<1x1x1x8x8xbf16> to vector<8x8xbf16>
    %32 = vector.shape_cast %26 : vector<8x8xbf16> to vector<1x1x1x8x8xbf16>
    tpu.vector_store %arg4[%c0_17, %29, %c0_18, %c0_19, %c0_20], %32 {strides = array<i32>} : memref<1x8x2x8x8xbf16, #tpu.memory_space<vmem>>, vector<1x1x1x8x8xbf16>,
    %33 = vector.extract_strided_slice %11 {offsets = [24, 0], sizes = [8, 8], strides = [1, 1]} : vector<64x8xbf16> to vector<8x8xbf16>
    %c8_i32_21 = arith.constant 8 : i32
    %34 = arith.muli %c0_i32, %c8_i32_21 : i32
    %c3_i32 = arith.constant 3 : i32
    %35 = arith.addi %34, %c3_i32 : i32
    %c0_22 = arith.constant 0 : index
    %36 = arith.index_cast %35 : i32 to index
    %c0_23 = arith.constant 0 : index
    %c0_24 = arith.constant 0 : index
    %c0_25 = arith.constant 0 : index
    %37 = vector.load %arg4[%c0_22, %36, %c0_23, %c0_24, %c0_25] : memref<1x8x2x8x8xbf16, #tpu.memory_space<vmem>>, vector<1x1x1x8x8xbf16>
    %38 = vector.shape_cast %37 : vector<1x1x1x8x8xbf16> to vector<8x8xbf16>
    %39 = vector.shape_cast %33 : vector<8x8xbf16> to vector<1x1x1x8x8xbf16>
    tpu.vector_store %arg4[%c0_22, %36, %c0_23, %c0_24, %c0_25], %39 {strides = array<i32>} : memref<1x8x2x8x8xbf16, #tpu.memory_space<vmem>>, vector<1x1x1x8x8xbf16>,
    %40 = vector.extract_strided_slice %11 {offsets = [32, 0], sizes = [8, 8], strides = [1, 1]} : vector<64x8xbf16> to vector<8x8xbf16>
    %c8_i32_26 = arith.constant 8 : i32
    %41 = arith.muli %c0_i32, %c8_i32_26 : i32
    %c4_i32 = arith.constant 4 : i32
    %42 = arith.addi %41, %c4_i32 : i32
    %c0_27 = arith.constant 0 : index
    %43 = arith.index_cast %42 : i32 to index
    %c0_28 = arith.constant 0 : index
    %c0_29 = arith.constant 0 : index
    %c0_30 = arith.constant 0 : index
    %44 = vector.load %arg4[%c0_27, %43, %c0_28, %c0_29, %c0_30] : memref<1x8x2x8x8xbf16, #tpu.memory_space<vmem>>, vector<1x1x1x8x8xbf16>
    %45 = vector.shape_cast %44 : vector<1x1x1x8x8xbf16> to vector<8x8xbf16>
    %46 = vector.shape_cast %40 : vector<8x8xbf16> to vector<1x1x1x8x8xbf16>
    tpu.vector_store %arg4[%c0_27, %43, %c0_28, %c0_29, %c0_30], %46 {strides = array<i32>} : memref<1x8x2x8x8xbf16, #tpu.memory_space<vmem>>, vector<1x1x1x8x8xbf16>,
    %47 = vector.extract_strided_slice %11 {offsets = [40, 0], sizes = [8, 8], strides = [1, 1]} : vector<64x8xbf16> to vector<8x8xbf16>
    %c8_i32_31 = arith.constant 8 : i32
    %48 = arith.muli %c0_i32, %c8_i32_31 : i32
    %c5_i32 = arith.constant 5 : i32
    %49 = arith.addi %48, %c5_i32 : i32
    %c0_32 = arith.constant 0 : index
    %50 = arith.index_cast %49 : i32 to index
    %c0_33 = arith.constant 0 : index
    %c0_34 = arith.constant 0 : index
    %c0_35 = arith.constant 0 : index
    %51 = vector.load %arg4[%c0_32, %50, %c0_33, %c0_34, %c0_35] : memref<1x8x2x8x8xbf16, #tpu.memory_space<vmem>>, vector<1x1x1x8x8xbf16>
    %52 = vector.shape_cast %51 : vector<1x1x1x8x8xbf16> to vector<8x8xbf16>
    %53 = vector.shape_cast %47 : vector<8x8xbf16> to vector<1x1x1x8x8xbf16>
    tpu.vector_store %arg4[%c0_32, %50, %c0_33, %c0_34, %c0_35], %53 {strides = array<i32>} : memref<1x8x2x8x8xbf16, #tpu.memory_space<vmem>>, vector<1x1x1x8x8xbf16>,
    %54 = vector.extract_strided_slice %11 {offsets = [48, 0], sizes = [8, 8], strides = [1, 1]} : vector<64x8xbf16> to vector<8x8xbf16>
    %c8_i32_36 = arith.constant 8 : i32
    %55 = arith.muli %c0_i32, %c8_i32_36 : i32
    %c6_i32 = arith.constant 6 : i32
    %56 = arith.addi %55, %c6_i32 : i32
    %c0_37 = arith.constant 0 : index
    %57 = arith.index_cast %56 : i32 to index
    %c0_38 = arith.constant 0 : index
    %c0_39 = arith.constant 0 : index
    %c0_40 = arith.constant 0 : index
    %58 = vector.load %arg4[%c0_37, %57, %c0_38, %c0_39, %c0_40] : memref<1x8x2x8x8xbf16, #tpu.memory_space<vmem>>, vector<1x1x1x8x8xbf16>
    %59 = vector.shape_cast %58 : vector<1x1x1x8x8xbf16> to vector<8x8xbf16>
    %60 = vector.shape_cast %54 : vector<8x8xbf16> to vector<1x1x1x8x8xbf16>
    tpu.vector_store %arg4[%c0_37, %57, %c0_38, %c0_39, %c0_40], %60 {strides = array<i32>} : memref<1x8x2x8x8xbf16, #tpu.memory_space<vmem>>, vector<1x1x1x8x8xbf16>,
    %61 = vector.extract_strided_slice %11 {offsets = [56, 0], sizes = [8, 8], strides = [1, 1]} : vector<64x8xbf16> to vector<8x8xbf16>
    %c8_i32_41 = arith.constant 8 : i32
    %62 = arith.muli %c0_i32, %c8_i32_41 : i32
    %c7_i32 = arith.constant 7 : i32
    %63 = arith.addi %62, %c7_i32 : i32
    %c0_42 = arith.constant 0 : index
    %64 = arith.index_cast %63 : i32 to index
    %c0_43 = arith.constant 0 : index
    %c0_44 = arith.constant 0 : index
    %c0_45 = arith.constant 0 : index
    %65 = vector.load %arg4[%c0_42, %64, %c0_43, %c0_44, %c0_45] : memref<1x8x2x8x8xbf16, #tpu.memory_space<vmem>>, vector<1x1x1x8x8xbf16>
    %66 = vector.shape_cast %65 : vector<1x1x1x8x8xbf16> to vector<8x8xbf16>
    %67 = vector.shape_cast %61 : vector<8x8xbf16> to vector<1x1x1x8x8xbf16>
    tpu.vector_store %arg4[%c0_42, %64, %c0_43, %c0_44, %c0_45], %67 {strides = array<i32>} : memref<1x8x2x8x8xbf16, #tpu.memory_space<vmem>>, vector<1x1x1x8x8xbf16>,
    %c1 = arith.constant 1 : index
    %c0_46 = arith.constant 0 : index
    %c0_47 = arith.constant 0 : index
    %68 = vector.load %arg2[%c1, %c0_46, %c0_47] : memref<2x8x8xbf16, #tpu.memory_space<vmem>>, vector<1x8x8xbf16>
    %69 = vector.shape_cast %68 : vector<1x8x8xbf16> to vector<8x8xbf16>
    %cst_48 = arith.constant dense<0.000000e+00> : vector<64x8xf32>
    %70 = tpu.matmul %4, %69, %cst_48 {dimension_numbers = #tpu.dot_dimension_numbers<[1], [0], [0], [1], [0, 0, 1, 1], [], []>} : vector<64x8xbf16>, vector<8x8xbf16>, vector<64x8xf32> -> vector<64x8xf32>
    %c0_49 = arith.constant 0 : index
    %c0_50 = arith.constant 0 : index
    %71 = vector.load %arg3[%c0_49, %c0_50] : memref<1x8xf32, #tpu.memory_space<vmem>>, vector<1x8xf32>
    %72 = vector.broadcast %71 : vector<1x8xf32> to vector<64x8xf32>
    %73 = arith.addf %70, %72 : vector<64x8xf32>
    %74 = arith.truncf %73 : vector<64x8xf32> to vector<64x8xbf16>
    %75 = vector.extract_strided_slice %74 {offsets = [0, 0], sizes = [8, 8], strides = [1, 1]} : vector<64x8xbf16> to vector<8x8xbf16>
    %c8_i32_51 = arith.constant 8 : i32
    %76 = arith.muli %c0_i32, %c8_i32_51 : i32
    %c0_i32_52 = arith.constant 0 : i32
    %77 = arith.addi %76, %c0_i32_52 : i32
    %c0_53 = arith.constant 0 : index
    %78 = arith.index_cast %77 : i32 to index
    %c1_54 = arith.constant 1 : index
    %c0_55 = arith.constant 0 : index
    %c0_56 = arith.constant 0 : index
    %79 = vector.load %arg4[%c0_53, %78, %c1_54, %c0_55, %c0_56] : memref<1x8x2x8x8xbf16, #tpu.memory_space<vmem>>, vector<1x1x1x8x8xbf16>
    %80 = vector.shape_cast %79 : vector<1x1x1x8x8xbf16> to vector<8x8xbf16>
    %81 = vector.shape_cast %75 : vector<8x8xbf16> to vector<1x1x1x8x8xbf16>
    tpu.vector_store %arg4[%c0_53, %78, %c1_54, %c0_55, %c0_56], %81 {strides = array<i32>} : memref<1x8x2x8x8xbf16, #tpu.memory_space<vmem>>, vector<1x1x1x8x8xbf16>,
    %82 = vector.extract_strided_slice %74 {offsets = [8, 0], sizes = [8, 8], strides = [1, 1]} : vector<64x8xbf16> to vector<8x8xbf16>
    %c8_i32_57 = arith.constant 8 : i32
    %83 = arith.muli %c0_i32, %c8_i32_57 : i32
    %c1_i32_58 = arith.constant 1 : i32
    %84 = arith.addi %83, %c1_i32_58 : i32
    %c0_59 = arith.constant 0 : index
    %85 = arith.index_cast %84 : i32 to index
    %c1_60 = arith.constant 1 : index
    %c0_61 = arith.constant 0 : index
    %c0_62 = arith.constant 0 : index
    %86 = vector.load %arg4[%c0_59, %85, %c1_60, %c0_61, %c0_62] : memref<1x8x2x8x8xbf16, #tpu.memory_space<vmem>>, vector<1x1x1x8x8xbf16>
    %87 = vector.shape_cast %86 : vector<1x1x1x8x8xbf16> to vector<8x8xbf16>
    %88 = vector.shape_cast %82 : vector<8x8xbf16> to vector<1x1x1x8x8xbf16>
    tpu.vector_store %arg4[%c0_59, %85, %c1_60, %c0_61, %c0_62], %88 {strides = array<i32>} : memref<1x8x2x8x8xbf16, #tpu.memory_space<vmem>>, vector<1x1x1x8x8xbf16>,
    %89 = vector.extract_strided_slice %74 {offsets = [16, 0], sizes = [8, 8], strides = [1, 1]} : vector<64x8xbf16> to vector<8x8xbf16>
    %c8_i32_63 = arith.constant 8 : i32
    %90 = arith.muli %c0_i32, %c8_i32_63 : i32
    %c2_i32_64 = arith.constant 2 : i32
    %91 = arith.addi %90, %c2_i32_64 : i32
    %c0_65 = arith.constant 0 : index
    %92 = arith.index_cast %91 : i32 to index
    %c1_66 = arith.constant 1 : index
    %c0_67 = arith.constant 0 : index
    %c0_68 = arith.constant 0 : index
    %93 = vector.load %arg4[%c0_65, %92, %c1_66, %c0_67, %c0_68] : memref<1x8x2x8x8xbf16, #tpu.memory_space<vmem>>, vector<1x1x1x8x8xbf16>
    %94 = vector.shape_cast %93 : vector<1x1x1x8x8xbf16> to vector<8x8xbf16>
    %95 = vector.shape_cast %89 : vector<8x8xbf16> to vector<1x1x1x8x8xbf16>
    tpu.vector_store %arg4[%c0_65, %92, %c1_66, %c0_67, %c0_68], %95 {strides = array<i32>} : memref<1x8x2x8x8xbf16, #tpu.memory_space<vmem>>, vector<1x1x1x8x8xbf16>,
    %96 = vector.extract_strided_slice %74 {offsets = [24, 0], sizes = [8, 8], strides = [1, 1]} : vector<64x8xbf16> to vector<8x8xbf16>
    %c8_i32_69 = arith.constant 8 : i32
    %97 = arith.muli %c0_i32, %c8_i32_69 : i32
    %c3_i32_70 = arith.constant 3 : i32
    %98 = arith.addi %97, %c3_i32_70 : i32
    %c0_71 = arith.constant 0 : index
    %99 = arith.index_cast %98 : i32 to index
    %c1_72 = arith.constant 1 : index
    %c0_73 = arith.constant 0 : index
    %c0_74 = arith.constant 0 : index
    %100 = vector.load %arg4[%c0_71, %99, %c1_72, %c0_73, %c0_74] : memref<1x8x2x8x8xbf16, #tpu.memory_space<vmem>>, vector<1x1x1x8x8xbf16>
    %101 = vector.shape_cast %100 : vector<1x1x1x8x8xbf16> to vector<8x8xbf16>
    %102 = vector.shape_cast %96 : vector<8x8xbf16> to vector<1x1x1x8x8xbf16>
    tpu.vector_store %arg4[%c0_71, %99, %c1_72, %c0_73, %c0_74], %102 {strides = array<i32>} : memref<1x8x2x8x8xbf16, #tpu.memory_space<vmem>>, vector<1x1x1x8x8xbf16>,
    %103 = vector.extract_strided_slice %74 {offsets = [32, 0], sizes = [8, 8], strides = [1, 1]} : vector<64x8xbf16> to vector<8x8xbf16>
    %c8_i32_75 = arith.constant 8 : i32
    %104 = arith.muli %c0_i32, %c8_i32_75 : i32
    %c4_i32_76 = arith.constant 4 : i32
    %105 = arith.addi %104, %c4_i32_76 : i32
    %c0_77 = arith.constant 0 : index
    %106 = arith.index_cast %105 : i32 to index
    %c1_78 = arith.constant 1 : index
    %c0_79 = arith.constant 0 : index
    %c0_80 = arith.constant 0 : index
    %107 = vector.load %arg4[%c0_77, %106, %c1_78, %c0_79, %c0_80] : memref<1x8x2x8x8xbf16, #tpu.memory_space<vmem>>, vector<1x1x1x8x8xbf16>
    %108 = vector.shape_cast %107 : vector<1x1x1x8x8xbf16> to vector<8x8xbf16>
    %109 = vector.shape_cast %103 : vector<8x8xbf16> to vector<1x1x1x8x8xbf16>
    tpu.vector_store %arg4[%c0_77, %106, %c1_78, %c0_79, %c0_80], %109 {strides = array<i32>} : memref<1x8x2x8x8xbf16, #tpu.memory_space<vmem>>, vector<1x1x1x8x8xbf16>,
    %110 = vector.extract_strided_slice %74 {offsets = [40, 0], sizes = [8, 8], strides = [1, 1]} : vector<64x8xbf16> to vector<8x8xbf16>
    %c8_i32_81 = arith.constant 8 : i32
    %111 = arith.muli %c0_i32, %c8_i32_81 : i32
    %c5_i32_82 = arith.constant 5 : i32
    %112 = arith.addi %111, %c5_i32_82 : i32
    %c0_83 = arith.constant 0 : index
    %113 = arith.index_cast %112 : i32 to index
    %c1_84 = arith.constant 1 : index
    %c0_85 = arith.constant 0 : index
    %c0_86 = arith.constant 0 : index
    %114 = vector.load %arg4[%c0_83, %113, %c1_84, %c0_85, %c0_86] : memref<1x8x2x8x8xbf16, #tpu.memory_space<vmem>>, vector<1x1x1x8x8xbf16>
    %115 = vector.shape_cast %114 : vector<1x1x1x8x8xbf16> to vector<8x8xbf16>
    %116 = vector.shape_cast %110 : vector<8x8xbf16> to vector<1x1x1x8x8xbf16>
    tpu.vector_store %arg4[%c0_83, %113, %c1_84, %c0_85, %c0_86], %116 {strides = array<i32>} : memref<1x8x2x8x8xbf16, #tpu.memory_space<vmem>>, vector<1x1x1x8x8xbf16>,
    %117 = vector.extract_strided_slice %74 {offsets = [48, 0], sizes = [8, 8], strides = [1, 1]} : vector<64x8xbf16> to vector<8x8xbf16>
    %c8_i32_87 = arith.constant 8 : i32
    %118 = arith.muli %c0_i32, %c8_i32_87 : i32
    %c6_i32_88 = arith.constant 6 : i32
    %119 = arith.addi %118, %c6_i32_88 : i32
    %c0_89 = arith.constant 0 : index
    %120 = arith.index_cast %119 : i32 to index
    %c1_90 = arith.constant 1 : index
    %c0_91 = arith.constant 0 : index
    %c0_92 = arith.constant 0 : index
    %121 = vector.load %arg4[%c0_89, %120, %c1_90, %c0_91, %c0_92] : memref<1x8x2x8x8xbf16, #tpu.memory_space<vmem>>, vector<1x1x1x8x8xbf16>
    %122 = vector.shape_cast %121 : vector<1x1x1x8x8xbf16> to vector<8x8xbf16>
    %123 = vector.shape_cast %117 : vector<8x8xbf16> to vector<1x1x1x8x8xbf16>
    tpu.vector_store %arg4[%c0_89, %120, %c1_90, %c0_91, %c0_92], %123 {strides = array<i32>} : memref<1x8x2x8x8xbf16, #tpu.memory_space<vmem>>, vector<1x1x1x8x8xbf16>,
    %124 = vector.extract_strided_slice %74 {offsets = [56, 0], sizes = [8, 8], strides = [1, 1]} : vector<64x8xbf16> to vector<8x8xbf16>
    %c8_i32_93 = arith.constant 8 : i32
    %125 = arith.muli %c0_i32, %c8_i32_93 : i32
    %c7_i32_94 = arith.constant 7 : i32
    %126 = arith.addi %125, %c7_i32_94 : i32
    %c0_95 = arith.constant 0 : index
    %127 = arith.index_cast %126 : i32 to index
    %c1_96 = arith.constant 1 : index
    %c0_97 = arith.constant 0 : index
    %c0_98 = arith.constant 0 : index
    %128 = vector.load %arg4[%c0_95, %127, %c1_96, %c0_97, %c0_98] : memref<1x8x2x8x8xbf16, #tpu.memory_space<vmem>>, vector<1x1x1x8x8xbf16>
    %129 = vector.shape_cast %128 : vector<1x1x1x8x8xbf16> to vector<8x8xbf16>
    %130 = vector.shape_cast %124 : vector<8x8xbf16> to vector<1x1x1x8x8xbf16>
    tpu.vector_store %arg4[%c0_95, %127, %c1_96, %c0_97, %c0_98], %130 {strides = array<i32>} : memref<1x8x2x8x8xbf16, #tpu.memory_space<vmem>>, vector<1x1x1x8x8xbf16>,
    %c1_i32_99 = arith.constant 1 : i32
    return
  }
  func.func @transform_0(%arg0: i32) -> (i32, i32, i32) {
    %c0_i32 = arith.constant 0 : i32
    %c0_i32_0 = arith.constant 0 : i32
    %c0_i32_1 = arith.constant 0 : i32
    return %arg0, %c0_i32, %c0_i32_0 : i32, i32, i32
  }
  func.func @transform_1(%arg0: i32) -> (i32, i32, i32) {
    %c0_i32 = arith.constant 0 : i32
    %c0_i32_0 = arith.constant 0 : i32
    %c0_i32_1 = arith.constant 0 : i32
    %c0_i32_2 = arith.constant 0 : i32
    return %c0_i32, %c0_i32_0, %c0_i32_1 : i32, i32, i32
  }
  func.func @transform_2(%arg0: i32) -> (i32, i32) {
    %c0_i32 = arith.constant 0 : i32
    %c0_i32_0 = arith.constant 0 : i32
    %c0_i32_1 = arith.constant 0 : i32
    return %c0_i32, %c0_i32_0 : i32, i32
  }
  func.func @transform_3(%arg0: i32) -> (i32, i32, i32, i32, i32) {
    %c0_i32 = arith.constant 0 : i32
    %c0_i32_0 = arith.constant 0 : i32
    %c0_i32_1 = arith.constant 0 : i32
    %c0_i32_2 = arith.constant 0 : i32
    %c0_i32_3 = arith.constant 0 : i32
    return %arg0, %c0_i32, %c0_i32_0, %c0_i32_1, %c0_i32_2 : i32, i32, i32, i32, i32
  }
}

module attributes {stable_mosaic.version = 11 : i64} {
  func.func @kernel(%arg0: i32, %arg1: memref<1x16x16x4xbf16, #tpu.memory_space<vmem>>, %arg2: memref<1x16x16x4xbf16, #tpu.memory_space<vmem>>, %arg3: memref<3x3x4x128xbf16, #tpu.memory_space<vmem>>, %arg4: memref<3x3x4x128xbf16, #tpu.memory_space<vmem>>, %arg5: memref<1x128xf32, #tpu.memory_space<vmem>>, %arg6: memref<1x14x16x128xbf16, #tpu.memory_space<vmem>>, %arg7: memref<1x1x128xf32, #tpu.memory_space<vmem>>, %arg8: memref<1x1x128xf32, #tpu.memory_space<vmem>>) attributes {dimension_semantics = [#tpu.dimension_semantics<parallel>], iteration_bounds = array<i64: 2>, scalar_prefetch = 0 : i64, scratch_operands = 0 : i64, tpu.core_type = #tpu.core_type<tc>, window_params = [{transform_indices = @transform_0, window_bounds = array<i64: 1, 16, 16, 4>}, {transform_indices = @transform_1, window_bounds = array<i64: 1, 16, 16, 4>}, {pipeline_mode = #tpu.pipeline_mode<synchronous>, transform_indices = @transform_2, window_bounds = array<i64: 3, 3, 4, 128>}, {pipeline_mode = #tpu.pipeline_mode<synchronous>, transform_indices = @transform_3, window_bounds = array<i64: 3, 3, 4, 128>}, {pipeline_mode = #tpu.pipeline_mode<synchronous>, transform_indices = @transform_4, window_bounds = array<i64: 1, 128>}, {transform_indices = @transform_5, window_bounds = array<i64: 1, 14, 16, 128>}, {transform_indices = @transform_6, window_bounds = array<i64: 1, 1, 128>}, {transform_indices = @transform_7, window_bounds = array<i64: 1, 1, 128>}]} {
    %cst = arith.constant 0.000000e+00 : f32
    %0 = vector.broadcast %cst : f32 to vector<1x128xf32>
    %c0_i32 = arith.constant 0 : i32
    %c14_i32 = arith.constant 14 : i32
    %1 = arith.muli %c0_i32, %c14_i32 : i32
    %c0 = arith.constant 0 : index
    %c0_0 = arith.constant 0 : index
    %2 = vector.load %arg5[%c0, %c0_0] : memref<1x128xf32, #tpu.memory_space<vmem>>, vector<1x128xf32>
    %3 = vector.shape_cast %2 : vector<1x128xf32> to vector<1x128xf32>
    %4 = vector.broadcast %3 : vector<1x128xf32> to vector<222x128xf32>
    %c0_i32_1 = arith.constant 0 : i32
    %5 = arith.addi %1, %c0_i32_1 : i32
    %c0_2 = arith.constant 0 : index
    %6 = arith.index_cast %5 : i32 to index
    %c0_3 = arith.constant 0 : index
    %c0_4 = arith.constant 0 : index
    %7 = vector.load %arg1[%c0_2, %6, %c0_3, %c0_4] : memref<1x16x16x4xbf16, #tpu.memory_space<vmem>>, vector<1x14x16x4xbf16>
    %8 = vector.shape_cast %7 : vector<1x14x16x4xbf16> to vector<14x16x4xbf16>
    %9 = vector.shape_cast %8 : vector<14x16x4xbf16> to vector<224x4xbf16>
    %c0_i32_5 = arith.constant 0 : i32
    %10 = arith.addi %1, %c0_i32_5 : i32
    %c0_6 = arith.constant 0 : index
    %11 = arith.index_cast %10 : i32 to index
    %c0_7 = arith.constant 0 : index
    %c0_8 = arith.constant 0 : index
    %12 = vector.load %arg2[%c0_6, %11, %c0_7, %c0_8] : memref<1x16x16x4xbf16, #tpu.memory_space<vmem>>, vector<1x14x16x4xbf16>
    %13 = vector.shape_cast %12 : vector<1x14x16x4xbf16> to vector<14x16x4xbf16>
    %14 = vector.shape_cast %13 : vector<14x16x4xbf16> to vector<224x4xbf16>
    %15 = vector.extract_strided_slice %9 {offsets = [0, 0], sizes = [222, 4], strides = [1, 1]} : vector<224x4xbf16> to vector<222x4xbf16>
    %c0_9 = arith.constant 0 : index
    %c0_10 = arith.constant 0 : index
    %c0_11 = arith.constant 0 : index
    %c0_12 = arith.constant 0 : index
    %16 = vector.load %arg3[%c0_9, %c0_10, %c0_11, %c0_12] : memref<3x3x4x128xbf16, #tpu.memory_space<vmem>>, vector<1x1x4x128xbf16>
    %17 = vector.shape_cast %16 : vector<1x1x4x128xbf16> to vector<4x128xbf16>
    %cst_13 = arith.constant dense<0.000000e+00> : vector<222x128xf32>
    %18 = tpu.matmul %15, %17, %cst_13 {dimension_numbers = #tpu.dot_dimension_numbers<[1], [0], [0], [1], [0, 0, 1, 1], [], []>} : vector<222x4xbf16>, vector<4x128xbf16>, vector<222x128xf32> -> vector<222x128xf32>
    %19 = arith.addf %4, %18 : vector<222x128xf32>
    %20 = vector.extract_strided_slice %14 {offsets = [0, 0], sizes = [222, 4], strides = [1, 1]} : vector<224x4xbf16> to vector<222x4xbf16>
    %c0_14 = arith.constant 0 : index
    %c0_15 = arith.constant 0 : index
    %c0_16 = arith.constant 0 : index
    %c0_17 = arith.constant 0 : index
    %21 = vector.load %arg4[%c0_14, %c0_15, %c0_16, %c0_17] : memref<3x3x4x128xbf16, #tpu.memory_space<vmem>>, vector<1x1x4x128xbf16>
    %22 = vector.shape_cast %21 : vector<1x1x4x128xbf16> to vector<4x128xbf16>
    %cst_18 = arith.constant dense<0.000000e+00> : vector<222x128xf32>
    %23 = tpu.matmul %20, %22, %cst_18 {dimension_numbers = #tpu.dot_dimension_numbers<[1], [0], [0], [1], [0, 0, 1, 1], [], []>} : vector<222x4xbf16>, vector<4x128xbf16>, vector<222x128xf32> -> vector<222x128xf32>
    %24 = arith.addf %19, %23 : vector<222x128xf32>
    %25 = vector.extract_strided_slice %9 {offsets = [1, 0], sizes = [222, 4], strides = [1, 1]} : vector<224x4xbf16> to vector<222x4xbf16>
    %c0_19 = arith.constant 0 : index
    %c1 = arith.constant 1 : index
    %c0_20 = arith.constant 0 : index
    %c0_21 = arith.constant 0 : index
    %26 = vector.load %arg3[%c0_19, %c1, %c0_20, %c0_21] : memref<3x3x4x128xbf16, #tpu.memory_space<vmem>>, vector<1x1x4x128xbf16>
    %27 = vector.shape_cast %26 : vector<1x1x4x128xbf16> to vector<4x128xbf16>
    %cst_22 = arith.constant dense<0.000000e+00> : vector<222x128xf32>
    %28 = tpu.matmul %25, %27, %cst_22 {dimension_numbers = #tpu.dot_dimension_numbers<[1], [0], [0], [1], [0, 0, 1, 1], [], []>} : vector<222x4xbf16>, vector<4x128xbf16>, vector<222x128xf32> -> vector<222x128xf32>
    %29 = arith.addf %24, %28 : vector<222x128xf32>
    %30 = vector.extract_strided_slice %14 {offsets = [1, 0], sizes = [222, 4], strides = [1, 1]} : vector<224x4xbf16> to vector<222x4xbf16>
    %c0_23 = arith.constant 0 : index
    %c1_24 = arith.constant 1 : index
    %c0_25 = arith.constant 0 : index
    %c0_26 = arith.constant 0 : index
    %31 = vector.load %arg4[%c0_23, %c1_24, %c0_25, %c0_26] : memref<3x3x4x128xbf16, #tpu.memory_space<vmem>>, vector<1x1x4x128xbf16>
    %32 = vector.shape_cast %31 : vector<1x1x4x128xbf16> to vector<4x128xbf16>
    %cst_27 = arith.constant dense<0.000000e+00> : vector<222x128xf32>
    %33 = tpu.matmul %30, %32, %cst_27 {dimension_numbers = #tpu.dot_dimension_numbers<[1], [0], [0], [1], [0, 0, 1, 1], [], []>} : vector<222x4xbf16>, vector<4x128xbf16>, vector<222x128xf32> -> vector<222x128xf32>
    %34 = arith.addf %29, %33 : vector<222x128xf32>
    %35 = vector.extract_strided_slice %9 {offsets = [2, 0], sizes = [222, 4], strides = [1, 1]} : vector<224x4xbf16> to vector<222x4xbf16>
    %c0_28 = arith.constant 0 : index
    %c2 = arith.constant 2 : index
    %c0_29 = arith.constant 0 : index
    %c0_30 = arith.constant 0 : index
    %36 = vector.load %arg3[%c0_28, %c2, %c0_29, %c0_30] : memref<3x3x4x128xbf16, #tpu.memory_space<vmem>>, vector<1x1x4x128xbf16>
    %37 = vector.shape_cast %36 : vector<1x1x4x128xbf16> to vector<4x128xbf16>
    %cst_31 = arith.constant dense<0.000000e+00> : vector<222x128xf32>
    %38 = tpu.matmul %35, %37, %cst_31 {dimension_numbers = #tpu.dot_dimension_numbers<[1], [0], [0], [1], [0, 0, 1, 1], [], []>} : vector<222x4xbf16>, vector<4x128xbf16>, vector<222x128xf32> -> vector<222x128xf32>
    %39 = arith.addf %34, %38 : vector<222x128xf32>
    %40 = vector.extract_strided_slice %14 {offsets = [2, 0], sizes = [222, 4], strides = [1, 1]} : vector<224x4xbf16> to vector<222x4xbf16>
    %c0_32 = arith.constant 0 : index
    %c2_33 = arith.constant 2 : index
    %c0_34 = arith.constant 0 : index
    %c0_35 = arith.constant 0 : index
    %41 = vector.load %arg4[%c0_32, %c2_33, %c0_34, %c0_35] : memref<3x3x4x128xbf16, #tpu.memory_space<vmem>>, vector<1x1x4x128xbf16>
    %42 = vector.shape_cast %41 : vector<1x1x4x128xbf16> to vector<4x128xbf16>
    %cst_36 = arith.constant dense<0.000000e+00> : vector<222x128xf32>
    %43 = tpu.matmul %40, %42, %cst_36 {dimension_numbers = #tpu.dot_dimension_numbers<[1], [0], [0], [1], [0, 0, 1, 1], [], []>} : vector<222x4xbf16>, vector<4x128xbf16>, vector<222x128xf32> -> vector<222x128xf32>
    %44 = arith.addf %39, %43 : vector<222x128xf32>
    %c1_i32 = arith.constant 1 : i32
    %45 = arith.addi %1, %c1_i32 : i32
    %c0_37 = arith.constant 0 : index
    %46 = arith.index_cast %45 : i32 to index
    %c0_38 = arith.constant 0 : index
    %c0_39 = arith.constant 0 : index
    %47 = vector.load %arg1[%c0_37, %46, %c0_38, %c0_39] : memref<1x16x16x4xbf16, #tpu.memory_space<vmem>>, vector<1x14x16x4xbf16>
    %48 = vector.shape_cast %47 : vector<1x14x16x4xbf16> to vector<14x16x4xbf16>
    %49 = vector.shape_cast %48 : vector<14x16x4xbf16> to vector<224x4xbf16>
    %c1_i32_40 = arith.constant 1 : i32
    %50 = arith.addi %1, %c1_i32_40 : i32
    %c0_41 = arith.constant 0 : index
    %51 = arith.index_cast %50 : i32 to index
    %c0_42 = arith.constant 0 : index
    %c0_43 = arith.constant 0 : index
    %52 = vector.load %arg2[%c0_41, %51, %c0_42, %c0_43] : memref<1x16x16x4xbf16, #tpu.memory_space<vmem>>, vector<1x14x16x4xbf16>
    %53 = vector.shape_cast %52 : vector<1x14x16x4xbf16> to vector<14x16x4xbf16>
    %54 = vector.shape_cast %53 : vector<14x16x4xbf16> to vector<224x4xbf16>
    %55 = vector.extract_strided_slice %49 {offsets = [0, 0], sizes = [222, 4], strides = [1, 1]} : vector<224x4xbf16> to vector<222x4xbf16>
    %c1_44 = arith.constant 1 : index
    %c0_45 = arith.constant 0 : index
    %c0_46 = arith.constant 0 : index
    %c0_47 = arith.constant 0 : index
    %56 = vector.load %arg3[%c1_44, %c0_45, %c0_46, %c0_47] : memref<3x3x4x128xbf16, #tpu.memory_space<vmem>>, vector<1x1x4x128xbf16>
    %57 = vector.shape_cast %56 : vector<1x1x4x128xbf16> to vector<4x128xbf16>
    %cst_48 = arith.constant dense<0.000000e+00> : vector<222x128xf32>
    %58 = tpu.matmul %55, %57, %cst_48 {dimension_numbers = #tpu.dot_dimension_numbers<[1], [0], [0], [1], [0, 0, 1, 1], [], []>} : vector<222x4xbf16>, vector<4x128xbf16>, vector<222x128xf32> -> vector<222x128xf32>
    %59 = arith.addf %44, %58 : vector<222x128xf32>
    %60 = vector.extract_strided_slice %54 {offsets = [0, 0], sizes = [222, 4], strides = [1, 1]} : vector<224x4xbf16> to vector<222x4xbf16>
    %c1_49 = arith.constant 1 : index
    %c0_50 = arith.constant 0 : index
    %c0_51 = arith.constant 0 : index
    %c0_52 = arith.constant 0 : index
    %61 = vector.load %arg4[%c1_49, %c0_50, %c0_51, %c0_52] : memref<3x3x4x128xbf16, #tpu.memory_space<vmem>>, vector<1x1x4x128xbf16>
    %62 = vector.shape_cast %61 : vector<1x1x4x128xbf16> to vector<4x128xbf16>
    %cst_53 = arith.constant dense<0.000000e+00> : vector<222x128xf32>
    %63 = tpu.matmul %60, %62, %cst_53 {dimension_numbers = #tpu.dot_dimension_numbers<[1], [0], [0], [1], [0, 0, 1, 1], [], []>} : vector<222x4xbf16>, vector<4x128xbf16>, vector<222x128xf32> -> vector<222x128xf32>
    %64 = arith.addf %59, %63 : vector<222x128xf32>
    %65 = vector.extract_strided_slice %49 {offsets = [1, 0], sizes = [222, 4], strides = [1, 1]} : vector<224x4xbf16> to vector<222x4xbf16>
    %c1_54 = arith.constant 1 : index
    %c1_55 = arith.constant 1 : index
    %c0_56 = arith.constant 0 : index
    %c0_57 = arith.constant 0 : index
    %66 = vector.load %arg3[%c1_54, %c1_55, %c0_56, %c0_57] : memref<3x3x4x128xbf16, #tpu.memory_space<vmem>>, vector<1x1x4x128xbf16>
    %67 = vector.shape_cast %66 : vector<1x1x4x128xbf16> to vector<4x128xbf16>
    %cst_58 = arith.constant dense<0.000000e+00> : vector<222x128xf32>
    %68 = tpu.matmul %65, %67, %cst_58 {dimension_numbers = #tpu.dot_dimension_numbers<[1], [0], [0], [1], [0, 0, 1, 1], [], []>} : vector<222x4xbf16>, vector<4x128xbf16>, vector<222x128xf32> -> vector<222x128xf32>
    %69 = arith.addf %64, %68 : vector<222x128xf32>
    %70 = vector.extract_strided_slice %54 {offsets = [1, 0], sizes = [222, 4], strides = [1, 1]} : vector<224x4xbf16> to vector<222x4xbf16>
    %c1_59 = arith.constant 1 : index
    %c1_60 = arith.constant 1 : index
    %c0_61 = arith.constant 0 : index
    %c0_62 = arith.constant 0 : index
    %71 = vector.load %arg4[%c1_59, %c1_60, %c0_61, %c0_62] : memref<3x3x4x128xbf16, #tpu.memory_space<vmem>>, vector<1x1x4x128xbf16>
    %72 = vector.shape_cast %71 : vector<1x1x4x128xbf16> to vector<4x128xbf16>
    %cst_63 = arith.constant dense<0.000000e+00> : vector<222x128xf32>
    %73 = tpu.matmul %70, %72, %cst_63 {dimension_numbers = #tpu.dot_dimension_numbers<[1], [0], [0], [1], [0, 0, 1, 1], [], []>} : vector<222x4xbf16>, vector<4x128xbf16>, vector<222x128xf32> -> vector<222x128xf32>
    %74 = arith.addf %69, %73 : vector<222x128xf32>
    %75 = vector.extract_strided_slice %49 {offsets = [2, 0], sizes = [222, 4], strides = [1, 1]} : vector<224x4xbf16> to vector<222x4xbf16>
    %c1_64 = arith.constant 1 : index
    %c2_65 = arith.constant 2 : index
    %c0_66 = arith.constant 0 : index
    %c0_67 = arith.constant 0 : index
    %76 = vector.load %arg3[%c1_64, %c2_65, %c0_66, %c0_67] : memref<3x3x4x128xbf16, #tpu.memory_space<vmem>>, vector<1x1x4x128xbf16>
    %77 = vector.shape_cast %76 : vector<1x1x4x128xbf16> to vector<4x128xbf16>
    %cst_68 = arith.constant dense<0.000000e+00> : vector<222x128xf32>
    %78 = tpu.matmul %75, %77, %cst_68 {dimension_numbers = #tpu.dot_dimension_numbers<[1], [0], [0], [1], [0, 0, 1, 1], [], []>} : vector<222x4xbf16>, vector<4x128xbf16>, vector<222x128xf32> -> vector<222x128xf32>
    %79 = arith.addf %74, %78 : vector<222x128xf32>
    %80 = vector.extract_strided_slice %54 {offsets = [2, 0], sizes = [222, 4], strides = [1, 1]} : vector<224x4xbf16> to vector<222x4xbf16>
    %c1_69 = arith.constant 1 : index
    %c2_70 = arith.constant 2 : index
    %c0_71 = arith.constant 0 : index
    %c0_72 = arith.constant 0 : index
    %81 = vector.load %arg4[%c1_69, %c2_70, %c0_71, %c0_72] : memref<3x3x4x128xbf16, #tpu.memory_space<vmem>>, vector<1x1x4x128xbf16>
    %82 = vector.shape_cast %81 : vector<1x1x4x128xbf16> to vector<4x128xbf16>
    %cst_73 = arith.constant dense<0.000000e+00> : vector<222x128xf32>
    %83 = tpu.matmul %80, %82, %cst_73 {dimension_numbers = #tpu.dot_dimension_numbers<[1], [0], [0], [1], [0, 0, 1, 1], [], []>} : vector<222x4xbf16>, vector<4x128xbf16>, vector<222x128xf32> -> vector<222x128xf32>
    %84 = arith.addf %79, %83 : vector<222x128xf32>
    %c2_i32 = arith.constant 2 : i32
    %85 = arith.addi %1, %c2_i32 : i32
    %c0_74 = arith.constant 0 : index
    %86 = arith.index_cast %85 : i32 to index
    %c0_75 = arith.constant 0 : index
    %c0_76 = arith.constant 0 : index
    %87 = vector.load %arg1[%c0_74, %86, %c0_75, %c0_76] : memref<1x16x16x4xbf16, #tpu.memory_space<vmem>>, vector<1x14x16x4xbf16>
    %88 = vector.shape_cast %87 : vector<1x14x16x4xbf16> to vector<14x16x4xbf16>
    %89 = vector.shape_cast %88 : vector<14x16x4xbf16> to vector<224x4xbf16>
    %c2_i32_77 = arith.constant 2 : i32
    %90 = arith.addi %1, %c2_i32_77 : i32
    %c0_78 = arith.constant 0 : index
    %91 = arith.index_cast %90 : i32 to index
    %c0_79 = arith.constant 0 : index
    %c0_80 = arith.constant 0 : index
    %92 = vector.load %arg2[%c0_78, %91, %c0_79, %c0_80] : memref<1x16x16x4xbf16, #tpu.memory_space<vmem>>, vector<1x14x16x4xbf16>
    %93 = vector.shape_cast %92 : vector<1x14x16x4xbf16> to vector<14x16x4xbf16>
    %94 = vector.shape_cast %93 : vector<14x16x4xbf16> to vector<224x4xbf16>
    %95 = vector.extract_strided_slice %89 {offsets = [0, 0], sizes = [222, 4], strides = [1, 1]} : vector<224x4xbf16> to vector<222x4xbf16>
    %c2_81 = arith.constant 2 : index
    %c0_82 = arith.constant 0 : index
    %c0_83 = arith.constant 0 : index
    %c0_84 = arith.constant 0 : index
    %96 = vector.load %arg3[%c2_81, %c0_82, %c0_83, %c0_84] : memref<3x3x4x128xbf16, #tpu.memory_space<vmem>>, vector<1x1x4x128xbf16>
    %97 = vector.shape_cast %96 : vector<1x1x4x128xbf16> to vector<4x128xbf16>
    %cst_85 = arith.constant dense<0.000000e+00> : vector<222x128xf32>
    %98 = tpu.matmul %95, %97, %cst_85 {dimension_numbers = #tpu.dot_dimension_numbers<[1], [0], [0], [1], [0, 0, 1, 1], [], []>} : vector<222x4xbf16>, vector<4x128xbf16>, vector<222x128xf32> -> vector<222x128xf32>
    %99 = arith.addf %84, %98 : vector<222x128xf32>
    %100 = vector.extract_strided_slice %94 {offsets = [0, 0], sizes = [222, 4], strides = [1, 1]} : vector<224x4xbf16> to vector<222x4xbf16>
    %c2_86 = arith.constant 2 : index
    %c0_87 = arith.constant 0 : index
    %c0_88 = arith.constant 0 : index
    %c0_89 = arith.constant 0 : index
    %101 = vector.load %arg4[%c2_86, %c0_87, %c0_88, %c0_89] : memref<3x3x4x128xbf16, #tpu.memory_space<vmem>>, vector<1x1x4x128xbf16>
    %102 = vector.shape_cast %101 : vector<1x1x4x128xbf16> to vector<4x128xbf16>
    %cst_90 = arith.constant dense<0.000000e+00> : vector<222x128xf32>
    %103 = tpu.matmul %100, %102, %cst_90 {dimension_numbers = #tpu.dot_dimension_numbers<[1], [0], [0], [1], [0, 0, 1, 1], [], []>} : vector<222x4xbf16>, vector<4x128xbf16>, vector<222x128xf32> -> vector<222x128xf32>
    %104 = arith.addf %99, %103 : vector<222x128xf32>
    %105 = vector.extract_strided_slice %89 {offsets = [1, 0], sizes = [222, 4], strides = [1, 1]} : vector<224x4xbf16> to vector<222x4xbf16>
    %c2_91 = arith.constant 2 : index
    %c1_92 = arith.constant 1 : index
    %c0_93 = arith.constant 0 : index
    %c0_94 = arith.constant 0 : index
    %106 = vector.load %arg3[%c2_91, %c1_92, %c0_93, %c0_94] : memref<3x3x4x128xbf16, #tpu.memory_space<vmem>>, vector<1x1x4x128xbf16>
    %107 = vector.shape_cast %106 : vector<1x1x4x128xbf16> to vector<4x128xbf16>
    %cst_95 = arith.constant dense<0.000000e+00> : vector<222x128xf32>
    %108 = tpu.matmul %105, %107, %cst_95 {dimension_numbers = #tpu.dot_dimension_numbers<[1], [0], [0], [1], [0, 0, 1, 1], [], []>} : vector<222x4xbf16>, vector<4x128xbf16>, vector<222x128xf32> -> vector<222x128xf32>
    %109 = arith.addf %104, %108 : vector<222x128xf32>
    %110 = vector.extract_strided_slice %94 {offsets = [1, 0], sizes = [222, 4], strides = [1, 1]} : vector<224x4xbf16> to vector<222x4xbf16>
    %c2_96 = arith.constant 2 : index
    %c1_97 = arith.constant 1 : index
    %c0_98 = arith.constant 0 : index
    %c0_99 = arith.constant 0 : index
    %111 = vector.load %arg4[%c2_96, %c1_97, %c0_98, %c0_99] : memref<3x3x4x128xbf16, #tpu.memory_space<vmem>>, vector<1x1x4x128xbf16>
    %112 = vector.shape_cast %111 : vector<1x1x4x128xbf16> to vector<4x128xbf16>
    %cst_100 = arith.constant dense<0.000000e+00> : vector<222x128xf32>
    %113 = tpu.matmul %110, %112, %cst_100 {dimension_numbers = #tpu.dot_dimension_numbers<[1], [0], [0], [1], [0, 0, 1, 1], [], []>} : vector<222x4xbf16>, vector<4x128xbf16>, vector<222x128xf32> -> vector<222x128xf32>
    %114 = arith.addf %109, %113 : vector<222x128xf32>
    %115 = vector.extract_strided_slice %89 {offsets = [2, 0], sizes = [222, 4], strides = [1, 1]} : vector<224x4xbf16> to vector<222x4xbf16>
    %c2_101 = arith.constant 2 : index
    %c2_102 = arith.constant 2 : index
    %c0_103 = arith.constant 0 : index
    %c0_104 = arith.constant 0 : index
    %116 = vector.load %arg3[%c2_101, %c2_102, %c0_103, %c0_104] : memref<3x3x4x128xbf16, #tpu.memory_space<vmem>>, vector<1x1x4x128xbf16>
    %117 = vector.shape_cast %116 : vector<1x1x4x128xbf16> to vector<4x128xbf16>
    %cst_105 = arith.constant dense<0.000000e+00> : vector<222x128xf32>
    %118 = tpu.matmul %115, %117, %cst_105 {dimension_numbers = #tpu.dot_dimension_numbers<[1], [0], [0], [1], [0, 0, 1, 1], [], []>} : vector<222x4xbf16>, vector<4x128xbf16>, vector<222x128xf32> -> vector<222x128xf32>
    %119 = arith.addf %114, %118 : vector<222x128xf32>
    %120 = vector.extract_strided_slice %94 {offsets = [2, 0], sizes = [222, 4], strides = [1, 1]} : vector<224x4xbf16> to vector<222x4xbf16>
    %c2_106 = arith.constant 2 : index
    %c2_107 = arith.constant 2 : index
    %c0_108 = arith.constant 0 : index
    %c0_109 = arith.constant 0 : index
    %121 = vector.load %arg4[%c2_106, %c2_107, %c0_108, %c0_109] : memref<3x3x4x128xbf16, #tpu.memory_space<vmem>>, vector<1x1x4x128xbf16>
    %122 = vector.shape_cast %121 : vector<1x1x4x128xbf16> to vector<4x128xbf16>
    %cst_110 = arith.constant dense<0.000000e+00> : vector<222x128xf32>
    %123 = tpu.matmul %120, %122, %cst_110 {dimension_numbers = #tpu.dot_dimension_numbers<[1], [0], [0], [1], [0, 0, 1, 1], [], []>} : vector<222x4xbf16>, vector<4x128xbf16>, vector<222x128xf32> -> vector<222x128xf32>
    %124 = arith.addf %119, %123 : vector<222x128xf32>
    %125 = tpu.iota {dimensions = array<i32: 0>} : vector<222x1xi32>
    %c16_i32 = arith.constant 16 : i32
    %c0_i32_111 = arith.constant 0 : i32
    %126 = arith.cmpi eq, %c16_i32, %c0_i32_111 : i32
    %c1_i32_112 = arith.constant 1 : i32
    %127 = arith.select %126, %c1_i32_112, %c16_i32 : i32
    %128 = vector.broadcast %127 : i32 to vector<222x1xi32>
    %129 = arith.remsi %125, %128 : vector<222x1xi32>
    %c0_i32_113 = arith.constant 0 : i32
    %130 = vector.broadcast %c0_i32_113 : i32 to vector<222x1xi32>
    %131 = arith.cmpi ne, %129, %130 : vector<222x1xi32>
    %c0_i32_114 = arith.constant 0 : i32
    %132 = vector.broadcast %c0_i32_114 : i32 to vector<222x1xi32>
    %133 = arith.cmpi slt, %129, %132 : vector<222x1xi32>
    %c0_i32_115 = arith.constant 0 : i32
    %134 = arith.cmpi slt, %127, %c0_i32_115 : i32
    %135 = vector.broadcast %134 : i1 to vector<222x1xi1>
    %136 = vector.broadcast %135 : vector<222x1xi1> to vector<222x1xi1>
    %137 = arith.xori %133, %136 : vector<222x1xi1>
    %138 = arith.andi %137, %131 : vector<222x1xi1>
    %139 = vector.broadcast %127 : i32 to vector<222x1xi32>
    %140 = arith.addi %129, %139 : vector<222x1xi32>
    %141 = arith.select %138, %140, %129 : vector<222x1xi1>, vector<222x1xi32>
    %c14_i32_116 = arith.constant 14 : i32
    %142 = vector.broadcast %c14_i32_116 : i32 to vector<222x1xi32>
    %143 = arith.cmpi slt, %141, %142 : vector<222x1xi32>
    %cst_117 = arith.constant 0.000000e+00 : f32
    %144 = vector.shape_cast %143 : vector<222x1xi1> to vector<222x1xi1>
    %145 = vector.broadcast %144 : vector<222x1xi1> to vector<222x128xi1>
    %146 = vector.broadcast %cst_117 : f32 to vector<222x128xf32>
    %147 = arith.select %145, %124, %146 : vector<222x128xi1>, vector<222x128xf32>
    %cst_118 = arith.constant dense<0.000000e+00> : vector<128xf32>
    %148 = vector.multi_reduction <add>, %147, %cst_118 [0] : vector<222x128xf32> to vector<128xf32>
    %149 = vector.shape_cast %148 : vector<128xf32> to vector<1x128xf32>
    %150 = arith.addf %0, %149 : vector<1x128xf32>
    %151 = arith.mulf %147, %147 : vector<222x128xf32>
    %cst_119 = arith.constant dense<0.000000e+00> : vector<128xf32>
    %152 = vector.multi_reduction <add>, %151, %cst_119 [0] : vector<222x128xf32> to vector<128xf32>
    %153 = vector.shape_cast %152 : vector<128xf32> to vector<1x128xf32>
    %154 = arith.addf %0, %153 : vector<1x128xf32>
    %155 = arith.truncf %124 : vector<222x128xf32> to vector<222x128xbf16>
    %cst_120 = arith.constant 0.000000e+00 : bf16
    %156 = vector.broadcast %cst_120 : bf16 to vector<2x128xbf16>
    %157 = vector.extract_strided_slice %155 {offsets = [0, 0], sizes = [14, 128], strides = [1, 1]} : vector<222x128xbf16> to vector<14x128xbf16>
    %158 = tpu.concatenate %157, %156 in 0 : vector<14x128xbf16>, vector<2x128xbf16> -> vector<16x128xbf16>
    %c0_i32_121 = arith.constant 0 : i32
    %159 = arith.addi %1, %c0_i32_121 : i32
    %c0_122 = arith.constant 0 : index
    %160 = arith.index_cast %159 : i32 to index
    %c0_123 = arith.constant 0 : index
    %c0_124 = arith.constant 0 : index
    %161 = vector.load %arg6[%c0_122, %160, %c0_123, %c0_124] : memref<1x14x16x128xbf16, #tpu.memory_space<vmem>>, vector<1x1x16x128xbf16>
    %162 = vector.shape_cast %161 : vector<1x1x16x128xbf16> to vector<16x128xbf16>
    %163 = vector.shape_cast %158 : vector<16x128xbf16> to vector<1x1x16x128xbf16>
    tpu.vector_store %arg6[%c0_122, %160, %c0_123, %c0_124], %163 {strides = array<i32>} : memref<1x14x16x128xbf16, #tpu.memory_space<vmem>>, vector<1x1x16x128xbf16>,
    %164 = vector.extract_strided_slice %155 {offsets = [16, 0], sizes = [14, 128], strides = [1, 1]} : vector<222x128xbf16> to vector<14x128xbf16>
    %165 = tpu.concatenate %164, %156 in 0 : vector<14x128xbf16>, vector<2x128xbf16> -> vector<16x128xbf16>
    %c1_i32_125 = arith.constant 1 : i32
    %166 = arith.addi %1, %c1_i32_125 : i32
    %c0_126 = arith.constant 0 : index
    %167 = arith.index_cast %166 : i32 to index
    %c0_127 = arith.constant 0 : index
    %c0_128 = arith.constant 0 : index
    %168 = vector.load %arg6[%c0_126, %167, %c0_127, %c0_128] : memref<1x14x16x128xbf16, #tpu.memory_space<vmem>>, vector<1x1x16x128xbf16>
    %169 = vector.shape_cast %168 : vector<1x1x16x128xbf16> to vector<16x128xbf16>
    %170 = vector.shape_cast %165 : vector<16x128xbf16> to vector<1x1x16x128xbf16>
    tpu.vector_store %arg6[%c0_126, %167, %c0_127, %c0_128], %170 {strides = array<i32>} : memref<1x14x16x128xbf16, #tpu.memory_space<vmem>>, vector<1x1x16x128xbf16>,
    %171 = vector.extract_strided_slice %155 {offsets = [32, 0], sizes = [14, 128], strides = [1, 1]} : vector<222x128xbf16> to vector<14x128xbf16>
    %172 = tpu.concatenate %171, %156 in 0 : vector<14x128xbf16>, vector<2x128xbf16> -> vector<16x128xbf16>
    %c2_i32_129 = arith.constant 2 : i32
    %173 = arith.addi %1, %c2_i32_129 : i32
    %c0_130 = arith.constant 0 : index
    %174 = arith.index_cast %173 : i32 to index
    %c0_131 = arith.constant 0 : index
    %c0_132 = arith.constant 0 : index
    %175 = vector.load %arg6[%c0_130, %174, %c0_131, %c0_132] : memref<1x14x16x128xbf16, #tpu.memory_space<vmem>>, vector<1x1x16x128xbf16>
    %176 = vector.shape_cast %175 : vector<1x1x16x128xbf16> to vector<16x128xbf16>
    %177 = vector.shape_cast %172 : vector<16x128xbf16> to vector<1x1x16x128xbf16>
    tpu.vector_store %arg6[%c0_130, %174, %c0_131, %c0_132], %177 {strides = array<i32>} : memref<1x14x16x128xbf16, #tpu.memory_space<vmem>>, vector<1x1x16x128xbf16>,
    %178 = vector.extract_strided_slice %155 {offsets = [48, 0], sizes = [14, 128], strides = [1, 1]} : vector<222x128xbf16> to vector<14x128xbf16>
    %179 = tpu.concatenate %178, %156 in 0 : vector<14x128xbf16>, vector<2x128xbf16> -> vector<16x128xbf16>
    %c3_i32 = arith.constant 3 : i32
    %180 = arith.addi %1, %c3_i32 : i32
    %c0_133 = arith.constant 0 : index
    %181 = arith.index_cast %180 : i32 to index
    %c0_134 = arith.constant 0 : index
    %c0_135 = arith.constant 0 : index
    %182 = vector.load %arg6[%c0_133, %181, %c0_134, %c0_135] : memref<1x14x16x128xbf16, #tpu.memory_space<vmem>>, vector<1x1x16x128xbf16>
    %183 = vector.shape_cast %182 : vector<1x1x16x128xbf16> to vector<16x128xbf16>
    %184 = vector.shape_cast %179 : vector<16x128xbf16> to vector<1x1x16x128xbf16>
    tpu.vector_store %arg6[%c0_133, %181, %c0_134, %c0_135], %184 {strides = array<i32>} : memref<1x14x16x128xbf16, #tpu.memory_space<vmem>>, vector<1x1x16x128xbf16>,
    %185 = vector.extract_strided_slice %155 {offsets = [64, 0], sizes = [14, 128], strides = [1, 1]} : vector<222x128xbf16> to vector<14x128xbf16>
    %186 = tpu.concatenate %185, %156 in 0 : vector<14x128xbf16>, vector<2x128xbf16> -> vector<16x128xbf16>
    %c4_i32 = arith.constant 4 : i32
    %187 = arith.addi %1, %c4_i32 : i32
    %c0_136 = arith.constant 0 : index
    %188 = arith.index_cast %187 : i32 to index
    %c0_137 = arith.constant 0 : index
    %c0_138 = arith.constant 0 : index
    %189 = vector.load %arg6[%c0_136, %188, %c0_137, %c0_138] : memref<1x14x16x128xbf16, #tpu.memory_space<vmem>>, vector<1x1x16x128xbf16>
    %190 = vector.shape_cast %189 : vector<1x1x16x128xbf16> to vector<16x128xbf16>
    %191 = vector.shape_cast %186 : vector<16x128xbf16> to vector<1x1x16x128xbf16>
    tpu.vector_store %arg6[%c0_136, %188, %c0_137, %c0_138], %191 {strides = array<i32>} : memref<1x14x16x128xbf16, #tpu.memory_space<vmem>>, vector<1x1x16x128xbf16>,
    %192 = vector.extract_strided_slice %155 {offsets = [80, 0], sizes = [14, 128], strides = [1, 1]} : vector<222x128xbf16> to vector<14x128xbf16>
    %193 = tpu.concatenate %192, %156 in 0 : vector<14x128xbf16>, vector<2x128xbf16> -> vector<16x128xbf16>
    %c5_i32 = arith.constant 5 : i32
    %194 = arith.addi %1, %c5_i32 : i32
    %c0_139 = arith.constant 0 : index
    %195 = arith.index_cast %194 : i32 to index
    %c0_140 = arith.constant 0 : index
    %c0_141 = arith.constant 0 : index
    %196 = vector.load %arg6[%c0_139, %195, %c0_140, %c0_141] : memref<1x14x16x128xbf16, #tpu.memory_space<vmem>>, vector<1x1x16x128xbf16>
    %197 = vector.shape_cast %196 : vector<1x1x16x128xbf16> to vector<16x128xbf16>
    %198 = vector.shape_cast %193 : vector<16x128xbf16> to vector<1x1x16x128xbf16>
    tpu.vector_store %arg6[%c0_139, %195, %c0_140, %c0_141], %198 {strides = array<i32>} : memref<1x14x16x128xbf16, #tpu.memory_space<vmem>>, vector<1x1x16x128xbf16>,
    %199 = vector.extract_strided_slice %155 {offsets = [96, 0], sizes = [14, 128], strides = [1, 1]} : vector<222x128xbf16> to vector<14x128xbf16>
    %200 = tpu.concatenate %199, %156 in 0 : vector<14x128xbf16>, vector<2x128xbf16> -> vector<16x128xbf16>
    %c6_i32 = arith.constant 6 : i32
    %201 = arith.addi %1, %c6_i32 : i32
    %c0_142 = arith.constant 0 : index
    %202 = arith.index_cast %201 : i32 to index
    %c0_143 = arith.constant 0 : index
    %c0_144 = arith.constant 0 : index
    %203 = vector.load %arg6[%c0_142, %202, %c0_143, %c0_144] : memref<1x14x16x128xbf16, #tpu.memory_space<vmem>>, vector<1x1x16x128xbf16>
    %204 = vector.shape_cast %203 : vector<1x1x16x128xbf16> to vector<16x128xbf16>
    %205 = vector.shape_cast %200 : vector<16x128xbf16> to vector<1x1x16x128xbf16>
    tpu.vector_store %arg6[%c0_142, %202, %c0_143, %c0_144], %205 {strides = array<i32>} : memref<1x14x16x128xbf16, #tpu.memory_space<vmem>>, vector<1x1x16x128xbf16>,
    %206 = vector.extract_strided_slice %155 {offsets = [112, 0], sizes = [14, 128], strides = [1, 1]} : vector<222x128xbf16> to vector<14x128xbf16>
    %207 = tpu.concatenate %206, %156 in 0 : vector<14x128xbf16>, vector<2x128xbf16> -> vector<16x128xbf16>
    %c7_i32 = arith.constant 7 : i32
    %208 = arith.addi %1, %c7_i32 : i32
    %c0_145 = arith.constant 0 : index
    %209 = arith.index_cast %208 : i32 to index
    %c0_146 = arith.constant 0 : index
    %c0_147 = arith.constant 0 : index
    %210 = vector.load %arg6[%c0_145, %209, %c0_146, %c0_147] : memref<1x14x16x128xbf16, #tpu.memory_space<vmem>>, vector<1x1x16x128xbf16>
    %211 = vector.shape_cast %210 : vector<1x1x16x128xbf16> to vector<16x128xbf16>
    %212 = vector.shape_cast %207 : vector<16x128xbf16> to vector<1x1x16x128xbf16>
    tpu.vector_store %arg6[%c0_145, %209, %c0_146, %c0_147], %212 {strides = array<i32>} : memref<1x14x16x128xbf16, #tpu.memory_space<vmem>>, vector<1x1x16x128xbf16>,
    %213 = vector.extract_strided_slice %155 {offsets = [128, 0], sizes = [14, 128], strides = [1, 1]} : vector<222x128xbf16> to vector<14x128xbf16>
    %214 = tpu.concatenate %213, %156 in 0 : vector<14x128xbf16>, vector<2x128xbf16> -> vector<16x128xbf16>
    %c8_i32 = arith.constant 8 : i32
    %215 = arith.addi %1, %c8_i32 : i32
    %c0_148 = arith.constant 0 : index
    %216 = arith.index_cast %215 : i32 to index
    %c0_149 = arith.constant 0 : index
    %c0_150 = arith.constant 0 : index
    %217 = vector.load %arg6[%c0_148, %216, %c0_149, %c0_150] : memref<1x14x16x128xbf16, #tpu.memory_space<vmem>>, vector<1x1x16x128xbf16>
    %218 = vector.shape_cast %217 : vector<1x1x16x128xbf16> to vector<16x128xbf16>
    %219 = vector.shape_cast %214 : vector<16x128xbf16> to vector<1x1x16x128xbf16>
    tpu.vector_store %arg6[%c0_148, %216, %c0_149, %c0_150], %219 {strides = array<i32>} : memref<1x14x16x128xbf16, #tpu.memory_space<vmem>>, vector<1x1x16x128xbf16>,
    %220 = vector.extract_strided_slice %155 {offsets = [144, 0], sizes = [14, 128], strides = [1, 1]} : vector<222x128xbf16> to vector<14x128xbf16>
    %221 = tpu.concatenate %220, %156 in 0 : vector<14x128xbf16>, vector<2x128xbf16> -> vector<16x128xbf16>
    %c9_i32 = arith.constant 9 : i32
    %222 = arith.addi %1, %c9_i32 : i32
    %c0_151 = arith.constant 0 : index
    %223 = arith.index_cast %222 : i32 to index
    %c0_152 = arith.constant 0 : index
    %c0_153 = arith.constant 0 : index
    %224 = vector.load %arg6[%c0_151, %223, %c0_152, %c0_153] : memref<1x14x16x128xbf16, #tpu.memory_space<vmem>>, vector<1x1x16x128xbf16>
    %225 = vector.shape_cast %224 : vector<1x1x16x128xbf16> to vector<16x128xbf16>
    %226 = vector.shape_cast %221 : vector<16x128xbf16> to vector<1x1x16x128xbf16>
    tpu.vector_store %arg6[%c0_151, %223, %c0_152, %c0_153], %226 {strides = array<i32>} : memref<1x14x16x128xbf16, #tpu.memory_space<vmem>>, vector<1x1x16x128xbf16>,
    %227 = vector.extract_strided_slice %155 {offsets = [160, 0], sizes = [14, 128], strides = [1, 1]} : vector<222x128xbf16> to vector<14x128xbf16>
    %228 = tpu.concatenate %227, %156 in 0 : vector<14x128xbf16>, vector<2x128xbf16> -> vector<16x128xbf16>
    %c10_i32 = arith.constant 10 : i32
    %229 = arith.addi %1, %c10_i32 : i32
    %c0_154 = arith.constant 0 : index
    %230 = arith.index_cast %229 : i32 to index
    %c0_155 = arith.constant 0 : index
    %c0_156 = arith.constant 0 : index
    %231 = vector.load %arg6[%c0_154, %230, %c0_155, %c0_156] : memref<1x14x16x128xbf16, #tpu.memory_space<vmem>>, vector<1x1x16x128xbf16>
    %232 = vector.shape_cast %231 : vector<1x1x16x128xbf16> to vector<16x128xbf16>
    %233 = vector.shape_cast %228 : vector<16x128xbf16> to vector<1x1x16x128xbf16>
    tpu.vector_store %arg6[%c0_154, %230, %c0_155, %c0_156], %233 {strides = array<i32>} : memref<1x14x16x128xbf16, #tpu.memory_space<vmem>>, vector<1x1x16x128xbf16>,
    %234 = vector.extract_strided_slice %155 {offsets = [176, 0], sizes = [14, 128], strides = [1, 1]} : vector<222x128xbf16> to vector<14x128xbf16>
    %235 = tpu.concatenate %234, %156 in 0 : vector<14x128xbf16>, vector<2x128xbf16> -> vector<16x128xbf16>
    %c11_i32 = arith.constant 11 : i32
    %236 = arith.addi %1, %c11_i32 : i32
    %c0_157 = arith.constant 0 : index
    %237 = arith.index_cast %236 : i32 to index
    %c0_158 = arith.constant 0 : index
    %c0_159 = arith.constant 0 : index
    %238 = vector.load %arg6[%c0_157, %237, %c0_158, %c0_159] : memref<1x14x16x128xbf16, #tpu.memory_space<vmem>>, vector<1x1x16x128xbf16>
    %239 = vector.shape_cast %238 : vector<1x1x16x128xbf16> to vector<16x128xbf16>
    %240 = vector.shape_cast %235 : vector<16x128xbf16> to vector<1x1x16x128xbf16>
    tpu.vector_store %arg6[%c0_157, %237, %c0_158, %c0_159], %240 {strides = array<i32>} : memref<1x14x16x128xbf16, #tpu.memory_space<vmem>>, vector<1x1x16x128xbf16>,
    %241 = vector.extract_strided_slice %155 {offsets = [192, 0], sizes = [14, 128], strides = [1, 1]} : vector<222x128xbf16> to vector<14x128xbf16>
    %242 = tpu.concatenate %241, %156 in 0 : vector<14x128xbf16>, vector<2x128xbf16> -> vector<16x128xbf16>
    %c12_i32 = arith.constant 12 : i32
    %243 = arith.addi %1, %c12_i32 : i32
    %c0_160 = arith.constant 0 : index
    %244 = arith.index_cast %243 : i32 to index
    %c0_161 = arith.constant 0 : index
    %c0_162 = arith.constant 0 : index
    %245 = vector.load %arg6[%c0_160, %244, %c0_161, %c0_162] : memref<1x14x16x128xbf16, #tpu.memory_space<vmem>>, vector<1x1x16x128xbf16>
    %246 = vector.shape_cast %245 : vector<1x1x16x128xbf16> to vector<16x128xbf16>
    %247 = vector.shape_cast %242 : vector<16x128xbf16> to vector<1x1x16x128xbf16>
    tpu.vector_store %arg6[%c0_160, %244, %c0_161, %c0_162], %247 {strides = array<i32>} : memref<1x14x16x128xbf16, #tpu.memory_space<vmem>>, vector<1x1x16x128xbf16>,
    %248 = vector.extract_strided_slice %155 {offsets = [208, 0], sizes = [14, 128], strides = [1, 1]} : vector<222x128xbf16> to vector<14x128xbf16>
    %249 = tpu.concatenate %248, %156 in 0 : vector<14x128xbf16>, vector<2x128xbf16> -> vector<16x128xbf16>
    %c13_i32 = arith.constant 13 : i32
    %250 = arith.addi %1, %c13_i32 : i32
    %c0_163 = arith.constant 0 : index
    %251 = arith.index_cast %250 : i32 to index
    %c0_164 = arith.constant 0 : index
    %c0_165 = arith.constant 0 : index
    %252 = vector.load %arg6[%c0_163, %251, %c0_164, %c0_165] : memref<1x14x16x128xbf16, #tpu.memory_space<vmem>>, vector<1x1x16x128xbf16>
    %253 = vector.shape_cast %252 : vector<1x1x16x128xbf16> to vector<16x128xbf16>
    %254 = vector.shape_cast %249 : vector<16x128xbf16> to vector<1x1x16x128xbf16>
    tpu.vector_store %arg6[%c0_163, %251, %c0_164, %c0_165], %254 {strides = array<i32>} : memref<1x14x16x128xbf16, #tpu.memory_space<vmem>>, vector<1x1x16x128xbf16>,
    %c1_i32_166 = arith.constant 1 : i32
    %c0_167 = arith.constant 0 : index
    %c0_168 = arith.constant 0 : index
    %c0_169 = arith.constant 0 : index
    %255 = vector.load %arg7[%c0_167, %c0_168, %c0_169] : memref<1x1x128xf32, #tpu.memory_space<vmem>>, vector<1x1x128xf32>
    %256 = vector.shape_cast %255 : vector<1x1x128xf32> to vector<1x128xf32>
    %257 = vector.shape_cast %150 : vector<1x128xf32> to vector<1x1x128xf32>
    tpu.vector_store %arg7[%c0_167, %c0_168, %c0_169], %257 {strides = array<i32>} : memref<1x1x128xf32, #tpu.memory_space<vmem>>, vector<1x1x128xf32>,
    %c0_170 = arith.constant 0 : index
    %c0_171 = arith.constant 0 : index
    %c0_172 = arith.constant 0 : index
    %258 = vector.load %arg8[%c0_170, %c0_171, %c0_172] : memref<1x1x128xf32, #tpu.memory_space<vmem>>, vector<1x1x128xf32>
    %259 = vector.shape_cast %258 : vector<1x1x128xf32> to vector<1x128xf32>
    %260 = vector.shape_cast %154 : vector<1x128xf32> to vector<1x1x128xf32>
    tpu.vector_store %arg8[%c0_170, %c0_171, %c0_172], %260 {strides = array<i32>} : memref<1x1x128xf32, #tpu.memory_space<vmem>>, vector<1x1x128xf32>,
    return
  }
  func.func @transform_0(%arg0: i32) -> (i32, i32, i32, i32) {
    %c0_i32 = arith.constant 0 : i32
    %c0_i32_0 = arith.constant 0 : i32
    %c0_i32_1 = arith.constant 0 : i32
    %c0_i32_2 = arith.constant 0 : i32
    return %arg0, %c0_i32, %c0_i32_0, %c0_i32_1 : i32, i32, i32, i32
  }
  func.func @transform_1(%arg0: i32) -> (i32, i32, i32, i32) {
    %c0_i32 = arith.constant 0 : i32
    %c0_i32_0 = arith.constant 0 : i32
    %c0_i32_1 = arith.constant 0 : i32
    %c0_i32_2 = arith.constant 0 : i32
    return %arg0, %c0_i32, %c0_i32_0, %c0_i32_1 : i32, i32, i32, i32
  }
  func.func @transform_2(%arg0: i32) -> (i32, i32, i32, i32) {
    %c0_i32 = arith.constant 0 : i32
    %c0_i32_0 = arith.constant 0 : i32
    %c0_i32_1 = arith.constant 0 : i32
    %c0_i32_2 = arith.constant 0 : i32
    %c0_i32_3 = arith.constant 0 : i32
    return %c0_i32, %c0_i32_0, %c0_i32_1, %c0_i32_2 : i32, i32, i32, i32
  }
  func.func @transform_3(%arg0: i32) -> (i32, i32, i32, i32) {
    %c0_i32 = arith.constant 0 : i32
    %c0_i32_0 = arith.constant 0 : i32
    %c0_i32_1 = arith.constant 0 : i32
    %c0_i32_2 = arith.constant 0 : i32
    %c0_i32_3 = arith.constant 0 : i32
    return %c0_i32, %c0_i32_0, %c0_i32_1, %c0_i32_2 : i32, i32, i32, i32
  }
  func.func @transform_4(%arg0: i32) -> (i32, i32) {
    %c0_i32 = arith.constant 0 : i32
    %c0_i32_0 = arith.constant 0 : i32
    %c0_i32_1 = arith.constant 0 : i32
    return %c0_i32, %c0_i32_0 : i32, i32
  }
  func.func @transform_5(%arg0: i32) -> (i32, i32, i32, i32) {
    %c0_i32 = arith.constant 0 : i32
    %c0_i32_0 = arith.constant 0 : i32
    %c0_i32_1 = arith.constant 0 : i32
    %c0_i32_2 = arith.constant 0 : i32
    return %arg0, %c0_i32, %c0_i32_0, %c0_i32_1 : i32, i32, i32, i32
  }
  func.func @transform_6(%arg0: i32) -> (i32, i32, i32) {
    %c0_i32 = arith.constant 0 : i32
    %c0_i32_0 = arith.constant 0 : i32
    %c0_i32_1 = arith.constant 0 : i32
    return %arg0, %c0_i32, %c0_i32_0 : i32, i32, i32
  }
  func.func @transform_7(%arg0: i32) -> (i32, i32, i32) {
    %c0_i32 = arith.constant 0 : i32
    %c0_i32_0 = arith.constant 0 : i32
    %c0_i32_1 = arith.constant 0 : i32
    return %arg0, %c0_i32, %c0_i32_0 : i32, i32, i32
  }
}

module attributes {stable_mosaic.version = 11 : i64} {
  func.func @kernel(%arg0: i32, %arg1: memref<1x14x16x128xbf16, #tpu.memory_space<vmem>>, %arg2: memref<1x128xf32, #tpu.memory_space<vmem>>, %arg3: memref<1x128xf32, #tpu.memory_space<vmem>>, %arg4: memref<3x3x128x128xbf16, #tpu.memory_space<vmem>>, %arg5: memref<1x128xf32, #tpu.memory_space<vmem>>, %arg6: memref<1x12x12x128xf32, #tpu.memory_space<vmem>>, %arg7: memref<1x1x128xf32, #tpu.memory_space<vmem>>, %arg8: memref<1x1x128xf32, #tpu.memory_space<vmem>>) attributes {dimension_semantics = [#tpu.dimension_semantics<parallel>], iteration_bounds = array<i64: 2>, scalar_prefetch = 0 : i64, scratch_operands = 0 : i64, tpu.core_type = #tpu.core_type<tc>, window_params = [{transform_indices = @transform_0, window_bounds = array<i64: 1, 14, 16, 128>}, {pipeline_mode = #tpu.pipeline_mode<synchronous>, transform_indices = @transform_1, window_bounds = array<i64: 1, 128>}, {pipeline_mode = #tpu.pipeline_mode<synchronous>, transform_indices = @transform_2, window_bounds = array<i64: 1, 128>}, {pipeline_mode = #tpu.pipeline_mode<synchronous>, transform_indices = @transform_3, window_bounds = array<i64: 3, 3, 128, 128>}, {pipeline_mode = #tpu.pipeline_mode<synchronous>, transform_indices = @transform_4, window_bounds = array<i64: 1, 128>}, {transform_indices = @transform_5, window_bounds = array<i64: 1, 12, 12, 128>}, {transform_indices = @transform_6, window_bounds = array<i64: 1, 1, 128>}, {transform_indices = @transform_7, window_bounds = array<i64: 1, 1, 128>}]} {
    %c0 = arith.constant 0 : index
    %c0_0 = arith.constant 0 : index
    %0 = vector.load %arg2[%c0, %c0_0] : memref<1x128xf32, #tpu.memory_space<vmem>>, vector<1x128xf32>
    %c0_1 = arith.constant 0 : index
    %c0_2 = arith.constant 0 : index
    %1 = vector.load %arg3[%c0_1, %c0_2] : memref<1x128xf32, #tpu.memory_space<vmem>>, vector<1x128xf32>
    %cst = arith.constant 0.000000e+00 : f32
    %2 = vector.broadcast %cst : f32 to vector<1x128xf32>
    %c0_i32 = arith.constant 0 : i32
    %c12_i32 = arith.constant 12 : i32
    %3 = arith.muli %c0_i32, %c12_i32 : i32
    %c0_3 = arith.constant 0 : index
    %c0_4 = arith.constant 0 : index
    %4 = vector.load %arg5[%c0_3, %c0_4] : memref<1x128xf32, #tpu.memory_space<vmem>>, vector<1x128xf32>
    %5 = vector.shape_cast %4 : vector<1x128xf32> to vector<1x128xf32>
    %6 = vector.broadcast %5 : vector<1x128xf32> to vector<190x128xf32>
    %c0_i32_5 = arith.constant 0 : i32
    %7 = arith.addi %3, %c0_i32_5 : i32
    %c0_6 = arith.constant 0 : index
    %8 = arith.index_cast %7 : i32 to index
    %c0_7 = arith.constant 0 : index
    %c0_8 = arith.constant 0 : index
    %9 = vector.load %arg1[%c0_6, %8, %c0_7, %c0_8] : memref<1x14x16x128xbf16, #tpu.memory_space<vmem>>, vector<1x12x16x128xbf16>
    %10 = vector.shape_cast %9 : vector<1x12x16x128xbf16> to vector<12x16x128xbf16>
    %11 = vector.shape_cast %10 : vector<12x16x128xbf16> to vector<192x128xbf16>
    %12 = arith.extf %11 : vector<192x128xbf16> to vector<192x128xf32>
    %13 = vector.broadcast %0 : vector<1x128xf32> to vector<192x128xf32>
    %14 = arith.mulf %12, %13 : vector<192x128xf32>
    %15 = vector.broadcast %1 : vector<1x128xf32> to vector<192x128xf32>
    %16 = arith.addf %14, %15 : vector<192x128xf32>
    %cst_9 = arith.constant 0.000000e+00 : f32
    %17 = vector.broadcast %cst_9 : f32 to vector<192x128xf32>
    %18 = arith.maximumf %16, %17 : vector<192x128xf32>
    %19 = arith.truncf %18 : vector<192x128xf32> to vector<192x128xbf16>
    %20 = vector.extract_strided_slice %19 {offsets = [0, 0], sizes = [190, 128], strides = [1, 1]} : vector<192x128xbf16> to vector<190x128xbf16>
    %c0_10 = arith.constant 0 : index
    %c0_11 = arith.constant 0 : index
    %c0_12 = arith.constant 0 : index
    %c0_13 = arith.constant 0 : index
    %21 = vector.load %arg4[%c0_10, %c0_11, %c0_12, %c0_13] : memref<3x3x128x128xbf16, #tpu.memory_space<vmem>>, vector<1x1x128x128xbf16>
    %22 = vector.shape_cast %21 : vector<1x1x128x128xbf16> to vector<128x128xbf16>
    %cst_14 = arith.constant dense<0.000000e+00> : vector<190x128xf32>
    %23 = tpu.matmul %20, %22, %cst_14 {dimension_numbers = #tpu.dot_dimension_numbers<[1], [0], [0], [1], [0, 0, 1, 1], [], []>} : vector<190x128xbf16>, vector<128x128xbf16>, vector<190x128xf32> -> vector<190x128xf32>
    %24 = arith.addf %6, %23 : vector<190x128xf32>
    %25 = vector.extract_strided_slice %19 {offsets = [1, 0], sizes = [190, 128], strides = [1, 1]} : vector<192x128xbf16> to vector<190x128xbf16>
    %c0_15 = arith.constant 0 : index
    %c1 = arith.constant 1 : index
    %c0_16 = arith.constant 0 : index
    %c0_17 = arith.constant 0 : index
    %26 = vector.load %arg4[%c0_15, %c1, %c0_16, %c0_17] : memref<3x3x128x128xbf16, #tpu.memory_space<vmem>>, vector<1x1x128x128xbf16>
    %27 = vector.shape_cast %26 : vector<1x1x128x128xbf16> to vector<128x128xbf16>
    %cst_18 = arith.constant dense<0.000000e+00> : vector<190x128xf32>
    %28 = tpu.matmul %25, %27, %cst_18 {dimension_numbers = #tpu.dot_dimension_numbers<[1], [0], [0], [1], [0, 0, 1, 1], [], []>} : vector<190x128xbf16>, vector<128x128xbf16>, vector<190x128xf32> -> vector<190x128xf32>
    %29 = arith.addf %24, %28 : vector<190x128xf32>
    %30 = vector.extract_strided_slice %19 {offsets = [2, 0], sizes = [190, 128], strides = [1, 1]} : vector<192x128xbf16> to vector<190x128xbf16>
    %c0_19 = arith.constant 0 : index
    %c2 = arith.constant 2 : index
    %c0_20 = arith.constant 0 : index
    %c0_21 = arith.constant 0 : index
    %31 = vector.load %arg4[%c0_19, %c2, %c0_20, %c0_21] : memref<3x3x128x128xbf16, #tpu.memory_space<vmem>>, vector<1x1x128x128xbf16>
    %32 = vector.shape_cast %31 : vector<1x1x128x128xbf16> to vector<128x128xbf16>
    %cst_22 = arith.constant dense<0.000000e+00> : vector<190x128xf32>
    %33 = tpu.matmul %30, %32, %cst_22 {dimension_numbers = #tpu.dot_dimension_numbers<[1], [0], [0], [1], [0, 0, 1, 1], [], []>} : vector<190x128xbf16>, vector<128x128xbf16>, vector<190x128xf32> -> vector<190x128xf32>
    %34 = arith.addf %29, %33 : vector<190x128xf32>
    %c1_i32 = arith.constant 1 : i32
    %35 = arith.addi %3, %c1_i32 : i32
    %c0_23 = arith.constant 0 : index
    %36 = arith.index_cast %35 : i32 to index
    %c0_24 = arith.constant 0 : index
    %c0_25 = arith.constant 0 : index
    %37 = vector.load %arg1[%c0_23, %36, %c0_24, %c0_25] : memref<1x14x16x128xbf16, #tpu.memory_space<vmem>>, vector<1x12x16x128xbf16>
    %38 = vector.shape_cast %37 : vector<1x12x16x128xbf16> to vector<12x16x128xbf16>
    %39 = vector.shape_cast %38 : vector<12x16x128xbf16> to vector<192x128xbf16>
    %40 = arith.extf %39 : vector<192x128xbf16> to vector<192x128xf32>
    %41 = vector.broadcast %0 : vector<1x128xf32> to vector<192x128xf32>
    %42 = arith.mulf %40, %41 : vector<192x128xf32>
    %43 = vector.broadcast %1 : vector<1x128xf32> to vector<192x128xf32>
    %44 = arith.addf %42, %43 : vector<192x128xf32>
    %cst_26 = arith.constant 0.000000e+00 : f32
    %45 = vector.broadcast %cst_26 : f32 to vector<192x128xf32>
    %46 = arith.maximumf %44, %45 : vector<192x128xf32>
    %47 = arith.truncf %46 : vector<192x128xf32> to vector<192x128xbf16>
    %48 = vector.extract_strided_slice %47 {offsets = [0, 0], sizes = [190, 128], strides = [1, 1]} : vector<192x128xbf16> to vector<190x128xbf16>
    %c1_27 = arith.constant 1 : index
    %c0_28 = arith.constant 0 : index
    %c0_29 = arith.constant 0 : index
    %c0_30 = arith.constant 0 : index
    %49 = vector.load %arg4[%c1_27, %c0_28, %c0_29, %c0_30] : memref<3x3x128x128xbf16, #tpu.memory_space<vmem>>, vector<1x1x128x128xbf16>
    %50 = vector.shape_cast %49 : vector<1x1x128x128xbf16> to vector<128x128xbf16>
    %cst_31 = arith.constant dense<0.000000e+00> : vector<190x128xf32>
    %51 = tpu.matmul %48, %50, %cst_31 {dimension_numbers = #tpu.dot_dimension_numbers<[1], [0], [0], [1], [0, 0, 1, 1], [], []>} : vector<190x128xbf16>, vector<128x128xbf16>, vector<190x128xf32> -> vector<190x128xf32>
    %52 = arith.addf %34, %51 : vector<190x128xf32>
    %53 = vector.extract_strided_slice %47 {offsets = [1, 0], sizes = [190, 128], strides = [1, 1]} : vector<192x128xbf16> to vector<190x128xbf16>
    %c1_32 = arith.constant 1 : index
    %c1_33 = arith.constant 1 : index
    %c0_34 = arith.constant 0 : index
    %c0_35 = arith.constant 0 : index
    %54 = vector.load %arg4[%c1_32, %c1_33, %c0_34, %c0_35] : memref<3x3x128x128xbf16, #tpu.memory_space<vmem>>, vector<1x1x128x128xbf16>
    %55 = vector.shape_cast %54 : vector<1x1x128x128xbf16> to vector<128x128xbf16>
    %cst_36 = arith.constant dense<0.000000e+00> : vector<190x128xf32>
    %56 = tpu.matmul %53, %55, %cst_36 {dimension_numbers = #tpu.dot_dimension_numbers<[1], [0], [0], [1], [0, 0, 1, 1], [], []>} : vector<190x128xbf16>, vector<128x128xbf16>, vector<190x128xf32> -> vector<190x128xf32>
    %57 = arith.addf %52, %56 : vector<190x128xf32>
    %58 = vector.extract_strided_slice %47 {offsets = [2, 0], sizes = [190, 128], strides = [1, 1]} : vector<192x128xbf16> to vector<190x128xbf16>
    %c1_37 = arith.constant 1 : index
    %c2_38 = arith.constant 2 : index
    %c0_39 = arith.constant 0 : index
    %c0_40 = arith.constant 0 : index
    %59 = vector.load %arg4[%c1_37, %c2_38, %c0_39, %c0_40] : memref<3x3x128x128xbf16, #tpu.memory_space<vmem>>, vector<1x1x128x128xbf16>
    %60 = vector.shape_cast %59 : vector<1x1x128x128xbf16> to vector<128x128xbf16>
    %cst_41 = arith.constant dense<0.000000e+00> : vector<190x128xf32>
    %61 = tpu.matmul %58, %60, %cst_41 {dimension_numbers = #tpu.dot_dimension_numbers<[1], [0], [0], [1], [0, 0, 1, 1], [], []>} : vector<190x128xbf16>, vector<128x128xbf16>, vector<190x128xf32> -> vector<190x128xf32>
    %62 = arith.addf %57, %61 : vector<190x128xf32>
    %c2_i32 = arith.constant 2 : i32
    %63 = arith.addi %3, %c2_i32 : i32
    %c0_42 = arith.constant 0 : index
    %64 = arith.index_cast %63 : i32 to index
    %c0_43 = arith.constant 0 : index
    %c0_44 = arith.constant 0 : index
    %65 = vector.load %arg1[%c0_42, %64, %c0_43, %c0_44] : memref<1x14x16x128xbf16, #tpu.memory_space<vmem>>, vector<1x12x16x128xbf16>
    %66 = vector.shape_cast %65 : vector<1x12x16x128xbf16> to vector<12x16x128xbf16>
    %67 = vector.shape_cast %66 : vector<12x16x128xbf16> to vector<192x128xbf16>
    %68 = arith.extf %67 : vector<192x128xbf16> to vector<192x128xf32>
    %69 = vector.broadcast %0 : vector<1x128xf32> to vector<192x128xf32>
    %70 = arith.mulf %68, %69 : vector<192x128xf32>
    %71 = vector.broadcast %1 : vector<1x128xf32> to vector<192x128xf32>
    %72 = arith.addf %70, %71 : vector<192x128xf32>
    %cst_45 = arith.constant 0.000000e+00 : f32
    %73 = vector.broadcast %cst_45 : f32 to vector<192x128xf32>
    %74 = arith.maximumf %72, %73 : vector<192x128xf32>
    %75 = arith.truncf %74 : vector<192x128xf32> to vector<192x128xbf16>
    %76 = vector.extract_strided_slice %75 {offsets = [0, 0], sizes = [190, 128], strides = [1, 1]} : vector<192x128xbf16> to vector<190x128xbf16>
    %c2_46 = arith.constant 2 : index
    %c0_47 = arith.constant 0 : index
    %c0_48 = arith.constant 0 : index
    %c0_49 = arith.constant 0 : index
    %77 = vector.load %arg4[%c2_46, %c0_47, %c0_48, %c0_49] : memref<3x3x128x128xbf16, #tpu.memory_space<vmem>>, vector<1x1x128x128xbf16>
    %78 = vector.shape_cast %77 : vector<1x1x128x128xbf16> to vector<128x128xbf16>
    %cst_50 = arith.constant dense<0.000000e+00> : vector<190x128xf32>
    %79 = tpu.matmul %76, %78, %cst_50 {dimension_numbers = #tpu.dot_dimension_numbers<[1], [0], [0], [1], [0, 0, 1, 1], [], []>} : vector<190x128xbf16>, vector<128x128xbf16>, vector<190x128xf32> -> vector<190x128xf32>
    %80 = arith.addf %62, %79 : vector<190x128xf32>
    %81 = vector.extract_strided_slice %75 {offsets = [1, 0], sizes = [190, 128], strides = [1, 1]} : vector<192x128xbf16> to vector<190x128xbf16>
    %c2_51 = arith.constant 2 : index
    %c1_52 = arith.constant 1 : index
    %c0_53 = arith.constant 0 : index
    %c0_54 = arith.constant 0 : index
    %82 = vector.load %arg4[%c2_51, %c1_52, %c0_53, %c0_54] : memref<3x3x128x128xbf16, #tpu.memory_space<vmem>>, vector<1x1x128x128xbf16>
    %83 = vector.shape_cast %82 : vector<1x1x128x128xbf16> to vector<128x128xbf16>
    %cst_55 = arith.constant dense<0.000000e+00> : vector<190x128xf32>
    %84 = tpu.matmul %81, %83, %cst_55 {dimension_numbers = #tpu.dot_dimension_numbers<[1], [0], [0], [1], [0, 0, 1, 1], [], []>} : vector<190x128xbf16>, vector<128x128xbf16>, vector<190x128xf32> -> vector<190x128xf32>
    %85 = arith.addf %80, %84 : vector<190x128xf32>
    %86 = vector.extract_strided_slice %75 {offsets = [2, 0], sizes = [190, 128], strides = [1, 1]} : vector<192x128xbf16> to vector<190x128xbf16>
    %c2_56 = arith.constant 2 : index
    %c2_57 = arith.constant 2 : index
    %c0_58 = arith.constant 0 : index
    %c0_59 = arith.constant 0 : index
    %87 = vector.load %arg4[%c2_56, %c2_57, %c0_58, %c0_59] : memref<3x3x128x128xbf16, #tpu.memory_space<vmem>>, vector<1x1x128x128xbf16>
    %88 = vector.shape_cast %87 : vector<1x1x128x128xbf16> to vector<128x128xbf16>
    %cst_60 = arith.constant dense<0.000000e+00> : vector<190x128xf32>
    %89 = tpu.matmul %86, %88, %cst_60 {dimension_numbers = #tpu.dot_dimension_numbers<[1], [0], [0], [1], [0, 0, 1, 1], [], []>} : vector<190x128xbf16>, vector<128x128xbf16>, vector<190x128xf32> -> vector<190x128xf32>
    %90 = arith.addf %85, %89 : vector<190x128xf32>
    %91 = tpu.iota {dimensions = array<i32: 0>} : vector<190x1xi32>
    %c16_i32 = arith.constant 16 : i32
    %c0_i32_61 = arith.constant 0 : i32
    %92 = arith.cmpi eq, %c16_i32, %c0_i32_61 : i32
    %c1_i32_62 = arith.constant 1 : i32
    %93 = arith.select %92, %c1_i32_62, %c16_i32 : i32
    %94 = vector.broadcast %93 : i32 to vector<190x1xi32>
    %95 = arith.remsi %91, %94 : vector<190x1xi32>
    %c0_i32_63 = arith.constant 0 : i32
    %96 = vector.broadcast %c0_i32_63 : i32 to vector<190x1xi32>
    %97 = arith.cmpi ne, %95, %96 : vector<190x1xi32>
    %c0_i32_64 = arith.constant 0 : i32
    %98 = vector.broadcast %c0_i32_64 : i32 to vector<190x1xi32>
    %99 = arith.cmpi slt, %95, %98 : vector<190x1xi32>
    %c0_i32_65 = arith.constant 0 : i32
    %100 = arith.cmpi slt, %93, %c0_i32_65 : i32
    %101 = vector.broadcast %100 : i1 to vector<190x1xi1>
    %102 = vector.broadcast %101 : vector<190x1xi1> to vector<190x1xi1>
    %103 = arith.xori %99, %102 : vector<190x1xi1>
    %104 = arith.andi %103, %97 : vector<190x1xi1>
    %105 = vector.broadcast %93 : i32 to vector<190x1xi32>
    %106 = arith.addi %95, %105 : vector<190x1xi32>
    %107 = arith.select %104, %106, %95 : vector<190x1xi1>, vector<190x1xi32>
    %c12_i32_66 = arith.constant 12 : i32
    %108 = vector.broadcast %c12_i32_66 : i32 to vector<190x1xi32>
    %109 = arith.cmpi slt, %107, %108 : vector<190x1xi32>
    %cst_67 = arith.constant 0.000000e+00 : f32
    %110 = vector.shape_cast %109 : vector<190x1xi1> to vector<190x1xi1>
    %111 = vector.broadcast %110 : vector<190x1xi1> to vector<190x128xi1>
    %112 = vector.broadcast %cst_67 : f32 to vector<190x128xf32>
    %113 = arith.select %111, %90, %112 : vector<190x128xi1>, vector<190x128xf32>
    %cst_68 = arith.constant dense<0.000000e+00> : vector<128xf32>
    %114 = vector.multi_reduction <add>, %113, %cst_68 [0] : vector<190x128xf32> to vector<128xf32>
    %115 = vector.shape_cast %114 : vector<128xf32> to vector<1x128xf32>
    %116 = arith.addf %2, %115 : vector<1x128xf32>
    %117 = arith.mulf %113, %113 : vector<190x128xf32>
    %cst_69 = arith.constant dense<0.000000e+00> : vector<128xf32>
    %118 = vector.multi_reduction <add>, %117, %cst_69 [0] : vector<190x128xf32> to vector<128xf32>
    %119 = vector.shape_cast %118 : vector<128xf32> to vector<1x128xf32>
    %120 = arith.addf %2, %119 : vector<1x128xf32>
    %121 = vector.extract_strided_slice %90 {offsets = [0, 0], sizes = [12, 128], strides = [1, 1]} : vector<190x128xf32> to vector<12x128xf32>
    %c0_i32_70 = arith.constant 0 : i32
    %122 = arith.addi %3, %c0_i32_70 : i32
    %c0_71 = arith.constant 0 : index
    %123 = arith.index_cast %122 : i32 to index
    %c0_72 = arith.constant 0 : index
    %c0_73 = arith.constant 0 : index
    %124 = vector.load %arg6[%c0_71, %123, %c0_72, %c0_73] : memref<1x12x12x128xf32, #tpu.memory_space<vmem>>, vector<1x1x12x128xf32>
    %125 = vector.shape_cast %124 : vector<1x1x12x128xf32> to vector<12x128xf32>
    %126 = vector.shape_cast %121 : vector<12x128xf32> to vector<1x1x12x128xf32>
    tpu.vector_store %arg6[%c0_71, %123, %c0_72, %c0_73], %126 {strides = array<i32>} : memref<1x12x12x128xf32, #tpu.memory_space<vmem>>, vector<1x1x12x128xf32>,
    %127 = vector.extract_strided_slice %90 {offsets = [16, 0], sizes = [12, 128], strides = [1, 1]} : vector<190x128xf32> to vector<12x128xf32>
    %c1_i32_74 = arith.constant 1 : i32
    %128 = arith.addi %3, %c1_i32_74 : i32
    %c0_75 = arith.constant 0 : index
    %129 = arith.index_cast %128 : i32 to index
    %c0_76 = arith.constant 0 : index
    %c0_77 = arith.constant 0 : index
    %130 = vector.load %arg6[%c0_75, %129, %c0_76, %c0_77] : memref<1x12x12x128xf32, #tpu.memory_space<vmem>>, vector<1x1x12x128xf32>
    %131 = vector.shape_cast %130 : vector<1x1x12x128xf32> to vector<12x128xf32>
    %132 = vector.shape_cast %127 : vector<12x128xf32> to vector<1x1x12x128xf32>
    tpu.vector_store %arg6[%c0_75, %129, %c0_76, %c0_77], %132 {strides = array<i32>} : memref<1x12x12x128xf32, #tpu.memory_space<vmem>>, vector<1x1x12x128xf32>,
    %133 = vector.extract_strided_slice %90 {offsets = [32, 0], sizes = [12, 128], strides = [1, 1]} : vector<190x128xf32> to vector<12x128xf32>
    %c2_i32_78 = arith.constant 2 : i32
    %134 = arith.addi %3, %c2_i32_78 : i32
    %c0_79 = arith.constant 0 : index
    %135 = arith.index_cast %134 : i32 to index
    %c0_80 = arith.constant 0 : index
    %c0_81 = arith.constant 0 : index
    %136 = vector.load %arg6[%c0_79, %135, %c0_80, %c0_81] : memref<1x12x12x128xf32, #tpu.memory_space<vmem>>, vector<1x1x12x128xf32>
    %137 = vector.shape_cast %136 : vector<1x1x12x128xf32> to vector<12x128xf32>
    %138 = vector.shape_cast %133 : vector<12x128xf32> to vector<1x1x12x128xf32>
    tpu.vector_store %arg6[%c0_79, %135, %c0_80, %c0_81], %138 {strides = array<i32>} : memref<1x12x12x128xf32, #tpu.memory_space<vmem>>, vector<1x1x12x128xf32>,
    %139 = vector.extract_strided_slice %90 {offsets = [48, 0], sizes = [12, 128], strides = [1, 1]} : vector<190x128xf32> to vector<12x128xf32>
    %c3_i32 = arith.constant 3 : i32
    %140 = arith.addi %3, %c3_i32 : i32
    %c0_82 = arith.constant 0 : index
    %141 = arith.index_cast %140 : i32 to index
    %c0_83 = arith.constant 0 : index
    %c0_84 = arith.constant 0 : index
    %142 = vector.load %arg6[%c0_82, %141, %c0_83, %c0_84] : memref<1x12x12x128xf32, #tpu.memory_space<vmem>>, vector<1x1x12x128xf32>
    %143 = vector.shape_cast %142 : vector<1x1x12x128xf32> to vector<12x128xf32>
    %144 = vector.shape_cast %139 : vector<12x128xf32> to vector<1x1x12x128xf32>
    tpu.vector_store %arg6[%c0_82, %141, %c0_83, %c0_84], %144 {strides = array<i32>} : memref<1x12x12x128xf32, #tpu.memory_space<vmem>>, vector<1x1x12x128xf32>,
    %145 = vector.extract_strided_slice %90 {offsets = [64, 0], sizes = [12, 128], strides = [1, 1]} : vector<190x128xf32> to vector<12x128xf32>
    %c4_i32 = arith.constant 4 : i32
    %146 = arith.addi %3, %c4_i32 : i32
    %c0_85 = arith.constant 0 : index
    %147 = arith.index_cast %146 : i32 to index
    %c0_86 = arith.constant 0 : index
    %c0_87 = arith.constant 0 : index
    %148 = vector.load %arg6[%c0_85, %147, %c0_86, %c0_87] : memref<1x12x12x128xf32, #tpu.memory_space<vmem>>, vector<1x1x12x128xf32>
    %149 = vector.shape_cast %148 : vector<1x1x12x128xf32> to vector<12x128xf32>
    %150 = vector.shape_cast %145 : vector<12x128xf32> to vector<1x1x12x128xf32>
    tpu.vector_store %arg6[%c0_85, %147, %c0_86, %c0_87], %150 {strides = array<i32>} : memref<1x12x12x128xf32, #tpu.memory_space<vmem>>, vector<1x1x12x128xf32>,
    %151 = vector.extract_strided_slice %90 {offsets = [80, 0], sizes = [12, 128], strides = [1, 1]} : vector<190x128xf32> to vector<12x128xf32>
    %c5_i32 = arith.constant 5 : i32
    %152 = arith.addi %3, %c5_i32 : i32
    %c0_88 = arith.constant 0 : index
    %153 = arith.index_cast %152 : i32 to index
    %c0_89 = arith.constant 0 : index
    %c0_90 = arith.constant 0 : index
    %154 = vector.load %arg6[%c0_88, %153, %c0_89, %c0_90] : memref<1x12x12x128xf32, #tpu.memory_space<vmem>>, vector<1x1x12x128xf32>
    %155 = vector.shape_cast %154 : vector<1x1x12x128xf32> to vector<12x128xf32>
    %156 = vector.shape_cast %151 : vector<12x128xf32> to vector<1x1x12x128xf32>
    tpu.vector_store %arg6[%c0_88, %153, %c0_89, %c0_90], %156 {strides = array<i32>} : memref<1x12x12x128xf32, #tpu.memory_space<vmem>>, vector<1x1x12x128xf32>,
    %157 = vector.extract_strided_slice %90 {offsets = [96, 0], sizes = [12, 128], strides = [1, 1]} : vector<190x128xf32> to vector<12x128xf32>
    %c6_i32 = arith.constant 6 : i32
    %158 = arith.addi %3, %c6_i32 : i32
    %c0_91 = arith.constant 0 : index
    %159 = arith.index_cast %158 : i32 to index
    %c0_92 = arith.constant 0 : index
    %c0_93 = arith.constant 0 : index
    %160 = vector.load %arg6[%c0_91, %159, %c0_92, %c0_93] : memref<1x12x12x128xf32, #tpu.memory_space<vmem>>, vector<1x1x12x128xf32>
    %161 = vector.shape_cast %160 : vector<1x1x12x128xf32> to vector<12x128xf32>
    %162 = vector.shape_cast %157 : vector<12x128xf32> to vector<1x1x12x128xf32>
    tpu.vector_store %arg6[%c0_91, %159, %c0_92, %c0_93], %162 {strides = array<i32>} : memref<1x12x12x128xf32, #tpu.memory_space<vmem>>, vector<1x1x12x128xf32>,
    %163 = vector.extract_strided_slice %90 {offsets = [112, 0], sizes = [12, 128], strides = [1, 1]} : vector<190x128xf32> to vector<12x128xf32>
    %c7_i32 = arith.constant 7 : i32
    %164 = arith.addi %3, %c7_i32 : i32
    %c0_94 = arith.constant 0 : index
    %165 = arith.index_cast %164 : i32 to index
    %c0_95 = arith.constant 0 : index
    %c0_96 = arith.constant 0 : index
    %166 = vector.load %arg6[%c0_94, %165, %c0_95, %c0_96] : memref<1x12x12x128xf32, #tpu.memory_space<vmem>>, vector<1x1x12x128xf32>
    %167 = vector.shape_cast %166 : vector<1x1x12x128xf32> to vector<12x128xf32>
    %168 = vector.shape_cast %163 : vector<12x128xf32> to vector<1x1x12x128xf32>
    tpu.vector_store %arg6[%c0_94, %165, %c0_95, %c0_96], %168 {strides = array<i32>} : memref<1x12x12x128xf32, #tpu.memory_space<vmem>>, vector<1x1x12x128xf32>,
    %169 = vector.extract_strided_slice %90 {offsets = [128, 0], sizes = [12, 128], strides = [1, 1]} : vector<190x128xf32> to vector<12x128xf32>
    %c8_i32 = arith.constant 8 : i32
    %170 = arith.addi %3, %c8_i32 : i32
    %c0_97 = arith.constant 0 : index
    %171 = arith.index_cast %170 : i32 to index
    %c0_98 = arith.constant 0 : index
    %c0_99 = arith.constant 0 : index
    %172 = vector.load %arg6[%c0_97, %171, %c0_98, %c0_99] : memref<1x12x12x128xf32, #tpu.memory_space<vmem>>, vector<1x1x12x128xf32>
    %173 = vector.shape_cast %172 : vector<1x1x12x128xf32> to vector<12x128xf32>
    %174 = vector.shape_cast %169 : vector<12x128xf32> to vector<1x1x12x128xf32>
    tpu.vector_store %arg6[%c0_97, %171, %c0_98, %c0_99], %174 {strides = array<i32>} : memref<1x12x12x128xf32, #tpu.memory_space<vmem>>, vector<1x1x12x128xf32>,
    %175 = vector.extract_strided_slice %90 {offsets = [144, 0], sizes = [12, 128], strides = [1, 1]} : vector<190x128xf32> to vector<12x128xf32>
    %c9_i32 = arith.constant 9 : i32
    %176 = arith.addi %3, %c9_i32 : i32
    %c0_100 = arith.constant 0 : index
    %177 = arith.index_cast %176 : i32 to index
    %c0_101 = arith.constant 0 : index
    %c0_102 = arith.constant 0 : index
    %178 = vector.load %arg6[%c0_100, %177, %c0_101, %c0_102] : memref<1x12x12x128xf32, #tpu.memory_space<vmem>>, vector<1x1x12x128xf32>
    %179 = vector.shape_cast %178 : vector<1x1x12x128xf32> to vector<12x128xf32>
    %180 = vector.shape_cast %175 : vector<12x128xf32> to vector<1x1x12x128xf32>
    tpu.vector_store %arg6[%c0_100, %177, %c0_101, %c0_102], %180 {strides = array<i32>} : memref<1x12x12x128xf32, #tpu.memory_space<vmem>>, vector<1x1x12x128xf32>,
    %181 = vector.extract_strided_slice %90 {offsets = [160, 0], sizes = [12, 128], strides = [1, 1]} : vector<190x128xf32> to vector<12x128xf32>
    %c10_i32 = arith.constant 10 : i32
    %182 = arith.addi %3, %c10_i32 : i32
    %c0_103 = arith.constant 0 : index
    %183 = arith.index_cast %182 : i32 to index
    %c0_104 = arith.constant 0 : index
    %c0_105 = arith.constant 0 : index
    %184 = vector.load %arg6[%c0_103, %183, %c0_104, %c0_105] : memref<1x12x12x128xf32, #tpu.memory_space<vmem>>, vector<1x1x12x128xf32>
    %185 = vector.shape_cast %184 : vector<1x1x12x128xf32> to vector<12x128xf32>
    %186 = vector.shape_cast %181 : vector<12x128xf32> to vector<1x1x12x128xf32>
    tpu.vector_store %arg6[%c0_103, %183, %c0_104, %c0_105], %186 {strides = array<i32>} : memref<1x12x12x128xf32, #tpu.memory_space<vmem>>, vector<1x1x12x128xf32>,
    %187 = vector.extract_strided_slice %90 {offsets = [176, 0], sizes = [12, 128], strides = [1, 1]} : vector<190x128xf32> to vector<12x128xf32>
    %c11_i32 = arith.constant 11 : i32
    %188 = arith.addi %3, %c11_i32 : i32
    %c0_106 = arith.constant 0 : index
    %189 = arith.index_cast %188 : i32 to index
    %c0_107 = arith.constant 0 : index
    %c0_108 = arith.constant 0 : index
    %190 = vector.load %arg6[%c0_106, %189, %c0_107, %c0_108] : memref<1x12x12x128xf32, #tpu.memory_space<vmem>>, vector<1x1x12x128xf32>
    %191 = vector.shape_cast %190 : vector<1x1x12x128xf32> to vector<12x128xf32>
    %192 = vector.shape_cast %187 : vector<12x128xf32> to vector<1x1x12x128xf32>
    tpu.vector_store %arg6[%c0_106, %189, %c0_107, %c0_108], %192 {strides = array<i32>} : memref<1x12x12x128xf32, #tpu.memory_space<vmem>>, vector<1x1x12x128xf32>,
    %c1_i32_109 = arith.constant 1 : i32
    %c0_110 = arith.constant 0 : index
    %c0_111 = arith.constant 0 : index
    %c0_112 = arith.constant 0 : index
    %193 = vector.load %arg7[%c0_110, %c0_111, %c0_112] : memref<1x1x128xf32, #tpu.memory_space<vmem>>, vector<1x1x128xf32>
    %194 = vector.shape_cast %193 : vector<1x1x128xf32> to vector<1x128xf32>
    %195 = vector.shape_cast %116 : vector<1x128xf32> to vector<1x1x128xf32>
    tpu.vector_store %arg7[%c0_110, %c0_111, %c0_112], %195 {strides = array<i32>} : memref<1x1x128xf32, #tpu.memory_space<vmem>>, vector<1x1x128xf32>,
    %c0_113 = arith.constant 0 : index
    %c0_114 = arith.constant 0 : index
    %c0_115 = arith.constant 0 : index
    %196 = vector.load %arg8[%c0_113, %c0_114, %c0_115] : memref<1x1x128xf32, #tpu.memory_space<vmem>>, vector<1x1x128xf32>
    %197 = vector.shape_cast %196 : vector<1x1x128xf32> to vector<1x128xf32>
    %198 = vector.shape_cast %120 : vector<1x128xf32> to vector<1x1x128xf32>
    tpu.vector_store %arg8[%c0_113, %c0_114, %c0_115], %198 {strides = array<i32>} : memref<1x1x128xf32, #tpu.memory_space<vmem>>, vector<1x1x128xf32>,
    return
  }
  func.func @transform_0(%arg0: i32) -> (i32, i32, i32, i32) {
    %c0_i32 = arith.constant 0 : i32
    %c0_i32_0 = arith.constant 0 : i32
    %c0_i32_1 = arith.constant 0 : i32
    %c0_i32_2 = arith.constant 0 : i32
    return %arg0, %c0_i32, %c0_i32_0, %c0_i32_1 : i32, i32, i32, i32
  }
  func.func @transform_1(%arg0: i32) -> (i32, i32) {
    %c0_i32 = arith.constant 0 : i32
    %c0_i32_0 = arith.constant 0 : i32
    %c0_i32_1 = arith.constant 0 : i32
    return %c0_i32, %c0_i32_0 : i32, i32
  }
  func.func @transform_2(%arg0: i32) -> (i32, i32) {
    %c0_i32 = arith.constant 0 : i32
    %c0_i32_0 = arith.constant 0 : i32
    %c0_i32_1 = arith.constant 0 : i32
    return %c0_i32, %c0_i32_0 : i32, i32
  }
  func.func @transform_3(%arg0: i32) -> (i32, i32, i32, i32) {
    %c0_i32 = arith.constant 0 : i32
    %c0_i32_0 = arith.constant 0 : i32
    %c0_i32_1 = arith.constant 0 : i32
    %c0_i32_2 = arith.constant 0 : i32
    %c0_i32_3 = arith.constant 0 : i32
    return %c0_i32, %c0_i32_0, %c0_i32_1, %c0_i32_2 : i32, i32, i32, i32
  }
  func.func @transform_4(%arg0: i32) -> (i32, i32) {
    %c0_i32 = arith.constant 0 : i32
    %c0_i32_0 = arith.constant 0 : i32
    %c0_i32_1 = arith.constant 0 : i32
    return %c0_i32, %c0_i32_0 : i32, i32
  }
  func.func @transform_5(%arg0: i32) -> (i32, i32, i32, i32) {
    %c0_i32 = arith.constant 0 : i32
    %c0_i32_0 = arith.constant 0 : i32
    %c0_i32_1 = arith.constant 0 : i32
    %c0_i32_2 = arith.constant 0 : i32
    return %arg0, %c0_i32, %c0_i32_0, %c0_i32_1 : i32, i32, i32, i32
  }
  func.func @transform_6(%arg0: i32) -> (i32, i32, i32) {
    %c0_i32 = arith.constant 0 : i32
    %c0_i32_0 = arith.constant 0 : i32
    %c0_i32_1 = arith.constant 0 : i32
    return %arg0, %c0_i32, %c0_i32_0 : i32, i32, i32
  }
  func.func @transform_7(%arg0: i32) -> (i32, i32, i32) {
    %c0_i32 = arith.constant 0 : i32
    %c0_i32_0 = arith.constant 0 : i32
    %c0_i32_1 = arith.constant 0 : i32
    return %arg0, %c0_i32, %c0_i32_0 : i32, i32, i32
  }
}

</mosaic_0001>

<llo_original>
// kernel: tile.8
$region0: #{tile.8}
  #allocation0 [shape = 's32[1]{0}', space=sflag, size = 0x4, scoped, tag = 'scoped memory for tile.8']
  %s0 = inlined_call_operand.vmem [shape: f32[4], index: 0, kind: input, shape index: {}]
  %s1 = inlined_call_operand.vmem [shape: f32[2,4], index: 1, kind: output, shape index: {}]
  // Predicated region
  $region2: #{tile.8} parent=0 // pred_check
    _
  $region3: #{tile.8} parent=0 // pred_check_branch
    %3 = sbr.rel (0) target = $region5
  $region4: #{tile.8} parent=0 // pred_region
    _
  $region5: #{tile.8} parent=0 // pred_fallthru
    _
  %v4 = vld [vmem:[%s0] ss:$0 sm:$0xff]
  %5 = vst [vmem:[%s1] sm:$0x3] %v4

// kernel: tile.9
$region0: #{tile.9}
  %s0 = inlined_call_operand.vmem [shape: f32[2,4], index: 0, kind: input, shape index: {}]
  %s1 = inlined_call_operand.vmem [shape: f32[1,8], index: 1, kind: output, shape index: {}]
  $region1: #{tile.9} parent=0
    #allocation0 [shape = 'u8[4096]{0}', space=vmem, size = 0x1000, scoped, tag = 'scoped mem for output reshape']
    #allocation1 [shape = 'u8[4096]{0}', space=vmem, size = 0x1000, scoped, tag = 'scoped mem for input reshape']
    %s3 = sshll.u32 1, 2
    %s4 = ssub.s32 %s3, 1
    %v5 = vld [vmem:[%s0] sm:%s4]
    %6 = vst [vmem:[#allocation1] sm:%s4] %v5
    %v7 = vld [vmem:[#allocation1] sm:$0x1]
    %vm8 = vcmask 31744
    %9 = vst.msk [vmem:[#allocation0] sm:$0x1] %vm8, %v7
    %s10 = scalar_lea.vmem [#allocation1], 1
    %v11 = vld [vmem:[%s10] sm:$0x1]
    %12 = vrot.lane.b32.xlu0 %v11, 4
    %v13 = vpop.permute.xlu0 %12
    %vm14 = vcmask 64544
    %15 = vst.msk [vmem:[#allocation0] sm:$0x1] %vm14, %v13
    %s17 = sshll.u32 1, 1
    %s18 = ssub.s32 %s17, 1
    %v20 = vld [vmem:[#allocation0] sm:%s18]
    %s21 = sshll.u32 1, 1
    %s22 = ssub.s32 %s21, 1
    %23 = vst [vmem:[%s1] sm:%s22] %v20

// kernel: up_step_forward.3
$region0: #{up_step_forward.3}
  #allocation0 [shape = 'u32[]', space=smem, size = 0x4, offset = 0x4, fixed_abs, tag = 'smem constant byte address 0x4 - core index']
  #allocation1 [shape = 'u32[144,128]{1,0:T(1,128)}', space=vmem, size = 0x12000, scoped, tag = 'internal scratch']
  %s0 = inlined_call_operand.vmem [shape: bf16[2,64,8], index: 0, kind: input, shape index: {}]
  %s1 = inlined_call_operand.vmem [shape: bf16[2,8,8], index: 1, kind: input, shape index: {}]
  %s2 = inlined_call_operand.vmem [shape: f32[1,8], index: 2, kind: input, shape index: {}]
  %s3 = inlined_call_operand.vmem [shape: bf16[2,8,2,8,8], index: 3, kind: output, shape index: {}]
  %s4 = sld [smem:[#allocation0]]
  $region45: #{up_step_forward.3} parent=0
    _
  %s6 = ssub.s32 1, %s4
  %s7 = scalar_select 0, %s6, %s4
  loop: start=0, step=1, limit=4
  $region2: #{up_step_forward.3} parent=0 // loop_pre_header
    _
  $region3: #{up_step_forward.3} parent=0 // loop_header
    %s9 = sphi 0, %s13
    %p10 = scmp.ge.s32.totalorder %s9, 4
    %s19 = sphi 0, %s21
    %s22 = sphi 0, %s19
    %s23 = sphi 0, %s22
    %s39 = sphi 0, %s23
    %s43 = sphi 0, %s43
    %s45 = sphi 0, %s43
    %s46 = sphi 0, %s45
    %s60 = sphi 0, %s46
    %s64 = sphi 0, %s64
    %s66 = sphi 0, %s64
    %s67 = sphi 0, %s66
    %s81 = sphi 0, %s67
    %s87 = sphi 0, %s89
    %s90 = sphi 0, %s87
    %s91 = sphi 0, %s90
    %s107 = sphi 0, %s91
  $region4: #{up_step_forward.3} parent=0 // loop_header_branch
    %12 = sbr.rel (%p10) target = $region8
  $region5: #{up_step_forward.3} parent=0 // loop_body
    %s14 = ssub.s32 %s9, 1
    %s15 = ssub.s32 %s9, 2
    %s16 = sadd.s32 %s9, 1
    %s17 = ssub.s32 %s9, %s16
    %p18 = scmp.eq.s32.totalorder %s17, 0
    %s20 = sadd.s32 %s19, 1
    %s21 = scalar_select %p18, %s19, %s20
    %p24 = pneg %p18
    %p25 = scmp.eq.s32.totalorder %s9, 1
    %p26 = por %p24, %p25
    %p27 = scmp.ne.s32.totalorder %s19, %s22
    %p28 = scmp.eq.s32.totalorder %s9, 0
    %p29 = por %p27, %p28
    %p30 = scmp.ne.s32.totalorder %s19, %s22
    %p31 = scmp.eq.s32.totalorder %s14, 1
    %p32 = por %p30, %p31
    %p33 = scmp.ne.s32.totalorder %s22, %s23
    %p34 = scmp.eq.s32.totalorder %s14, 0
    %p35 = por %p33, %p34
    %p36 = scmp.ne.s32.totalorder %s22, %s23
    %p37 = scmp.eq.s32.totalorder %s15, 1
    %p38 = por %p36, %p37
    %p40 = scmp.ne.s32.totalorder %s23, %s39
    %p41 = scmp.eq.s32.totalorder %s15, 0
    %p42 = por %p40, %p41
    %s44 = sadd.s32 %s43, 1
    %p47 = scmp.eq.s32.totalorder %s9, 1
    %p48 = scmp.ne.s32.totalorder %s43, %s45
    %p49 = scmp.eq.s32.totalorder %s9, 0
    %p50 = por %p48, %p49
    %p51 = scmp.ne.s32.totalorder %s43, %s45
    %p52 = scmp.eq.s32.totalorder %s14, 1
    %p53 = por %p51, %p52
    %p54 = scmp.ne.s32.totalorder %s45, %s46
    %p55 = scmp.eq.s32.totalorder %s14, 0
    %p56 = por %p54, %p55
    %p57 = scmp.ne.s32.totalorder %s45, %s46
    %p58 = scmp.eq.s32.totalorder %s15, 1
    %p59 = por %p57, %p58
    %p61 = scmp.ne.s32.totalorder %s46, %s60
    %p62 = scmp.eq.s32.totalorder %s15, 0
    %p63 = por %p61, %p62
    %s65 = sadd.s32 %s64, 1
    %p68 = scmp.eq.s32.totalorder %s9, 1
    %p69 = scmp.ne.s32.totalorder %s64, %s66
    %p70 = scmp.eq.s32.totalorder %s9, 0
    %p71 = por %p69, %p70
    %p72 = scmp.ne.s32.totalorder %s64, %s66
    %p73 = scmp.eq.s32.totalorder %s14, 1
    %p74 = por %p72, %p73
    %p75 = scmp.ne.s32.totalorder %s66, %s67
    %p76 = scmp.eq.s32.totalorder %s14, 0
    %p77 = por %p75, %p76
    %p78 = scmp.ne.s32.totalorder %s66, %s67
    %p79 = scmp.eq.s32.totalorder %s15, 1
    %p80 = por %p78, %p79
    %p82 = scmp.ne.s32.totalorder %s67, %s81
    %p83 = scmp.eq.s32.totalorder %s15, 0
    %p84 = por %p82, %p83
    %s85 = ssub.s32 %s9, %s16
    %p86 = scmp.eq.s32.totalorder %s85, 0
    %s88 = sadd.s32 %s87, 1
    %s89 = scalar_select %p86, %s87, %s88
    %p92 = pneg %p86
    %p93 = scmp.eq.s32.totalorder %s9, 1
    %p94 = por %p92, %p93
    %p95 = scmp.ne.s32.totalorder %s87, %s90
    %p96 = scmp.eq.s32.totalorder %s9, 0
    %p97 = por %p95, %p96
    %p98 = scmp.ne.s32.totalorder %s87, %s90
    %p99 = scmp.eq.s32.totalorder %s14, 1
    %p100 = por %p98, %p99
    %p101 = scmp.ne.s32.totalorder %s90, %s91
    %p102 = scmp.eq.s32.totalorder %s14, 0
    %p103 = por %p101, %p102
    %p104 = scmp.ne.s32.totalorder %s90, %s91
    %p105 = scmp.eq.s32.totalorder %s15, 1
    %p106 = por %p104, %p105
    %p108 = scmp.ne.s32.totalorder %s91, %s107
    %p109 = scmp.eq.s32.totalorder %s15, 0
    %p110 = por %p108, %p109
    %p111 = scmp.le.s32.totalorder 1, %s9
    %p112 = scmp.lt.s32.totalorder %s9, 3
    %p113 = pnand %p111, %p112
    %p114 = pneg %p113
    // Predicated region
    $region9: #{up_step_forward.3} parent=5 // pred_check
      _
    $region10: #{up_step_forward.3} parent=5 // pred_check_branch
      %116 = sbr.rel (%p113) target = $region12
    $region11: #{up_step_forward.3} parent=5 // pred_region
      %s117 = ssub.s32 %s9, 1
      // Predicated region
      $region13: #{up_step_forward.3} parent=11 // pred_check
        %p118 = pneg %p56
      $region14: #{up_step_forward.3} parent=11 // pred_check_branch
        %120 = sbr.rel (%p118) target = $region16
      $region15: #{up_step_forward.3} parent=11 // pred_region
        _
      $region16: #{up_step_forward.3} parent=11 // pred_fallthru
        _
      // Predicated region
      $region17: #{up_step_forward.3} parent=11 // pred_check
        %p121 = pneg %p77
      $region18: #{up_step_forward.3} parent=11 // pred_check_branch
        %123 = sbr.rel (%p121) target = $region20
      $region19: #{up_step_forward.3} parent=11 // pred_region
        _
      $region20: #{up_step_forward.3} parent=11 // pred_fallthru
        _
    $region12: #{up_step_forward.3} parent=5 // pred_fallthru
      _
    %p124 = scmp.lt.s32.totalorder %s9, 2
    // Predicated region
    $region21: #{up_step_forward.3} parent=5 // pred_check
      %p125 = pneg %p124
    $region22: #{up_step_forward.3} parent=5 // pred_check_branch
      %127 = sbr.rel (%p125) target = $region24
    $region23: #{up_step_forward.3} parent=5 // pred_region
      // Predicated region
      $region25: #{up_step_forward.3} parent=23 // pred_check
        %p128 = pneg %p29
      $region26: #{up_step_forward.3} parent=23 // pred_check_branch
        %130 = sbr.rel (%p128) target = $region28
      $region27: #{up_step_forward.3} parent=23 // pred_region
        %p131 = scmp.lt.s32.totalorder %s9, 1
        %s132 = scalar_select %p131, %s9, 1
        %s133 = smul.addr %s132, 8
        %s134 = smul.addr %s133, 4
        %s135 = scalar_lea.vmem %s0, %s134
      $region28: #{up_step_forward.3} parent=23 // pred_fallthru
        _
    $region24: #{up_step_forward.3} parent=5 // pred_fallthru
      _
    %p136 = scmp.le.s32.totalorder 1, %s9
    %p137 = scmp.lt.s32.totalorder %s9, 3
    %p138 = pnand %p136, %p137
    %p139 = pneg %p138
    // Predicated region
    $region29: #{up_step_forward.3} parent=5 // pred_check
      _
    $region30: #{up_step_forward.3} parent=5 // pred_check_branch
      %141 = sbr.rel (%p138) target = $region32
    $region31: #{up_step_forward.3} parent=5 // pred_region
      %s142 = ssub.s32 %s9, 1
      %p143 = scmp.lt.s32.totalorder %s14, 1
      %s144 = scalar_select %p143, %s14, 1
      %s145 = smul.addr %s144, 8
      %s146 = smul.addr %s145, 4
      %s147 = scalar_lea.vmem %s0, %s146
      %p148 = pneg %p35
      %p149 = pneg %p32
      %p150 = pneg %p56
      %p151 = pneg %p53
      %p152 = pneg %p77
      %p153 = pneg %p74
      %p154 = pneg %p103
      %p155 = pneg %p100
      %p156 = scmp.lt.s32.totalorder %s14, 1
      %s157 = scalar_select %p156, %s14, 1
      %s158 = smul.addr %s157, 16
      %s159 = smul.addr %s158, 4
      %s160 = scalar_lea.vmem %s3, %s159
      %p161 = scmp.lt.s32.totalorder %s14, 1
      %s162 = scalar_select %p161, %s14, 1
      %s163 = smul.addr %s162, 8
      %s164 = smul.addr %s163, 4
      %s165 = scalar_lea.vmem %s0, %s164
      %p166 = scmp.lt.s32.totalorder %s14, 1
      %s167 = scalar_select %p166, %s14, 1
      %s168 = smul.addr %s167, 16
      %s169 = smul.addr %s168, 4
      %s170 = scalar_lea.vmem %s3, %s169
      %v172 = vld [vmem:[%s165] sm:$0xf]
      %v173 = vld [vmem:[%s165 + $0x4] sm:$0xf]
      %v174 = vld [vmem:[%s165 + $0x8] sm:$0xf]
      %v175 = vld [vmem:[%s165 + $0xc] sm:$0xf]
      %v176 = vld [vmem:[%s165 + $0x10] sm:$0xf]
      %v177 = vld [vmem:[%s165 + $0x14] sm:$0xf]
      %v178 = vld [vmem:[%s165 + $0x18] sm:$0xf]
      %v179 = vld [vmem:[%s165 + $0x1c] sm:$0xf]
      %v180 = vld [vmem:[%s1] sm:$0xf]
      %v181 = vld [vmem:[%s2] sm:$0x1]
      %v183 = vlaneseq
      %v184 = vshrl.u32 %v183, 7
      %v185 = vsub.s32 0, %v184
      %v186 = vrot.slane %v181, %v185
      %v196 = vunpack.c.l.b16 %v172
      %v197 = vunpack.c.l.b16 %v173
      %v198 = vunpack.c.l.b16 %v174
      %v199 = vunpack.c.l.b16 %v175
      %v200 = vunpack.c.l.b16 %v176
      %v201 = vunpack.c.l.b16 %v177
      %v202 = vunpack.c.l.b16 %v178
      %v203 = vunpack.c.l.b16 %v179
      %v204 = vpack.c.b16 %v197, %v196
      %v205 = vpack.c.b16 %v199, %v198
      %v206 = vpack.c.b16 %v201, %v200
      %v207 = vpack.c.b16 %v203, %v202
      %vm208 = vcmask 64512
      %v210 = vsel %vm208, %v204, 0
      %v213 = vsel %vm208, %v205, 0
      %v216 = vsel %vm208, %v206, 0
      %v219 = vsel %vm208, %v207, 0
      %vm221 = vcmask 1043456
      %v223 = vsel %vm221, %v180, 0
      %225 = vmatprep.subr.bf16.mxu0 0
      %226 = vmatpush1.bf16.msra.mxu0 0
      %227 = vmatprep.subr.bf16.mxu0 0
      %228 = vmatpush1.bf16.msra.mxu0 0
      %229 = vmatprep.subr.bf16.mxu0 0
      %230 = vmatpush1.bf16.msra.mxu0 0
      %231 = vmatprep.subr.bf16.mxu0 0
      %232 = vmatpush1.bf16.msra.mxu0 0
      %233 = vmatprep.subr.bf16.mxu0 0
      %234 = vmatpush1.bf16.msra.mxu0 0
      %235 = vmatprep.subr.bf16.mxu0 0
      %236 = vmatpush1.bf16.msra.mxu0 0
      %237 = vmatprep.subr.bf16.mxu0 0
      %238 = vmatpush1.bf16.msra.mxu0 0
      %239 = vmatprep.subr.bf16.mxu0 0
      %240 = vmatpush1.bf16.msra.mxu0 %v223
      %241 = vmatprep.subr.bf16.mxu0 0
      %242 = vmatpush2.bf16.msra.mxu0 0
      %243 = vmatprep.subr.bf16.mxu0 0
      %244 = vmatpush2.bf16.msra.mxu0 0
      %245 = vmatprep.subr.bf16.mxu0 0
      %246 = vmatpush2.bf16.msra.mxu0 0
      %247 = vmatprep.subr.bf16.mxu0 0
      %248 = vmatpush2.bf16.msra.mxu0 0
      %249 = vmatprep.subr.bf16.mxu0 0
      %250 = vmatpush2.bf16.msra.mxu0 0
      %251 = vmatprep.subr.bf16.mxu0 0
      %252 = vmatpush2.bf16.msra.mxu0 0
      %253 = vmatprep.subr.bf16.mxu0 0
      %254 = vmatpush2.bf16.msra.mxu0 0
      %255 = vmatprep.subr.bf16.mxu0 0
      %256 = vmatpush2.bf16.msra.mxu0 0
      %257 = vmatprep.mubr.bf16.mxu0 0
      %258 = vmatmul.mubr.bf16.gmra.mxu0 %v210
      %v259 = vpop.f32.mrf.mxu0
      %v260 = vadd.f32 %v186, %v259
      %v261 = vpop.f32.mrf.mxu0
      %v262 = vpop.f32.mrf.mxu0
      %v263 = vadd.f32 %v186, %v262
      %v264 = vpop.f32.mrf.mxu0
      %265 = vmatprep.mubr.bf16.mxu0 0
      %266 = vmatmul.mubr.bf16.gmra.mxu0 %v213
      %v267 = vpop.f32.mrf.mxu0
      %v268 = vadd.f32 %v186, %v267
      %v269 = vpop.f32.mrf.mxu0
      %v270 = vpop.f32.mrf.mxu0
      %v271 = vadd.f32 %v186, %v270
      %v272 = vpop.f32.mrf.mxu0
      %273 = vmatprep.mubr.bf16.mxu0 0
      %274 = vmatmul.mubr.bf16.gmra.mxu0 %v216
      %v275 = vpop.f32.mrf.mxu0
      %v276 = vadd.f32 %v186, %v275
      %v277 = vpop.f32.mrf.mxu0
      %v278 = vpop.f32.mrf.mxu0
      %v279 = vadd.f32 %v186, %v278
      %v280 = vpop.f32.mrf.mxu0
      %281 = vmatprep.mubr.bf16.mxu0 0
      %282 = vmatmul.mubr.bf16.gmra.mxu0 %v219
      %v283 = vpop.f32.mrf.mxu0
      %v284 = vadd.f32 %v186, %v283
      %v285 = vpop.f32.mrf.mxu0
      %v286 = vpop.f32.mrf.mxu0
      %v287 = vadd.f32 %v186, %v286
      %v288 = vpop.f32.mrf.mxu0
      %289 = vdwg.mxu0
      %v290 = vpack.c.bf16 %v263, %v260
      %v291 = vpack.c.bf16 %v271, %v268
      %v292 = vpack.c.bf16 %v279, %v276
      %v293 = vpack.c.bf16 %v287, %v284
      %vm294 = vcmask 60416
      %295 = vst.msk [vmem:[%s170] sm:$0xf] %vm294, %v290
      %v297 = vunpack.c.h.b16 %v290
      %v298 = vpack.c.b16 %v297, %v297
      %s300 = scalar_lea.vmem %s170, 8
      %301 = vst.msk [vmem:[%s300] sm:$0xf] %vm294, %v298
      %s302 = scalar_lea.vmem %s170, 16
      %303 = vst.msk [vmem:[%s302] sm:$0xf] %vm294, %v291
      %v305 = vunpack.c.h.b16 %v291
      %v306 = vpack.c.b16 %v305, %v305
      %s308 = scalar_lea.vmem %s170, 24
      %309 = vst.msk [vmem:[%s308] sm:$0xf] %vm294, %v306
      %s310 = scalar_lea.vmem %s170, 32
      %311 = vst.msk [vmem:[%s310] sm:$0xf] %vm294, %v292
      %v313 = vunpack.c.h.b16 %v292
      %v314 = vpack.c.b16 %v313, %v313
      %s316 = scalar_lea.vmem %s170, 40
      %317 = vst.msk [vmem:[%s316] sm:$0xf] %vm294, %v314
      %s318 = scalar_lea.vmem %s170, 48
      %319 = vst.msk [vmem:[%s318] sm:$0xf] %vm294, %v293
      %v321 = vunpack.c.h.b16 %v293
      %v322 = vpack.c.b16 %v321, %v321
      %s324 = scalar_lea.vmem %s170, 56
      %325 = vst.msk [vmem:[%s324] sm:$0xf] %vm294, %v322
      %s326 = scalar_lea.vmem %s1, 4
      %v327 = vld [vmem:[%s326] sm:$0xf]
      %v328 = vld [vmem:[%s2] sm:$0x1]
      %v330 = vlaneseq
      %v331 = vshrl.u32 %v330, 7
      %v332 = vsub.s32 0, %v331
      %v333 = vrot.slane %v328, %v332
      %v336 = vsel %vm221, %v327, 0
      %338 = vmatprep.subr.bf16.mxu0 0
      %339 = vmatpush1.bf16.msra.mxu0 0
      %340 = vmatprep.subr.bf16.mxu0 0
      %341 = vmatpush1.bf16.msra.mxu0 0
      %342 = vmatprep.subr.bf16.mxu0 0
      %343 = vmatpush1.bf16.msra.mxu0 0
      %344 = vmatprep.subr.bf16.mxu0 0
      %345 = vmatpush1.bf16.msra.mxu0 0
      %346 = vmatprep.subr.bf16.mxu0 0
      %347 = vmatpush1.bf16.msra.mxu0 0
      %348 = vmatprep.subr.bf16.mxu0 0
      %349 = vmatpush1.bf16.msra.mxu0 0
      %350 = vmatprep.subr.bf16.mxu0 0
      %351 = vmatpush1.bf16.msra.mxu0 0
      %352 = vmatprep.subr.bf16.mxu0 0
      %353 = vmatpush1.bf16.msra.mxu0 %v336
      %354 = vmatprep.subr.bf16.mxu0 0
      %355 = vmatpush2.bf16.msra.mxu0 0
      %356 = vmatprep.subr.bf16.mxu0 0
      %357 = vmatpush2.bf16.msra.mxu0 0
      %358 = vmatprep.subr.bf16.mxu0 0
      %359 = vmatpush2.bf16.msra.mxu0 0
      %360 = vmatprep.subr.bf16.mxu0 0
      %361 = vmatpush2.bf16.msra.mxu0 0
      %362 = vmatprep.subr.bf16.mxu0 0
      %363 = vmatpush2.bf16.msra.mxu0 0
      %364 = vmatprep.subr.bf16.mxu0 0
      %365 = vmatpush2.bf16.msra.mxu0 0
      %366 = vmatprep.subr.bf16.mxu0 0
      %367 = vmatpush2.bf16.msra.mxu0 0
      %368 = vmatprep.subr.bf16.mxu0 0
      %369 = vmatpush2.bf16.msra.mxu0 0
      %370 = vmatprep.mubr.bf16.mxu0 0
      %371 = vmatmul.mubr.bf16.gmra.mxu0 %v210
      %v372 = vpop.f32.mrf.mxu0
      %v373 = vadd.f32 %v333, %v372
      %v374 = vpop.f32.mrf.mxu0
      %v375 = vpop.f32.mrf.mxu0
      %v376 = vadd.f32 %v333, %v375
      %v377 = vpop.f32.mrf.mxu0
      %378 = vmatprep.mubr.bf16.mxu0 0
      %379 = vmatmul.mubr.bf16.gmra.mxu0 %v213
      %v380 = vpop.f32.mrf.mxu0
      %v381 = vadd.f32 %v333, %v380
      %v382 = vpop.f32.mrf.mxu0
      %v383 = vpop.f32.mrf.mxu0
      %v384 = vadd.f32 %v333, %v383
      %v385 = vpop.f32.mrf.mxu0
      %386 = vmatprep.mubr.bf16.mxu0 0
      %387 = vmatmul.mubr.bf16.gmra.mxu0 %v216
      %v388 = vpop.f32.mrf.mxu0
      %v389 = vadd.f32 %v333, %v388
      %v390 = vpop.f32.mrf.mxu0
      %v391 = vpop.f32.mrf.mxu0
      %v392 = vadd.f32 %v333, %v391
      %v393 = vpop.f32.mrf.mxu0
      %394 = vmatprep.mubr.bf16.mxu0 0
      %395 = vmatmul.mubr.bf16.gmra.mxu0 %v219
      %v396 = vpop.f32.mrf.mxu0
      %v397 = vadd.f32 %v333, %v396
      %v398 = vpop.f32.mrf.mxu0
      %v399 = vpop.f32.mrf.mxu0
      %v400 = vadd.f32 %v333, %v399
      %v401 = vpop.f32.mrf.mxu0
      %402 = vdwg.mxu0
      %v403 = vpack.c.bf16 %v376, %v373
      %v404 = vpack.c.bf16 %v384, %v381
      %v405 = vpack.c.bf16 %v392, %v389
      %v406 = vpack.c.bf16 %v400, %v397
      %s407 = scalar_lea.vmem %s170, 4
      %408 = vst.msk [vmem:[%s407] sm:$0xf] %vm294, %v403
      %v410 = vunpack.c.h.b16 %v403
      %v411 = vpack.c.b16 %v410, %v410
      %s413 = scalar_lea.vmem %s170, 12
      %414 = vst.msk [vmem:[%s413] sm:$0xf] %vm294, %v411
      %s415 = scalar_lea.vmem %s170, 20
      %416 = vst.msk [vmem:[%s415] sm:$0xf] %vm294, %v404
      %v418 = vunpack.c.h.b16 %v404
      %v419 = vpack.c.b16 %v418, %v418
      %s421 = scalar_lea.vmem %s170, 28
      %422 = vst.msk [vmem:[%s421] sm:$0xf] %vm294, %v419
      %s423 = scalar_lea.vmem %s170, 36
      %424 = vst.msk [vmem:[%s423] sm:$0xf] %vm294, %v405
      %v426 = vunpack.c.h.b16 %v405
      %v427 = vpack.c.b16 %v426, %v426
      %s429 = scalar_lea.vmem %s170, 44
      %430 = vst.msk [vmem:[%s429] sm:$0xf] %vm294, %v427
      %s431 = scalar_lea.vmem %s170, 52
      %432 = vst.msk [vmem:[%s431] sm:$0xf] %vm294, %v406
      %v434 = vunpack.c.h.b16 %v406
      %v435 = vpack.c.b16 %v434, %v434
      %s437 = scalar_lea.vmem %s170, 60
      %438 = vst.msk [vmem:[%s437] sm:$0xf] %vm294, %v435
      %p439 = scmp.lt.s32.totalorder %s14, 1
      %s440 = scalar_select %p439, %s14, 1
      %s441 = smul.addr %s440, 16
      %s442 = smul.addr %s441, 4
      %s443 = scalar_lea.vmem %s3, %s442
      // Predicated region
      $region33: #{up_step_forward.3} parent=31 // pred_check
        %p444 = pneg %p100
      $region34: #{up_step_forward.3} parent=31 // pred_check_branch
        %446 = sbr.rel (%p444) target = $region36
      $region35: #{up_step_forward.3} parent=31 // pred_region
        _
      $region36: #{up_step_forward.3} parent=31 // pred_fallthru
        _
    $region32: #{up_step_forward.3} parent=5 // pred_fallthru
      _
    %p447 = scmp.le.s32.totalorder 2, %s9
    // Predicated region
    $region37: #{up_step_forward.3} parent=5 // pred_check
      %p448 = pneg %p447
    $region38: #{up_step_forward.3} parent=5 // pred_check_branch
      %450 = sbr.rel (%p448) target = $region40
    $region39: #{up_step_forward.3} parent=5 // pred_region
      %s451 = ssub.s32 %s9, 2
      // Predicated region
      $region41: #{up_step_forward.3} parent=39 // pred_check
        %p452 = pneg %p106
      $region42: #{up_step_forward.3} parent=39 // pred_check_branch
        %454 = sbr.rel (%p452) target = $region44
      $region43: #{up_step_forward.3} parent=39 // pred_region
        %p455 = scmp.lt.s32.totalorder %s15, 1
        %s456 = scalar_select %p455, %s15, 1
        %s457 = smul.addr %s456, 16
        %s458 = smul.addr %s457, 4
        %s459 = scalar_lea.vmem %s3, %s458
      $region44: #{up_step_forward.3} parent=39 // pred_fallthru
        _
    $region40: #{up_step_forward.3} parent=5 // pred_fallthru
      _
  $region6: #{up_step_forward.3} parent=0 // loop_footer
    %s13 = sadd.s32 1, %s9
  $region7: #{up_step_forward.3} parent=0 // loop_footer_branch
    %8 = sbr.rel target = $region3
  $region8: #{up_step_forward.3} parent=0 // loop_exit
    _

// kernel: up_step_forward.5
$region0: #{up_step_forward.5}
  #allocation0 [shape = 'u32[]', space=smem, size = 0x4, offset = 0x4, fixed_abs, tag = 'smem constant byte address 0x4 - core index']
  #allocation1 [shape = 'u32[144,128]{1,0:T(1,128)}', space=vmem, size = 0x12000, scoped, tag = 'internal scratch']
  %s0 = inlined_call_operand.vmem [shape: bf16[2,14,16,128], index: 0, kind: input, shape index: {}]
  %s1 = inlined_call_operand.vmem [shape: f32[1,128], index: 1, kind: input, shape index: {}]
  %s2 = inlined_call_operand.vmem [shape: f32[1,128], index: 2, kind: input, shape index: {}]
  %s3 = inlined_call_operand.vmem [shape: bf16[3,3,128,128], index: 3, kind: input, shape index: {}]
  %s4 = inlined_call_operand.vmem [shape: f32[1,128], index: 4, kind: input, shape index: {}]
  %s5 = inlined_call_operand.vmem [shape: f32[2,12,12,128], index: 5, kind: output, shape index: {0}]
  %s6 = inlined_call_operand.vmem [shape: f32[2,1,128], index: 6, kind: output, shape index: {1}]
  %s7 = inlined_call_operand.vmem [shape: f32[2,1,128], index: 7, kind: output, shape index: {2}]
  %8 = xla_tuple %s5, %s6, %s7
  %s9 = sld [smem:[#allocation0]]
  $region69: #{up_step_forward.5} parent=0
    _
  %s11 = ssub.s32 1, %s9
  %s12 = scalar_select 0, %s11, %s9
  loop: start=0, step=1, limit=4
  $region2: #{up_step_forward.5} parent=0 // loop_pre_header
    _
  $region3: #{up_step_forward.5} parent=0 // loop_header
    %s14 = sphi 0, %s18
    %p15 = scmp.ge.s32.totalorder %s14, 4
    %s24 = sphi 0, %s26
    %s27 = sphi 0, %s24
    %s28 = sphi 0, %s27
    %s44 = sphi 0, %s28
    %s48 = sphi 0, %s48
    %s50 = sphi 0, %s48
    %s51 = sphi 0, %s50
    %s65 = sphi 0, %s51
    %s69 = sphi 0, %s69
    %s71 = sphi 0, %s69
    %s72 = sphi 0, %s71
    %s86 = sphi 0, %s72
    %s90 = sphi 0, %s90
    %s92 = sphi 0, %s90
    %s93 = sphi 0, %s92
    %s107 = sphi 0, %s93
    %s111 = sphi 0, %s111
    %s113 = sphi 0, %s111
    %s114 = sphi 0, %s113
    %s128 = sphi 0, %s114
    %s134 = sphi 0, %s136
    %s137 = sphi 0, %s134
    %s138 = sphi 0, %s137
    %s154 = sphi 0, %s138
    %s160 = sphi 0, %s162
    %s163 = sphi 0, %s160
    %s164 = sphi 0, %s163
    %s180 = sphi 0, %s164
    %s186 = sphi 0, %s188
    %s189 = sphi 0, %s186
    %s190 = sphi 0, %s189
    %s206 = sphi 0, %s190
  $region4: #{up_step_forward.5} parent=0 // loop_header_branch
    %17 = sbr.rel (%p15) target = $region8
  $region5: #{up_step_forward.5} parent=0 // loop_body
    %s19 = ssub.s32 %s14, 1
    %s20 = ssub.s32 %s14, 2
    %s21 = sadd.s32 %s14, 1
    %s22 = ssub.s32 %s14, %s21
    %p23 = scmp.eq.s32.totalorder %s22, 0
    %s25 = sadd.s32 %s24, 1
    %s26 = scalar_select %p23, %s24, %s25
    %p29 = pneg %p23
    %p30 = scmp.eq.s32.totalorder %s14, 1
    %p31 = por %p29, %p30
    %p32 = scmp.ne.s32.totalorder %s24, %s27
    %p33 = scmp.eq.s32.totalorder %s14, 0
    %p34 = por %p32, %p33
    %p35 = scmp.ne.s32.totalorder %s24, %s27
    %p36 = scmp.eq.s32.totalorder %s19, 1
    %p37 = por %p35, %p36
    %p38 = scmp.ne.s32.totalorder %s27, %s28
    %p39 = scmp.eq.s32.totalorder %s19, 0
    %p40 = por %p38, %p39
    %p41 = scmp.ne.s32.totalorder %s27, %s28
    %p42 = scmp.eq.s32.totalorder %s20, 1
    %p43 = por %p41, %p42
    %p45 = scmp.ne.s32.totalorder %s28, %s44
    %p46 = scmp.eq.s32.totalorder %s20, 0
    %p47 = por %p45, %p46
    %s49 = sadd.s32 %s48, 1
    %p52 = scmp.eq.s32.totalorder %s14, 1
    %p53 = scmp.ne.s32.totalorder %s48, %s50
    %p54 = scmp.eq.s32.totalorder %s14, 0
    %p55 = por %p53, %p54
    %p56 = scmp.ne.s32.totalorder %s48, %s50
    %p57 = scmp.eq.s32.totalorder %s19, 1
    %p58 = por %p56, %p57
    %p59 = scmp.ne.s32.totalorder %s50, %s51
    %p60 = scmp.eq.s32.totalorder %s19, 0
    %p61 = por %p59, %p60
    %p62 = scmp.ne.s32.totalorder %s50, %s51
    %p63 = scmp.eq.s32.totalorder %s20, 1
    %p64 = por %p62, %p63
    %p66 = scmp.ne.s32.totalorder %s51, %s65
    %p67 = scmp.eq.s32.totalorder %s20, 0
    %p68 = por %p66, %p67
    %s70 = sadd.s32 %s69, 1
    %p73 = scmp.eq.s32.totalorder %s14, 1
    %p74 = scmp.ne.s32.totalorder %s69, %s71
    %p75 = scmp.eq.s32.totalorder %s14, 0
    %p76 = por %p74, %p75
    %p77 = scmp.ne.s32.totalorder %s69, %s71
    %p78 = scmp.eq.s32.totalorder %s19, 1
    %p79 = por %p77, %p78
    %p80 = scmp.ne.s32.totalorder %s71, %s72
    %p81 = scmp.eq.s32.totalorder %s19, 0
    %p82 = por %p80, %p81
    %p83 = scmp.ne.s32.totalorder %s71, %s72
    %p84 = scmp.eq.s32.totalorder %s20, 1
    %p85 = por %p83, %p84
    %p87 = scmp.ne.s32.totalorder %s72, %s86
    %p88 = scmp.eq.s32.totalorder %s20, 0
    %p89 = por %p87, %p88
    %s91 = sadd.s32 %s90, 1
    %p94 = scmp.eq.s32.totalorder %s14, 1
    %p95 = scmp.ne.s32.totalorder %s90, %s92
    %p96 = scmp.eq.s32.totalorder %s14, 0
    %p97 = por %p95, %p96
    %p98 = scmp.ne.s32.totalorder %s90, %s92
    %p99 = scmp.eq.s32.totalorder %s19, 1
    %p100 = por %p98, %p99
    %p101 = scmp.ne.s32.totalorder %s92, %s93
    %p102 = scmp.eq.s32.totalorder %s19, 0
    %p103 = por %p101, %p102
    %p104 = scmp.ne.s32.totalorder %s92, %s93
    %p105 = scmp.eq.s32.totalorder %s20, 1
    %p106 = por %p104, %p105
    %p108 = scmp.ne.s32.totalorder %s93, %s107
    %p109 = scmp.eq.s32.totalorder %s20, 0
    %p110 = por %p108, %p109
    %s112 = sadd.s32 %s111, 1
    %p115 = scmp.eq.s32.totalorder %s14, 1
    %p116 = scmp.ne.s32.totalorder %s111, %s113
    %p117 = scmp.eq.s32.totalorder %s14, 0
    %p118 = por %p116, %p117
    %p119 = scmp.ne.s32.totalorder %s111, %s113
    %p120 = scmp.eq.s32.totalorder %s19, 1
    %p121 = por %p119, %p120
    %p122 = scmp.ne.s32.totalorder %s113, %s114
    %p123 = scmp.eq.s32.totalorder %s19, 0
    %p124 = por %p122, %p123
    %p125 = scmp.ne.s32.totalorder %s113, %s114
    %p126 = scmp.eq.s32.totalorder %s20, 1
    %p127 = por %p125, %p126
    %p129 = scmp.ne.s32.totalorder %s114, %s128
    %p130 = scmp.eq.s32.totalorder %s20, 0
    %p131 = por %p129, %p130
    %s132 = ssub.s32 %s14, %s21
    %p133 = scmp.eq.s32.totalorder %s132, 0
    %s135 = sadd.s32 %s134, 1
    %s136 = scalar_select %p133, %s134, %s135
    %p139 = pneg %p133
    %p140 = scmp.eq.s32.totalorder %s14, 1
    %p141 = por %p139, %p140
    %p142 = scmp.ne.s32.totalorder %s134, %s137
    %p143 = scmp.eq.s32.totalorder %s14, 0
    %p144 = por %p142, %p143
    %p145 = scmp.ne.s32.totalorder %s134, %s137
    %p146 = scmp.eq.s32.totalorder %s19, 1
    %p147 = por %p145, %p146
    %p148 = scmp.ne.s32.totalorder %s137, %s138
    %p149 = scmp.eq.s32.totalorder %s19, 0
    %p150 = por %p148, %p149
    %p151 = scmp.ne.s32.totalorder %s137, %s138
    %p152 = scmp.eq.s32.totalorder %s20, 1
    %p153 = por %p151, %p152
    %p155 = scmp.ne.s32.totalorder %s138, %s154
    %p156 = scmp.eq.s32.totalorder %s20, 0
    %p157 = por %p155, %p156
    %s158 = ssub.s32 %s14, %s21
    %p159 = scmp.eq.s32.totalorder %s158, 0
    %s161 = sadd.s32 %s160, 1
    %s162 = scalar_select %p159, %s160, %s161
    %p165 = pneg %p159
    %p166 = scmp.eq.s32.totalorder %s14, 1
    %p167 = por %p165, %p166
    %p168 = scmp.ne.s32.totalorder %s160, %s163
    %p169 = scmp.eq.s32.totalorder %s14, 0
    %p170 = por %p168, %p169
    %p171 = scmp.ne.s32.totalorder %s160, %s163
    %p172 = scmp.eq.s32.totalorder %s19, 1
    %p173 = por %p171, %p172
    %p174 = scmp.ne.s32.totalorder %s163, %s164
    %p175 = scmp.eq.s32.totalorder %s19, 0
    %p176 = por %p174, %p175
    %p177 = scmp.ne.s32.totalorder %s163, %s164
    %p178 = scmp.eq.s32.totalorder %s20, 1
    %p179 = por %p177, %p178
    %p181 = scmp.ne.s32.totalorder %s164, %s180
    %p182 = scmp.eq.s32.totalorder %s20, 0
    %p183 = por %p181, %p182
    %s184 = ssub.s32 %s14, %s21
    %p185 = scmp.eq.s32.totalorder %s184, 0
    %s187 = sadd.s32 %s186, 1
    %s188 = scalar_select %p185, %s186, %s187
    %p191 = pneg %p185
    %p192 = scmp.eq.s32.totalorder %s14, 1
    %p193 = por %p191, %p192
    %p194 = scmp.ne.s32.totalorder %s186, %s189
    %p195 = scmp.eq.s32.totalorder %s14, 0
    %p196 = por %p194, %p195
    %p197 = scmp.ne.s32.totalorder %s186, %s189
    %p198 = scmp.eq.s32.totalorder %s19, 1
    %p199 = por %p197, %p198
    %p200 = scmp.ne.s32.totalorder %s189, %s190
    %p201 = scmp.eq.s32.totalorder %s19, 0
    %p202 = por %p200, %p201
    %p203 = scmp.ne.s32.totalorder %s189, %s190
    %p204 = scmp.eq.s32.totalorder %s20, 1
    %p205 = por %p203, %p204
    %p207 = scmp.ne.s32.totalorder %s190, %s206
    %p208 = scmp.eq.s32.totalorder %s20, 0
    %p209 = por %p207, %p208
    %p210 = scmp.le.s32.totalorder 1, %s14
    %p211 = scmp.lt.s32.totalorder %s14, 3
    %p212 = pnand %p210, %p211
    %p213 = pneg %p212
    // Predicated region
    $region9: #{up_step_forward.5} parent=5 // pred_check
      _
    $region10: #{up_step_forward.5} parent=5 // pred_check_branch
      %215 = sbr.rel (%p212) target = $region12
    $region11: #{up_step_forward.5} parent=5 // pred_region
      %s216 = ssub.s32 %s14, 1
      // Predicated region
      $region13: #{up_step_forward.5} parent=11 // pred_check
        %p217 = pneg %p61
      $region14: #{up_step_forward.5} parent=11 // pred_check_branch
        %219 = sbr.rel (%p217) target = $region16
      $region15: #{up_step_forward.5} parent=11 // pred_region
        _
      $region16: #{up_step_forward.5} parent=11 // pred_fallthru
        _
      // Predicated region
      $region17: #{up_step_forward.5} parent=11 // pred_check
        %p220 = pneg %p82
      $region18: #{up_step_forward.5} parent=11 // pred_check_branch
        %222 = sbr.rel (%p220) target = $region20
      $region19: #{up_step_forward.5} parent=11 // pred_region
        _
      $region20: #{up_step_forward.5} parent=11 // pred_fallthru
        _
      // Predicated region
      $region21: #{up_step_forward.5} parent=11 // pred_check
        %p223 = pneg %p103
      $region22: #{up_step_forward.5} parent=11 // pred_check_branch
        %225 = sbr.rel (%p223) target = $region24
      $region23: #{up_step_forward.5} parent=11 // pred_region
        _
      $region24: #{up_step_forward.5} parent=11 // pred_fallthru
        _
      // Predicated region
      $region25: #{up_step_forward.5} parent=11 // pred_check
        %p226 = pneg %p124
      $region26: #{up_step_forward.5} parent=11 // pred_check_branch
        %228 = sbr.rel (%p226) target = $region28
      $region27: #{up_step_forward.5} parent=11 // pred_region
        _
      $region28: #{up_step_forward.5} parent=11 // pred_fallthru
        _
    $region12: #{up_step_forward.5} parent=5 // pred_fallthru
      _
    %p229 = scmp.lt.s32.totalorder %s14, 2
    // Predicated region
    $region29: #{up_step_forward.5} parent=5 // pred_check
      %p230 = pneg %p229
    $region30: #{up_step_forward.5} parent=5 // pred_check_branch
      %232 = sbr.rel (%p230) target = $region32
    $region31: #{up_step_forward.5} parent=5 // pred_region
      // Predicated region
      $region33: #{up_step_forward.5} parent=31 // pred_check
        %p233 = pneg %p34
      $region34: #{up_step_forward.5} parent=31 // pred_check_branch
        %235 = sbr.rel (%p233) target = $region36
      $region35: #{up_step_forward.5} parent=31 // pred_region
        %p236 = scmp.lt.s32.totalorder %s14, 1
        %s237 = scalar_select %p236, %s14, 1
        %s238 = smul.addr %s237, 28
        %s239 = smul.addr %s238, 4
        %s240 = scalar_lea.vmem %s0, %s239
      $region36: #{up_step_forward.5} parent=31 // pred_fallthru
        _
    $region32: #{up_step_forward.5} parent=5 // pred_fallthru
      _
    %p241 = scmp.le.s32.totalorder 1, %s14
    %p242 = scmp.lt.s32.totalorder %s14, 3
    %p243 = pnand %p241, %p242
    %p244 = pneg %p243
    // Predicated region
    $region37: #{up_step_forward.5} parent=5 // pred_check
      _
    $region38: #{up_step_forward.5} parent=5 // pred_check_branch
      %246 = sbr.rel (%p243) target = $region40
    $region39: #{up_step_forward.5} parent=5 // pred_region
      %s247 = ssub.s32 %s14, 1
      %p248 = scmp.lt.s32.totalorder %s19, 1
      %s249 = scalar_select %p248, %s19, 1
      %s250 = smul.addr %s249, 28
      %s251 = smul.addr %s250, 4
      %s252 = scalar_lea.vmem %s0, %s251
      %p253 = pneg %p40
      %p254 = pneg %p37
      %p255 = pneg %p61
      %p256 = pneg %p58
      %p257 = pneg %p82
      %p258 = pneg %p79
      %p259 = pneg %p103
      %p260 = pneg %p100
      %p261 = pneg %p124
      %p262 = pneg %p121
      %p263 = pneg %p150
      %p264 = pneg %p147
      %p265 = scmp.lt.s32.totalorder %s19, 1
      %s266 = scalar_select %p265, %s19, 1
      %s267 = smul.addr %s266, 24
      %s268 = smul.addr %s267, 8
      %s269 = scalar_lea.vmem %s5, %s268
      %p270 = pneg %p176
      %p271 = pneg %p173
      %p272 = scmp.lt.s32.totalorder %s19, 1
      %s273 = scalar_select %p272, %s19, 1
      %s274 = scalar_lea.vmem %s6, %s273
      %p275 = pneg %p202
      %p276 = pneg %p199
      %p277 = scmp.lt.s32.totalorder %s19, 1
      %s278 = scalar_select %p277, %s19, 1
      %s279 = scalar_lea.vmem %s7, %s278
      %p280 = scmp.lt.s32.totalorder %s19, 1
      %s281 = scalar_select %p280, %s19, 1
      %s282 = smul.addr %s281, 28
      %s283 = smul.addr %s282, 4
      %s284 = scalar_lea.vmem %s0, %s283
      %p285 = scmp.lt.s32.totalorder %s19, 1
      %s286 = scalar_select %p285, %s19, 1
      %s287 = smul.addr %s286, 24
      %s288 = smul.addr %s287, 8
      %s289 = scalar_lea.vmem %s5, %s288
      %p290 = scmp.lt.s32.totalorder %s19, 1
      %s291 = scalar_select %p290, %s19, 1
      %s292 = scalar_lea.vmem %s6, %s291
      %p293 = scmp.lt.s32.totalorder %s19, 1
      %s294 = scalar_select %p293, %s19, 1
      %s295 = scalar_lea.vmem %s7, %s294
      %v297 = vld [vmem:[%s1] sm:$0x1]
      %v298 = vld [vmem:[%s2] sm:$0x1]
      %v299 = vld [vmem:[%s4] sm:$0x1]
      %v301 = vlaneseq
      %v302 = vshrl.u32 %v301, 7
      %v303 = vsub.s32 0, %v302
      %v304 = vrot.slane %v299, %v303
      %v306 = vld [vmem:[%s284] sm:$0xf]
      %v307 = vld [vmem:[%s284 + $0x4] sm:$0xf]
      %v308 = vld [vmem:[%s284 + $0x8] sm:$0xf]
      %v309 = vld [vmem:[%s284 + $0xc] sm:$0xf]
      %v310 = vld [vmem:[%s284 + $0x10] sm:$0xf]
      %v311 = vld [vmem:[%s284 + $0x14] sm:$0xf]
      %v312 = vld [vmem:[%s284 + $0x18] sm:$0xf]
      %v313 = vld [vmem:[%s284 + $0x1c] sm:$0xf]
      %v314 = vld [vmem:[%s284 + $0x20] sm:$0xf]
      %v315 = vld [vmem:[%s284 + $0x24] sm:$0xf]
      %v316 = vld [vmem:[%s284 + $0x28] sm:$0xf]
      %v317 = vld [vmem:[%s284 + $0x2c] sm:$0xf]
      %v318 = vld [vmem:[%s284 + $0x30] sm:$0xf]
      %v319 = vld [vmem:[%s284 + $0x34] sm:$0xf]
      %v320 = vld [vmem:[%s284 + $0x38] sm:$0xf]
      %v321 = vld [vmem:[%s284 + $0x3c] sm:$0xf]
      %v322 = vld [vmem:[%s284 + $0x40] sm:$0xf]
      %v323 = vld [vmem:[%s284 + $0x44] sm:$0xf]
      %v324 = vld [vmem:[%s284 + $0x48] sm:$0xf]
      %v325 = vld [vmem:[%s284 + $0x4c] sm:$0xf]
      %v326 = vld [vmem:[%s284 + $0x50] sm:$0xf]
      %v327 = vld [vmem:[%s284 + $0x54] sm:$0xf]
      %v328 = vld [vmem:[%s284 + $0x58] sm:$0xf]
      %v329 = vld [vmem:[%s284 + $0x5c] sm:$0xf]
      %v330 = vunpack.c.l.bf16 %v306
      %v331 = vunpack.c.l.bf16 %v307
      %v332 = vunpack.c.l.bf16 %v308
      %v333 = vunpack.c.l.bf16 %v309
      %v334 = vunpack.c.l.bf16 %v310
      %v335 = vunpack.c.l.bf16 %v311
      %v336 = vunpack.c.l.bf16 %v312
      %v337 = vunpack.c.l.bf16 %v313
      %v338 = vunpack.c.l.bf16 %v314
      %v339 = vunpack.c.l.bf16 %v315
      %v340 = vunpack.c.l.bf16 %v316
      %v341 = vunpack.c.l.bf16 %v317
      %v342 = vunpack.c.l.bf16 %v318
      %v343 = vunpack.c.l.bf16 %v319
      %v344 = vunpack.c.l.bf16 %v320
      %v345 = vunpack.c.l.bf16 %v321
      %v346 = vunpack.c.l.bf16 %v322
      %v347 = vunpack.c.l.bf16 %v323
      %v348 = vunpack.c.l.bf16 %v324
      %v349 = vunpack.c.l.bf16 %v325
      %v350 = vunpack.c.l.bf16 %v326
      %v351 = vunpack.c.l.bf16 %v327
      %v352 = vunpack.c.l.bf16 %v328
      %v353 = vunpack.c.l.bf16 %v329
      %v355 = vlaneseq
      %v356 = vshrl.u32 %v355, 7
      %v357 = vsub.s32 0, %v356
      %v358 = vrot.slane %v297, %v357
      %v360 = vmul.f32 %v330, %v358
      %v361 = vmul.f32 %v331, %v358
      %v362 = vmul.f32 %v332, %v358
      %v363 = vmul.f32 %v333, %v358
      %v364 = vmul.f32 %v334, %v358
      %v365 = vmul.f32 %v335, %v358
      %v366 = vmul.f32 %v336, %v358
      %v367 = vmul.f32 %v337, %v358
      %v368 = vmul.f32 %v338, %v358
      %v369 = vmul.f32 %v339, %v358
      %v370 = vmul.f32 %v340, %v358
      %v371 = vmul.f32 %v341, %v358
      %v372 = vmul.f32 %v342, %v358
      %v373 = vmul.f32 %v343, %v358
      %v374 = vmul.f32 %v344, %v358
      %v375 = vmul.f32 %v345, %v358
      %v376 = vmul.f32 %v346, %v358
      %v377 = vmul.f32 %v347, %v358
      %v378 = vmul.f32 %v348, %v358
      %v379 = vmul.f32 %v349, %v358
      %v380 = vmul.f32 %v350, %v358
      %v381 = vmul.f32 %v351, %v358
      %v382 = vmul.f32 %v352, %v358
      %v383 = vmul.f32 %v353, %v358
      %v385 = vlaneseq
      %v386 = vshrl.u32 %v385, 7
      %v387 = vsub.s32 0, %v386
      %v388 = vrot.slane %v298, %v387
      %v390 = vadd.f32 %v360, %v388
      %v391 = vadd.f32 %v361, %v388
      %v392 = vadd.f32 %v362, %v388
      %v393 = vadd.f32 %v363, %v388
      %v394 = vadd.f32 %v364, %v388
      %v395 = vadd.f32 %v365, %v388
      %v396 = vadd.f32 %v366, %v388
      %v397 = vadd.f32 %v367, %v388
      %v398 = vadd.f32 %v368, %v388
      %v399 = vadd.f32 %v369, %v388
      %v400 = vadd.f32 %v370, %v388
      %v401 = vadd.f32 %v371, %v388
      %v402 = vadd.f32 %v372, %v388
      %v403 = vadd.f32 %v373, %v388
      %v404 = vadd.f32 %v374, %v388
      %v405 = vadd.f32 %v375, %v388
      %v406 = vadd.f32 %v376, %v388
      %v407 = vadd.f32 %v377, %v388
      %v408 = vadd.f32 %v378, %v388
      %v409 = vadd.f32 %v379, %v388
      %v410 = vadd.f32 %v380, %v388
      %v411 = vadd.f32 %v381, %v388
      %v412 = vadd.f32 %v382, %v388
      %v413 = vadd.f32 %v383, %v388
      %v414 = vmax.f32 %v390, 0.0
      %v415 = vmax.f32 %v391, 0.0
      %v416 = vmax.f32 %v392, 0.0
      %v417 = vmax.f32 %v393, 0.0
      %v418 = vmax.f32 %v394, 0.0
      %v419 = vmax.f32 %v395, 0.0
      %v420 = vmax.f32 %v396, 0.0
      %v421 = vmax.f32 %v397, 0.0
      %v422 = vmax.f32 %v398, 0.0
      %v423 = vmax.f32 %v399, 0.0
      %v424 = vmax.f32 %v400, 0.0
      %v425 = vmax.f32 %v401, 0.0
      %v426 = vmax.f32 %v402, 0.0
      %v427 = vmax.f32 %v403, 0.0
      %v428 = vmax.f32 %v404, 0.0
      %v429 = vmax.f32 %v405, 0.0
      %v430 = vmax.f32 %v406, 0.0
      %v431 = vmax.f32 %v407, 0.0
      %v432 = vmax.f32 %v408, 0.0
      %v433 = vmax.f32 %v409, 0.0
      %v434 = vmax.f32 %v410, 0.0
      %v435 = vmax.f32 %v411, 0.0
      %v436 = vmax.f32 %v412, 0.0
      %v437 = vmax.f32 %v413, 0.0
      %v438 = vpack.c.bf16 %v415, %v414
      %v439 = vpack.c.bf16 %v417, %v416
      %v440 = vpack.c.bf16 %v419, %v418
      %v441 = vpack.c.bf16 %v421, %v420
      %v442 = vpack.c.bf16 %v423, %v422
      %v443 = vpack.c.bf16 %v425, %v424
      %v444 = vpack.c.bf16 %v427, %v426
      %v445 = vpack.c.bf16 %v429, %v428
      %v446 = vpack.c.bf16 %v431, %v430
      %v447 = vpack.c.bf16 %v433, %v432
      %v448 = vpack.c.bf16 %v435, %v434
      %v449 = vpack.c.bf16 %v437, %v436
      %v450 = vld [vmem:[%s3] sm:$0xf]
      %v451 = vld [vmem:[%s3 + $0x4] sm:$0xf]
      %v452 = vld [vmem:[%s3 + $0x8] sm:$0xf]
      %v453 = vld [vmem:[%s3 + $0xc] sm:$0xf]
      %v454 = vld [vmem:[%s3 + $0x10] sm:$0xf]
      %v455 = vld [vmem:[%s3 + $0x14] sm:$0xf]
      %v456 = vld [vmem:[%s3 + $0x18] sm:$0xf]
      %v457 = vld [vmem:[%s3 + $0x1c] sm:$0xf]
      %v458 = vld [vmem:[%s3 + $0x20] sm:$0xf]
      %v459 = vld [vmem:[%s3 + $0x24] sm:$0xf]
      %v460 = vld [vmem:[%s3 + $0x28] sm:$0xf]
      %v461 = vld [vmem:[%s3 + $0x2c] sm:$0xf]
      %v462 = vld [vmem:[%s3 + $0x30] sm:$0xf]
      %v463 = vld [vmem:[%s3 + $0x34] sm:$0xf]
      %v464 = vld [vmem:[%s3 + $0x38] sm:$0xf]
      %v465 = vld [vmem:[%s3 + $0x3c] sm:$0xf]
      %v482 = vunpack.c.l.b16 %v450
      %v483 = vunpack.c.l.b16 %v451
      %v484 = vunpack.c.l.b16 %v452
      %v485 = vunpack.c.l.b16 %v453
      %v486 = vunpack.c.l.b16 %v454
      %v487 = vunpack.c.l.b16 %v455
      %v488 = vunpack.c.l.b16 %v456
      %v489 = vunpack.c.l.b16 %v457
      %v490 = vunpack.c.l.b16 %v458
      %v491 = vunpack.c.l.b16 %v459
      %v492 = vunpack.c.l.b16 %v460
      %v493 = vunpack.c.l.b16 %v461
      %v494 = vunpack.c.l.b16 %v462
      %v495 = vunpack.c.l.b16 %v463
      %v496 = vunpack.c.l.b16 %v464
      %v497 = vunpack.c.l.b16 %v465
      %v498 = vpack.c.b16 %v483, %v482
      %v499 = vpack.c.b16 %v485, %v484
      %v500 = vpack.c.b16 %v487, %v486
      %v501 = vpack.c.b16 %v489, %v488
      %v502 = vpack.c.b16 %v491, %v490
      %v503 = vpack.c.b16 %v493, %v492
      %v504 = vpack.c.b16 %v495, %v494
      %v505 = vpack.c.b16 %v497, %v496
      %514 = vmatprep.subr.bf16.mxu0 0
      %515 = vmatpush1.bf16.msra.mxu0 %v505
      %516 = vmatprep.subr.bf16.mxu0 0
      %517 = vmatpush1.bf16.msra.mxu0 %v504
      %518 = vmatprep.subr.bf16.mxu0 0
      %519 = vmatpush1.bf16.msra.mxu0 %v503
      %520 = vmatprep.subr.bf16.mxu0 0
      %521 = vmatpush1.bf16.msra.mxu0 %v502
      %522 = vmatprep.subr.bf16.mxu0 0
      %523 = vmatpush1.bf16.msra.mxu0 %v501
      %524 = vmatprep.subr.bf16.mxu0 0
      %525 = vmatpush1.bf16.msra.mxu0 %v500
      %526 = vmatprep.subr.bf16.mxu0 0
      %527 = vmatpush1.bf16.msra.mxu0 %v499
      %528 = vmatprep.subr.bf16.mxu0 0
      %529 = vmatpush1.bf16.msra.mxu0 %v498
      %530 = vmatprep.subr.bf16.mxu0 0
      %531 = vmatpush2.bf16.msra.mxu0 0
      %532 = vmatprep.subr.bf16.mxu0 0
      %533 = vmatpush2.bf16.msra.mxu0 0
      %534 = vmatprep.subr.bf16.mxu0 0
      %535 = vmatpush2.bf16.msra.mxu0 0
      %536 = vmatprep.subr.bf16.mxu0 0
      %537 = vmatpush2.bf16.msra.mxu0 0
      %538 = vmatprep.subr.bf16.mxu0 0
      %539 = vmatpush2.bf16.msra.mxu0 0
      %540 = vmatprep.subr.bf16.mxu0 0
      %541 = vmatpush2.bf16.msra.mxu0 0
      %542 = vmatprep.subr.bf16.mxu0 0
      %543 = vmatpush2.bf16.msra.mxu0 0
      %544 = vmatprep.subr.bf16.mxu0 0
      %545 = vmatpush2.bf16.msra.mxu0 0
      %546 = vmatprep.mubr.bf16.mxu0 0
      %547 = vmatmul.mubr.bf16.gmra.mxu0 %v438
      %v548 = vpop.f32.mrf.mxu0
      %v549 = vadd.f32 0.0, %v548
      %v550 = vpop.f32.mrf.mxu0
      %v551 = vpop.f32.mrf.mxu0
      %v552 = vadd.f32 0.0, %v551
      %v553 = vpop.f32.mrf.mxu0
      %554 = vmatprep.mubr.bf16.mxu0 0
      %555 = vmatmul.mubr.bf16.gmra.mxu0 %v439
      %v556 = vpop.f32.mrf.mxu0
      %v557 = vadd.f32 0.0, %v556
      %v558 = vpop.f32.mrf.mxu0
      %v559 = vpop.f32.mrf.mxu0
      %v560 = vadd.f32 0.0, %v559
      %v561 = vpop.f32.mrf.mxu0
      %562 = vmatprep.mubr.bf16.mxu0 0
      %563 = vmatmul.mubr.bf16.gmra.mxu0 %v440
      %v564 = vpop.f32.mrf.mxu0
      %v565 = vadd.f32 0.0, %v564
      %v566 = vpop.f32.mrf.mxu0
      %v567 = vpop.f32.mrf.mxu0
      %v568 = vadd.f32 0.0, %v567
      %v569 = vpop.f32.mrf.mxu0
      %570 = vmatprep.mubr.bf16.mxu0 0
      %571 = vmatmul.mubr.bf16.gmra.mxu0 %v441
      %v572 = vpop.f32.mrf.mxu0
      %v573 = vadd.f32 0.0, %v572
      %v574 = vpop.f32.mrf.mxu0
      %v575 = vpop.f32.mrf.mxu0
      %v576 = vadd.f32 0.0, %v575
      %v577 = vpop.f32.mrf.mxu0
      %578 = vmatprep.mubr.bf16.mxu0 0
      %579 = vmatmul.mubr.bf16.gmra.mxu0 %v442
      %v580 = vpop.f32.mrf.mxu0
      %v581 = vadd.f32 0.0, %v580
      %v582 = vpop.f32.mrf.mxu0
      %v583 = vpop.f32.mrf.mxu0
      %v584 = vadd.f32 0.0, %v583
      %v585 = vpop.f32.mrf.mxu0
      %586 = vmatprep.mubr.bf16.mxu0 0
      %587 = vmatmul.mubr.bf16.gmra.mxu0 %v443
      %v588 = vpop.f32.mrf.mxu0
      %v589 = vadd.f32 0.0, %v588
      %v590 = vpop.f32.mrf.mxu0
      %v591 = vpop.f32.mrf.mxu0
      %v592 = vadd.f32 0.0, %v591
      %v593 = vpop.f32.mrf.mxu0
      %594 = vmatprep.mubr.bf16.mxu0 0
      %595 = vmatmul.mubr.bf16.gmra.mxu0 %v444
      %v596 = vpop.f32.mrf.mxu0
      %v597 = vadd.f32 0.0, %v596
      %v598 = vpop.f32.mrf.mxu0
      %v599 = vpop.f32.mrf.mxu0
      %v600 = vadd.f32 0.0, %v599
      %v601 = vpop.f32.mrf.mxu0
      %602 = vmatprep.mubr.bf16.mxu0 0
      %603 = vmatmul.mubr.bf16.gmra.mxu0 %v445
      %v604 = vpop.f32.mrf.mxu0
      %v605 = vadd.f32 0.0, %v604
      %v606 = vpop.f32.mrf.mxu0
      %v607 = vpop.f32.mrf.mxu0
      %v608 = vadd.f32 0.0, %v607
      %v609 = vpop.f32.mrf.mxu0
      %610 = vmatprep.mubr.bf16.mxu0 0
      %611 = vmatmul.mubr.bf16.gmra.mxu0 %v446
      %v612 = vpop.f32.mrf.mxu0
      %v613 = vadd.f32 0.0, %v612
      %v614 = vpop.f32.mrf.mxu0
      %v615 = vpop.f32.mrf.mxu0
      %v616 = vadd.f32 0.0, %v615
      %v617 = vpop.f32.mrf.mxu0
      %618 = vmatprep.mubr.bf16.mxu0 0
      %619 = vmatmul.mubr.bf16.gmra.mxu0 %v447
      %v620 = vpop.f32.mrf.mxu0
      %v621 = vadd.f32 0.0, %v620
      %v622 = vpop.f32.mrf.mxu0
      %v623 = vpop.f32.mrf.mxu0
      %v624 = vadd.f32 0.0, %v623
      %v625 = vpop.f32.mrf.mxu0
      %626 = vmatprep.mubr.bf16.mxu0 0
      %627 = vmatmul.mubr.bf16.gmra.mxu0 %v448
      %v628 = vpop.f32.mrf.mxu0
      %v629 = vadd.f32 0.0, %v628
      %v630 = vpop.f32.mrf.mxu0
      %v631 = vpop.f32.mrf.mxu0
      %v632 = vadd.f32 0.0, %v631
      %v633 = vpop.f32.mrf.mxu0
      %634 = vmatprep.mubr.bf16.mxu0 0
      %635 = vmatmul.mubr.bf16.gmra.mxu0 %v449
      %v636 = vpop.f32.mrf.mxu0
      %v637 = vadd.f32 0.0, %v636
      %v638 = vpop.f32.mrf.mxu0
      %v639 = vpop.f32.mrf.mxu0
      %v640 = vadd.f32 0.0, %v639
      %v641 = vpop.f32.mrf.mxu0
      %642 = vdwg.mxu0
      %v643 = vadd.f32 %v304, %v549
      %v644 = vadd.f32 %v304, %v552
      %v645 = vadd.f32 %v304, %v557
      %v646 = vadd.f32 %v304, %v560
      %v647 = vadd.f32 %v304, %v565
      %v648 = vadd.f32 %v304, %v568
      %v649 = vadd.f32 %v304, %v573
      %v650 = vadd.f32 %v304, %v576
      %v651 = vadd.f32 %v304, %v581
      %v652 = vadd.f32 %v304, %v584
      %v653 = vadd.f32 %v304, %v589
      %v654 = vadd.f32 %v304, %v592
      %v655 = vadd.f32 %v304, %v597
      %v656 = vadd.f32 %v304, %v600
      %v657 = vadd.f32 %v304, %v605
      %v658 = vadd.f32 %v304, %v608
      %v659 = vadd.f32 %v304, %v613
      %v660 = vadd.f32 %v304, %v616
      %v661 = vadd.f32 %v304, %v621
      %v662 = vadd.f32 %v304, %v624
      %v663 = vadd.f32 %v304, %v629
      %v664 = vadd.f32 %v304, %v632
      %v665 = vadd.f32 %v304, %v637
      %v666 = vadd.f32 %v304, %v640
      %s667 = scalar_lea.vmem %s3, 64
      %v668 = vld [vmem:[%s667] sm:$0xf]
      %v669 = vld [vmem:[%s667 + $0x4] sm:$0xf]
      %v670 = vld [vmem:[%s667 + $0x8] sm:$0xf]
      %v671 = vld [vmem:[%s667 + $0xc] sm:$0xf]
      %v672 = vld [vmem:[%s667 + $0x10] sm:$0xf]
      %v673 = vld [vmem:[%s667 + $0x14] sm:$0xf]
      %v674 = vld [vmem:[%s667 + $0x18] sm:$0xf]
      %v675 = vld [vmem:[%s667 + $0x1c] sm:$0xf]
      %v676 = vld [vmem:[%s667 + $0x20] sm:$0xf]
      %v677 = vld [vmem:[%s667 + $0x24] sm:$0xf]
      %v678 = vld [vmem:[%s667 + $0x28] sm:$0xf]
      %v679 = vld [vmem:[%s667 + $0x2c] sm:$0xf]
      %v680 = vld [vmem:[%s667 + $0x30] sm:$0xf]
      %v681 = vld [vmem:[%s667 + $0x34] sm:$0xf]
      %v682 = vld [vmem:[%s667 + $0x38] sm:$0xf]
      %v683 = vld [vmem:[%s667 + $0x3c] sm:$0xf]
      %vm684 = vsmask.f32 7424
      %v686 = vshrl.u32 %v438, 16
      %v688 = vshll.u32 %v438, 16
      %v690 = vrot.slane %v688, 1
      %v691 = vor.u32 %v686, %v690
      %v693 = vshll.u32 %v439, 16
      %v695 = vrot.slane %v693, 1
      %v696 = vsel %vm684, %v691, %v695
      %v697 = vshrl.u32 %v439, 16
      %v699 = vor.u32 %v697, %v695
      %v701 = vshll.u32 %v440, 16
      %v703 = vrot.slane %v701, 1
      %v704 = vsel %vm684, %v699, %v703
      %v705 = vshrl.u32 %v440, 16
      %v707 = vor.u32 %v705, %v703
      %v709 = vshll.u32 %v441, 16
      %v711 = vrot.slane %v709, 1
      %v712 = vsel %vm684, %v707, %v711
      %v713 = vshrl.u32 %v441, 16
      %v715 = vor.u32 %v713, %v711
      %v717 = vshll.u32 %v442, 16
      %v719 = vrot.slane %v717, 1
      %v720 = vsel %vm684, %v715, %v719
      %v721 = vshrl.u32 %v442, 16
      %v723 = vor.u32 %v721, %v719
      %v725 = vshll.u32 %v443, 16
      %v727 = vrot.slane %v725, 1
      %v728 = vsel %vm684, %v723, %v727
      %v729 = vshrl.u32 %v443, 16
      %v731 = vor.u32 %v729, %v727
      %v733 = vshll.u32 %v444, 16
      %v735 = vrot.slane %v733, 1
      %v736 = vsel %vm684, %v731, %v735
      %v737 = vshrl.u32 %v444, 16
      %v739 = vor.u32 %v737, %v735
      %v741 = vshll.u32 %v445, 16
      %v743 = vrot.slane %v741, 1
      %v744 = vsel %vm684, %v739, %v743
      %v745 = vshrl.u32 %v445, 16
      %v747 = vor.u32 %v745, %v743
      %v749 = vshll.u32 %v446, 16
      %v751 = vrot.slane %v749, 1
      %v752 = vsel %vm684, %v747, %v751
      %v753 = vshrl.u32 %v446, 16
      %v755 = vor.u32 %v753, %v751
      %v757 = vshll.u32 %v447, 16
      %v759 = vrot.slane %v757, 1
      %v760 = vsel %vm684, %v755, %v759
      %v761 = vshrl.u32 %v447, 16
      %v763 = vor.u32 %v761, %v759
      %v765 = vshll.u32 %v448, 16
      %v767 = vrot.slane %v765, 1
      %v768 = vsel %vm684, %v763, %v767
      %v769 = vshrl.u32 %v448, 16
      %v771 = vor.u32 %v769, %v767
      %v773 = vshll.u32 %v449, 16
      %v775 = vrot.slane %v773, 1
      %v776 = vsel %vm684, %v771, %v775
      %v777 = vshrl.u32 %v449, 16
      %v779 = vor.u32 %v777, %v775
      %v808 = vunpack.c.l.b16 %v668
      %v809 = vunpack.c.l.b16 %v669
      %v810 = vunpack.c.l.b16 %v670
      %v811 = vunpack.c.l.b16 %v671
      %v812 = vunpack.c.l.b16 %v672
      %v813 = vunpack.c.l.b16 %v673
      %v814 = vunpack.c.l.b16 %v674
      %v815 = vunpack.c.l.b16 %v675
      %v816 = vunpack.c.l.b16 %v676
      %v817 = vunpack.c.l.b16 %v677
      %v818 = vunpack.c.l.b16 %v678
      %v819 = vunpack.c.l.b16 %v679
      %v820 = vunpack.c.l.b16 %v680
      %v821 = vunpack.c.l.b16 %v681
      %v822 = vunpack.c.l.b16 %v682
      %v823 = vunpack.c.l.b16 %v683
      %v824 = vpack.c.b16 %v809, %v808
      %v825 = vpack.c.b16 %v811, %v810
      %v826 = vpack.c.b16 %v813, %v812
      %v827 = vpack.c.b16 %v815, %v814
      %v828 = vpack.c.b16 %v817, %v816
      %v829 = vpack.c.b16 %v819, %v818
      %v830 = vpack.c.b16 %v821, %v820
      %v831 = vpack.c.b16 %v823, %v822
      %840 = vmatprep.subr.bf16.mxu0 0
      %841 = vmatpush1.bf16.msra.mxu0 %v831
      %842 = vmatprep.subr.bf16.mxu0 0
      %843 = vmatpush1.bf16.msra.mxu0 %v830
      %844 = vmatprep.subr.bf16.mxu0 0
      %845 = vmatpush1.bf16.msra.mxu0 %v829
      %846 = vmatprep.subr.bf16.mxu0 0
      %847 = vmatpush1.bf16.msra.mxu0 %v828
      %848 = vmatprep.subr.bf16.mxu0 0
      %849 = vmatpush1.bf16.msra.mxu0 %v827
      %850 = vmatprep.subr.bf16.mxu0 0
      %851 = vmatpush1.bf16.msra.mxu0 %v826
      %852 = vmatprep.subr.bf16.mxu0 0
      %853 = vmatpush1.bf16.msra.mxu0 %v825
      %854 = vmatprep.subr.bf16.mxu0 0
      %855 = vmatpush1.bf16.msra.mxu0 %v824
      %856 = vmatprep.subr.bf16.mxu0 0
      %857 = vmatpush2.bf16.msra.mxu0 0
      %858 = vmatprep.subr.bf16.mxu0 0
      %859 = vmatpush2.bf16.msra.mxu0 0
      %860 = vmatprep.subr.bf16.mxu0 0
      %861 = vmatpush2.bf16.msra.mxu0 0
      %862 = vmatprep.subr.bf16.mxu0 0
      %863 = vmatpush2.bf16.msra.mxu0 0
      %864 = vmatprep.subr.bf16.mxu0 0
      %865 = vmatpush2.bf16.msra.mxu0 0
      %866 = vmatprep.subr.bf16.mxu0 0
      %867 = vmatpush2.bf16.msra.mxu0 0
      %868 = vmatprep.subr.bf16.mxu0 0
      %869 = vmatpush2.bf16.msra.mxu0 0
      %870 = vmatprep.subr.bf16.mxu0 0
      %871 = vmatpush2.bf16.msra.mxu0 0
      %872 = vmatprep.mubr.bf16.mxu0 0
      %873 = vmatmul.mubr.bf16.gmra.mxu0 %v696
      %v874 = vpop.f32.mrf.mxu0
      %v875 = vadd.f32 0.0, %v874
      %v876 = vpop.f32.mrf.mxu0
      %v877 = vpop.f32.mrf.mxu0
      %v878 = vadd.f32 0.0, %v877
      %v879 = vpop.f32.mrf.mxu0
      %880 = vmatprep.mubr.bf16.mxu0 0
      %881 = vmatmul.mubr.bf16.gmra.mxu0 %v704
      %v882 = vpop.f32.mrf.mxu0
      %v883 = vadd.f32 0.0, %v882
      %v884 = vpop.f32.mrf.mxu0
      %v885 = vpop.f32.mrf.mxu0
      %v886 = vadd.f32 0.0, %v885
      %v887 = vpop.f32.mrf.mxu0
      %888 = vmatprep.mubr.bf16.mxu0 0
      %889 = vmatmul.mubr.bf16.gmra.mxu0 %v712
      %v890 = vpop.f32.mrf.mxu0
      %v891 = vadd.f32 0.0, %v890
      %v892 = vpop.f32.mrf.mxu0
      %v893 = vpop.f32.mrf.mxu0
      %v894 = vadd.f32 0.0, %v893
      %v895 = vpop.f32.mrf.mxu0
      %896 = vmatprep.mubr.bf16.mxu0 0
      %897 = vmatmul.mubr.bf16.gmra.mxu0 %v720
      %v898 = vpop.f32.mrf.mxu0
      %v899 = vadd.f32 0.0, %v898
      %v900 = vpop.f32.mrf.mxu0
      %v901 = vpop.f32.mrf.mxu0
      %v902 = vadd.f32 0.0, %v901
      %v903 = vpop.f32.mrf.mxu0
      %904 = vmatprep.mubr.bf16.mxu0 0
      %905 = vmatmul.mubr.bf16.gmra.mxu0 %v728
      %v906 = vpop.f32.mrf.mxu0
      %v907 = vadd.f32 0.0, %v906
      %v908 = vpop.f32.mrf.mxu0
      %v909 = vpop.f32.mrf.mxu0
      %v910 = vadd.f32 0.0, %v909
      %v911 = vpop.f32.mrf.mxu0
      %912 = vmatprep.mubr.bf16.mxu0 0
      %913 = vmatmul.mubr.bf16.gmra.mxu0 %v736
      %v914 = vpop.f32.mrf.mxu0
      %v915 = vadd.f32 0.0, %v914
      %v916 = vpop.f32.mrf.mxu0
      %v917 = vpop.f32.mrf.mxu0
      %v918 = vadd.f32 0.0, %v917
      %v919 = vpop.f32.mrf.mxu0
      %920 = vmatprep.mubr.bf16.mxu0 0
      %921 = vmatmul.mubr.bf16.gmra.mxu0 %v744
      %v922 = vpop.f32.mrf.mxu0
      %v923 = vadd.f32 0.0, %v922
      %v924 = vpop.f32.mrf.mxu0
      %v925 = vpop.f32.mrf.mxu0
      %v926 = vadd.f32 0.0, %v925
      %v927 = vpop.f32.mrf.mxu0
      %928 = vmatprep.mubr.bf16.mxu0 0
      %929 = vmatmul.mubr.bf16.gmra.mxu0 %v752
      %v930 = vpop.f32.mrf.mxu0
      %v931 = vadd.f32 0.0, %v930
      %v932 = vpop.f32.mrf.mxu0
      %v933 = vpop.f32.mrf.mxu0
      %v934 = vadd.f32 0.0, %v933
      %v935 = vpop.f32.mrf.mxu0
      %936 = vmatprep.mubr.bf16.mxu0 0
      %937 = vmatmul.mubr.bf16.gmra.mxu0 %v760
      %v938 = vpop.f32.mrf.mxu0
      %v939 = vadd.f32 0.0, %v938
      %v940 = vpop.f32.mrf.mxu0
      %v941 = vpop.f32.mrf.mxu0
      %v942 = vadd.f32 0.0, %v941
      %v943 = vpop.f32.mrf.mxu0
      %944 = vmatprep.mubr.bf16.mxu0 0
      %945 = vmatmul.mubr.bf16.gmra.mxu0 %v768
      %v946 = vpop.f32.mrf.mxu0
      %v947 = vadd.f32 0.0, %v946
      %v948 = vpop.f32.mrf.mxu0
      %v949 = vpop.f32.mrf.mxu0
      %v950 = vadd.f32 0.0, %v949
      %v951 = vpop.f32.mrf.mxu0
      %952 = vmatprep.mubr.bf16.mxu0 0
      %953 = vmatmul.mubr.bf16.gmra.mxu0 %v776
      %v954 = vpop.f32.mrf.mxu0
      %v955 = vadd.f32 0.0, %v954
      %v956 = vpop.f32.mrf.mxu0
      %v957 = vpop.f32.mrf.mxu0
      %v958 = vadd.f32 0.0, %v957
      %v959 = vpop.f32.mrf.mxu0
      %960 = vmatprep.mubr.bf16.mxu0 0
      %961 = vmatmul.mubr.bf16.gmra.mxu0 %v779
      %v962 = vpop.f32.mrf.mxu0
      %v963 = vadd.f32 0.0, %v962
      %v964 = vpop.f32.mrf.mxu0
      %v965 = vpop.f32.mrf.mxu0
      %v966 = vadd.f32 0.0, %v965
      %v967 = vpop.f32.mrf.mxu0
      %968 = vdwg.mxu0
      %v969 = vadd.f32 %v643, %v875
      %v970 = vadd.f32 %v644, %v878
      %v971 = vadd.f32 %v645, %v883
      %v972 = vadd.f32 %v646, %v886
      %v973 = vadd.f32 %v647, %v891
      %v974 = vadd.f32 %v648, %v894
      %v975 = vadd.f32 %v649, %v899
      %v976 = vadd.f32 %v650, %v902
      %v977 = vadd.f32 %v651, %v907
      %v978 = vadd.f32 %v652, %v910
      %v979 = vadd.f32 %v653, %v915
      %v980 = vadd.f32 %v654, %v918
      %v981 = vadd.f32 %v655, %v923
      %v982 = vadd.f32 %v656, %v926
      %v983 = vadd.f32 %v657, %v931
      %v984 = vadd.f32 %v658, %v934
      %v985 = vadd.f32 %v659, %v939
      %v986 = vadd.f32 %v660, %v942
      %v987 = vadd.f32 %v661, %v947
      %v988 = vadd.f32 %v662, %v950
      %v989 = vadd.f32 %v663, %v955
      %v990 = vadd.f32 %v664, %v958
      %v991 = vadd.f32 %v665, %v963
      %v992 = vadd.f32 %v666, %v966
      %s993 = scalar_lea.vmem %s3, 128
      %v994 = vld [vmem:[%s993] sm:$0xf]
      %v995 = vld [vmem:[%s993 + $0x4] sm:$0xf]
      %v996 = vld [vmem:[%s993 + $0x8] sm:$0xf]
      %v997 = vld [vmem:[%s993 + $0xc] sm:$0xf]
      %v998 = vld [vmem:[%s993 + $0x10] sm:$0xf]
      %v999 = vld [vmem:[%s993 + $0x14] sm:$0xf]
      %v1000 = vld [vmem:[%s993 + $0x18] sm:$0xf]
      %v1001 = vld [vmem:[%s993 + $0x1c] sm:$0xf]
      %v1002 = vld [vmem:[%s993 + $0x20] sm:$0xf]
      %v1003 = vld [vmem:[%s993 + $0x24] sm:$0xf]
      %v1004 = vld [vmem:[%s993 + $0x28] sm:$0xf]
      %v1005 = vld [vmem:[%s993 + $0x2c] sm:$0xf]
      %v1006 = vld [vmem:[%s993 + $0x30] sm:$0xf]
      %v1007 = vld [vmem:[%s993 + $0x34] sm:$0xf]
      %v1008 = vld [vmem:[%s993 + $0x38] sm:$0xf]
      %v1009 = vld [vmem:[%s993 + $0x3c] sm:$0xf]
      %vm1022 = vcmask 1046528
      %v1023 = vrot.slane %v438, 1
      %v1024 = vrot.slane %v439, 1
      %v1025 = vsel %vm1022, %v1023, %v1024
      %v1026 = vrot.slane %v440, 1
      %v1027 = vsel %vm1022, %v1024, %v1026
      %v1028 = vrot.slane %v441, 1
      %v1029 = vsel %vm1022, %v1026, %v1028
      %v1030 = vrot.slane %v442, 1
      %v1031 = vsel %vm1022, %v1028, %v1030
      %v1032 = vrot.slane %v443, 1
      %v1033 = vsel %vm1022, %v1030, %v1032
      %v1034 = vrot.slane %v444, 1
      %v1035 = vsel %vm1022, %v1032, %v1034
      %v1036 = vrot.slane %v445, 1
      %v1037 = vsel %vm1022, %v1034, %v1036
      %v1038 = vrot.slane %v446, 1
      %v1039 = vsel %vm1022, %v1036, %v1038
      %v1040 = vrot.slane %v447, 1
      %v1041 = vsel %vm1022, %v1038, %v1040
      %v1042 = vrot.slane %v448, 1
      %v1043 = vsel %vm1022, %v1040, %v1042
      %v1044 = vrot.slane %v449, 1
      %v1045 = vsel %vm1022, %v1042, %v1044
      %v1074 = vunpack.c.l.b16 %v994
      %v1075 = vunpack.c.l.b16 %v995
      %v1076 = vunpack.c.l.b16 %v996
      %v1077 = vunpack.c.l.b16 %v997
      %v1078 = vunpack.c.l.b16 %v998
      %v1079 = vunpack.c.l.b16 %v999
      %v1080 = vunpack.c.l.b16 %v1000
      %v1081 = vunpack.c.l.b16 %v1001
      %v1082 = vunpack.c.l.b16 %v1002
      %v1083 = vunpack.c.l.b16 %v1003
      %v1084 = vunpack.c.l.b16 %v1004
      %v1085 = vunpack.c.l.b16 %v1005
      %v1086 = vunpack.c.l.b16 %v1006
      %v1087 = vunpack.c.l.b16 %v1007
      %v1088 = vunpack.c.l.b16 %v1008
      %v1089 = vunpack.c.l.b16 %v1009
      %v1090 = vpack.c.b16 %v1075, %v1074
      %v1091 = vpack.c.b16 %v1077, %v1076
      %v1092 = vpack.c.b16 %v1079, %v1078
      %v1093 = vpack.c.b16 %v1081, %v1080
      %v1094 = vpack.c.b16 %v1083, %v1082
      %v1095 = vpack.c.b16 %v1085, %v1084
      %v1096 = vpack.c.b16 %v1087, %v1086
      %v1097 = vpack.c.b16 %v1089, %v1088
      %1106 = vmatprep.subr.bf16.mxu0 0
      %1107 = vmatpush1.bf16.msra.mxu0 %v1097
      %1108 = vmatprep.subr.bf16.mxu0 0
      %1109 = vmatpush1.bf16.msra.mxu0 %v1096
      %1110 = vmatprep.subr.bf16.mxu0 0
      %1111 = vmatpush1.bf16.msra.mxu0 %v1095
      %1112 = vmatprep.subr.bf16.mxu0 0
      %1113 = vmatpush1.bf16.msra.mxu0 %v1094
      %1114 = vmatprep.subr.bf16.mxu0 0
      %1115 = vmatpush1.bf16.msra.mxu0 %v1093
      %1116 = vmatprep.subr.bf16.mxu0 0
      %1117 = vmatpush1.bf16.msra.mxu0 %v1092
      %1118 = vmatprep.subr.bf16.mxu0 0
      %1119 = vmatpush1.bf16.msra.mxu0 %v1091
      %1120 = vmatprep.subr.bf16.mxu0 0
      %1121 = vmatpush1.bf16.msra.mxu0 %v1090
      %1122 = vmatprep.subr.bf16.mxu0 0
      %1123 = vmatpush2.bf16.msra.mxu0 0
      %1124 = vmatprep.subr.bf16.mxu0 0
      %1125 = vmatpush2.bf16.msra.mxu0 0
      %1126 = vmatprep.subr.bf16.mxu0 0
      %1127 = vmatpush2.bf16.msra.mxu0 0
      %1128 = vmatprep.subr.bf16.mxu0 0
      %1129 = vmatpush2.bf16.msra.mxu0 0
      %1130 = vmatprep.subr.bf16.mxu0 0
      %1131 = vmatpush2.bf16.msra.mxu0 0
      %1132 = vmatprep.subr.bf16.mxu0 0
      %1133 = vmatpush2.bf16.msra.mxu0 0
      %1134 = vmatprep.subr.bf16.mxu0 0
      %1135 = vmatpush2.bf16.msra.mxu0 0
      %1136 = vmatprep.subr.bf16.mxu0 0
      %1137 = vmatpush2.bf16.msra.mxu0 0
      %1138 = vmatprep.mubr.bf16.mxu0 0
      %1139 = vmatmul.mubr.bf16.gmra.mxu0 %v1025
      %v1140 = vpop.f32.mrf.mxu0
      %v1141 = vadd.f32 0.0, %v1140
      %v1142 = vpop.f32.mrf.mxu0
      %v1143 = vpop.f32.mrf.mxu0
      %v1144 = vadd.f32 0.0, %v1143
      %v1145 = vpop.f32.mrf.mxu0
      %1146 = vmatprep.mubr.bf16.mxu0 0
      %1147 = vmatmul.mubr.bf16.gmra.mxu0 %v1027
      %v1148 = vpop.f32.mrf.mxu0
      %v1149 = vadd.f32 0.0, %v1148
      %v1150 = vpop.f32.mrf.mxu0
      %v1151 = vpop.f32.mrf.mxu0
      %v1152 = vadd.f32 0.0, %v1151
      %v1153 = vpop.f32.mrf.mxu0
      %1154 = vmatprep.mubr.bf16.mxu0 0
      %1155 = vmatmul.mubr.bf16.gmra.mxu0 %v1029
      %v1156 = vpop.f32.mrf.mxu0
      %v1157 = vadd.f32 0.0, %v1156
      %v1158 = vpop.f32.mrf.mxu0
      %v1159 = vpop.f32.mrf.mxu0
      %v1160 = vadd.f32 0.0, %v1159
      %v1161 = vpop.f32.mrf.mxu0
      %1162 = vmatprep.mubr.bf16.mxu0 0
      %1163 = vmatmul.mubr.bf16.gmra.mxu0 %v1031
      %v1164 = vpop.f32.mrf.mxu0
      %v1165 = vadd.f32 0.0, %v1164
      %v1166 = vpop.f32.mrf.mxu0
      %v1167 = vpop.f32.mrf.mxu0
      %v1168 = vadd.f32 0.0, %v1167
      %v1169 = vpop.f32.mrf.mxu0
      %1170 = vmatprep.mubr.bf16.mxu0 0
      %1171 = vmatmul.mubr.bf16.gmra.mxu0 %v1033
      %v1172 = vpop.f32.mrf.mxu0
      %v1173 = vadd.f32 0.0, %v1172
      %v1174 = vpop.f32.mrf.mxu0
      %v1175 = vpop.f32.mrf.mxu0
      %v1176 = vadd.f32 0.0, %v1175
      %v1177 = vpop.f32.mrf.mxu0
      %1178 = vmatprep.mubr.bf16.mxu0 0
      %1179 = vmatmul.mubr.bf16.gmra.mxu0 %v1035
      %v1180 = vpop.f32.mrf.mxu0
      %v1181 = vadd.f32 0.0, %v1180
      %v1182 = vpop.f32.mrf.mxu0
      %v1183 = vpop.f32.mrf.mxu0
      %v1184 = vadd.f32 0.0, %v1183
      %v1185 = vpop.f32.mrf.mxu0
      %1186 = vmatprep.mubr.bf16.mxu0 0
      %1187 = vmatmul.mubr.bf16.gmra.mxu0 %v1037
      %v1188 = vpop.f32.mrf.mxu0
      %v1189 = vadd.f32 0.0, %v1188
      %v1190 = vpop.f32.mrf.mxu0
      %v1191 = vpop.f32.mrf.mxu0
      %v1192 = vadd.f32 0.0, %v1191
      %v1193 = vpop.f32.mrf.mxu0
      %1194 = vmatprep.mubr.bf16.mxu0 0
      %1195 = vmatmul.mubr.bf16.gmra.mxu0 %v1039
      %v1196 = vpop.f32.mrf.mxu0
      %v1197 = vadd.f32 0.0, %v1196
      %v1198 = vpop.f32.mrf.mxu0
      %v1199 = vpop.f32.mrf.mxu0
      %v1200 = vadd.f32 0.0, %v1199
      %v1201 = vpop.f32.mrf.mxu0
      %1202 = vmatprep.mubr.bf16.mxu0 0
      %1203 = vmatmul.mubr.bf16.gmra.mxu0 %v1041
      %v1204 = vpop.f32.mrf.mxu0
      %v1205 = vadd.f32 0.0, %v1204
      %v1206 = vpop.f32.mrf.mxu0
      %v1207 = vpop.f32.mrf.mxu0
      %v1208 = vadd.f32 0.0, %v1207
      %v1209 = vpop.f32.mrf.mxu0
      %1210 = vmatprep.mubr.bf16.mxu0 0
      %1211 = vmatmul.mubr.bf16.gmra.mxu0 %v1043
      %v1212 = vpop.f32.mrf.mxu0
      %v1213 = vadd.f32 0.0, %v1212
      %v1214 = vpop.f32.mrf.mxu0
      %v1215 = vpop.f32.mrf.mxu0
      %v1216 = vadd.f32 0.0, %v1215
      %v1217 = vpop.f32.mrf.mxu0
      %1218 = vmatprep.mubr.bf16.mxu0 0
      %1219 = vmatmul.mubr.bf16.gmra.mxu0 %v1045
      %v1220 = vpop.f32.mrf.mxu0
      %v1221 = vadd.f32 0.0, %v1220
      %v1222 = vpop.f32.mrf.mxu0
      %v1223 = vpop.f32.mrf.mxu0
      %v1224 = vadd.f32 0.0, %v1223
      %v1225 = vpop.f32.mrf.mxu0
      %1226 = vmatprep.mubr.bf16.mxu0 0
      %1227 = vmatmul.mubr.bf16.gmra.mxu0 %v1044
      %v1228 = vpop.f32.mrf.mxu0
      %v1229 = vadd.f32 0.0, %v1228
      %v1230 = vpop.f32.mrf.mxu0
      %v1231 = vpop.f32.mrf.mxu0
      %v1232 = vadd.f32 0.0, %v1231
      %v1233 = vpop.f32.mrf.mxu0
      %1234 = vdwg.mxu0
      %v1235 = vadd.f32 %v969, %v1141
      %v1236 = vadd.f32 %v970, %v1144
      %v1237 = vadd.f32 %v971, %v1149
      %v1238 = vadd.f32 %v972, %v1152
      %v1239 = vadd.f32 %v973, %v1157
      %v1240 = vadd.f32 %v974, %v1160
      %v1241 = vadd.f32 %v975, %v1165
      %v1242 = vadd.f32 %v976, %v1168
      %v1243 = vadd.f32 %v977, %v1173
      %v1244 = vadd.f32 %v978, %v1176
      %v1245 = vadd.f32 %v979, %v1181
      %v1246 = vadd.f32 %v980, %v1184
      %v1247 = vadd.f32 %v981, %v1189
      %v1248 = vadd.f32 %v982, %v1192
      %v1249 = vadd.f32 %v983, %v1197
      %v1250 = vadd.f32 %v984, %v1200
      %v1251 = vadd.f32 %v985, %v1205
      %v1252 = vadd.f32 %v986, %v1208
      %v1253 = vadd.f32 %v987, %v1213
      %v1254 = vadd.f32 %v988, %v1216
      %v1255 = vadd.f32 %v989, %v1221
      %v1256 = vadd.f32 %v990, %v1224
      %v1257 = vadd.f32 %v991, %v1229
      %v1258 = vadd.f32 %v992, %v1232
      %s1259 = scalar_lea.vmem %s284, 8
      %v1260 = vld [vmem:[%s1259] sm:$0xf]
      %v1261 = vld [vmem:[%s1259 + $0x4] sm:$0xf]
      %v1262 = vld [vmem:[%s1259 + $0x8] sm:$0xf]
      %v1263 = vld [vmem:[%s1259 + $0xc] sm:$0xf]
      %v1264 = vld [vmem:[%s1259 + $0x10] sm:$0xf]
      %v1265 = vld [vmem:[%s1259 + $0x14] sm:$0xf]
      %v1266 = vld [vmem:[%s1259 + $0x18] sm:$0xf]
      %v1267 = vld [vmem:[%s1259 + $0x1c] sm:$0xf]
      %v1268 = vld [vmem:[%s1259 + $0x20] sm:$0xf]
      %v1269 = vld [vmem:[%s1259 + $0x24] sm:$0xf]
      %v1270 = vld [vmem:[%s1259 + $0x28] sm:$0xf]
      %v1271 = vld [vmem:[%s1259 + $0x2c] sm:$0xf]
      %v1272 = vld [vmem:[%s1259 + $0x30] sm:$0xf]
      %v1273 = vld [vmem:[%s1259 + $0x34] sm:$0xf]
      %v1274 = vld [vmem:[%s1259 + $0x38] sm:$0xf]
      %v1275 = vld [vmem:[%s1259 + $0x3c] sm:$0xf]
      %v1276 = vld [vmem:[%s1259 + $0x40] sm:$0xf]
      %v1277 = vld [vmem:[%s1259 + $0x44] sm:$0xf]
      %v1278 = vld [vmem:[%s1259 + $0x48] sm:$0xf]
      %v1279 = vld [vmem:[%s1259 + $0x4c] sm:$0xf]
      %v1280 = vld [vmem:[%s1259 + $0x50] sm:$0xf]
      %v1281 = vld [vmem:[%s1259 + $0x54] sm:$0xf]
      %v1282 = vld [vmem:[%s1259 + $0x58] sm:$0xf]
      %v1283 = vld [vmem:[%s1259 + $0x5c] sm:$0xf]
      %v1284 = vunpack.c.l.bf16 %v1260
      %v1285 = vunpack.c.l.bf16 %v1261
      %v1286 = vunpack.c.l.bf16 %v1262
      %v1287 = vunpack.c.l.bf16 %v1263
      %v1288 = vunpack.c.l.bf16 %v1264
      %v1289 = vunpack.c.l.bf16 %v1265
      %v1290 = vunpack.c.l.bf16 %v1266
      %v1291 = vunpack.c.l.bf16 %v1267
      %v1292 = vunpack.c.l.bf16 %v1268
      %v1293 = vunpack.c.l.bf16 %v1269
      %v1294 = vunpack.c.l.bf16 %v1270
      %v1295 = vunpack.c.l.bf16 %v1271
      %v1296 = vunpack.c.l.bf16 %v1272
      %v1297 = vunpack.c.l.bf16 %v1273
      %v1298 = vunpack.c.l.bf16 %v1274
      %v1299 = vunpack.c.l.bf16 %v1275
      %v1300 = vunpack.c.l.bf16 %v1276
      %v1301 = vunpack.c.l.bf16 %v1277
      %v1302 = vunpack.c.l.bf16 %v1278
      %v1303 = vunpack.c.l.bf16 %v1279
      %v1304 = vunpack.c.l.bf16 %v1280
      %v1305 = vunpack.c.l.bf16 %v1281
      %v1306 = vunpack.c.l.bf16 %v1282
      %v1307 = vunpack.c.l.bf16 %v1283
      %v1308 = vmul.f32 %v1284, %v358
      %v1309 = vmul.f32 %v1285, %v358
      %v1310 = vmul.f32 %v1286, %v358
      %v1311 = vmul.f32 %v1287, %v358
      %v1312 = vmul.f32 %v1288, %v358
      %v1313 = vmul.f32 %v1289, %v358
      %v1314 = vmul.f32 %v1290, %v358
      %v1315 = vmul.f32 %v1291, %v358
      %v1316 = vmul.f32 %v1292, %v358
      %v1317 = vmul.f32 %v1293, %v358
      %v1318 = vmul.f32 %v1294, %v358
      %v1319 = vmul.f32 %v1295, %v358
      %v1320 = vmul.f32 %v1296, %v358
      %v1321 = vmul.f32 %v1297, %v358
      %v1322 = vmul.f32 %v1298, %v358
      %v1323 = vmul.f32 %v1299, %v358
      %v1324 = vmul.f32 %v1300, %v358
      %v1325 = vmul.f32 %v1301, %v358
      %v1326 = vmul.f32 %v1302, %v358
      %v1327 = vmul.f32 %v1303, %v358
      %v1328 = vmul.f32 %v1304, %v358
      %v1329 = vmul.f32 %v1305, %v358
      %v1330 = vmul.f32 %v1306, %v358
      %v1331 = vmul.f32 %v1307, %v358
      %v1332 = vadd.f32 %v1308, %v388
      %v1333 = vadd.f32 %v1309, %v388
      %v1334 = vadd.f32 %v1310, %v388
      %v1335 = vadd.f32 %v1311, %v388
      %v1336 = vadd.f32 %v1312, %v388
      %v1337 = vadd.f32 %v1313, %v388
      %v1338 = vadd.f32 %v1314, %v388
      %v1339 = vadd.f32 %v1315, %v388
      %v1340 = vadd.f32 %v1316, %v388
      %v1341 = vadd.f32 %v1317, %v388
      %v1342 = vadd.f32 %v1318, %v388
      %v1343 = vadd.f32 %v1319, %v388
      %v1344 = vadd.f32 %v1320, %v388
      %v1345 = vadd.f32 %v1321, %v388
      %v1346 = vadd.f32 %v1322, %v388
      %v1347 = vadd.f32 %v1323, %v388
      %v1348 = vadd.f32 %v1324, %v388
      %v1349 = vadd.f32 %v1325, %v388
      %v1350 = vadd.f32 %v1326, %v388
      %v1351 = vadd.f32 %v1327, %v388
      %v1352 = vadd.f32 %v1328, %v388
      %v1353 = vadd.f32 %v1329, %v388
      %v1354 = vadd.f32 %v1330, %v388
      %v1355 = vadd.f32 %v1331, %v388
      %v1356 = vmax.f32 %v1332, 0.0
      %v1357 = vmax.f32 %v1333, 0.0
      %v1358 = vmax.f32 %v1334, 0.0
      %v1359 = vmax.f32 %v1335, 0.0
      %v1360 = vmax.f32 %v1336, 0.0
      %v1361 = vmax.f32 %v1337, 0.0
      %v1362 = vmax.f32 %v1338, 0.0
      %v1363 = vmax.f32 %v1339, 0.0
      %v1364 = vmax.f32 %v1340, 0.0
      %v1365 = vmax.f32 %v1341, 0.0
      %v1366 = vmax.f32 %v1342, 0.0
      %v1367 = vmax.f32 %v1343, 0.0
      %v1368 = vmax.f32 %v1344, 0.0
      %v1369 = vmax.f32 %v1345, 0.0
      %v1370 = vmax.f32 %v1346, 0.0
      %v1371 = vmax.f32 %v1347, 0.0
      %v1372 = vmax.f32 %v1348, 0.0
      %v1373 = vmax.f32 %v1349, 0.0
      %v1374 = vmax.f32 %v1350, 0.0
      %v1375 = vmax.f32 %v1351, 0.0
      %v1376 = vmax.f32 %v1352, 0.0
      %v1377 = vmax.f32 %v1353, 0.0
      %v1378 = vmax.f32 %v1354, 0.0
      %v1379 = vmax.f32 %v1355, 0.0
      %v1380 = vpack.c.bf16 %v1357, %v1356
      %v1381 = vpack.c.bf16 %v1359, %v1358
      %v1382 = vpack.c.bf16 %v1361, %v1360
      %v1383 = vpack.c.bf16 %v1363, %v1362
      %v1384 = vpack.c.bf16 %v1365, %v1364
      %v1385 = vpack.c.bf16 %v1367, %v1366
      %v1386 = vpack.c.bf16 %v1369, %v1368
      %v1387 = vpack.c.bf16 %v1371, %v1370
      %v1388 = vpack.c.bf16 %v1373, %v1372
      %v1389 = vpack.c.bf16 %v1375, %v1374
      %v1390 = vpack.c.bf16 %v1377, %v1376
      %v1391 = vpack.c.bf16 %v1379, %v1378
      %s1392 = scalar_lea.vmem %s3, 192
      %v1393 = vld [vmem:[%s1392] sm:$0xf]
      %v1394 = vld [vmem:[%s1392 + $0x4] sm:$0xf]
      %v1395 = vld [vmem:[%s1392 + $0x8] sm:$0xf]
      %v1396 = vld [vmem:[%s1392 + $0xc] sm:$0xf]
      %v1397 = vld [vmem:[%s1392 + $0x10] sm:$0xf]
      %v1398 = vld [vmem:[%s1392 + $0x14] sm:$0xf]
      %v1399 = vld [vmem:[%s1392 + $0x18] sm:$0xf]
      %v1400 = vld [vmem:[%s1392 + $0x1c] sm:$0xf]
      %v1401 = vld [vmem:[%s1392 + $0x20] sm:$0xf]
      %v1402 = vld [vmem:[%s1392 + $0x24] sm:$0xf]
      %v1403 = vld [vmem:[%s1392 + $0x28] sm:$0xf]
      %v1404 = vld [vmem:[%s1392 + $0x2c] sm:$0xf]
      %v1405 = vld [vmem:[%s1392 + $0x30] sm:$0xf]
      %v1406 = vld [vmem:[%s1392 + $0x34] sm:$0xf]
      %v1407 = vld [vmem:[%s1392 + $0x38] sm:$0xf]
      %v1408 = vld [vmem:[%s1392 + $0x3c] sm:$0xf]
      %v1425 = vunpack.c.l.b16 %v1393
      %v1426 = vunpack.c.l.b16 %v1394
      %v1427 = vunpack.c.l.b16 %v1395
      %v1428 = vunpack.c.l.b16 %v1396
      %v1429 = vunpack.c.l.b16 %v1397
      %v1430 = vunpack.c.l.b16 %v1398
      %v1431 = vunpack.c.l.b16 %v1399
      %v1432 = vunpack.c.l.b16 %v1400
      %v1433 = vunpack.c.l.b16 %v1401
      %v1434 = vunpack.c.l.b16 %v1402
      %v1435 = vunpack.c.l.b16 %v1403
      %v1436 = vunpack.c.l.b16 %v1404
      %v1437 = vunpack.c.l.b16 %v1405
      %v1438 = vunpack.c.l.b16 %v1406
      %v1439 = vunpack.c.l.b16 %v1407
      %v1440 = vunpack.c.l.b16 %v1408
      %v1441 = vpack.c.b16 %v1426, %v1425
      %v1442 = vpack.c.b16 %v1428, %v1427
      %v1443 = vpack.c.b16 %v1430, %v1429
      %v1444 = vpack.c.b16 %v1432, %v1431
      %v1445 = vpack.c.b16 %v1434, %v1433
      %v1446 = vpack.c.b16 %v1436, %v1435
      %v1447 = vpack.c.b16 %v1438, %v1437
      %v1448 = vpack.c.b16 %v1440, %v1439
      %1457 = vmatprep.subr.bf16.mxu0 0
      %1458 = vmatpush1.bf16.msra.mxu0 %v1448
      %1459 = vmatprep.subr.bf16.mxu0 0
      %1460 = vmatpush1.bf16.msra.mxu0 %v1447
      %1461 = vmatprep.subr.bf16.mxu0 0
      %1462 = vmatpush1.bf16.msra.mxu0 %v1446
      %1463 = vmatprep.subr.bf16.mxu0 0
      %1464 = vmatpush1.bf16.msra.mxu0 %v1445
      %1465 = vmatprep.subr.bf16.mxu0 0
      %1466 = vmatpush1.bf16.msra.mxu0 %v1444
      %1467 = vmatprep.subr.bf16.mxu0 0
      %1468 = vmatpush1.bf16.msra.mxu0 %v1443
      %1469 = vmatprep.subr.bf16.mxu0 0
      %1470 = vmatpush1.bf16.msra.mxu0 %v1442
      %1471 = vmatprep.subr.bf16.mxu0 0
      %1472 = vmatpush1.bf16.msra.mxu0 %v1441
      %1473 = vmatprep.subr.bf16.mxu0 0
      %1474 = vmatpush2.bf16.msra.mxu0 0
      %1475 = vmatprep.subr.bf16.mxu0 0
      %1476 = vmatpush2.bf16.msra.mxu0 0
      %1477 = vmatprep.subr.bf16.mxu0 0
      %1478 = vmatpush2.bf16.msra.mxu0 0
      %1479 = vmatprep.subr.bf16.mxu0 0
      %1480 = vmatpush2.bf16.msra.mxu0 0
      %1481 = vmatprep.subr.bf16.mxu0 0
      %1482 = vmatpush2.bf16.msra.mxu0 0
      %1483 = vmatprep.subr.bf16.mxu0 0
      %1484 = vmatpush2.bf16.msra.mxu0 0
      %1485 = vmatprep.subr.bf16.mxu0 0
      %1486 = vmatpush2.bf16.msra.mxu0 0
      %1487 = vmatprep.subr.bf16.mxu0 0
      %1488 = vmatpush2.bf16.msra.mxu0 0
      %1489 = vmatprep.mubr.bf16.mxu0 0
      %1490 = vmatmul.mubr.bf16.gmra.mxu0 %v1380
      %v1491 = vpop.f32.mrf.mxu0
      %v1492 = vadd.f32 0.0, %v1491
      %v1493 = vpop.f32.mrf.mxu0
      %v1494 = vpop.f32.mrf.mxu0
      %v1495 = vadd.f32 0.0, %v1494
      %v1496 = vpop.f32.mrf.mxu0
      %1497 = vmatprep.mubr.bf16.mxu0 0
      %1498 = vmatmul.mubr.bf16.gmra.mxu0 %v1381
      %v1499 = vpop.f32.mrf.mxu0
      %v1500 = vadd.f32 0.0, %v1499
      %v1501 = vpop.f32.mrf.mxu0
      %v1502 = vpop.f32.mrf.mxu0
      %v1503 = vadd.f32 0.0, %v1502
      %v1504 = vpop.f32.mrf.mxu0
      %1505 = vmatprep.mubr.bf16.mxu0 0
      %1506 = vmatmul.mubr.bf16.gmra.mxu0 %v1382
      %v1507 = vpop.f32.mrf.mxu0
      %v1508 = vadd.f32 0.0, %v1507
      %v1509 = vpop.f32.mrf.mxu0
      %v1510 = vpop.f32.mrf.mxu0
      %v1511 = vadd.f32 0.0, %v1510
      %v1512 = vpop.f32.mrf.mxu0
      %1513 = vmatprep.mubr.bf16.mxu0 0
      %1514 = vmatmul.mubr.bf16.gmra.mxu0 %v1383
      %v1515 = vpop.f32.mrf.mxu0
      %v1516 = vadd.f32 0.0, %v1515
      %v1517 = vpop.f32.mrf.mxu0
      %v1518 = vpop.f32.mrf.mxu0
      %v1519 = vadd.f32 0.0, %v1518
      %v1520 = vpop.f32.mrf.mxu0
      %1521 = vmatprep.mubr.bf16.mxu0 0
      %1522 = vmatmul.mubr.bf16.gmra.mxu0 %v1384
      %v1523 = vpop.f32.mrf.mxu0
      %v1524 = vadd.f32 0.0, %v1523
      %v1525 = vpop.f32.mrf.mxu0
      %v1526 = vpop.f32.mrf.mxu0
      %v1527 = vadd.f32 0.0, %v1526
      %v1528 = vpop.f32.mrf.mxu0
      %1529 = vmatprep.mubr.bf16.mxu0 0
      %1530 = vmatmul.mubr.bf16.gmra.mxu0 %v1385
      %v1531 = vpop.f32.mrf.mxu0
      %v1532 = vadd.f32 0.0, %v1531
      %v1533 = vpop.f32.mrf.mxu0
      %v1534 = vpop.f32.mrf.mxu0
      %v1535 = vadd.f32 0.0, %v1534
      %v1536 = vpop.f32.mrf.mxu0
      %1537 = vmatprep.mubr.bf16.mxu0 0
      %1538 = vmatmul.mubr.bf16.gmra.mxu0 %v1386
      %v1539 = vpop.f32.mrf.mxu0
      %v1540 = vadd.f32 0.0, %v1539
      %v1541 = vpop.f32.mrf.mxu0
      %v1542 = vpop.f32.mrf.mxu0
      %v1543 = vadd.f32 0.0, %v1542
      %v1544 = vpop.f32.mrf.mxu0
      %1545 = vmatprep.mubr.bf16.mxu0 0
      %1546 = vmatmul.mubr.bf16.gmra.mxu0 %v1387
      %v1547 = vpop.f32.mrf.mxu0
      %v1548 = vadd.f32 0.0, %v1547
      %v1549 = vpop.f32.mrf.mxu0
      %v1550 = vpop.f32.mrf.mxu0
      %v1551 = vadd.f32 0.0, %v1550
      %v1552 = vpop.f32.mrf.mxu0
      %1553 = vmatprep.mubr.bf16.mxu0 0
      %1554 = vmatmul.mubr.bf16.gmra.mxu0 %v1388
      %v1555 = vpop.f32.mrf.mxu0
      %v1556 = vadd.f32 0.0, %v1555
      %v1557 = vpop.f32.mrf.mxu0
      %v1558 = vpop.f32.mrf.mxu0
      %v1559 = vadd.f32 0.0, %v1558
      %v1560 = vpop.f32.mrf.mxu0
      %1561 = vmatprep.mubr.bf16.mxu0 0
      %1562 = vmatmul.mubr.bf16.gmra.mxu0 %v1389
      %v1563 = vpop.f32.mrf.mxu0
      %v1564 = vadd.f32 0.0, %v1563
      %v1565 = vpop.f32.mrf.mxu0
      %v1566 = vpop.f32.mrf.mxu0
      %v1567 = vadd.f32 0.0, %v1566
      %v1568 = vpop.f32.mrf.mxu0
      %1569 = vmatprep.mubr.bf16.mxu0 0
      %1570 = vmatmul.mubr.bf16.gmra.mxu0 %v1390
      %v1571 = vpop.f32.mrf.mxu0
      %v1572 = vadd.f32 0.0, %v1571
      %v1573 = vpop.f32.mrf.mxu0
      %v1574 = vpop.f32.mrf.mxu0
      %v1575 = vadd.f32 0.0, %v1574
      %v1576 = vpop.f32.mrf.mxu0
      %1577 = vmatprep.mubr.bf16.mxu0 0
      %1578 = vmatmul.mubr.bf16.gmra.mxu0 %v1391
      %v1579 = vpop.f32.mrf.mxu0
      %v1580 = vadd.f32 0.0, %v1579
      %v1581 = vpop.f32.mrf.mxu0
      %v1582 = vpop.f32.mrf.mxu0
      %v1583 = vadd.f32 0.0, %v1582
      %v1584 = vpop.f32.mrf.mxu0
      %1585 = vdwg.mxu0
      %v1586 = vadd.f32 %v1235, %v1492
      %v1587 = vadd.f32 %v1236, %v1495
      %v1588 = vadd.f32 %v1237, %v1500
      %v1589 = vadd.f32 %v1238, %v1503
      %v1590 = vadd.f32 %v1239, %v1508
      %v1591 = vadd.f32 %v1240, %v1511
      %v1592 = vadd.f32 %v1241, %v1516
      %v1593 = vadd.f32 %v1242, %v1519
      %v1594 = vadd.f32 %v1243, %v1524
      %v1595 = vadd.f32 %v1244, %v1527
      %v1596 = vadd.f32 %v1245, %v1532
      %v1597 = vadd.f32 %v1246, %v1535
      %v1598 = vadd.f32 %v1247, %v1540
      %v1599 = vadd.f32 %v1248, %v1543
      %v1600 = vadd.f32 %v1249, %v1548
      %v1601 = vadd.f32 %v1250, %v1551
      %v1602 = vadd.f32 %v1251, %v1556
      %v1603 = vadd.f32 %v1252, %v1559
      %v1604 = vadd.f32 %v1253, %v1564
      %v1605 = vadd.f32 %v1254, %v1567
      %v1606 = vadd.f32 %v1255, %v1572
      %v1607 = vadd.f32 %v1256, %v1575
      %v1608 = vadd.f32 %v1257, %v1580
      %v1609 = vadd.f32 %v1258, %v1583
      %s1610 = scalar_lea.vmem %s3, 256
      %v1611 = vld [vmem:[%s1610] sm:$0xf]
      %v1612 = vld [vmem:[%s1610 + $0x4] sm:$0xf]
      %v1613 = vld [vmem:[%s1610 + $0x8] sm:$0xf]
      %v1614 = vld [vmem:[%s1610 + $0xc] sm:$0xf]
      %v1615 = vld [vmem:[%s1610 + $0x10] sm:$0xf]
      %v1616 = vld [vmem:[%s1610 + $0x14] sm:$0xf]
      %v1617 = vld [vmem:[%s1610 + $0x18] sm:$0xf]
      %v1618 = vld [vmem:[%s1610 + $0x1c] sm:$0xf]
      %v1619 = vld [vmem:[%s1610 + $0x20] sm:$0xf]
      %v1620 = vld [vmem:[%s1610 + $0x24] sm:$0xf]
      %v1621 = vld [vmem:[%s1610 + $0x28] sm:$0xf]
      %v1622 = vld [vmem:[%s1610 + $0x2c] sm:$0xf]
      %v1623 = vld [vmem:[%s1610 + $0x30] sm:$0xf]
      %v1624 = vld [vmem:[%s1610 + $0x34] sm:$0xf]
      %v1625 = vld [vmem:[%s1610 + $0x38] sm:$0xf]
      %v1626 = vld [vmem:[%s1610 + $0x3c] sm:$0xf]
      %v1628 = vshrl.u32 %v1380, 16
      %v1630 = vshll.u32 %v1380, 16
      %v1632 = vrot.slane %v1630, 1
      %v1633 = vor.u32 %v1628, %v1632
      %v1635 = vshll.u32 %v1381, 16
      %v1637 = vrot.slane %v1635, 1
      %v1638 = vsel %vm684, %v1633, %v1637
      %v1639 = vshrl.u32 %v1381, 16
      %v1641 = vor.u32 %v1639, %v1637
      %v1643 = vshll.u32 %v1382, 16
      %v1645 = vrot.slane %v1643, 1
      %v1646 = vsel %vm684, %v1641, %v1645
      %v1647 = vshrl.u32 %v1382, 16
      %v1649 = vor.u32 %v1647, %v1645
      %v1651 = vshll.u32 %v1383, 16
      %v1653 = vrot.slane %v1651, 1
      %v1654 = vsel %vm684, %v1649, %v1653
      %v1655 = vshrl.u32 %v1383, 16
      %v1657 = vor.u32 %v1655, %v1653
      %v1659 = vshll.u32 %v1384, 16
      %v1661 = vrot.slane %v1659, 1
      %v1662 = vsel %vm684, %v1657, %v1661
      %v1663 = vshrl.u32 %v1384, 16
      %v1665 = vor.u32 %v1663, %v1661
      %v1667 = vshll.u32 %v1385, 16
      %v1669 = vrot.slane %v1667, 1
      %v1670 = vsel %vm684, %v1665, %v1669
      %v1671 = vshrl.u32 %v1385, 16
      %v1673 = vor.u32 %v1671, %v1669
      %v1675 = vshll.u32 %v1386, 16
      %v1677 = vrot.slane %v1675, 1
      %v1678 = vsel %vm684, %v1673, %v1677
      %v1679 = vshrl.u32 %v1386, 16
      %v1681 = vor.u32 %v1679, %v1677
      %v1683 = vshll.u32 %v1387, 16
      %v1685 = vrot.slane %v1683, 1
      %v1686 = vsel %vm684, %v1681, %v1685
      %v1687 = vshrl.u32 %v1387, 16
      %v1689 = vor.u32 %v1687, %v1685
      %v1691 = vshll.u32 %v1388, 16
      %v1693 = vrot.slane %v1691, 1
      %v1694 = vsel %vm684, %v1689, %v1693
      %v1695 = vshrl.u32 %v1388, 16
      %v1697 = vor.u32 %v1695, %v1693
      %v1699 = vshll.u32 %v1389, 16
      %v1701 = vrot.slane %v1699, 1
      %v1702 = vsel %vm684, %v1697, %v1701
      %v1703 = vshrl.u32 %v1389, 16
      %v1705 = vor.u32 %v1703, %v1701
      %v1707 = vshll.u32 %v1390, 16
      %v1709 = vrot.slane %v1707, 1
      %v1710 = vsel %vm684, %v1705, %v1709
      %v1711 = vshrl.u32 %v1390, 16
      %v1713 = vor.u32 %v1711, %v1709
      %v1715 = vshll.u32 %v1391, 16
      %v1717 = vrot.slane %v1715, 1
      %v1718 = vsel %vm684, %v1713, %v1717
      %v1719 = vshrl.u32 %v1391, 16
      %v1721 = vor.u32 %v1719, %v1717
      %v1750 = vunpack.c.l.b16 %v1611
      %v1751 = vunpack.c.l.b16 %v1612
      %v1752 = vunpack.c.l.b16 %v1613
      %v1753 = vunpack.c.l.b16 %v1614
      %v1754 = vunpack.c.l.b16 %v1615
      %v1755 = vunpack.c.l.b16 %v1616
      %v1756 = vunpack.c.l.b16 %v1617
      %v1757 = vunpack.c.l.b16 %v1618
      %v1758 = vunpack.c.l.b16 %v1619
      %v1759 = vunpack.c.l.b16 %v1620
      %v1760 = vunpack.c.l.b16 %v1621
      %v1761 = vunpack.c.l.b16 %v1622
      %v1762 = vunpack.c.l.b16 %v1623
      %v1763 = vunpack.c.l.b16 %v1624
      %v1764 = vunpack.c.l.b16 %v1625
      %v1765 = vunpack.c.l.b16 %v1626
      %v1766 = vpack.c.b16 %v1751, %v1750
      %v1767 = vpack.c.b16 %v1753, %v1752
      %v1768 = vpack.c.b16 %v1755, %v1754
      %v1769 = vpack.c.b16 %v1757, %v1756
      %v1770 = vpack.c.b16 %v1759, %v1758
      %v1771 = vpack.c.b16 %v1761, %v1760
      %v1772 = vpack.c.b16 %v1763, %v1762
      %v1773 = vpack.c.b16 %v1765, %v1764
      %1782 = vmatprep.subr.bf16.mxu0 0
      %1783 = vmatpush1.bf16.msra.mxu0 %v1773
      %1784 = vmatprep.subr.bf16.mxu0 0
      %1785 = vmatpush1.bf16.msra.mxu0 %v1772
      %1786 = vmatprep.subr.bf16.mxu0 0
      %1787 = vmatpush1.bf16.msra.mxu0 %v1771
      %1788 = vmatprep.subr.bf16.mxu0 0
      %1789 = vmatpush1.bf16.msra.mxu0 %v1770
      %1790 = vmatprep.subr.bf16.mxu0 0
      %1791 = vmatpush1.bf16.msra.mxu0 %v1769
      %1792 = vmatprep.subr.bf16.mxu0 0
      %1793 = vmatpush1.bf16.msra.mxu0 %v1768
      %1794 = vmatprep.subr.bf16.mxu0 0
      %1795 = vmatpush1.bf16.msra.mxu0 %v1767
      %1796 = vmatprep.subr.bf16.mxu0 0
      %1797 = vmatpush1.bf16.msra.mxu0 %v1766
      %1798 = vmatprep.subr.bf16.mxu0 0
      %1799 = vmatpush2.bf16.msra.mxu0 0
      %1800 = vmatprep.subr.bf16.mxu0 0
      %1801 = vmatpush2.bf16.msra.mxu0 0
      %1802 = vmatprep.subr.bf16.mxu0 0
      %1803 = vmatpush2.bf16.msra.mxu0 0
      %1804 = vmatprep.subr.bf16.mxu0 0
      %1805 = vmatpush2.bf16.msra.mxu0 0
      %1806 = vmatprep.subr.bf16.mxu0 0
      %1807 = vmatpush2.bf16.msra.mxu0 0
      %1808 = vmatprep.subr.bf16.mxu0 0
      %1809 = vmatpush2.bf16.msra.mxu0 0
      %1810 = vmatprep.subr.bf16.mxu0 0
      %1811 = vmatpush2.bf16.msra.mxu0 0
      %1812 = vmatprep.subr.bf16.mxu0 0
      %1813 = vmatpush2.bf16.msra.mxu0 0
      %1814 = vmatprep.mubr.bf16.mxu0 0
      %1815 = vmatmul.mubr.bf16.gmra.mxu0 %v1638
      %v1816 = vpop.f32.mrf.mxu0
      %v1817 = vadd.f32 0.0, %v1816
      %v1818 = vpop.f32.mrf.mxu0
      %v1819 = vpop.f32.mrf.mxu0
      %v1820 = vadd.f32 0.0, %v1819
      %v1821 = vpop.f32.mrf.mxu0
      %1822 = vmatprep.mubr.bf16.mxu0 0
      %1823 = vmatmul.mubr.bf16.gmra.mxu0 %v1646
      %v1824 = vpop.f32.mrf.mxu0
      %v1825 = vadd.f32 0.0, %v1824
      %v1826 = vpop.f32.mrf.mxu0
      %v1827 = vpop.f32.mrf.mxu0
      %v1828 = vadd.f32 0.0, %v1827
      %v1829 = vpop.f32.mrf.mxu0
      %1830 = vmatprep.mubr.bf16.mxu0 0
      %1831 = vmatmul.mubr.bf16.gmra.mxu0 %v1654
      %v1832 = vpop.f32.mrf.mxu0
      %v1833 = vadd.f32 0.0, %v1832
      %v1834 = vpop.f32.mrf.mxu0
      %v1835 = vpop.f32.mrf.mxu0
      %v1836 = vadd.f32 0.0, %v1835
      %v1837 = vpop.f32.mrf.mxu0
      %1838 = vmatprep.mubr.bf16.mxu0 0
      %1839 = vmatmul.mubr.bf16.gmra.mxu0 %v1662
      %v1840 = vpop.f32.mrf.mxu0
      %v1841 = vadd.f32 0.0, %v1840
      %v1842 = vpop.f32.mrf.mxu0
      %v1843 = vpop.f32.mrf.mxu0
      %v1844 = vadd.f32 0.0, %v1843
      %v1845 = vpop.f32.mrf.mxu0
      %1846 = vmatprep.mubr.bf16.mxu0 0
      %1847 = vmatmul.mubr.bf16.gmra.mxu0 %v1670
      %v1848 = vpop.f32.mrf.mxu0
      %v1849 = vadd.f32 0.0, %v1848
      %v1850 = vpop.f32.mrf.mxu0
      %v1851 = vpop.f32.mrf.mxu0
      %v1852 = vadd.f32 0.0, %v1851
      %v1853 = vpop.f32.mrf.mxu0
      %1854 = vmatprep.mubr.bf16.mxu0 0
      %1855 = vmatmul.mubr.bf16.gmra.mxu0 %v1678
      %v1856 = vpop.f32.mrf.mxu0
      %v1857 = vadd.f32 0.0, %v1856
      %v1858 = vpop.f32.mrf.mxu0
      %v1859 = vpop.f32.mrf.mxu0
      %v1860 = vadd.f32 0.0, %v1859
      %v1861 = vpop.f32.mrf.mxu0
      %1862 = vmatprep.mubr.bf16.mxu0 0
      %1863 = vmatmul.mubr.bf16.gmra.mxu0 %v1686
      %v1864 = vpop.f32.mrf.mxu0
      %v1865 = vadd.f32 0.0, %v1864
      %v1866 = vpop.f32.mrf.mxu0
      %v1867 = vpop.f32.mrf.mxu0
      %v1868 = vadd.f32 0.0, %v1867
      %v1869 = vpop.f32.mrf.mxu0
      %1870 = vmatprep.mubr.bf16.mxu0 0
      %1871 = vmatmul.mubr.bf16.gmra.mxu0 %v1694
      %v1872 = vpop.f32.mrf.mxu0
      %v1873 = vadd.f32 0.0, %v1872
      %v1874 = vpop.f32.mrf.mxu0
      %v1875 = vpop.f32.mrf.mxu0
      %v1876 = vadd.f32 0.0, %v1875
      %v1877 = vpop.f32.mrf.mxu0
      %1878 = vmatprep.mubr.bf16.mxu0 0
      %1879 = vmatmul.mubr.bf16.gmra.mxu0 %v1702
      %v1880 = vpop.f32.mrf.mxu0
      %v1881 = vadd.f32 0.0, %v1880
      %v1882 = vpop.f32.mrf.mxu0
      %v1883 = vpop.f32.mrf.mxu0
      %v1884 = vadd.f32 0.0, %v1883
      %v1885 = vpop.f32.mrf.mxu0
      %1886 = vmatprep.mubr.bf16.mxu0 0
      %1887 = vmatmul.mubr.bf16.gmra.mxu0 %v1710
      %v1888 = vpop.f32.mrf.mxu0
      %v1889 = vadd.f32 0.0, %v1888
      %v1890 = vpop.f32.mrf.mxu0
      %v1891 = vpop.f32.mrf.mxu0
      %v1892 = vadd.f32 0.0, %v1891
      %v1893 = vpop.f32.mrf.mxu0
      %1894 = vmatprep.mubr.bf16.mxu0 0
      %1895 = vmatmul.mubr.bf16.gmra.mxu0 %v1718
      %v1896 = vpop.f32.mrf.mxu0
      %v1897 = vadd.f32 0.0, %v1896
      %v1898 = vpop.f32.mrf.mxu0
      %v1899 = vpop.f32.mrf.mxu0
      %v1900 = vadd.f32 0.0, %v1899
      %v1901 = vpop.f32.mrf.mxu0
      %1902 = vmatprep.mubr.bf16.mxu0 0
      %1903 = vmatmul.mubr.bf16.gmra.mxu0 %v1721
      %v1904 = vpop.f32.mrf.mxu0
      %v1905 = vadd.f32 0.0, %v1904
      %v1906 = vpop.f32.mrf.mxu0
      %v1907 = vpop.f32.mrf.mxu0
      %v1908 = vadd.f32 0.0, %v1907
      %v1909 = vpop.f32.mrf.mxu0
      %1910 = vdwg.mxu0
      %v1911 = vadd.f32 %v1586, %v1817
      %v1912 = vadd.f32 %v1587, %v1820
      %v1913 = vadd.f32 %v1588, %v1825
      %v1914 = vadd.f32 %v1589, %v1828
      %v1915 = vadd.f32 %v1590, %v1833
      %v1916 = vadd.f32 %v1591, %v1836
      %v1917 = vadd.f32 %v1592, %v1841
      %v1918 = vadd.f32 %v1593, %v1844
      %v1919 = vadd.f32 %v1594, %v1849
      %v1920 = vadd.f32 %v1595, %v1852
      %v1921 = vadd.f32 %v1596, %v1857
      %v1922 = vadd.f32 %v1597, %v1860
      %v1923 = vadd.f32 %v1598, %v1865
      %v1924 = vadd.f32 %v1599, %v1868
      %v1925 = vadd.f32 %v1600, %v1873
      %v1926 = vadd.f32 %v1601, %v1876
      %v1927 = vadd.f32 %v1602, %v1881
      %v1928 = vadd.f32 %v1603, %v1884
      %v1929 = vadd.f32 %v1604, %v1889
      %v1930 = vadd.f32 %v1605, %v1892
      %v1931 = vadd.f32 %v1606, %v1897
      %v1932 = vadd.f32 %v1607, %v1900
      %v1933 = vadd.f32 %v1608, %v1905
      %v1934 = vadd.f32 %v1609, %v1908
      %s1935 = scalar_lea.vmem %s3, 320
      %v1936 = vld [vmem:[%s1935] sm:$0xf]
      %v1937 = vld [vmem:[%s1935 + $0x4] sm:$0xf]
      %v1938 = vld [vmem:[%s1935 + $0x8] sm:$0xf]
      %v1939 = vld [vmem:[%s1935 + $0xc] sm:$0xf]
      %v1940 = vld [vmem:[%s1935 + $0x10] sm:$0xf]
      %v1941 = vld [vmem:[%s1935 + $0x14] sm:$0xf]
      %v1942 = vld [vmem:[%s1935 + $0x18] sm:$0xf]
      %v1943 = vld [vmem:[%s1935 + $0x1c] sm:$0xf]
      %v1944 = vld [vmem:[%s1935 + $0x20] sm:$0xf]
      %v1945 = vld [vmem:[%s1935 + $0x24] sm:$0xf]
      %v1946 = vld [vmem:[%s1935 + $0x28] sm:$0xf]
      %v1947 = vld [vmem:[%s1935 + $0x2c] sm:$0xf]
      %v1948 = vld [vmem:[%s1935 + $0x30] sm:$0xf]
      %v1949 = vld [vmem:[%s1935 + $0x34] sm:$0xf]
      %v1950 = vld [vmem:[%s1935 + $0x38] sm:$0xf]
      %v1951 = vld [vmem:[%s1935 + $0x3c] sm:$0xf]
      %v1964 = vrot.slane %v1380, 1
      %v1965 = vrot.slane %v1381, 1
      %v1966 = vsel %vm1022, %v1964, %v1965
      %v1967 = vrot.slane %v1382, 1
      %v1968 = vsel %vm1022, %v1965, %v1967
      %v1969 = vrot.slane %v1383, 1
      %v1970 = vsel %vm1022, %v1967, %v1969
      %v1971 = vrot.slane %v1384, 1
      %v1972 = vsel %vm1022, %v1969, %v1971
      %v1973 = vrot.slane %v1385, 1
      %v1974 = vsel %vm1022, %v1971, %v1973
      %v1975 = vrot.slane %v1386, 1
      %v1976 = vsel %vm1022, %v1973, %v1975
      %v1977 = vrot.slane %v1387, 1
      %v1978 = vsel %vm1022, %v1975, %v1977
      %v1979 = vrot.slane %v1388, 1
      %v1980 = vsel %vm1022, %v1977, %v1979
      %v1981 = vrot.slane %v1389, 1
      %v1982 = vsel %vm1022, %v1979, %v1981
      %v1983 = vrot.slane %v1390, 1
      %v1984 = vsel %vm1022, %v1981, %v1983
      %v1985 = vrot.slane %v1391, 1
      %v1986 = vsel %vm1022, %v1983, %v1985
      %v2015 = vunpack.c.l.b16 %v1936
      %v2016 = vunpack.c.l.b16 %v1937
      %v2017 = vunpack.c.l.b16 %v1938
      %v2018 = vunpack.c.l.b16 %v1939
      %v2019 = vunpack.c.l.b16 %v1940
      %v2020 = vunpack.c.l.b16 %v1941
      %v2021 = vunpack.c.l.b16 %v1942
      %v2022 = vunpack.c.l.b16 %v1943
      %v2023 = vunpack.c.l.b16 %v1944
      %v2024 = vunpack.c.l.b16 %v1945
      %v2025 = vunpack.c.l.b16 %v1946
      %v2026 = vunpack.c.l.b16 %v1947
      %v2027 = vunpack.c.l.b16 %v1948
      %v2028 = vunpack.c.l.b16 %v1949
      %v2029 = vunpack.c.l.b16 %v1950
      %v2030 = vunpack.c.l.b16 %v1951
      %v2031 = vpack.c.b16 %v2016, %v2015
      %v2032 = vpack.c.b16 %v2018, %v2017
      %v2033 = vpack.c.b16 %v2020, %v2019
      %v2034 = vpack.c.b16 %v2022, %v2021
      %v2035 = vpack.c.b16 %v2024, %v2023
      %v2036 = vpack.c.b16 %v2026, %v2025
      %v2037 = vpack.c.b16 %v2028, %v2027
      %v2038 = vpack.c.b16 %v2030, %v2029
      %2047 = vmatprep.subr.bf16.mxu0 0
      %2048 = vmatpush1.bf16.msra.mxu0 %v2038
      %2049 = vmatprep.subr.bf16.mxu0 0
      %2050 = vmatpush1.bf16.msra.mxu0 %v2037
      %2051 = vmatprep.subr.bf16.mxu0 0
      %2052 = vmatpush1.bf16.msra.mxu0 %v2036
      %2053 = vmatprep.subr.bf16.mxu0 0
      %2054 = vmatpush1.bf16.msra.mxu0 %v2035
      %2055 = vmatprep.subr.bf16.mxu0 0
      %2056 = vmatpush1.bf16.msra.mxu0 %v2034
      %2057 = vmatprep.subr.bf16.mxu0 0
      %2058 = vmatpush1.bf16.msra.mxu0 %v2033
      %2059 = vmatprep.subr.bf16.mxu0 0
      %2060 = vmatpush1.bf16.msra.mxu0 %v2032
      %2061 = vmatprep.subr.bf16.mxu0 0
      %2062 = vmatpush1.bf16.msra.mxu0 %v2031
      %2063 = vmatprep.subr.bf16.mxu0 0
      %2064 = vmatpush2.bf16.msra.mxu0 0
      %2065 = vmatprep.subr.bf16.mxu0 0
      %2066 = vmatpush2.bf16.msra.mxu0 0
      %2067 = vmatprep.subr.bf16.mxu0 0
      %2068 = vmatpush2.bf16.msra.mxu0 0
      %2069 = vmatprep.subr.bf16.mxu0 0
      %2070 = vmatpush2.bf16.msra.mxu0 0
      %2071 = vmatprep.subr.bf16.mxu0 0
      %2072 = vmatpush2.bf16.msra.mxu0 0
      %2073 = vmatprep.subr.bf16.mxu0 0
      %2074 = vmatpush2.bf16.msra.mxu0 0
      %2075 = vmatprep.subr.bf16.mxu0 0
      %2076 = vmatpush2.bf16.msra.mxu0 0
      %2077 = vmatprep.subr.bf16.mxu0 0
      %2078 = vmatpush2.bf16.msra.mxu0 0
      %2079 = vmatprep.mubr.bf16.mxu0 0
      %2080 = vmatmul.mubr.bf16.gmra.mxu0 %v1966
      %v2081 = vpop.f32.mrf.mxu0
      %v2082 = vadd.f32 0.0, %v2081
      %v2083 = vpop.f32.mrf.mxu0
      %v2084 = vpop.f32.mrf.mxu0
      %v2085 = vadd.f32 0.0, %v2084
      %v2086 = vpop.f32.mrf.mxu0
      %2087 = vmatprep.mubr.bf16.mxu0 0
      %2088 = vmatmul.mubr.bf16.gmra.mxu0 %v1968
      %v2089 = vpop.f32.mrf.mxu0
      %v2090 = vadd.f32 0.0, %v2089
      %v2091 = vpop.f32.mrf.mxu0
      %v2092 = vpop.f32.mrf.mxu0
      %v2093 = vadd.f32 0.0, %v2092
      %v2094 = vpop.f32.mrf.mxu0
      %2095 = vmatprep.mubr.bf16.mxu0 0
      %2096 = vmatmul.mubr.bf16.gmra.mxu0 %v1970
      %v2097 = vpop.f32.mrf.mxu0
      %v2098 = vadd.f32 0.0, %v2097
      %v2099 = vpop.f32.mrf.mxu0
      %v2100 = vpop.f32.mrf.mxu0
      %v2101 = vadd.f32 0.0, %v2100
      %v2102 = vpop.f32.mrf.mxu0
      %2103 = vmatprep.mubr.bf16.mxu0 0
      %2104 = vmatmul.mubr.bf16.gmra.mxu0 %v1972
      %v2105 = vpop.f32.mrf.mxu0
      %v2106 = vadd.f32 0.0, %v2105
      %v2107 = vpop.f32.mrf.mxu0
      %v2108 = vpop.f32.mrf.mxu0
      %v2109 = vadd.f32 0.0, %v2108
      %v2110 = vpop.f32.mrf.mxu0
      %2111 = vmatprep.mubr.bf16.mxu0 0
      %2112 = vmatmul.mubr.bf16.gmra.mxu0 %v1974
      %v2113 = vpop.f32.mrf.mxu0
      %v2114 = vadd.f32 0.0, %v2113
      %v2115 = vpop.f32.mrf.mxu0
      %v2116 = vpop.f32.mrf.mxu0
      %v2117 = vadd.f32 0.0, %v2116
      %v2118 = vpop.f32.mrf.mxu0
      %2119 = vmatprep.mubr.bf16.mxu0 0
      %2120 = vmatmul.mubr.bf16.gmra.mxu0 %v1976
      %v2121 = vpop.f32.mrf.mxu0
      %v2122 = vadd.f32 0.0, %v2121
      %v2123 = vpop.f32.mrf.mxu0
      %v2124 = vpop.f32.mrf.mxu0
      %v2125 = vadd.f32 0.0, %v2124
      %v2126 = vpop.f32.mrf.mxu0
      %2127 = vmatprep.mubr.bf16.mxu0 0
      %2128 = vmatmul.mubr.bf16.gmra.mxu0 %v1978
      %v2129 = vpop.f32.mrf.mxu0
      %v2130 = vadd.f32 0.0, %v2129
      %v2131 = vpop.f32.mrf.mxu0
      %v2132 = vpop.f32.mrf.mxu0
      %v2133 = vadd.f32 0.0, %v2132
      %v2134 = vpop.f32.mrf.mxu0
      %2135 = vmatprep.mubr.bf16.mxu0 0
      %2136 = vmatmul.mubr.bf16.gmra.mxu0 %v1980
      %v2137 = vpop.f32.mrf.mxu0
      %v2138 = vadd.f32 0.0, %v2137
      %v2139 = vpop.f32.mrf.mxu0
      %v2140 = vpop.f32.mrf.mxu0
      %v2141 = vadd.f32 0.0, %v2140
      %v2142 = vpop.f32.mrf.mxu0
      %2143 = vmatprep.mubr.bf16.mxu0 0
      %2144 = vmatmul.mubr.bf16.gmra.mxu0 %v1982
      %v2145 = vpop.f32.mrf.mxu0
      %v2146 = vadd.f32 0.0, %v2145
      %v2147 = vpop.f32.mrf.mxu0
      %v2148 = vpop.f32.mrf.mxu0
      %v2149 = vadd.f32 0.0, %v2148
      %v2150 = vpop.f32.mrf.mxu0
      %2151 = vmatprep.mubr.bf16.mxu0 0
      %2152 = vmatmul.mubr.bf16.gmra.mxu0 %v1984
      %v2153 = vpop.f32.mrf.mxu0
      %v2154 = vadd.f32 0.0, %v2153
      %v2155 = vpop.f32.mrf.mxu0
      %v2156 = vpop.f32.mrf.mxu0
      %v2157 = vadd.f32 0.0, %v2156
      %v2158 = vpop.f32.mrf.mxu0
      %2159 = vmatprep.mubr.bf16.mxu0 0
      %2160 = vmatmul.mubr.bf16.gmra.mxu0 %v1986
      %v2161 = vpop.f32.mrf.mxu0
      %v2162 = vadd.f32 0.0, %v2161
      %v2163 = vpop.f32.mrf.mxu0
      %v2164 = vpop.f32.mrf.mxu0
      %v2165 = vadd.f32 0.0, %v2164
      %v2166 = vpop.f32.mrf.mxu0
      %2167 = vmatprep.mubr.bf16.mxu0 0
      %2168 = vmatmul.mubr.bf16.gmra.mxu0 %v1985
      %v2169 = vpop.f32.mrf.mxu0
      %v2170 = vadd.f32 0.0, %v2169
      %v2171 = vpop.f32.mrf.mxu0
      %v2172 = vpop.f32.mrf.mxu0
      %v2173 = vadd.f32 0.0, %v2172
      %v2174 = vpop.f32.mrf.mxu0
      %2175 = vdwg.mxu0
      %v2176 = vadd.f32 %v1911, %v2082
      %v2177 = vadd.f32 %v1912, %v2085
      %v2178 = vadd.f32 %v1913, %v2090
      %v2179 = vadd.f32 %v1914, %v2093
      %v2180 = vadd.f32 %v1915, %v2098
      %v2181 = vadd.f32 %v1916, %v2101
      %v2182 = vadd.f32 %v1917, %v2106
      %v2183 = vadd.f32 %v1918, %v2109
      %v2184 = vadd.f32 %v1919, %v2114
      %v2185 = vadd.f32 %v1920, %v2117
      %v2186 = vadd.f32 %v1921, %v2122
      %v2187 = vadd.f32 %v1922, %v2125
      %v2188 = vadd.f32 %v1923, %v2130
      %v2189 = vadd.f32 %v1924, %v2133
      %v2190 = vadd.f32 %v1925, %v2138
      %v2191 = vadd.f32 %v1926, %v2141
      %v2192 = vadd.f32 %v1927, %v2146
      %v2193 = vadd.f32 %v1928, %v2149
      %v2194 = vadd.f32 %v1929, %v2154
      %v2195 = vadd.f32 %v1930, %v2157
      %v2196 = vadd.f32 %v1931, %v2162
      %v2197 = vadd.f32 %v1932, %v2165
      %v2198 = vadd.f32 %v1933, %v2170
      %v2199 = vadd.f32 %v1934, %v2173
      %s2200 = scalar_lea.vmem %s284, 16
      %v2201 = vld [vmem:[%s2200] sm:$0xf]
      %v2202 = vld [vmem:[%s2200 + $0x4] sm:$0xf]
      %v2203 = vld [vmem:[%s2200 + $0x8] sm:$0xf]
      %v2204 = vld [vmem:[%s2200 + $0xc] sm:$0xf]
      %v2205 = vld [vmem:[%s2200 + $0x10] sm:$0xf]
      %v2206 = vld [vmem:[%s2200 + $0x14] sm:$0xf]
      %v2207 = vld [vmem:[%s2200 + $0x18] sm:$0xf]
      %v2208 = vld [vmem:[%s2200 + $0x1c] sm:$0xf]
      %v2209 = vld [vmem:[%s2200 + $0x20] sm:$0xf]
      %v2210 = vld [vmem:[%s2200 + $0x24] sm:$0xf]
      %v2211 = vld [vmem:[%s2200 + $0x28] sm:$0xf]
      %v2212 = vld [vmem:[%s2200 + $0x2c] sm:$0xf]
      %v2213 = vld [vmem:[%s2200 + $0x30] sm:$0xf]
      %v2214 = vld [vmem:[%s2200 + $0x34] sm:$0xf]
      %v2215 = vld [vmem:[%s2200 + $0x38] sm:$0xf]
      %v2216 = vld [vmem:[%s2200 + $0x3c] sm:$0xf]
      %v2217 = vld [vmem:[%s2200 + $0x40] sm:$0xf]
      %v2218 = vld [vmem:[%s2200 + $0x44] sm:$0xf]
      %v2219 = vld [vmem:[%s2200 + $0x48] sm:$0xf]
      %v2220 = vld [vmem:[%s2200 + $0x4c] sm:$0xf]
      %v2221 = vld [vmem:[%s2200 + $0x50] sm:$0xf]
      %v2222 = vld [vmem:[%s2200 + $0x54] sm:$0xf]
      %v2223 = vld [vmem:[%s2200 + $0x58] sm:$0xf]
      %v2224 = vld [vmem:[%s2200 + $0x5c] sm:$0xf]
      %v2225 = vunpack.c.l.bf16 %v2201
      %v2226 = vunpack.c.l.bf16 %v2202
      %v2227 = vunpack.c.l.bf16 %v2203
      %v2228 = vunpack.c.l.bf16 %v2204
      %v2229 = vunpack.c.l.bf16 %v2205
      %v2230 = vunpack.c.l.bf16 %v2206
      %v2231 = vunpack.c.l.bf16 %v2207
      %v2232 = vunpack.c.l.bf16 %v2208
      %v2233 = vunpack.c.l.bf16 %v2209
      %v2234 = vunpack.c.l.bf16 %v2210
      %v2235 = vunpack.c.l.bf16 %v2211
      %v2236 = vunpack.c.l.bf16 %v2212
      %v2237 = vunpack.c.l.bf16 %v2213
      %v2238 = vunpack.c.l.bf16 %v2214
      %v2239 = vunpack.c.l.bf16 %v2215
      %v2240 = vunpack.c.l.bf16 %v2216
      %v2241 = vunpack.c.l.bf16 %v2217
      %v2242 = vunpack.c.l.bf16 %v2218
      %v2243 = vunpack.c.l.bf16 %v2219
      %v2244 = vunpack.c.l.bf16 %v2220
      %v2245 = vunpack.c.l.bf16 %v2221
      %v2246 = vunpack.c.l.bf16 %v2222
      %v2247 = vunpack.c.l.bf16 %v2223
      %v2248 = vunpack.c.l.bf16 %v2224
      %v2249 = vmul.f32 %v2225, %v358
      %v2250 = vmul.f32 %v2226, %v358
      %v2251 = vmul.f32 %v2227, %v358
      %v2252 = vmul.f32 %v2228, %v358
      %v2253 = vmul.f32 %v2229, %v358
      %v2254 = vmul.f32 %v2230, %v358
      %v2255 = vmul.f32 %v2231, %v358
      %v2256 = vmul.f32 %v2232, %v358
      %v2257 = vmul.f32 %v2233, %v358
      %v2258 = vmul.f32 %v2234, %v358
      %v2259 = vmul.f32 %v2235, %v358
      %v2260 = vmul.f32 %v2236, %v358
      %v2261 = vmul.f32 %v2237, %v358
      %v2262 = vmul.f32 %v2238, %v358
      %v2263 = vmul.f32 %v2239, %v358
      %v2264 = vmul.f32 %v2240, %v358
      %v2265 = vmul.f32 %v2241, %v358
      %v2266 = vmul.f32 %v2242, %v358
      %v2267 = vmul.f32 %v2243, %v358
      %v2268 = vmul.f32 %v2244, %v358
      %v2269 = vmul.f32 %v2245, %v358
      %v2270 = vmul.f32 %v2246, %v358
      %v2271 = vmul.f32 %v2247, %v358
      %v2272 = vmul.f32 %v2248, %v358
      %v2273 = vadd.f32 %v2249, %v388
      %v2274 = vadd.f32 %v2250, %v388
      %v2275 = vadd.f32 %v2251, %v388
      %v2276 = vadd.f32 %v2252, %v388
      %v2277 = vadd.f32 %v2253, %v388
      %v2278 = vadd.f32 %v2254, %v388
      %v2279 = vadd.f32 %v2255, %v388
      %v2280 = vadd.f32 %v2256, %v388
      %v2281 = vadd.f32 %v2257, %v388
      %v2282 = vadd.f32 %v2258, %v388
      %v2283 = vadd.f32 %v2259, %v388
      %v2284 = vadd.f32 %v2260, %v388
      %v2285 = vadd.f32 %v2261, %v388
      %v2286 = vadd.f32 %v2262, %v388
      %v2287 = vadd.f32 %v2263, %v388
      %v2288 = vadd.f32 %v2264, %v388
      %v2289 = vadd.f32 %v2265, %v388
      %v2290 = vadd.f32 %v2266, %v388
      %v2291 = vadd.f32 %v2267, %v388
      %v2292 = vadd.f32 %v2268, %v388
      %v2293 = vadd.f32 %v2269, %v388
      %v2294 = vadd.f32 %v2270, %v388
      %v2295 = vadd.f32 %v2271, %v388
      %v2296 = vadd.f32 %v2272, %v388
      %v2297 = vmax.f32 %v2273, 0.0
      %v2298 = vmax.f32 %v2274, 0.0
      %v2299 = vmax.f32 %v2275, 0.0
      %v2300 = vmax.f32 %v2276, 0.0
      %v2301 = vmax.f32 %v2277, 0.0
      %v2302 = vmax.f32 %v2278, 0.0
      %v2303 = vmax.f32 %v2279, 0.0
      %v2304 = vmax.f32 %v2280, 0.0
      %v2305 = vmax.f32 %v2281, 0.0
      %v2306 = vmax.f32 %v2282, 0.0
      %v2307 = vmax.f32 %v2283, 0.0
      %v2308 = vmax.f32 %v2284, 0.0
      %v2309 = vmax.f32 %v2285, 0.0
      %v2310 = vmax.f32 %v2286, 0.0
      %v2311 = vmax.f32 %v2287, 0.0
      %v2312 = vmax.f32 %v2288, 0.0
      %v2313 = vmax.f32 %v2289, 0.0
      %v2314 = vmax.f32 %v2290, 0.0
      %v2315 = vmax.f32 %v2291, 0.0
      %v2316 = vmax.f32 %v2292, 0.0
      %v2317 = vmax.f32 %v2293, 0.0
      %v2318 = vmax.f32 %v2294, 0.0
      %v2319 = vmax.f32 %v2295, 0.0
      %v2320 = vmax.f32 %v2296, 0.0
      %v2321 = vpack.c.bf16 %v2298, %v2297
      %v2322 = vpack.c.bf16 %v2300, %v2299
      %v2323 = vpack.c.bf16 %v2302, %v2301
      %v2324 = vpack.c.bf16 %v2304, %v2303
      %v2325 = vpack.c.bf16 %v2306, %v2305
      %v2326 = vpack.c.bf16 %v2308, %v2307
      %v2327 = vpack.c.bf16 %v2310, %v2309
      %v2328 = vpack.c.bf16 %v2312, %v2311
      %v2329 = vpack.c.bf16 %v2314, %v2313
      %v2330 = vpack.c.bf16 %v2316, %v2315
      %v2331 = vpack.c.bf16 %v2318, %v2317
      %v2332 = vpack.c.bf16 %v2320, %v2319
      %s2333 = scalar_lea.vmem %s3, 384
      %v2334 = vld [vmem:[%s2333] sm:$0xf]
      %v2335 = vld [vmem:[%s2333 + $0x4] sm:$0xf]
      %v2336 = vld [vmem:[%s2333 + $0x8] sm:$0xf]
      %v2337 = vld [vmem:[%s2333 + $0xc] sm:$0xf]
      %v2338 = vld [vmem:[%s2333 + $0x10] sm:$0xf]
      %v2339 = vld [vmem:[%s2333 + $0x14] sm:$0xf]
      %v2340 = vld [vmem:[%s2333 + $0x18] sm:$0xf]
      %v2341 = vld [vmem:[%s2333 + $0x1c] sm:$0xf]
      %v2342 = vld [vmem:[%s2333 + $0x20] sm:$0xf]
      %v2343 = vld [vmem:[%s2333 + $0x24] sm:$0xf]
      %v2344 = vld [vmem:[%s2333 + $0x28] sm:$0xf]
      %v2345 = vld [vmem:[%s2333 + $0x2c] sm:$0xf]
      %v2346 = vld [vmem:[%s2333 + $0x30] sm:$0xf]
      %v2347 = vld [vmem:[%s2333 + $0x34] sm:$0xf]
      %v2348 = vld [vmem:[%s2333 + $0x38] sm:$0xf]
      %v2349 = vld [vmem:[%s2333 + $0x3c] sm:$0xf]
      %v2366 = vunpack.c.l.b16 %v2334
      %v2367 = vunpack.c.l.b16 %v2335
      %v2368 = vunpack.c.l.b16 %v2336
      %v2369 = vunpack.c.l.b16 %v2337
      %v2370 = vunpack.c.l.b16 %v2338
      %v2371 = vunpack.c.l.b16 %v2339
      %v2372 = vunpack.c.l.b16 %v2340
      %v2373 = vunpack.c.l.b16 %v2341
      %v2374 = vunpack.c.l.b16 %v2342
      %v2375 = vunpack.c.l.b16 %v2343
      %v2376 = vunpack.c.l.b16 %v2344
      %v2377 = vunpack.c.l.b16 %v2345
      %v2378 = vunpack.c.l.b16 %v2346
      %v2379 = vunpack.c.l.b16 %v2347
      %v2380 = vunpack.c.l.b16 %v2348
      %v2381 = vunpack.c.l.b16 %v2349
      %v2382 = vpack.c.b16 %v2367, %v2366
      %v2383 = vpack.c.b16 %v2369, %v2368
      %v2384 = vpack.c.b16 %v2371, %v2370
      %v2385 = vpack.c.b16 %v2373, %v2372
      %v2386 = vpack.c.b16 %v2375, %v2374
      %v2387 = vpack.c.b16 %v2377, %v2376
      %v2388 = vpack.c.b16 %v2379, %v2378
      %v2389 = vpack.c.b16 %v2381, %v2380
      %2398 = vmatprep.subr.bf16.mxu0 0
      %2399 = vmatpush1.bf16.msra.mxu0 %v2389
      %2400 = vmatprep.subr.bf16.mxu0 0
      %2401 = vmatpush1.bf16.msra.mxu0 %v2388
      %2402 = vmatprep.subr.bf16.mxu0 0
      %2403 = vmatpush1.bf16.msra.mxu0 %v2387
      %2404 = vmatprep.subr.bf16.mxu0 0
      %2405 = vmatpush1.bf16.msra.mxu0 %v2386
      %2406 = vmatprep.subr.bf16.mxu0 0
      %2407 = vmatpush1.bf16.msra.mxu0 %v2385
      %2408 = vmatprep.subr.bf16.mxu0 0
      %2409 = vmatpush1.bf16.msra.mxu0 %v2384
      %2410 = vmatprep.subr.bf16.mxu0 0
      %2411 = vmatpush1.bf16.msra.mxu0 %v2383
      %2412 = vmatprep.subr.bf16.mxu0 0
      %2413 = vmatpush1.bf16.msra.mxu0 %v2382
      %2414 = vmatprep.subr.bf16.mxu0 0
      %2415 = vmatpush2.bf16.msra.mxu0 0
      %2416 = vmatprep.subr.bf16.mxu0 0
      %2417 = vmatpush2.bf16.msra.mxu0 0
      %2418 = vmatprep.subr.bf16.mxu0 0
      %2419 = vmatpush2.bf16.msra.mxu0 0
      %2420 = vmatprep.subr.bf16.mxu0 0
      %2421 = vmatpush2.bf16.msra.mxu0 0
      %2422 = vmatprep.subr.bf16.mxu0 0
      %2423 = vmatpush2.bf16.msra.mxu0 0
      %2424 = vmatprep.subr.bf16.mxu0 0
      %2425 = vmatpush2.bf16.msra.mxu0 0
      %2426 = vmatprep.subr.bf16.mxu0 0
      %2427 = vmatpush2.bf16.msra.mxu0 0
      %2428 = vmatprep.subr.bf16.mxu0 0
      %2429 = vmatpush2.bf16.msra.mxu0 0
      %2430 = vmatprep.mubr.bf16.mxu0 0
      %2431 = vmatmul.mubr.bf16.gmra.mxu0 %v2321
      %v2432 = vpop.f32.mrf.mxu0
      %v2433 = vadd.f32 0.0, %v2432
      %v2434 = vpop.f32.mrf.mxu0
      %v2435 = vpop.f32.mrf.mxu0
      %v2436 = vadd.f32 0.0, %v2435
      %v2437 = vpop.f32.mrf.mxu0
      %2438 = vmatprep.mubr.bf16.mxu0 0
      %2439 = vmatmul.mubr.bf16.gmra.mxu0 %v2322
      %v2440 = vpop.f32.mrf.mxu0
      %v2441 = vadd.f32 0.0, %v2440
      %v2442 = vpop.f32.mrf.mxu0
      %v2443 = vpop.f32.mrf.mxu0
      %v2444 = vadd.f32 0.0, %v2443
      %v2445 = vpop.f32.mrf.mxu0
      %2446 = vmatprep.mubr.bf16.mxu0 0
      %2447 = vmatmul.mubr.bf16.gmra.mxu0 %v2323
      %v2448 = vpop.f32.mrf.mxu0
      %v2449 = vadd.f32 0.0, %v2448
      %v2450 = vpop.f32.mrf.mxu0
      %v2451 = vpop.f32.mrf.mxu0
      %v2452 = vadd.f32 0.0, %v2451
      %v2453 = vpop.f32.mrf.mxu0
      %2454 = vmatprep.mubr.bf16.mxu0 0
      %2455 = vmatmul.mubr.bf16.gmra.mxu0 %v2324
      %v2456 = vpop.f32.mrf.mxu0
      %v2457 = vadd.f32 0.0, %v2456
      %v2458 = vpop.f32.mrf.mxu0
      %v2459 = vpop.f32.mrf.mxu0
      %v2460 = vadd.f32 0.0, %v2459
      %v2461 = vpop.f32.mrf.mxu0
      %2462 = vmatprep.mubr.bf16.mxu0 0
      %2463 = vmatmul.mubr.bf16.gmra.mxu0 %v2325
      %v2464 = vpop.f32.mrf.mxu0
      %v2465 = vadd.f32 0.0, %v2464
      %v2466 = vpop.f32.mrf.mxu0
      %v2467 = vpop.f32.mrf.mxu0
      %v2468 = vadd.f32 0.0, %v2467
      %v2469 = vpop.f32.mrf.mxu0
      %2470 = vmatprep.mubr.bf16.mxu0 0
      %2471 = vmatmul.mubr.bf16.gmra.mxu0 %v2326
      %v2472 = vpop.f32.mrf.mxu0
      %v2473 = vadd.f32 0.0, %v2472
      %v2474 = vpop.f32.mrf.mxu0
      %v2475 = vpop.f32.mrf.mxu0
      %v2476 = vadd.f32 0.0, %v2475
      %v2477 = vpop.f32.mrf.mxu0
      %2478 = vmatprep.mubr.bf16.mxu0 0
      %2479 = vmatmul.mubr.bf16.gmra.mxu0 %v2327
      %v2480 = vpop.f32.mrf.mxu0
      %v2481 = vadd.f32 0.0, %v2480
      %v2482 = vpop.f32.mrf.mxu0
      %v2483 = vpop.f32.mrf.mxu0
      %v2484 = vadd.f32 0.0, %v2483
      %v2485 = vpop.f32.mrf.mxu0
      %2486 = vmatprep.mubr.bf16.mxu0 0
      %2487 = vmatmul.mubr.bf16.gmra.mxu0 %v2328
      %v2488 = vpop.f32.mrf.mxu0
      %v2489 = vadd.f32 0.0, %v2488
      %v2490 = vpop.f32.mrf.mxu0
      %v2491 = vpop.f32.mrf.mxu0
      %v2492 = vadd.f32 0.0, %v2491
      %v2493 = vpop.f32.mrf.mxu0
      %2494 = vmatprep.mubr.bf16.mxu0 0
      %2495 = vmatmul.mubr.bf16.gmra.mxu0 %v2329
      %v2496 = vpop.f32.mrf.mxu0
      %v2497 = vadd.f32 0.0, %v2496
      %v2498 = vpop.f32.mrf.mxu0
      %v2499 = vpop.f32.mrf.mxu0
      %v2500 = vadd.f32 0.0, %v2499
      %v2501 = vpop.f32.mrf.mxu0
      %2502 = vmatprep.mubr.bf16.mxu0 0
      %2503 = vmatmul.mubr.bf16.gmra.mxu0 %v2330
      %v2504 = vpop.f32.mrf.mxu0
      %v2505 = vadd.f32 0.0, %v2504
      %v2506 = vpop.f32.mrf.mxu0
      %v2507 = vpop.f32.mrf.mxu0
      %v2508 = vadd.f32 0.0, %v2507
      %v2509 = vpop.f32.mrf.mxu0
      %2510 = vmatprep.mubr.bf16.mxu0 0
      %2511 = vmatmul.mubr.bf16.gmra.mxu0 %v2331
      %v2512 = vpop.f32.mrf.mxu0
      %v2513 = vadd.f32 0.0, %v2512
      %v2514 = vpop.f32.mrf.mxu0
      %v2515 = vpop.f32.mrf.mxu0
      %v2516 = vadd.f32 0.0, %v2515
      %v2517 = vpop.f32.mrf.mxu0
      %2518 = vmatprep.mubr.bf16.mxu0 0
      %2519 = vmatmul.mubr.bf16.gmra.mxu0 %v2332
      %v2520 = vpop.f32.mrf.mxu0
      %v2521 = vadd.f32 0.0, %v2520
      %v2522 = vpop.f32.mrf.mxu0
      %v2523 = vpop.f32.mrf.mxu0
      %v2524 = vadd.f32 0.0, %v2523
      %v2525 = vpop.f32.mrf.mxu0
      %2526 = vdwg.mxu0
      %v2527 = vadd.f32 %v2176, %v2433
      %v2528 = vadd.f32 %v2177, %v2436
      %v2529 = vadd.f32 %v2178, %v2441
      %v2530 = vadd.f32 %v2179, %v2444
      %v2531 = vadd.f32 %v2180, %v2449
      %v2532 = vadd.f32 %v2181, %v2452
      %v2533 = vadd.f32 %v2182, %v2457
      %v2534 = vadd.f32 %v2183, %v2460
      %v2535 = vadd.f32 %v2184, %v2465
      %v2536 = vadd.f32 %v2185, %v2468
      %v2537 = vadd.f32 %v2186, %v2473
      %v2538 = vadd.f32 %v2187, %v2476
      %v2539 = vadd.f32 %v2188, %v2481
      %v2540 = vadd.f32 %v2189, %v2484
      %v2541 = vadd.f32 %v2190, %v2489
      %v2542 = vadd.f32 %v2191, %v2492
      %v2543 = vadd.f32 %v2192, %v2497
      %v2544 = vadd.f32 %v2193, %v2500
      %v2545 = vadd.f32 %v2194, %v2505
      %v2546 = vadd.f32 %v2195, %v2508
      %v2547 = vadd.f32 %v2196, %v2513
      %v2548 = vadd.f32 %v2197, %v2516
      %v2549 = vadd.f32 %v2198, %v2521
      %v2550 = vadd.f32 %v2199, %v2524
      %s2551 = scalar_lea.vmem %s3, 448
      %v2552 = vld [vmem:[%s2551] sm:$0xf]
      %v2553 = vld [vmem:[%s2551 + $0x4] sm:$0xf]
      %v2554 = vld [vmem:[%s2551 + $0x8] sm:$0xf]
      %v2555 = vld [vmem:[%s2551 + $0xc] sm:$0xf]
      %v2556 = vld [vmem:[%s2551 + $0x10] sm:$0xf]
      %v2557 = vld [vmem:[%s2551 + $0x14] sm:$0xf]
      %v2558 = vld [vmem:[%s2551 + $0x18] sm:$0xf]
      %v2559 = vld [vmem:[%s2551 + $0x1c] sm:$0xf]
      %v2560 = vld [vmem:[%s2551 + $0x20] sm:$0xf]
      %v2561 = vld [vmem:[%s2551 + $0x24] sm:$0xf]
      %v2562 = vld [vmem:[%s2551 + $0x28] sm:$0xf]
      %v2563 = vld [vmem:[%s2551 + $0x2c] sm:$0xf]
      %v2564 = vld [vmem:[%s2551 + $0x30] sm:$0xf]
      %v2565 = vld [vmem:[%s2551 + $0x34] sm:$0xf]
      %v2566 = vld [vmem:[%s2551 + $0x38] sm:$0xf]
      %v2567 = vld [vmem:[%s2551 + $0x3c] sm:$0xf]
      %v2569 = vshrl.u32 %v2321, 16
      %v2571 = vshll.u32 %v2321, 16
      %v2573 = vrot.slane %v2571, 1
      %v2574 = vor.u32 %v2569, %v2573
      %v2576 = vshll.u32 %v2322, 16
      %v2578 = vrot.slane %v2576, 1
      %v2579 = vsel %vm684, %v2574, %v2578
      %v2580 = vshrl.u32 %v2322, 16
      %v2582 = vor.u32 %v2580, %v2578
      %v2584 = vshll.u32 %v2323, 16
      %v2586 = vrot.slane %v2584, 1
      %v2587 = vsel %vm684, %v2582, %v2586
      %v2588 = vshrl.u32 %v2323, 16
      %v2590 = vor.u32 %v2588, %v2586
      %v2592 = vshll.u32 %v2324, 16
      %v2594 = vrot.slane %v2592, 1
      %v2595 = vsel %vm684, %v2590, %v2594
      %v2596 = vshrl.u32 %v2324, 16
      %v2598 = vor.u32 %v2596, %v2594
      %v2600 = vshll.u32 %v2325, 16
      %v2602 = vrot.slane %v2600, 1
      %v2603 = vsel %vm684, %v2598, %v2602
      %v2604 = vshrl.u32 %v2325, 16
      %v2606 = vor.u32 %v2604, %v2602
      %v2608 = vshll.u32 %v2326, 16
      %v2610 = vrot.slane %v2608, 1
      %v2611 = vsel %vm684, %v2606, %v2610
      %v2612 = vshrl.u32 %v2326, 16
      %v2614 = vor.u32 %v2612, %v2610
      %v2616 = vshll.u32 %v2327, 16
      %v2618 = vrot.slane %v2616, 1
      %v2619 = vsel %vm684, %v2614, %v2618
      %v2620 = vshrl.u32 %v2327, 16
      %v2622 = vor.u32 %v2620, %v2618
      %v2624 = vshll.u32 %v2328, 16
      %v2626 = vrot.slane %v2624, 1
      %v2627 = vsel %vm684, %v2622, %v2626
      %v2628 = vshrl.u32 %v2328, 16
      %v2630 = vor.u32 %v2628, %v2626
      %v2632 = vshll.u32 %v2329, 16
      %v2634 = vrot.slane %v2632, 1
      %v2635 = vsel %vm684, %v2630, %v2634
      %v2636 = vshrl.u32 %v2329, 16
      %v2638 = vor.u32 %v2636, %v2634
      %v2640 = vshll.u32 %v2330, 16
      %v2642 = vrot.slane %v2640, 1
      %v2643 = vsel %vm684, %v2638, %v2642
      %v2644 = vshrl.u32 %v2330, 16
      %v2646 = vor.u32 %v2644, %v2642
      %v2648 = vshll.u32 %v2331, 16
      %v2650 = vrot.slane %v2648, 1
      %v2651 = vsel %vm684, %v2646, %v2650
      %v2652 = vshrl.u32 %v2331, 16
      %v2654 = vor.u32 %v2652, %v2650
      %v2656 = vshll.u32 %v2332, 16
      %v2658 = vrot.slane %v2656, 1
      %v2659 = vsel %vm684, %v2654, %v2658
      %v2660 = vshrl.u32 %v2332, 16
      %v2662 = vor.u32 %v2660, %v2658
      %v2691 = vunpack.c.l.b16 %v2552
      %v2692 = vunpack.c.l.b16 %v2553
      %v2693 = vunpack.c.l.b16 %v2554
      %v2694 = vunpack.c.l.b16 %v2555
      %v2695 = vunpack.c.l.b16 %v2556
      %v2696 = vunpack.c.l.b16 %v2557
      %v2697 = vunpack.c.l.b16 %v2558
      %v2698 = vunpack.c.l.b16 %v2559
      %v2699 = vunpack.c.l.b16 %v2560
      %v2700 = vunpack.c.l.b16 %v2561
      %v2701 = vunpack.c.l.b16 %v2562
      %v2702 = vunpack.c.l.b16 %v2563
      %v2703 = vunpack.c.l.b16 %v2564
      %v2704 = vunpack.c.l.b16 %v2565
      %v2705 = vunpack.c.l.b16 %v2566
      %v2706 = vunpack.c.l.b16 %v2567
      %v2707 = vpack.c.b16 %v2692, %v2691
      %v2708 = vpack.c.b16 %v2694, %v2693
      %v2709 = vpack.c.b16 %v2696, %v2695
      %v2710 = vpack.c.b16 %v2698, %v2697
      %v2711 = vpack.c.b16 %v2700, %v2699
      %v2712 = vpack.c.b16 %v2702, %v2701
      %v2713 = vpack.c.b16 %v2704, %v2703
      %v2714 = vpack.c.b16 %v2706, %v2705
      %2723 = vmatprep.subr.bf16.mxu0 0
      %2724 = vmatpush1.bf16.msra.mxu0 %v2714
      %2725 = vmatprep.subr.bf16.mxu0 0
      %2726 = vmatpush1.bf16.msra.mxu0 %v2713
      %2727 = vmatprep.subr.bf16.mxu0 0
      %2728 = vmatpush1.bf16.msra.mxu0 %v2712
      %2729 = vmatprep.subr.bf16.mxu0 0
      %2730 = vmatpush1.bf16.msra.mxu0 %v2711
      %2731 = vmatprep.subr.bf16.mxu0 0
      %2732 = vmatpush1.bf16.msra.mxu0 %v2710
      %2733 = vmatprep.subr.bf16.mxu0 0
      %2734 = vmatpush1.bf16.msra.mxu0 %v2709
      %2735 = vmatprep.subr.bf16.mxu0 0
      %2736 = vmatpush1.bf16.msra.mxu0 %v2708
      %2737 = vmatprep.subr.bf16.mxu0 0
      %2738 = vmatpush1.bf16.msra.mxu0 %v2707
      %2739 = vmatprep.subr.bf16.mxu0 0
      %2740 = vmatpush2.bf16.msra.mxu0 0
      %2741 = vmatprep.subr.bf16.mxu0 0
      %2742 = vmatpush2.bf16.msra.mxu0 0
      %2743 = vmatprep.subr.bf16.mxu0 0
      %2744 = vmatpush2.bf16.msra.mxu0 0
      %2745 = vmatprep.subr.bf16.mxu0 0
      %2746 = vmatpush2.bf16.msra.mxu0 0
      %2747 = vmatprep.subr.bf16.mxu0 0
      %2748 = vmatpush2.bf16.msra.mxu0 0
      %2749 = vmatprep.subr.bf16.mxu0 0
      %2750 = vmatpush2.bf16.msra.mxu0 0
      %2751 = vmatprep.subr.bf16.mxu0 0
      %2752 = vmatpush2.bf16.msra.mxu0 0
      %2753 = vmatprep.subr.bf16.mxu0 0
      %2754 = vmatpush2.bf16.msra.mxu0 0
      %2755 = vmatprep.mubr.bf16.mxu0 0
      %2756 = vmatmul.mubr.bf16.gmra.mxu0 %v2579
      %v2757 = vpop.f32.mrf.mxu0
      %v2758 = vadd.f32 0.0, %v2757
      %v2759 = vpop.f32.mrf.mxu0
      %v2760 = vpop.f32.mrf.mxu0
      %v2761 = vadd.f32 0.0, %v2760
      %v2762 = vpop.f32.mrf.mxu0
      %2763 = vmatprep.mubr.bf16.mxu0 0
      %2764 = vmatmul.mubr.bf16.gmra.mxu0 %v2587
      %v2765 = vpop.f32.mrf.mxu0
      %v2766 = vadd.f32 0.0, %v2765
      %v2767 = vpop.f32.mrf.mxu0
      %v2768 = vpop.f32.mrf.mxu0
      %v2769 = vadd.f32 0.0, %v2768
      %v2770 = vpop.f32.mrf.mxu0
      %2771 = vmatprep.mubr.bf16.mxu0 0
      %2772 = vmatmul.mubr.bf16.gmra.mxu0 %v2595
      %v2773 = vpop.f32.mrf.mxu0
      %v2774 = vadd.f32 0.0, %v2773
      %v2775 = vpop.f32.mrf.mxu0
      %v2776 = vpop.f32.mrf.mxu0
      %v2777 = vadd.f32 0.0, %v2776
      %v2778 = vpop.f32.mrf.mxu0
      %2779 = vmatprep.mubr.bf16.mxu0 0
      %2780 = vmatmul.mubr.bf16.gmra.mxu0 %v2603
      %v2781 = vpop.f32.mrf.mxu0
      %v2782 = vadd.f32 0.0, %v2781
      %v2783 = vpop.f32.mrf.mxu0
      %v2784 = vpop.f32.mrf.mxu0
      %v2785 = vadd.f32 0.0, %v2784
      %v2786 = vpop.f32.mrf.mxu0
      %2787 = vmatprep.mubr.bf16.mxu0 0
      %2788 = vmatmul.mubr.bf16.gmra.mxu0 %v2611
      %v2789 = vpop.f32.mrf.mxu0
      %v2790 = vadd.f32 0.0, %v2789
      %v2791 = vpop.f32.mrf.mxu0
      %v2792 = vpop.f32.mrf.mxu0
      %v2793 = vadd.f32 0.0, %v2792
      %v2794 = vpop.f32.mrf.mxu0
      %2795 = vmatprep.mubr.bf16.mxu0 0
      %2796 = vmatmul.mubr.bf16.gmra.mxu0 %v2619
      %v2797 = vpop.f32.mrf.mxu0
      %v2798 = vadd.f32 0.0, %v2797
      %v2799 = vpop.f32.mrf.mxu0
      %v2800 = vpop.f32.mrf.mxu0
      %v2801 = vadd.f32 0.0, %v2800
      %v2802 = vpop.f32.mrf.mxu0
      %2803 = vmatprep.mubr.bf16.mxu0 0
      %2804 = vmatmul.mubr.bf16.gmra.mxu0 %v2627
      %v2805 = vpop.f32.mrf.mxu0
      %v2806 = vadd.f32 0.0, %v2805
      %v2807 = vpop.f32.mrf.mxu0
      %v2808 = vpop.f32.mrf.mxu0
      %v2809 = vadd.f32 0.0, %v2808
      %v2810 = vpop.f32.mrf.mxu0
      %2811 = vmatprep.mubr.bf16.mxu0 0
      %2812 = vmatmul.mubr.bf16.gmra.mxu0 %v2635
      %v2813 = vpop.f32.mrf.mxu0
      %v2814 = vadd.f32 0.0, %v2813
      %v2815 = vpop.f32.mrf.mxu0
      %v2816 = vpop.f32.mrf.mxu0
      %v2817 = vadd.f32 0.0, %v2816
      %v2818 = vpop.f32.mrf.mxu0
      %2819 = vmatprep.mubr.bf16.mxu0 0
      %2820 = vmatmul.mubr.bf16.gmra.mxu0 %v2643
      %v2821 = vpop.f32.mrf.mxu0
      %v2822 = vadd.f32 0.0, %v2821
      %v2823 = vpop.f32.mrf.mxu0
      %v2824 = vpop.f32.mrf.mxu0
      %v2825 = vadd.f32 0.0, %v2824
      %v2826 = vpop.f32.mrf.mxu0
      %2827 = vmatprep.mubr.bf16.mxu0 0
      %2828 = vmatmul.mubr.bf16.gmra.mxu0 %v2651
      %v2829 = vpop.f32.mrf.mxu0
      %v2830 = vadd.f32 0.0, %v2829
      %v2831 = vpop.f32.mrf.mxu0
      %v2832 = vpop.f32.mrf.mxu0
      %v2833 = vadd.f32 0.0, %v2832
      %v2834 = vpop.f32.mrf.mxu0
      %2835 = vmatprep.mubr.bf16.mxu0 0
      %2836 = vmatmul.mubr.bf16.gmra.mxu0 %v2659
      %v2837 = vpop.f32.mrf.mxu0
      %v2838 = vadd.f32 0.0, %v2837
      %v2839 = vpop.f32.mrf.mxu0
      %v2840 = vpop.f32.mrf.mxu0
      %v2841 = vadd.f32 0.0, %v2840
      %v2842 = vpop.f32.mrf.mxu0
      %2843 = vmatprep.mubr.bf16.mxu0 0
      %2844 = vmatmul.mubr.bf16.gmra.mxu0 %v2662
      %v2845 = vpop.f32.mrf.mxu0
      %v2846 = vadd.f32 0.0, %v2845
      %v2847 = vpop.f32.mrf.mxu0
      %v2848 = vpop.f32.mrf.mxu0
      %v2849 = vadd.f32 0.0, %v2848
      %v2850 = vpop.f32.mrf.mxu0
      %2851 = vdwg.mxu0
      %v2852 = vadd.f32 %v2527, %v2758
      %v2853 = vadd.f32 %v2528, %v2761
      %v2854 = vadd.f32 %v2529, %v2766
      %v2855 = vadd.f32 %v2530, %v2769
      %v2856 = vadd.f32 %v2531, %v2774
      %v2857 = vadd.f32 %v2532, %v2777
      %v2858 = vadd.f32 %v2533, %v2782
      %v2859 = vadd.f32 %v2534, %v2785
      %v2860 = vadd.f32 %v2535, %v2790
      %v2861 = vadd.f32 %v2536, %v2793
      %v2862 = vadd.f32 %v2537, %v2798
      %v2863 = vadd.f32 %v2538, %v2801
      %v2864 = vadd.f32 %v2539, %v2806
      %v2865 = vadd.f32 %v2540, %v2809
      %v2866 = vadd.f32 %v2541, %v2814
      %v2867 = vadd.f32 %v2542, %v2817
      %v2868 = vadd.f32 %v2543, %v2822
      %v2869 = vadd.f32 %v2544, %v2825
      %v2870 = vadd.f32 %v2545, %v2830
      %v2871 = vadd.f32 %v2546, %v2833
      %v2872 = vadd.f32 %v2547, %v2838
      %v2873 = vadd.f32 %v2548, %v2841
      %v2874 = vadd.f32 %v2549, %v2846
      %v2875 = vadd.f32 %v2550, %v2849
      %s2876 = scalar_lea.vmem %s3, 512
      %v2877 = vld [vmem:[%s2876] sm:$0xf]
      %v2878 = vld [vmem:[%s2876 + $0x4] sm:$0xf]
      %v2879 = vld [vmem:[%s2876 + $0x8] sm:$0xf]
      %v2880 = vld [vmem:[%s2876 + $0xc] sm:$0xf]
      %v2881 = vld [vmem:[%s2876 + $0x10] sm:$0xf]
      %v2882 = vld [vmem:[%s2876 + $0x14] sm:$0xf]
      %v2883 = vld [vmem:[%s2876 + $0x18] sm:$0xf]
      %v2884 = vld [vmem:[%s2876 + $0x1c] sm:$0xf]
      %v2885 = vld [vmem:[%s2876 + $0x20] sm:$0xf]
      %v2886 = vld [vmem:[%s2876 + $0x24] sm:$0xf]
      %v2887 = vld [vmem:[%s2876 + $0x28] sm:$0xf]
      %v2888 = vld [vmem:[%s2876 + $0x2c] sm:$0xf]
      %v2889 = vld [vmem:[%s2876 + $0x30] sm:$0xf]
      %v2890 = vld [vmem:[%s2876 + $0x34] sm:$0xf]
      %v2891 = vld [vmem:[%s2876 + $0x38] sm:$0xf]
      %v2892 = vld [vmem:[%s2876 + $0x3c] sm:$0xf]
      %v2905 = vrot.slane %v2321, 1
      %v2906 = vrot.slane %v2322, 1
      %v2907 = vsel %vm1022, %v2905, %v2906
      %v2908 = vrot.slane %v2323, 1
      %v2909 = vsel %vm1022, %v2906, %v2908
      %v2910 = vrot.slane %v2324, 1
      %v2911 = vsel %vm1022, %v2908, %v2910
      %v2912 = vrot.slane %v2325, 1
      %v2913 = vsel %vm1022, %v2910, %v2912
      %v2914 = vrot.slane %v2326, 1
      %v2915 = vsel %vm1022, %v2912, %v2914
      %v2916 = vrot.slane %v2327, 1
      %v2917 = vsel %vm1022, %v2914, %v2916
      %v2918 = vrot.slane %v2328, 1
      %v2919 = vsel %vm1022, %v2916, %v2918
      %v2920 = vrot.slane %v2329, 1
      %v2921 = vsel %vm1022, %v2918, %v2920
      %v2922 = vrot.slane %v2330, 1
      %v2923 = vsel %vm1022, %v2920, %v2922
      %v2924 = vrot.slane %v2331, 1
      %v2925 = vsel %vm1022, %v2922, %v2924
      %v2926 = vrot.slane %v2332, 1
      %v2927 = vsel %vm1022, %v2924, %v2926
      %v2956 = vunpack.c.l.b16 %v2877
      %v2957 = vunpack.c.l.b16 %v2878
      %v2958 = vunpack.c.l.b16 %v2879
      %v2959 = vunpack.c.l.b16 %v2880
      %v2960 = vunpack.c.l.b16 %v2881
      %v2961 = vunpack.c.l.b16 %v2882
      %v2962 = vunpack.c.l.b16 %v2883
      %v2963 = vunpack.c.l.b16 %v2884
      %v2964 = vunpack.c.l.b16 %v2885
      %v2965 = vunpack.c.l.b16 %v2886
      %v2966 = vunpack.c.l.b16 %v2887
      %v2967 = vunpack.c.l.b16 %v2888
      %v2968 = vunpack.c.l.b16 %v2889
      %v2969 = vunpack.c.l.b16 %v2890
      %v2970 = vunpack.c.l.b16 %v2891
      %v2971 = vunpack.c.l.b16 %v2892
      %v2972 = vpack.c.b16 %v2957, %v2956
      %v2973 = vpack.c.b16 %v2959, %v2958
      %v2974 = vpack.c.b16 %v2961, %v2960
      %v2975 = vpack.c.b16 %v2963, %v2962
      %v2976 = vpack.c.b16 %v2965, %v2964
      %v2977 = vpack.c.b16 %v2967, %v2966
      %v2978 = vpack.c.b16 %v2969, %v2968
      %v2979 = vpack.c.b16 %v2971, %v2970
      %2988 = vmatprep.subr.bf16.mxu0 0
      %2989 = vmatpush1.bf16.msra.mxu0 %v2979
      %2990 = vmatprep.subr.bf16.mxu0 0
      %2991 = vmatpush1.bf16.msra.mxu0 %v2978
      %2992 = vmatprep.subr.bf16.mxu0 0
      %2993 = vmatpush1.bf16.msra.mxu0 %v2977
      %2994 = vmatprep.subr.bf16.mxu0 0
      %2995 = vmatpush1.bf16.msra.mxu0 %v2976
      %2996 = vmatprep.subr.bf16.mxu0 0
      %2997 = vmatpush1.bf16.msra.mxu0 %v2975
      %2998 = vmatprep.subr.bf16.mxu0 0
      %2999 = vmatpush1.bf16.msra.mxu0 %v2974
      %3000 = vmatprep.subr.bf16.mxu0 0
      %3001 = vmatpush1.bf16.msra.mxu0 %v2973
      %3002 = vmatprep.subr.bf16.mxu0 0
      %3003 = vmatpush1.bf16.msra.mxu0 %v2972
      %3004 = vmatprep.subr.bf16.mxu0 0
      %3005 = vmatpush2.bf16.msra.mxu0 0
      %3006 = vmatprep.subr.bf16.mxu0 0
      %3007 = vmatpush2.bf16.msra.mxu0 0
      %3008 = vmatprep.subr.bf16.mxu0 0
      %3009 = vmatpush2.bf16.msra.mxu0 0
      %3010 = vmatprep.subr.bf16.mxu0 0
      %3011 = vmatpush2.bf16.msra.mxu0 0
      %3012 = vmatprep.subr.bf16.mxu0 0
      %3013 = vmatpush2.bf16.msra.mxu0 0
      %3014 = vmatprep.subr.bf16.mxu0 0
      %3015 = vmatpush2.bf16.msra.mxu0 0
      %3016 = vmatprep.subr.bf16.mxu0 0
      %3017 = vmatpush2.bf16.msra.mxu0 0
      %3018 = vmatprep.subr.bf16.mxu0 0
      %3019 = vmatpush2.bf16.msra.mxu0 0
      %3020 = vmatprep.mubr.bf16.mxu0 0
      %3021 = vmatmul.mubr.bf16.gmra.mxu0 %v2907
      %v3022 = vpop.f32.mrf.mxu0
      %v3023 = vadd.f32 0.0, %v3022
      %v3024 = vpop.f32.mrf.mxu0
      %v3025 = vpop.f32.mrf.mxu0
      %v3026 = vadd.f32 0.0, %v3025
      %v3027 = vpop.f32.mrf.mxu0
      %3028 = vmatprep.mubr.bf16.mxu0 0
      %3029 = vmatmul.mubr.bf16.gmra.mxu0 %v2909
      %v3030 = vpop.f32.mrf.mxu0
      %v3031 = vadd.f32 0.0, %v3030
      %v3032 = vpop.f32.mrf.mxu0
      %v3033 = vpop.f32.mrf.mxu0
      %v3034 = vadd.f32 0.0, %v3033
      %v3035 = vpop.f32.mrf.mxu0
      %3036 = vmatprep.mubr.bf16.mxu0 0
      %3037 = vmatmul.mubr.bf16.gmra.mxu0 %v2911
      %v3038 = vpop.f32.mrf.mxu0
      %v3039 = vadd.f32 0.0, %v3038
      %v3040 = vpop.f32.mrf.mxu0
      %v3041 = vpop.f32.mrf.mxu0
      %v3042 = vadd.f32 0.0, %v3041
      %v3043 = vpop.f32.mrf.mxu0
      %3044 = vmatprep.mubr.bf16.mxu0 0
      %3045 = vmatmul.mubr.bf16.gmra.mxu0 %v2913
      %v3046 = vpop.f32.mrf.mxu0
      %v3047 = vadd.f32 0.0, %v3046
      %v3048 = vpop.f32.mrf.mxu0
      %v3049 = vpop.f32.mrf.mxu0
      %v3050 = vadd.f32 0.0, %v3049
      %v3051 = vpop.f32.mrf.mxu0
      %3052 = vmatprep.mubr.bf16.mxu0 0
      %3053 = vmatmul.mubr.bf16.gmra.mxu0 %v2915
      %v3054 = vpop.f32.mrf.mxu0
      %v3055 = vadd.f32 0.0, %v3054
      %v3056 = vpop.f32.mrf.mxu0
      %v3057 = vpop.f32.mrf.mxu0
      %v3058 = vadd.f32 0.0, %v3057
      %v3059 = vpop.f32.mrf.mxu0
      %3060 = vmatprep.mubr.bf16.mxu0 0
      %3061 = vmatmul.mubr.bf16.gmra.mxu0 %v2917
      %v3062 = vpop.f32.mrf.mxu0
      %v3063 = vadd.f32 0.0, %v3062
      %v3064 = vpop.f32.mrf.mxu0
      %v3065 = vpop.f32.mrf.mxu0
      %v3066 = vadd.f32 0.0, %v3065
      %v3067 = vpop.f32.mrf.mxu0
      %3068 = vmatprep.mubr.bf16.mxu0 0
      %3069 = vmatmul.mubr.bf16.gmra.mxu0 %v2919
      %v3070 = vpop.f32.mrf.mxu0
      %v3071 = vadd.f32 0.0, %v3070
      %v3072 = vpop.f32.mrf.mxu0
      %v3073 = vpop.f32.mrf.mxu0
      %v3074 = vadd.f32 0.0, %v3073
      %v3075 = vpop.f32.mrf.mxu0
      %3076 = vmatprep.mubr.bf16.mxu0 0
      %3077 = vmatmul.mubr.bf16.gmra.mxu0 %v2921
      %v3078 = vpop.f32.mrf.mxu0
      %v3079 = vadd.f32 0.0, %v3078
      %v3080 = vpop.f32.mrf.mxu0
      %v3081 = vpop.f32.mrf.mxu0
      %v3082 = vadd.f32 0.0, %v3081
      %v3083 = vpop.f32.mrf.mxu0
      %3084 = vmatprep.mubr.bf16.mxu0 0
      %3085 = vmatmul.mubr.bf16.gmra.mxu0 %v2923
      %v3086 = vpop.f32.mrf.mxu0
      %v3087 = vadd.f32 0.0, %v3086
      %v3088 = vpop.f32.mrf.mxu0
      %v3089 = vpop.f32.mrf.mxu0
      %v3090 = vadd.f32 0.0, %v3089
      %v3091 = vpop.f32.mrf.mxu0
      %3092 = vmatprep.mubr.bf16.mxu0 0
      %3093 = vmatmul.mubr.bf16.gmra.mxu0 %v2925
      %v3094 = vpop.f32.mrf.mxu0
      %v3095 = vadd.f32 0.0, %v3094
      %v3096 = vpop.f32.mrf.mxu0
      %v3097 = vpop.f32.mrf.mxu0
      %v3098 = vadd.f32 0.0, %v3097
      %v3099 = vpop.f32.mrf.mxu0
      %3100 = vmatprep.mubr.bf16.mxu0 0
      %3101 = vmatmul.mubr.bf16.gmra.mxu0 %v2927
      %v3102 = vpop.f32.mrf.mxu0
      %v3103 = vadd.f32 0.0, %v3102
      %v3104 = vpop.f32.mrf.mxu0
      %v3105 = vpop.f32.mrf.mxu0
      %v3106 = vadd.f32 0.0, %v3105
      %v3107 = vpop.f32.mrf.mxu0
      %3108 = vmatprep.mubr.bf16.mxu0 0
      %3109 = vmatmul.mubr.bf16.gmra.mxu0 %v2926
      %v3110 = vpop.f32.mrf.mxu0
      %v3111 = vadd.f32 0.0, %v3110
      %v3112 = vpop.f32.mrf.mxu0
      %v3113 = vpop.f32.mrf.mxu0
      %v3114 = vadd.f32 0.0, %v3113
      %v3115 = vpop.f32.mrf.mxu0
      %3116 = vdwg.mxu0
      %v3117 = vadd.f32 %v2852, %v3023
      %v3118 = vadd.f32 %v2853, %v3026
      %v3119 = vadd.f32 %v2854, %v3031
      %v3120 = vadd.f32 %v2855, %v3034
      %v3121 = vadd.f32 %v2856, %v3039
      %v3122 = vadd.f32 %v2857, %v3042
      %v3123 = vadd.f32 %v2858, %v3047
      %v3124 = vadd.f32 %v2859, %v3050
      %v3125 = vadd.f32 %v2860, %v3055
      %v3126 = vadd.f32 %v2861, %v3058
      %v3127 = vadd.f32 %v2862, %v3063
      %v3128 = vadd.f32 %v2863, %v3066
      %v3129 = vadd.f32 %v2864, %v3071
      %v3130 = vadd.f32 %v2865, %v3074
      %v3131 = vadd.f32 %v2866, %v3079
      %v3132 = vadd.f32 %v2867, %v3082
      %v3133 = vadd.f32 %v2868, %v3087
      %v3134 = vadd.f32 %v2869, %v3090
      %v3135 = vadd.f32 %v2870, %v3095
      %v3136 = vadd.f32 %v2871, %v3098
      %v3137 = vadd.f32 %v2872, %v3103
      %v3138 = vadd.f32 %v2873, %v3106
      %v3139 = vadd.f32 %v2874, %v3111
      %v3140 = vadd.f32 %v2875, %v3114
      %v3141 = vlaneseq
      %v3142 = vshrl.u32 %v3141, 7
      %v3143 = vadd.s32 %v3142, 8
      %v3144 = vadd.s32 %v3142, 16
      %v3145 = vadd.s32 %v3142, 24
      %v3146 = vadd.s32 %v3142, 32
      %v3147 = vadd.s32 %v3142, 40
      %v3148 = vadd.s32 %v3142, 48
      %v3149 = vadd.s32 %v3142, 56
      %v3150 = vadd.s32 %v3142, 64
      %v3151 = vadd.s32 %v3142, 72
      %v3152 = vadd.s32 %v3142, 80
      %v3153 = vadd.s32 %v3142, 88
      %v3154 = vadd.s32 %v3142, 96
      %v3155 = vadd.s32 %v3142, 104
      %v3156 = vadd.s32 %v3142, 112
      %v3157 = vadd.s32 %v3142, 120
      %v3158 = vadd.s32 %v3142, 128
      %v3159 = vadd.s32 %v3142, 136
      %v3160 = vadd.s32 %v3142, 144
      %v3161 = vadd.s32 %v3142, 152
      %v3162 = vadd.s32 %v3142, 160
      %v3163 = vadd.s32 %v3142, 168
      %v3164 = vadd.s32 %v3142, 176
      %v3165 = vadd.s32 %v3142, 184
      %vm3166 = vcmp.lt.s32.totalorder %v3142, 0
      %v3167 = vsub.s32 0, %v3142
      %v3168 = vsel %vm3166, %v3167, %v3142
      %v3169 = vshrl.u32 %v3168, 4
      %v3170 = vand.u32 %v3168, 15
      %v3171 = vsub.s32 0, %v3170
      %v3172 = vsel %vm3166, %v3171, %v3170
      %vm3173 = vcmp.lt.s32.totalorder %v3143, 0
      %v3174 = vsub.s32 0, %v3143
      %v3175 = vsel %vm3173, %v3174, %v3143
      %v3176 = vshrl.u32 %v3175, 4
      %v3177 = vand.u32 %v3175, 15
      %v3178 = vsub.s32 0, %v3177
      %v3179 = vsel %vm3173, %v3178, %v3177
      %vm3180 = vcmp.lt.s32.totalorder %v3144, 0
      %v3181 = vsub.s32 0, %v3144
      %v3182 = vsel %vm3180, %v3181, %v3144
      %v3183 = vshrl.u32 %v3182, 4
      %v3184 = vand.u32 %v3182, 15
      %v3185 = vsub.s32 0, %v3184
      %v3186 = vsel %vm3180, %v3185, %v3184
      %vm3187 = vcmp.lt.s32.totalorder %v3145, 0
      %v3188 = vsub.s32 0, %v3145
      %v3189 = vsel %vm3187, %v3188, %v3145
      %v3190 = vshrl.u32 %v3189, 4
      %v3191 = vand.u32 %v3189, 15
      %v3192 = vsub.s32 0, %v3191
      %v3193 = vsel %vm3187, %v3192, %v3191
      %vm3194 = vcmp.lt.s32.totalorder %v3146, 0
      %v3195 = vsub.s32 0, %v3146
      %v3196 = vsel %vm3194, %v3195, %v3146
      %v3197 = vshrl.u32 %v3196, 4
      %v3198 = vand.u32 %v3196, 15
      %v3199 = vsub.s32 0, %v3198
      %v3200 = vsel %vm3194, %v3199, %v3198
      %vm3201 = vcmp.lt.s32.totalorder %v3147, 0
      %v3202 = vsub.s32 0, %v3147
      %v3203 = vsel %vm3201, %v3202, %v3147
      %v3204 = vshrl.u32 %v3203, 4
      %v3205 = vand.u32 %v3203, 15
      %v3206 = vsub.s32 0, %v3205
      %v3207 = vsel %vm3201, %v3206, %v3205
      %vm3208 = vcmp.lt.s32.totalorder %v3148, 0
      %v3209 = vsub.s32 0, %v3148
      %v3210 = vsel %vm3208, %v3209, %v3148
      %v3211 = vshrl.u32 %v3210, 4
      %v3212 = vand.u32 %v3210, 15
      %v3213 = vsub.s32 0, %v3212
      %v3214 = vsel %vm3208, %v3213, %v3212
      %vm3215 = vcmp.lt.s32.totalorder %v3149, 0
      %v3216 = vsub.s32 0, %v3149
      %v3217 = vsel %vm3215, %v3216, %v3149
      %v3218 = vshrl.u32 %v3217, 4
      %v3219 = vand.u32 %v3217, 15
      %v3220 = vsub.s32 0, %v3219
      %v3221 = vsel %vm3215, %v3220, %v3219
      %vm3222 = vcmp.lt.s32.totalorder %v3150, 0
      %v3223 = vsub.s32 0, %v3150
      %v3224 = vsel %vm3222, %v3223, %v3150
      %v3225 = vshrl.u32 %v3224, 4
      %v3226 = vand.u32 %v3224, 15
      %v3227 = vsub.s32 0, %v3226
      %v3228 = vsel %vm3222, %v3227, %v3226
      %vm3229 = vcmp.lt.s32.totalorder %v3151, 0
      %v3230 = vsub.s32 0, %v3151
      %v3231 = vsel %vm3229, %v3230, %v3151
      %v3232 = vshrl.u32 %v3231, 4
      %v3233 = vand.u32 %v3231, 15
      %v3234 = vsub.s32 0, %v3233
      %v3235 = vsel %vm3229, %v3234, %v3233
      %vm3236 = vcmp.lt.s32.totalorder %v3152, 0
      %v3237 = vsub.s32 0, %v3152
      %v3238 = vsel %vm3236, %v3237, %v3152
      %v3239 = vshrl.u32 %v3238, 4
      %v3240 = vand.u32 %v3238, 15
      %v3241 = vsub.s32 0, %v3240
      %v3242 = vsel %vm3236, %v3241, %v3240
      %vm3243 = vcmp.lt.s32.totalorder %v3153, 0
      %v3244 = vsub.s32 0, %v3153
      %v3245 = vsel %vm3243, %v3244, %v3153
      %v3246 = vshrl.u32 %v3245, 4
      %v3247 = vand.u32 %v3245, 15
      %v3248 = vsub.s32 0, %v3247
      %v3249 = vsel %vm3243, %v3248, %v3247
      %vm3250 = vcmp.lt.s32.totalorder %v3154, 0
      %v3251 = vsub.s32 0, %v3154
      %v3252 = vsel %vm3250, %v3251, %v3154
      %v3253 = vshrl.u32 %v3252, 4
      %v3254 = vand.u32 %v3252, 15
      %v3255 = vsub.s32 0, %v3254
      %v3256 = vsel %vm3250, %v3255, %v3254
      %vm3257 = vcmp.lt.s32.totalorder %v3155, 0
      %v3258 = vsub.s32 0, %v3155
      %v3259 = vsel %vm3257, %v3258, %v3155
      %v3260 = vshrl.u32 %v3259, 4
      %v3261 = vand.u32 %v3259, 15
      %v3262 = vsub.s32 0, %v3261
      %v3263 = vsel %vm3257, %v3262, %v3261
      %vm3264 = vcmp.lt.s32.totalorder %v3156, 0
      %v3265 = vsub.s32 0, %v3156
      %v3266 = vsel %vm3264, %v3265, %v3156
      %v3267 = vshrl.u32 %v3266, 4
      %v3268 = vand.u32 %v3266, 15
      %v3269 = vsub.s32 0, %v3268
      %v3270 = vsel %vm3264, %v3269, %v3268
      %vm3271 = vcmp.lt.s32.totalorder %v3157, 0
      %v3272 = vsub.s32 0, %v3157
      %v3273 = vsel %vm3271, %v3272, %v3157
      %v3274 = vshrl.u32 %v3273, 4
      %v3275 = vand.u32 %v3273, 15
      %v3276 = vsub.s32 0, %v3275
      %v3277 = vsel %vm3271, %v3276, %v3275
      %vm3278 = vcmp.lt.s32.totalorder %v3158, 0
      %v3279 = vsub.s32 0, %v3158
      %v3280 = vsel %vm3278, %v3279, %v3158
      %v3281 = vshrl.u32 %v3280, 4
      %v3282 = vand.u32 %v3280, 15
      %v3283 = vsub.s32 0, %v3282
      %v3284 = vsel %vm3278, %v3283, %v3282
      %vm3285 = vcmp.lt.s32.totalorder %v3159, 0
      %v3286 = vsub.s32 0, %v3159
      %v3287 = vsel %vm3285, %v3286, %v3159
      %v3288 = vshrl.u32 %v3287, 4
      %v3289 = vand.u32 %v3287, 15
      %v3290 = vsub.s32 0, %v3289
      %v3291 = vsel %vm3285, %v3290, %v3289
      %vm3292 = vcmp.lt.s32.totalorder %v3160, 0
      %v3293 = vsub.s32 0, %v3160
      %v3294 = vsel %vm3292, %v3293, %v3160
      %v3295 = vshrl.u32 %v3294, 4
      %v3296 = vand.u32 %v3294, 15
      %v3297 = vsub.s32 0, %v3296
      %v3298 = vsel %vm3292, %v3297, %v3296
      %vm3299 = vcmp.lt.s32.totalorder %v3161, 0
      %v3300 = vsub.s32 0, %v3161
      %v3301 = vsel %vm3299, %v3300, %v3161
      %v3302 = vshrl.u32 %v3301, 4
      %v3303 = vand.u32 %v3301, 15
      %v3304 = vsub.s32 0, %v3303
      %v3305 = vsel %vm3299, %v3304, %v3303
      %vm3306 = vcmp.lt.s32.totalorder %v3162, 0
      %v3307 = vsub.s32 0, %v3162
      %v3308 = vsel %vm3306, %v3307, %v3162
      %v3309 = vshrl.u32 %v3308, 4
      %v3310 = vand.u32 %v3308, 15
      %v3311 = vsub.s32 0, %v3310
      %v3312 = vsel %vm3306, %v3311, %v3310
      %vm3313 = vcmp.lt.s32.totalorder %v3163, 0
      %v3314 = vsub.s32 0, %v3163
      %v3315 = vsel %vm3313, %v3314, %v3163
      %v3316 = vshrl.u32 %v3315, 4
      %v3317 = vand.u32 %v3315, 15
      %v3318 = vsub.s32 0, %v3317
      %v3319 = vsel %vm3313, %v3318, %v3317
      %vm3320 = vcmp.lt.s32.totalorder %v3164, 0
      %v3321 = vsub.s32 0, %v3164
      %v3322 = vsel %vm3320, %v3321, %v3164
      %v3323 = vshrl.u32 %v3322, 4
      %v3324 = vand.u32 %v3322, 15
      %v3325 = vsub.s32 0, %v3324
      %v3326 = vsel %vm3320, %v3325, %v3324
      %vm3327 = vcmp.lt.s32.totalorder %v3165, 0
      %v3328 = vsub.s32 0, %v3165
      %v3329 = vsel %vm3327, %v3328, %v3165
      %v3330 = vshrl.u32 %v3329, 4
      %v3331 = vand.u32 %v3329, 15
      %v3332 = vsub.s32 0, %v3331
      %v3333 = vsel %vm3327, %v3332, %v3331
      %vm3334 = vcmp.ne.s32.totalorder %v3172, 0
      %vm3335 = vcmp.ne.s32.totalorder %v3179, 0
      %vm3336 = vcmp.ne.s32.totalorder %v3186, 0
      %vm3337 = vcmp.ne.s32.totalorder %v3193, 0
      %vm3338 = vcmp.ne.s32.totalorder %v3200, 0
      %vm3339 = vcmp.ne.s32.totalorder %v3207, 0
      %vm3340 = vcmp.ne.s32.totalorder %v3214, 0
      %vm3341 = vcmp.ne.s32.totalorder %v3221, 0
      %vm3342 = vcmp.ne.s32.totalorder %v3228, 0
      %vm3343 = vcmp.ne.s32.totalorder %v3235, 0
      %vm3344 = vcmp.ne.s32.totalorder %v3242, 0
      %vm3345 = vcmp.ne.s32.totalorder %v3249, 0
      %vm3346 = vcmp.ne.s32.totalorder %v3256, 0
      %vm3347 = vcmp.ne.s32.totalorder %v3263, 0
      %vm3348 = vcmp.ne.s32.totalorder %v3270, 0
      %vm3349 = vcmp.ne.s32.totalorder %v3277, 0
      %vm3350 = vcmp.ne.s32.totalorder %v3284, 0
      %vm3351 = vcmp.ne.s32.totalorder %v3291, 0
      %vm3352 = vcmp.ne.s32.totalorder %v3298, 0
      %vm3353 = vcmp.ne.s32.totalorder %v3305, 0
      %vm3354 = vcmp.ne.s32.totalorder %v3312, 0
      %vm3355 = vcmp.ne.s32.totalorder %v3319, 0
      %vm3356 = vcmp.ne.s32.totalorder %v3326, 0
      %vm3357 = vcmp.ne.s32.totalorder %v3333, 0
      %vm3358 = vcmp.lt.s32.totalorder %v3172, 0
      %vm3359 = vcmp.lt.s32.totalorder %v3179, 0
      %vm3360 = vcmp.lt.s32.totalorder %v3186, 0
      %vm3361 = vcmp.lt.s32.totalorder %v3193, 0
      %vm3362 = vcmp.lt.s32.totalorder %v3200, 0
      %vm3363 = vcmp.lt.s32.totalorder %v3207, 0
      %vm3364 = vcmp.lt.s32.totalorder %v3214, 0
      %vm3365 = vcmp.lt.s32.totalorder %v3221, 0
      %vm3366 = vcmp.lt.s32.totalorder %v3228, 0
      %vm3367 = vcmp.lt.s32.totalorder %v3235, 0
      %vm3368 = vcmp.lt.s32.totalorder %v3242, 0
      %vm3369 = vcmp.lt.s32.totalorder %v3249, 0
      %vm3370 = vcmp.lt.s32.totalorder %v3256, 0
      %vm3371 = vcmp.lt.s32.totalorder %v3263, 0
      %vm3372 = vcmp.lt.s32.totalorder %v3270, 0
      %vm3373 = vcmp.lt.s32.totalorder %v3277, 0
      %vm3374 = vcmp.lt.s32.totalorder %v3284, 0
      %vm3375 = vcmp.lt.s32.totalorder %v3291, 0
      %vm3376 = vcmp.lt.s32.totalorder %v3298, 0
      %vm3377 = vcmp.lt.s32.totalorder %v3305, 0
      %vm3378 = vcmp.lt.s32.totalorder %v3312, 0
      %vm3379 = vcmp.lt.s32.totalorder %v3319, 0
      %vm3380 = vcmp.lt.s32.totalorder %v3326, 0
      %vm3381 = vcmp.lt.s32.totalorder %v3333, 0
      %vm3382 = vmand %vm3358, %vm3334
      %vm3383 = vmand %vm3359, %vm3335
      %vm3384 = vmand %vm3360, %vm3336
      %vm3385 = vmand %vm3361, %vm3337
      %vm3386 = vmand %vm3362, %vm3338
      %vm3387 = vmand %vm3363, %vm3339
      %vm3388 = vmand %vm3364, %vm3340
      %vm3389 = vmand %vm3365, %vm3341
      %vm3390 = vmand %vm3366, %vm3342
      %vm3391 = vmand %vm3367, %vm3343
      %vm3392 = vmand %vm3368, %vm3344
      %vm3393 = vmand %vm3369, %vm3345
      %vm3394 = vmand %vm3370, %vm3346
      %vm3395 = vmand %vm3371, %vm3347
      %vm3396 = vmand %vm3372, %vm3348
      %vm3397 = vmand %vm3373, %vm3349
      %vm3398 = vmand %vm3374, %vm3350
      %vm3399 = vmand %vm3375, %vm3351
      %vm3400 = vmand %vm3376, %vm3352
      %vm3401 = vmand %vm3377, %vm3353
      %vm3402 = vmand %vm3378, %vm3354
      %vm3403 = vmand %vm3379, %vm3355
      %vm3404 = vmand %vm3380, %vm3356
      %vm3405 = vmand %vm3381, %vm3357
      %v3406 = vadd.s32 %v3172, 16
      %v3407 = vadd.s32 %v3179, 16
      %v3408 = vadd.s32 %v3186, 16
      %v3409 = vadd.s32 %v3193, 16
      %v3410 = vadd.s32 %v3200, 16
      %v3411 = vadd.s32 %v3207, 16
      %v3412 = vadd.s32 %v3214, 16
      %v3413 = vadd.s32 %v3221, 16
      %v3414 = vadd.s32 %v3228, 16
      %v3415 = vadd.s32 %v3235, 16
      %v3416 = vadd.s32 %v3242, 16
      %v3417 = vadd.s32 %v3249, 16
      %v3418 = vadd.s32 %v3256, 16
      %v3419 = vadd.s32 %v3263, 16
      %v3420 = vadd.s32 %v3270, 16
      %v3421 = vadd.s32 %v3277, 16
      %v3422 = vadd.s32 %v3284, 16
      %v3423 = vadd.s32 %v3291, 16
      %v3424 = vadd.s32 %v3298, 16
      %v3425 = vadd.s32 %v3305, 16
      %v3426 = vadd.s32 %v3312, 16
      %v3427 = vadd.s32 %v3319, 16
      %v3428 = vadd.s32 %v3326, 16
      %v3429 = vadd.s32 %v3333, 16
      %v3430 = vsel %vm3382, %v3406, %v3172
      %v3431 = vsel %vm3383, %v3407, %v3179
      %v3432 = vsel %vm3384, %v3408, %v3186
      %v3433 = vsel %vm3385, %v3409, %v3193
      %v3434 = vsel %vm3386, %v3410, %v3200
      %v3435 = vsel %vm3387, %v3411, %v3207
      %v3436 = vsel %vm3388, %v3412, %v3214
      %v3437 = vsel %vm3389, %v3413, %v3221
      %v3438 = vsel %vm3390, %v3414, %v3228
      %v3439 = vsel %vm3391, %v3415, %v3235
      %v3440 = vsel %vm3392, %v3416, %v3242
      %v3441 = vsel %vm3393, %v3417, %v3249
      %v3442 = vsel %vm3394, %v3418, %v3256
      %v3443 = vsel %vm3395, %v3419, %v3263
      %v3444 = vsel %vm3396, %v3420, %v3270
      %v3445 = vsel %vm3397, %v3421, %v3277
      %v3446 = vsel %vm3398, %v3422, %v3284
      %v3447 = vsel %vm3399, %v3423, %v3291
      %v3448 = vsel %vm3400, %v3424, %v3298
      %v3449 = vsel %vm3401, %v3425, %v3305
      %v3450 = vsel %vm3402, %v3426, %v3312
      %v3451 = vsel %vm3403, %v3427, %v3319
      %v3452 = vsel %vm3404, %v3428, %v3326
      %v3453 = vsel %vm3405, %v3429, %v3333
      %vm3454 = vcmp.lt.s32.totalorder %v3430, 12
      %vm3455 = vcmp.lt.s32.totalorder %v3431, 12
      %vm3456 = vcmp.lt.s32.totalorder %v3432, 12
      %vm3457 = vcmp.lt.s32.totalorder %v3433, 12
      %vm3458 = vcmp.lt.s32.totalorder %v3434, 12
      %vm3459 = vcmp.lt.s32.totalorder %v3435, 12
      %vm3460 = vcmp.lt.s32.totalorder %v3436, 12
      %vm3461 = vcmp.lt.s32.totalorder %v3437, 12
      %vm3462 = vcmp.lt.s32.totalorder %v3438, 12
      %vm3463 = vcmp.lt.s32.totalorder %v3439, 12
      %vm3464 = vcmp.lt.s32.totalorder %v3440, 12
      %vm3465 = vcmp.lt.s32.totalorder %v3441, 12
      %vm3466 = vcmp.lt.s32.totalorder %v3442, 12
      %vm3467 = vcmp.lt.s32.totalorder %v3443, 12
      %vm3468 = vcmp.lt.s32.totalorder %v3444, 12
      %vm3469 = vcmp.lt.s32.totalorder %v3445, 12
      %vm3470 = vcmp.lt.s32.totalorder %v3446, 12
      %vm3471 = vcmp.lt.s32.totalorder %v3447, 12
      %vm3472 = vcmp.lt.s32.totalorder %v3448, 12
      %vm3473 = vcmp.lt.s32.totalorder %v3449, 12
      %vm3474 = vcmp.lt.s32.totalorder %v3450, 12
      %vm3475 = vcmp.lt.s32.totalorder %v3451, 12
      %vm3476 = vcmp.lt.s32.totalorder %v3452, 12
      %vm3477 = vcmp.lt.s32.totalorder %v3453, 12
      %v3478 = vsel %vm3454, 1, 0
      %v3479 = vsel %vm3455, 1, 0
      %v3480 = vsel %vm3456, 1, 0
      %v3481 = vsel %vm3457, 1, 0
      %v3482 = vsel %vm3458, 1, 0
      %v3483 = vsel %vm3459, 1, 0
      %v3484 = vsel %vm3460, 1, 0
      %v3485 = vsel %vm3461, 1, 0
      %v3486 = vsel %vm3462, 1, 0
      %v3487 = vsel %vm3463, 1, 0
      %v3488 = vsel %vm3464, 1, 0
      %v3489 = vsel %vm3465, 1, 0
      %v3490 = vsel %vm3466, 1, 0
      %v3491 = vsel %vm3467, 1, 0
      %v3492 = vsel %vm3468, 1, 0
      %v3493 = vsel %vm3469, 1, 0
      %v3494 = vsel %vm3470, 1, 0
      %v3495 = vsel %vm3471, 1, 0
      %v3496 = vsel %vm3472, 1, 0
      %v3497 = vsel %vm3473, 1, 0
      %v3498 = vsel %vm3474, 1, 0
      %v3499 = vsel %vm3475, 1, 0
      %v3500 = vsel %vm3476, 1, 0
      %v3501 = vsel %vm3477, 1, 0
      %vm3502 = vcmp.eq.s32.totalorder %v3478, 1
      %vm3503 = vcmp.eq.s32.totalorder %v3479, 1
      %vm3504 = vcmp.eq.s32.totalorder %v3480, 1
      %vm3505 = vcmp.eq.s32.totalorder %v3481, 1
      %vm3506 = vcmp.eq.s32.totalorder %v3482, 1
      %vm3507 = vcmp.eq.s32.totalorder %v3483, 1
      %vm3508 = vcmp.eq.s32.totalorder %v3484, 1
      %vm3509 = vcmp.eq.s32.totalorder %v3485, 1
      %vm3510 = vcmp.eq.s32.totalorder %v3486, 1
      %vm3511 = vcmp.eq.s32.totalorder %v3487, 1
      %vm3512 = vcmp.eq.s32.totalorder %v3488, 1
      %vm3513 = vcmp.eq.s32.totalorder %v3489, 1
      %vm3514 = vcmp.eq.s32.totalorder %v3490, 1
      %vm3515 = vcmp.eq.s32.totalorder %v3491, 1
      %vm3516 = vcmp.eq.s32.totalorder %v3492, 1
      %vm3517 = vcmp.eq.s32.totalorder %v3493, 1
      %vm3518 = vcmp.eq.s32.totalorder %v3494, 1
      %vm3519 = vcmp.eq.s32.totalorder %v3495, 1
      %vm3520 = vcmp.eq.s32.totalorder %v3496, 1
      %vm3521 = vcmp.eq.s32.totalorder %v3497, 1
      %vm3522 = vcmp.eq.s32.totalorder %v3498, 1
      %vm3523 = vcmp.eq.s32.totalorder %v3499, 1
      %vm3524 = vcmp.eq.s32.totalorder %v3500, 1
      %vm3525 = vcmp.eq.s32.totalorder %v3501, 1
      %v3526 = vsel %vm3502, %v3117, 0.0
      %v3527 = vsel %vm3503, %v3118, 0.0
      %v3528 = vsel %vm3504, %v3119, 0.0
      %v3529 = vsel %vm3505, %v3120, 0.0
      %v3530 = vsel %vm3506, %v3121, 0.0
      %v3531 = vsel %vm3507, %v3122, 0.0
      %v3532 = vsel %vm3508, %v3123, 0.0
      %v3533 = vsel %vm3509, %v3124, 0.0
      %v3534 = vsel %vm3510, %v3125, 0.0
      %v3535 = vsel %vm3511, %v3126, 0.0
      %v3536 = vsel %vm3512, %v3127, 0.0
      %v3537 = vsel %vm3513, %v3128, 0.0
      %v3538 = vsel %vm3514, %v3129, 0.0
      %v3539 = vsel %vm3515, %v3130, 0.0
      %v3540 = vsel %vm3516, %v3131, 0.0
      %v3541 = vsel %vm3517, %v3132, 0.0
      %v3542 = vsel %vm3518, %v3133, 0.0
      %v3543 = vsel %vm3519, %v3134, 0.0
      %v3544 = vsel %vm3520, %v3135, 0.0
      %v3545 = vsel %vm3521, %v3136, 0.0
      %v3546 = vsel %vm3522, %v3137, 0.0
      %v3547 = vsel %vm3523, %v3138, 0.0
      %v3548 = vsel %vm3524, %v3139, 0.0
      %v3549 = vsel %vm3525, %v3140, 0.0
      %v3550 = vadd.f32 %v3526, %v3527
      %v3551 = vadd.f32 %v3550, %v3528
      %v3552 = vadd.f32 %v3551, %v3529
      %v3553 = vadd.f32 %v3552, %v3530
      %v3554 = vadd.f32 %v3553, %v3531
      %v3555 = vadd.f32 %v3554, %v3532
      %v3556 = vadd.f32 %v3555, %v3533
      %v3557 = vadd.f32 %v3556, %v3534
      %v3558 = vadd.f32 %v3557, %v3535
      %v3559 = vadd.f32 %v3558, %v3536
      %v3560 = vadd.f32 %v3559, %v3537
      %v3561 = vadd.f32 %v3560, %v3538
      %v3562 = vadd.f32 %v3561, %v3539
      %v3563 = vadd.f32 %v3562, %v3540
      %v3564 = vadd.f32 %v3563, %v3541
      %v3565 = vadd.f32 %v3564, %v3542
      %v3566 = vadd.f32 %v3565, %v3543
      %v3567 = vadd.f32 %v3566, %v3544
      %v3568 = vadd.f32 %v3567, %v3545
      %v3569 = vadd.f32 %v3568, %v3546
      %v3570 = vadd.f32 %v3569, %v3547
      %v3571 = vadd.f32 %v3570, %v3548
      %vm3572 = vcmask 1045504
      %v3573 = vsel %vm3572, %v3549, 0.0
      %v3574 = vadd.f32 %v3571, %v3573
      %v3575 = vrot.slane %v3574, 4
      %v3576 = vadd.f32 %v3574, %v3575
      %v3577 = vrot.slane %v3576, 2
      %v3578 = vadd.f32 %v3576, %v3577
      %v3579 = vrot.slane %v3578, 1
      %v3580 = vadd.f32 %v3578, %v3579
      %v3581 = vadd.f32 %v3580, 0.0
      %v3582 = vmul.f32 %v3526, %v3526
      %v3583 = vmul.f32 %v3527, %v3527
      %v3584 = vmul.f32 %v3528, %v3528
      %v3585 = vmul.f32 %v3529, %v3529
      %v3586 = vmul.f32 %v3530, %v3530
      %v3587 = vmul.f32 %v3531, %v3531
      %v3588 = vmul.f32 %v3532, %v3532
      %v3589 = vmul.f32 %v3533, %v3533
      %v3590 = vmul.f32 %v3534, %v3534
      %v3591 = vmul.f32 %v3535, %v3535
      %v3592 = vmul.f32 %v3536, %v3536
      %v3593 = vmul.f32 %v3537, %v3537
      %v3594 = vmul.f32 %v3538, %v3538
      %v3595 = vmul.f32 %v3539, %v3539
      %v3596 = vmul.f32 %v3540, %v3540
      %v3597 = vmul.f32 %v3541, %v3541
      %v3598 = vmul.f32 %v3542, %v3542
      %v3599 = vmul.f32 %v3543, %v3543
      %v3600 = vmul.f32 %v3544, %v3544
      %v3601 = vmul.f32 %v3545, %v3545
      %v3602 = vmul.f32 %v3546, %v3546
      %v3603 = vmul.f32 %v3547, %v3547
      %v3604 = vmul.f32 %v3548, %v3548
      %v3605 = vmul.f32 %v3549, %v3549
      %v3606 = vadd.f32 %v3582, %v3583
      %v3607 = vadd.f32 %v3606, %v3584
      %v3608 = vadd.f32 %v3607, %v3585
      %v3609 = vadd.f32 %v3608, %v3586
      %v3610 = vadd.f32 %v3609, %v3587
      %v3611 = vadd.f32 %v3610, %v3588
      %v3612 = vadd.f32 %v3611, %v3589
      %v3613 = vadd.f32 %v3612, %v3590
      %v3614 = vadd.f32 %v3613, %v3591
      %v3615 = vadd.f32 %v3614, %v3592
      %v3616 = vadd.f32 %v3615, %v3593
      %v3617 = vadd.f32 %v3616, %v3594
      %v3618 = vadd.f32 %v3617, %v3595
      %v3619 = vadd.f32 %v3618, %v3596
      %v3620 = vadd.f32 %v3619, %v3597
      %v3621 = vadd.f32 %v3620, %v3598
      %v3622 = vadd.f32 %v3621, %v3599
      %v3623 = vadd.f32 %v3622, %v3600
      %v3624 = vadd.f32 %v3623, %v3601
      %v3625 = vadd.f32 %v3624, %v3602
      %v3626 = vadd.f32 %v3625, %v3603
      %v3627 = vadd.f32 %v3626, %v3604
      %v3628 = vsel %vm3572, %v3605, 0.0
      %v3629 = vadd.f32 %v3627, %v3628
      %v3630 = vrot.slane %v3629, 4
      %v3631 = vadd.f32 %v3629, %v3630
      %v3632 = vrot.slane %v3631, 2
      %v3633 = vadd.f32 %v3631, %v3632
      %v3634 = vrot.slane %v3633, 1
      %v3635 = vadd.f32 %v3633, %v3634
      %v3636 = vadd.f32 %v3635, 0.0
      %3637 = vst [vmem:[%s289] sm:$0xff] %v3117
      %3638 = vst [vmem:[%s289 + $0x8] sm:$0xf] %v3118
      %s3639 = scalar_lea.vmem %s289, 16
      %3640 = vst [vmem:[%s3639] sm:$0xff] %v3119
      %3641 = vst [vmem:[%s3639 + $0x8] sm:$0xf] %v3120
      %s3642 = scalar_lea.vmem %s289, 32
      %3643 = vst [vmem:[%s3642] sm:$0xff] %v3121
      %3644 = vst [vmem:[%s3642 + $0x8] sm:$0xf] %v3122
      %s3645 = scalar_lea.vmem %s289, 48
      %3646 = vst [vmem:[%s3645] sm:$0xff] %v3123
      %3647 = vst [vmem:[%s3645 + $0x8] sm:$0xf] %v3124
      %s3648 = scalar_lea.vmem %s289, 64
      %3649 = vst [vmem:[%s3648] sm:$0xff] %v3125
      %3650 = vst [vmem:[%s3648 + $0x8] sm:$0xf] %v3126
      %s3651 = scalar_lea.vmem %s289, 80
      %3652 = vst [vmem:[%s3651] sm:$0xff] %v3127
      %3653 = vst [vmem:[%s3651 + $0x8] sm:$0xf] %v3128
      %s3654 = scalar_lea.vmem %s289, 96
      %3655 = vst [vmem:[%s3654] sm:$0xff] %v3129
      %3656 = vst [vmem:[%s3654 + $0x8] sm:$0xf] %v3130
      %s3657 = scalar_lea.vmem %s289, 112
      %3658 = vst [vmem:[%s3657] sm:$0xff] %v3131
      %3659 = vst [vmem:[%s3657 + $0x8] sm:$0xf] %v3132
      %s3660 = scalar_lea.vmem %s289, 128
      %3661 = vst [vmem:[%s3660] sm:$0xff] %v3133
      %3662 = vst [vmem:[%s3660 + $0x8] sm:$0xf] %v3134
      %s3663 = scalar_lea.vmem %s289, 144
      %3664 = vst [vmem:[%s3663] sm:$0xff] %v3135
      %3665 = vst [vmem:[%s3663 + $0x8] sm:$0xf] %v3136
      %s3666 = scalar_lea.vmem %s289, 160
      %3667 = vst [vmem:[%s3666] sm:$0xff] %v3137
      %3668 = vst [vmem:[%s3666 + $0x8] sm:$0xf] %v3138
      %s3669 = scalar_lea.vmem %s289, 176
      %3670 = vst [vmem:[%s3669] sm:$0xff] %v3139
      %3671 = vst [vmem:[%s3669 + $0x8] sm:$0xf] %v3140
      %3672 = vst [vmem:[%s292] sm:$0x1] %v3581
      %3673 = vst [vmem:[%s295] sm:$0x1] %v3636
      %p3674 = scmp.lt.s32.totalorder %s19, 1
      %s3675 = scalar_select %p3674, %s19, 1
      %s3676 = smul.addr %s3675, 24
      %s3677 = smul.addr %s3676, 8
      %s3678 = scalar_lea.vmem %s5, %s3677
      %p3679 = scmp.lt.s32.totalorder %s19, 1
      %s3680 = scalar_select %p3679, %s19, 1
      %s3681 = scalar_lea.vmem %s6, %s3680
      %p3682 = scmp.lt.s32.totalorder %s19, 1
      %s3683 = scalar_select %p3682, %s19, 1
      %s3684 = scalar_lea.vmem %s7, %s3683
      // Predicated region
      $region41: #{up_step_forward.5} parent=39 // pred_check
        %p3685 = pneg %p147
      $region42: #{up_step_forward.5} parent=39 // pred_check_branch
        %3687 = sbr.rel (%p3685) target = $region44
      $region43: #{up_step_forward.5} parent=39 // pred_region
        _
      $region44: #{up_step_forward.5} parent=39 // pred_fallthru
        _
      // Predicated region
      $region45: #{up_step_forward.5} parent=39 // pred_check
        %p3688 = pneg %p173
      $region46: #{up_step_forward.5} parent=39 // pred_check_branch
        %3690 = sbr.rel (%p3688) target = $region48
      $region47: #{up_step_forward.5} parent=39 // pred_region
        _
      $region48: #{up_step_forward.5} parent=39 // pred_fallthru
        _
      // Predicated region
      $region49: #{up_step_forward.5} parent=39 // pred_check
        %p3691 = pneg %p199
      $region50: #{up_step_forward.5} parent=39 // pred_check_branch
        %3693 = sbr.rel (%p3691) target = $region52
      $region51: #{up_step_forward.5} parent=39 // pred_region
        _
      $region52: #{up_step_forward.5} parent=39 // pred_fallthru
        _
    $region40: #{up_step_forward.5} parent=5 // pred_fallthru
      _
    %p3694 = scmp.le.s32.totalorder 2, %s14
    // Predicated region
    $region53: #{up_step_forward.5} parent=5 // pred_check
      %p3695 = pneg %p3694
    $region54: #{up_step_forward.5} parent=5 // pred_check_branch
      %3697 = sbr.rel (%p3695) target = $region56
    $region55: #{up_step_forward.5} parent=5 // pred_region
      %s3698 = ssub.s32 %s14, 2
      // Predicated region
      $region57: #{up_step_forward.5} parent=55 // pred_check
        %p3699 = pneg %p153
      $region58: #{up_step_forward.5} parent=55 // pred_check_branch
        %3701 = sbr.rel (%p3699) target = $region60
      $region59: #{up_step_forward.5} parent=55 // pred_region
        %p3702 = scmp.lt.s32.totalorder %s20, 1
        %s3703 = scalar_select %p3702, %s20, 1
        %s3704 = smul.addr %s3703, 24
        %s3705 = smul.addr %s3704, 8
        %s3706 = scalar_lea.vmem %s5, %s3705
      $region60: #{up_step_forward.5} parent=55 // pred_fallthru
        _
      // Predicated region
      $region61: #{up_step_forward.5} parent=55 // pred_check
        %p3707 = pneg %p179
      $region62: #{up_step_forward.5} parent=55 // pred_check_branch
        %3709 = sbr.rel (%p3707) target = $region64
      $region63: #{up_step_forward.5} parent=55 // pred_region
        %p3710 = scmp.lt.s32.totalorder %s20, 1
        %s3711 = scalar_select %p3710, %s20, 1
        %s3712 = scalar_lea.vmem %s6, %s3711
      $region64: #{up_step_forward.5} parent=55 // pred_fallthru
        _
      // Predicated region
      $region65: #{up_step_forward.5} parent=55 // pred_check
        %p3713 = pneg %p205
      $region66: #{up_step_forward.5} parent=55 // pred_check_branch
        %3715 = sbr.rel (%p3713) target = $region68
      $region67: #{up_step_forward.5} parent=55 // pred_region
        %p3716 = scmp.lt.s32.totalorder %s20, 1
        %s3717 = scalar_select %p3716, %s20, 1
        %s3718 = scalar_lea.vmem %s7, %s3717
      $region68: #{up_step_forward.5} parent=55 // pred_fallthru
        _
    $region56: #{up_step_forward.5} parent=5 // pred_fallthru
      _
  $region6: #{up_step_forward.5} parent=0 // loop_footer
    %s18 = sadd.s32 1, %s14
  $region7: #{up_step_forward.5} parent=0 // loop_footer_branch
    %13 = sbr.rel target = $region3
  $region8: #{up_step_forward.5} parent=0 // loop_exit
    _

// kernel: up_step_forward.4
$region0: #{up_step_forward.4}
  #allocation0 [shape = 'u32[]', space=smem, size = 0x4, offset = 0x4, fixed_abs, tag = 'smem constant byte address 0x4 - core index']
  #allocation1 [shape = 'u32[144,128]{1,0:T(1,128)}', space=vmem, size = 0x12000, scoped, tag = 'internal scratch']
  %s0 = inlined_call_operand.vmem [shape: bf16[2,16,16,4], index: 0, kind: input, shape index: {}]
  %s1 = inlined_call_operand.vmem [shape: bf16[2,16,16,4], index: 1, kind: input, shape index: {}]
  %s2 = inlined_call_operand.vmem [shape: bf16[3,3,4,128], index: 2, kind: input, shape index: {}]
  %s3 = inlined_call_operand.vmem [shape: bf16[3,3,4,128], index: 3, kind: input, shape index: {}]
  %s4 = inlined_call_operand.vmem [shape: f32[1,128], index: 4, kind: input, shape index: {}]
  %s5 = inlined_call_operand.vmem [shape: bf16[2,14,16,128], index: 5, kind: output, shape index: {0}]
  %s6 = inlined_call_operand.vmem [shape: f32[2,1,128], index: 6, kind: output, shape index: {1}]
  %s7 = inlined_call_operand.vmem [shape: f32[2,1,128], index: 7, kind: output, shape index: {2}]
  %8 = xla_tuple %s5, %s6, %s7
  %s9 = sld [smem:[#allocation0]]
  $region69: #{up_step_forward.4} parent=0
    _
  %s11 = ssub.s32 1, %s9
  %s12 = scalar_select 0, %s11, %s9
  loop: start=0, step=1, limit=4
  $region2: #{up_step_forward.4} parent=0 // loop_pre_header
    _
  $region3: #{up_step_forward.4} parent=0 // loop_header
    %s14 = sphi 0, %s18
    %p15 = scmp.ge.s32.totalorder %s14, 4
    %s24 = sphi 0, %s26
    %s27 = sphi 0, %s24
    %s28 = sphi 0, %s27
    %s44 = sphi 0, %s28
    %s50 = sphi 0, %s52
    %s53 = sphi 0, %s50
    %s54 = sphi 0, %s53
    %s70 = sphi 0, %s54
    %s74 = sphi 0, %s74
    %s76 = sphi 0, %s74
    %s77 = sphi 0, %s76
    %s91 = sphi 0, %s77
    %s95 = sphi 0, %s95
    %s97 = sphi 0, %s95
    %s98 = sphi 0, %s97
    %s112 = sphi 0, %s98
    %s116 = sphi 0, %s116
    %s118 = sphi 0, %s116
    %s119 = sphi 0, %s118
    %s133 = sphi 0, %s119
    %s139 = sphi 0, %s141
    %s142 = sphi 0, %s139
    %s143 = sphi 0, %s142
    %s159 = sphi 0, %s143
    %s165 = sphi 0, %s167
    %s168 = sphi 0, %s165
    %s169 = sphi 0, %s168
    %s185 = sphi 0, %s169
    %s191 = sphi 0, %s193
    %s194 = sphi 0, %s191
    %s195 = sphi 0, %s194
    %s211 = sphi 0, %s195
  $region4: #{up_step_forward.4} parent=0 // loop_header_branch
    %17 = sbr.rel (%p15) target = $region8
  $region5: #{up_step_forward.4} parent=0 // loop_body
    %s19 = ssub.s32 %s14, 1
    %s20 = ssub.s32 %s14, 2
    %s21 = sadd.s32 %s14, 1
    %s22 = ssub.s32 %s14, %s21
    %p23 = scmp.eq.s32.totalorder %s22, 0
    %s25 = sadd.s32 %s24, 1
    %s26 = scalar_select %p23, %s24, %s25
    %p29 = pneg %p23
    %p30 = scmp.eq.s32.totalorder %s14, 1
    %p31 = por %p29, %p30
    %p32 = scmp.ne.s32.totalorder %s24, %s27
    %p33 = scmp.eq.s32.totalorder %s14, 0
    %p34 = por %p32, %p33
    %p35 = scmp.ne.s32.totalorder %s24, %s27
    %p36 = scmp.eq.s32.totalorder %s19, 1
    %p37 = por %p35, %p36
    %p38 = scmp.ne.s32.totalorder %s27, %s28
    %p39 = scmp.eq.s32.totalorder %s19, 0
    %p40 = por %p38, %p39
    %p41 = scmp.ne.s32.totalorder %s27, %s28
    %p42 = scmp.eq.s32.totalorder %s20, 1
    %p43 = por %p41, %p42
    %p45 = scmp.ne.s32.totalorder %s28, %s44
    %p46 = scmp.eq.s32.totalorder %s20, 0
    %p47 = por %p45, %p46
    %s48 = ssub.s32 %s14, %s21
    %p49 = scmp.eq.s32.totalorder %s48, 0
    %s51 = sadd.s32 %s50, 1
    %s52 = scalar_select %p49, %s50, %s51
    %p55 = pneg %p49
    %p56 = scmp.eq.s32.totalorder %s14, 1
    %p57 = por %p55, %p56
    %p58 = scmp.ne.s32.totalorder %s50, %s53
    %p59 = scmp.eq.s32.totalorder %s14, 0
    %p60 = por %p58, %p59
    %p61 = scmp.ne.s32.totalorder %s50, %s53
    %p62 = scmp.eq.s32.totalorder %s19, 1
    %p63 = por %p61, %p62
    %p64 = scmp.ne.s32.totalorder %s53, %s54
    %p65 = scmp.eq.s32.totalorder %s19, 0
    %p66 = por %p64, %p65
    %p67 = scmp.ne.s32.totalorder %s53, %s54
    %p68 = scmp.eq.s32.totalorder %s20, 1
    %p69 = por %p67, %p68
    %p71 = scmp.ne.s32.totalorder %s54, %s70
    %p72 = scmp.eq.s32.totalorder %s20, 0
    %p73 = por %p71, %p72
    %s75 = sadd.s32 %s74, 1
    %p78 = scmp.eq.s32.totalorder %s14, 1
    %p79 = scmp.ne.s32.totalorder %s74, %s76
    %p80 = scmp.eq.s32.totalorder %s14, 0
    %p81 = por %p79, %p80
    %p82 = scmp.ne.s32.totalorder %s74, %s76
    %p83 = scmp.eq.s32.totalorder %s19, 1
    %p84 = por %p82, %p83
    %p85 = scmp.ne.s32.totalorder %s76, %s77
    %p86 = scmp.eq.s32.totalorder %s19, 0
    %p87 = por %p85, %p86
    %p88 = scmp.ne.s32.totalorder %s76, %s77
    %p89 = scmp.eq.s32.totalorder %s20, 1
    %p90 = por %p88, %p89
    %p92 = scmp.ne.s32.totalorder %s77, %s91
    %p93 = scmp.eq.s32.totalorder %s20, 0
    %p94 = por %p92, %p93
    %s96 = sadd.s32 %s95, 1
    %p99 = scmp.eq.s32.totalorder %s14, 1
    %p100 = scmp.ne.s32.totalorder %s95, %s97
    %p101 = scmp.eq.s32.totalorder %s14, 0
    %p102 = por %p100, %p101
    %p103 = scmp.ne.s32.totalorder %s95, %s97
    %p104 = scmp.eq.s32.totalorder %s19, 1
    %p105 = por %p103, %p104
    %p106 = scmp.ne.s32.totalorder %s97, %s98
    %p107 = scmp.eq.s32.totalorder %s19, 0
    %p108 = por %p106, %p107
    %p109 = scmp.ne.s32.totalorder %s97, %s98
    %p110 = scmp.eq.s32.totalorder %s20, 1
    %p111 = por %p109, %p110
    %p113 = scmp.ne.s32.totalorder %s98, %s112
    %p114 = scmp.eq.s32.totalorder %s20, 0
    %p115 = por %p113, %p114
    %s117 = sadd.s32 %s116, 1
    %p120 = scmp.eq.s32.totalorder %s14, 1
    %p121 = scmp.ne.s32.totalorder %s116, %s118
    %p122 = scmp.eq.s32.totalorder %s14, 0
    %p123 = por %p121, %p122
    %p124 = scmp.ne.s32.totalorder %s116, %s118
    %p125 = scmp.eq.s32.totalorder %s19, 1
    %p126 = por %p124, %p125
    %p127 = scmp.ne.s32.totalorder %s118, %s119
    %p128 = scmp.eq.s32.totalorder %s19, 0
    %p129 = por %p127, %p128
    %p130 = scmp.ne.s32.totalorder %s118, %s119
    %p131 = scmp.eq.s32.totalorder %s20, 1
    %p132 = por %p130, %p131
    %p134 = scmp.ne.s32.totalorder %s119, %s133
    %p135 = scmp.eq.s32.totalorder %s20, 0
    %p136 = por %p134, %p135
    %s137 = ssub.s32 %s14, %s21
    %p138 = scmp.eq.s32.totalorder %s137, 0
    %s140 = sadd.s32 %s139, 1
    %s141 = scalar_select %p138, %s139, %s140
    %p144 = pneg %p138
    %p145 = scmp.eq.s32.totalorder %s14, 1
    %p146 = por %p144, %p145
    %p147 = scmp.ne.s32.totalorder %s139, %s142
    %p148 = scmp.eq.s32.totalorder %s14, 0
    %p149 = por %p147, %p148
    %p150 = scmp.ne.s32.totalorder %s139, %s142
    %p151 = scmp.eq.s32.totalorder %s19, 1
    %p152 = por %p150, %p151
    %p153 = scmp.ne.s32.totalorder %s142, %s143
    %p154 = scmp.eq.s32.totalorder %s19, 0
    %p155 = por %p153, %p154
    %p156 = scmp.ne.s32.totalorder %s142, %s143
    %p157 = scmp.eq.s32.totalorder %s20, 1
    %p158 = por %p156, %p157
    %p160 = scmp.ne.s32.totalorder %s143, %s159
    %p161 = scmp.eq.s32.totalorder %s20, 0
    %p162 = por %p160, %p161
    %s163 = ssub.s32 %s14, %s21
    %p164 = scmp.eq.s32.totalorder %s163, 0
    %s166 = sadd.s32 %s165, 1
    %s167 = scalar_select %p164, %s165, %s166
    %p170 = pneg %p164
    %p171 = scmp.eq.s32.totalorder %s14, 1
    %p172 = por %p170, %p171
    %p173 = scmp.ne.s32.totalorder %s165, %s168
    %p174 = scmp.eq.s32.totalorder %s14, 0
    %p175 = por %p173, %p174
    %p176 = scmp.ne.s32.totalorder %s165, %s168
    %p177 = scmp.eq.s32.totalorder %s19, 1
    %p178 = por %p176, %p177
    %p179 = scmp.ne.s32.totalorder %s168, %s169
    %p180 = scmp.eq.s32.totalorder %s19, 0
    %p181 = por %p179, %p180
    %p182 = scmp.ne.s32.totalorder %s168, %s169
    %p183 = scmp.eq.s32.totalorder %s20, 1
    %p184 = por %p182, %p183
    %p186 = scmp.ne.s32.totalorder %s169, %s185
    %p187 = scmp.eq.s32.totalorder %s20, 0
    %p188 = por %p186, %p187
    %s189 = ssub.s32 %s14, %s21
    %p190 = scmp.eq.s32.totalorder %s189, 0
    %s192 = sadd.s32 %s191, 1
    %s193 = scalar_select %p190, %s191, %s192
    %p196 = pneg %p190
    %p197 = scmp.eq.s32.totalorder %s14, 1
    %p198 = por %p196, %p197
    %p199 = scmp.ne.s32.totalorder %s191, %s194
    %p200 = scmp.eq.s32.totalorder %s14, 0
    %p201 = por %p199, %p200
    %p202 = scmp.ne.s32.totalorder %s191, %s194
    %p203 = scmp.eq.s32.totalorder %s19, 1
    %p204 = por %p202, %p203
    %p205 = scmp.ne.s32.totalorder %s194, %s195
    %p206 = scmp.eq.s32.totalorder %s19, 0
    %p207 = por %p205, %p206
    %p208 = scmp.ne.s32.totalorder %s194, %s195
    %p209 = scmp.eq.s32.totalorder %s20, 1
    %p210 = por %p208, %p209
    %p212 = scmp.ne.s32.totalorder %s195, %s211
    %p213 = scmp.eq.s32.totalorder %s20, 0
    %p214 = por %p212, %p213
    %p215 = scmp.le.s32.totalorder 1, %s14
    %p216 = scmp.lt.s32.totalorder %s14, 3
    %p217 = pnand %p215, %p216
    %p218 = pneg %p217
    // Predicated region
    $region9: #{up_step_forward.4} parent=5 // pred_check
      _
    $region10: #{up_step_forward.4} parent=5 // pred_check_branch
      %220 = sbr.rel (%p217) target = $region12
    $region11: #{up_step_forward.4} parent=5 // pred_region
      %s221 = ssub.s32 %s14, 1
      // Predicated region
      $region13: #{up_step_forward.4} parent=11 // pred_check
        %p222 = pneg %p87
      $region14: #{up_step_forward.4} parent=11 // pred_check_branch
        %224 = sbr.rel (%p222) target = $region16
      $region15: #{up_step_forward.4} parent=11 // pred_region
        _
      $region16: #{up_step_forward.4} parent=11 // pred_fallthru
        _
      // Predicated region
      $region17: #{up_step_forward.4} parent=11 // pred_check
        %p225 = pneg %p108
      $region18: #{up_step_forward.4} parent=11 // pred_check_branch
        %227 = sbr.rel (%p225) target = $region20
      $region19: #{up_step_forward.4} parent=11 // pred_region
        _
      $region20: #{up_step_forward.4} parent=11 // pred_fallthru
        _
      // Predicated region
      $region21: #{up_step_forward.4} parent=11 // pred_check
        %p228 = pneg %p129
      $region22: #{up_step_forward.4} parent=11 // pred_check_branch
        %230 = sbr.rel (%p228) target = $region24
      $region23: #{up_step_forward.4} parent=11 // pred_region
        _
      $region24: #{up_step_forward.4} parent=11 // pred_fallthru
        _
    $region12: #{up_step_forward.4} parent=5 // pred_fallthru
      _
    %p231 = scmp.lt.s32.totalorder %s14, 2
    // Predicated region
    $region25: #{up_step_forward.4} parent=5 // pred_check
      %p232 = pneg %p231
    $region26: #{up_step_forward.4} parent=5 // pred_check_branch
      %234 = sbr.rel (%p232) target = $region28
    $region27: #{up_step_forward.4} parent=5 // pred_region
      // Predicated region
      $region29: #{up_step_forward.4} parent=27 // pred_check
        %p235 = pneg %p34
      $region30: #{up_step_forward.4} parent=27 // pred_check_branch
        %237 = sbr.rel (%p235) target = $region32
      $region31: #{up_step_forward.4} parent=27 // pred_region
        %p238 = scmp.lt.s32.totalorder %s14, 1
        %s239 = scalar_select %p238, %s14, 1
        %s240 = smul.addr %s239, 32
        %s241 = smul.addr %s240, 4
        %s242 = scalar_lea.vmem %s0, %s241
      $region32: #{up_step_forward.4} parent=27 // pred_fallthru
        _
      // Predicated region
      $region33: #{up_step_forward.4} parent=27 // pred_check
        %p243 = pneg %p60
      $region34: #{up_step_forward.4} parent=27 // pred_check_branch
        %245 = sbr.rel (%p243) target = $region36
      $region35: #{up_step_forward.4} parent=27 // pred_region
        %p246 = scmp.lt.s32.totalorder %s14, 1
        %s247 = scalar_select %p246, %s14, 1
        %s248 = smul.addr %s247, 32
        %s249 = smul.addr %s248, 4
        %s250 = scalar_lea.vmem %s1, %s249
      $region36: #{up_step_forward.4} parent=27 // pred_fallthru
        _
    $region28: #{up_step_forward.4} parent=5 // pred_fallthru
      _
    %p251 = scmp.le.s32.totalorder 1, %s14
    %p252 = scmp.lt.s32.totalorder %s14, 3
    %p253 = pnand %p251, %p252
    %p254 = pneg %p253
    // Predicated region
    $region37: #{up_step_forward.4} parent=5 // pred_check
      _
    $region38: #{up_step_forward.4} parent=5 // pred_check_branch
      %256 = sbr.rel (%p253) target = $region40
    $region39: #{up_step_forward.4} parent=5 // pred_region
      %s257 = ssub.s32 %s14, 1
      %p258 = scmp.lt.s32.totalorder %s19, 1
      %s259 = scalar_select %p258, %s19, 1
      %s260 = smul.addr %s259, 32
      %s261 = smul.addr %s260, 4
      %s262 = scalar_lea.vmem %s0, %s261
      %p263 = pneg %p40
      %p264 = pneg %p37
      %p265 = scmp.lt.s32.totalorder %s19, 1
      %s266 = scalar_select %p265, %s19, 1
      %s267 = smul.addr %s266, 32
      %s268 = smul.addr %s267, 4
      %s269 = scalar_lea.vmem %s1, %s268
      %p270 = pneg %p66
      %p271 = pneg %p63
      %p272 = pneg %p87
      %p273 = pneg %p84
      %p274 = pneg %p108
      %p275 = pneg %p105
      %p276 = pneg %p129
      %p277 = pneg %p126
      %p278 = pneg %p155
      %p279 = pneg %p152
      %p280 = scmp.lt.s32.totalorder %s19, 1
      %s281 = scalar_select %p280, %s19, 1
      %s282 = smul.addr %s281, 28
      %s283 = smul.addr %s282, 4
      %s284 = scalar_lea.vmem %s5, %s283
      %p285 = pneg %p181
      %p286 = pneg %p178
      %p287 = scmp.lt.s32.totalorder %s19, 1
      %s288 = scalar_select %p287, %s19, 1
      %s289 = scalar_lea.vmem %s6, %s288
      %p290 = pneg %p207
      %p291 = pneg %p204
      %p292 = scmp.lt.s32.totalorder %s19, 1
      %s293 = scalar_select %p292, %s19, 1
      %s294 = scalar_lea.vmem %s7, %s293
      %p295 = scmp.lt.s32.totalorder %s19, 1
      %s296 = scalar_select %p295, %s19, 1
      %s297 = smul.addr %s296, 32
      %s298 = smul.addr %s297, 4
      %s299 = scalar_lea.vmem %s0, %s298
      %p300 = scmp.lt.s32.totalorder %s19, 1
      %s301 = scalar_select %p300, %s19, 1
      %s302 = smul.addr %s301, 32
      %s303 = smul.addr %s302, 4
      %s304 = scalar_lea.vmem %s1, %s303
      %p305 = scmp.lt.s32.totalorder %s19, 1
      %s306 = scalar_select %p305, %s19, 1
      %s307 = smul.addr %s306, 28
      %s308 = smul.addr %s307, 4
      %s309 = scalar_lea.vmem %s5, %s308
      %p310 = scmp.lt.s32.totalorder %s19, 1
      %s311 = scalar_select %p310, %s19, 1
      %s312 = scalar_lea.vmem %s6, %s311
      %p313 = scmp.lt.s32.totalorder %s19, 1
      %s314 = scalar_select %p313, %s19, 1
      %s315 = scalar_lea.vmem %s7, %s314
      %v317 = vld [vmem:[%s4] sm:$0x1]
      %v319 = vlaneseq
      %v320 = vshrl.u32 %v319, 7
      %v321 = vsub.s32 0, %v320
      %v322 = vrot.slane %v317, %v321
      %v324 = vld [vmem:[%s299] sm:$0xf]
      %v325 = vld [vmem:[%s299 + $0x4] sm:$0xf]
      %v326 = vld [vmem:[%s299 + $0x8] sm:$0xf]
      %v327 = vld [vmem:[%s299 + $0xc] sm:$0xf]
      %v328 = vld [vmem:[%s299 + $0x10] sm:$0xf]
      %v329 = vld [vmem:[%s299 + $0x14] sm:$0xf]
      %v330 = vld [vmem:[%s299 + $0x18] sm:$0xf]
      %v331 = vld [vmem:[%s299 + $0x1c] sm:$0xf]
      %v332 = vld [vmem:[%s299 + $0x20] sm:$0xf]
      %v333 = vld [vmem:[%s299 + $0x24] sm:$0xf]
      %v334 = vld [vmem:[%s299 + $0x28] sm:$0xf]
      %v335 = vld [vmem:[%s299 + $0x2c] sm:$0xf]
      %v336 = vld [vmem:[%s299 + $0x30] sm:$0xf]
      %v337 = vld [vmem:[%s299 + $0x34] sm:$0xf]
      %v338 = vld [vmem:[%s299 + $0x38] sm:$0xf]
      %v339 = vld [vmem:[%s299 + $0x3c] sm:$0xf]
      %v340 = vld [vmem:[%s299 + $0x40] sm:$0xf]
      %v341 = vld [vmem:[%s299 + $0x44] sm:$0xf]
      %v342 = vld [vmem:[%s299 + $0x48] sm:$0xf]
      %v343 = vld [vmem:[%s299 + $0x4c] sm:$0xf]
      %v344 = vld [vmem:[%s299 + $0x50] sm:$0xf]
      %v345 = vld [vmem:[%s299 + $0x54] sm:$0xf]
      %v346 = vld [vmem:[%s299 + $0x58] sm:$0xf]
      %v347 = vld [vmem:[%s299 + $0x5c] sm:$0xf]
      %v348 = vld [vmem:[%s299 + $0x60] sm:$0xf]
      %v349 = vld [vmem:[%s299 + $0x64] sm:$0xf]
      %v350 = vld [vmem:[%s299 + $0x68] sm:$0xf]
      %v351 = vld [vmem:[%s299 + $0x6c] sm:$0xf]
      %v352 = vld [vmem:[%s304] sm:$0xf]
      %v353 = vld [vmem:[%s304 + $0x4] sm:$0xf]
      %v354 = vld [vmem:[%s304 + $0x8] sm:$0xf]
      %v355 = vld [vmem:[%s304 + $0xc] sm:$0xf]
      %v356 = vld [vmem:[%s304 + $0x10] sm:$0xf]
      %v357 = vld [vmem:[%s304 + $0x14] sm:$0xf]
      %v358 = vld [vmem:[%s304 + $0x18] sm:$0xf]
      %v359 = vld [vmem:[%s304 + $0x1c] sm:$0xf]
      %v360 = vld [vmem:[%s304 + $0x20] sm:$0xf]
      %v361 = vld [vmem:[%s304 + $0x24] sm:$0xf]
      %v362 = vld [vmem:[%s304 + $0x28] sm:$0xf]
      %v363 = vld [vmem:[%s304 + $0x2c] sm:$0xf]
      %v364 = vld [vmem:[%s304 + $0x30] sm:$0xf]
      %v365 = vld [vmem:[%s304 + $0x34] sm:$0xf]
      %v366 = vld [vmem:[%s304 + $0x38] sm:$0xf]
      %v367 = vld [vmem:[%s304 + $0x3c] sm:$0xf]
      %v368 = vld [vmem:[%s304 + $0x40] sm:$0xf]
      %v369 = vld [vmem:[%s304 + $0x44] sm:$0xf]
      %v370 = vld [vmem:[%s304 + $0x48] sm:$0xf]
      %v371 = vld [vmem:[%s304 + $0x4c] sm:$0xf]
      %v372 = vld [vmem:[%s304 + $0x50] sm:$0xf]
      %v373 = vld [vmem:[%s304 + $0x54] sm:$0xf]
      %v374 = vld [vmem:[%s304 + $0x58] sm:$0xf]
      %v375 = vld [vmem:[%s304 + $0x5c] sm:$0xf]
      %v376 = vld [vmem:[%s304 + $0x60] sm:$0xf]
      %v377 = vld [vmem:[%s304 + $0x64] sm:$0xf]
      %v378 = vld [vmem:[%s304 + $0x68] sm:$0xf]
      %v379 = vld [vmem:[%s304 + $0x6c] sm:$0xf]
      %v380 = vld [vmem:[%s2] sm:$0x3]
      %v409 = vunpack.c.l.b16 %v324
      %v410 = vunpack.c.l.b16 %v325
      %v411 = vunpack.c.l.b16 %v326
      %v412 = vunpack.c.l.b16 %v327
      %v413 = vunpack.c.l.b16 %v328
      %v414 = vunpack.c.l.b16 %v329
      %v415 = vunpack.c.l.b16 %v330
      %v416 = vunpack.c.l.b16 %v331
      %v417 = vunpack.c.l.b16 %v332
      %v418 = vunpack.c.l.b16 %v333
      %v419 = vunpack.c.l.b16 %v334
      %v420 = vunpack.c.l.b16 %v335
      %v421 = vunpack.c.l.b16 %v336
      %v422 = vunpack.c.l.b16 %v337
      %v423 = vunpack.c.l.b16 %v338
      %v424 = vunpack.c.l.b16 %v339
      %v425 = vunpack.c.l.b16 %v340
      %v426 = vunpack.c.l.b16 %v341
      %v427 = vunpack.c.l.b16 %v342
      %v428 = vunpack.c.l.b16 %v343
      %v429 = vunpack.c.l.b16 %v344
      %v430 = vunpack.c.l.b16 %v345
      %v431 = vunpack.c.l.b16 %v346
      %v432 = vunpack.c.l.b16 %v347
      %v433 = vunpack.c.l.b16 %v348
      %v434 = vunpack.c.l.b16 %v349
      %v435 = vunpack.c.l.b16 %v350
      %v436 = vunpack.c.l.b16 %v351
      %v437 = vpack.c.b16 %v410, %v409
      %v438 = vpack.c.b16 %v412, %v411
      %v439 = vpack.c.b16 %v414, %v413
      %v440 = vpack.c.b16 %v416, %v415
      %v441 = vpack.c.b16 %v418, %v417
      %v442 = vpack.c.b16 %v420, %v419
      %v443 = vpack.c.b16 %v422, %v421
      %v444 = vpack.c.b16 %v424, %v423
      %v445 = vpack.c.b16 %v426, %v425
      %v446 = vpack.c.b16 %v428, %v427
      %v447 = vpack.c.b16 %v430, %v429
      %v448 = vpack.c.b16 %v432, %v431
      %v449 = vpack.c.b16 %v434, %v433
      %v450 = vpack.c.b16 %v436, %v435
      %vm451 = vcmask 31744
      %v453 = vsel %vm451, %v437, 0
      %v456 = vsel %vm451, %v438, 0
      %v459 = vsel %vm451, %v439, 0
      %v462 = vsel %vm451, %v440, 0
      %v465 = vsel %vm451, %v441, 0
      %v468 = vsel %vm451, %v442, 0
      %v471 = vsel %vm451, %v443, 0
      %v474 = vsel %vm451, %v444, 0
      %v477 = vsel %vm451, %v445, 0
      %v480 = vsel %vm451, %v446, 0
      %v483 = vsel %vm451, %v447, 0
      %v486 = vsel %vm451, %v448, 0
      %v489 = vsel %vm451, %v449, 0
      %v492 = vsel %vm451, %v450, 0
      %vm494 = vcmask 1041408
      %v496 = vsel %vm494, %v380, 0
      %498 = vmatprep.subr.bf16.mxu0 0
      %499 = vmatpush1.bf16.msra.mxu0 0
      %500 = vmatprep.subr.bf16.mxu0 0
      %501 = vmatpush1.bf16.msra.mxu0 0
      %502 = vmatprep.subr.bf16.mxu0 0
      %503 = vmatpush1.bf16.msra.mxu0 0
      %504 = vmatprep.subr.bf16.mxu0 0
      %505 = vmatpush1.bf16.msra.mxu0 0
      %506 = vmatprep.subr.bf16.mxu0 0
      %507 = vmatpush1.bf16.msra.mxu0 0
      %508 = vmatprep.subr.bf16.mxu0 0
      %509 = vmatpush1.bf16.msra.mxu0 0
      %510 = vmatprep.subr.bf16.mxu0 0
      %511 = vmatpush1.bf16.msra.mxu0 0
      %512 = vmatprep.subr.bf16.mxu0 0
      %513 = vmatpush1.bf16.msra.mxu0 %v496
      %514 = vmatprep.subr.bf16.mxu0 0
      %515 = vmatpush2.bf16.msra.mxu0 0
      %516 = vmatprep.subr.bf16.mxu0 0
      %517 = vmatpush2.bf16.msra.mxu0 0
      %518 = vmatprep.subr.bf16.mxu0 0
      %519 = vmatpush2.bf16.msra.mxu0 0
      %520 = vmatprep.subr.bf16.mxu0 0
      %521 = vmatpush2.bf16.msra.mxu0 0
      %522 = vmatprep.subr.bf16.mxu0 0
      %523 = vmatpush2.bf16.msra.mxu0 0
      %524 = vmatprep.subr.bf16.mxu0 0
      %525 = vmatpush2.bf16.msra.mxu0 0
      %526 = vmatprep.subr.bf16.mxu0 0
      %527 = vmatpush2.bf16.msra.mxu0 0
      %528 = vmatprep.subr.bf16.mxu0 0
      %529 = vmatpush2.bf16.msra.mxu0 0
      %530 = vmatprep.mubr.bf16.mxu0 0
      %531 = vmatmul.mubr.bf16.gmra.mxu0 %v453
      %v532 = vpop.f32.mrf.mxu0
      %v533 = vadd.f32 0.0, %v532
      %v534 = vpop.f32.mrf.mxu0
      %v535 = vpop.f32.mrf.mxu0
      %v536 = vadd.f32 0.0, %v535
      %v537 = vpop.f32.mrf.mxu0
      %538 = vmatprep.mubr.bf16.mxu0 0
      %539 = vmatmul.mubr.bf16.gmra.mxu0 %v456
      %v540 = vpop.f32.mrf.mxu0
      %v541 = vadd.f32 0.0, %v540
      %v542 = vpop.f32.mrf.mxu0
      %v543 = vpop.f32.mrf.mxu0
      %v544 = vadd.f32 0.0, %v543
      %v545 = vpop.f32.mrf.mxu0
      %546 = vmatprep.mubr.bf16.mxu0 0
      %547 = vmatmul.mubr.bf16.gmra.mxu0 %v459
      %v548 = vpop.f32.mrf.mxu0
      %v549 = vadd.f32 0.0, %v548
      %v550 = vpop.f32.mrf.mxu0
      %v551 = vpop.f32.mrf.mxu0
      %v552 = vadd.f32 0.0, %v551
      %v553 = vpop.f32.mrf.mxu0
      %554 = vmatprep.mubr.bf16.mxu0 0
      %555 = vmatmul.mubr.bf16.gmra.mxu0 %v462
      %v556 = vpop.f32.mrf.mxu0
      %v557 = vadd.f32 0.0, %v556
      %v558 = vpop.f32.mrf.mxu0
      %v559 = vpop.f32.mrf.mxu0
      %v560 = vadd.f32 0.0, %v559
      %v561 = vpop.f32.mrf.mxu0
      %562 = vmatprep.mubr.bf16.mxu0 0
      %563 = vmatmul.mubr.bf16.gmra.mxu0 %v465
      %v564 = vpop.f32.mrf.mxu0
      %v565 = vadd.f32 0.0, %v564
      %v566 = vpop.f32.mrf.mxu0
      %v567 = vpop.f32.mrf.mxu0
      %v568 = vadd.f32 0.0, %v567
      %v569 = vpop.f32.mrf.mxu0
      %570 = vmatprep.mubr.bf16.mxu0 0
      %571 = vmatmul.mubr.bf16.gmra.mxu0 %v468
      %v572 = vpop.f32.mrf.mxu0
      %v573 = vadd.f32 0.0, %v572
      %v574 = vpop.f32.mrf.mxu0
      %v575 = vpop.f32.mrf.mxu0
      %v576 = vadd.f32 0.0, %v575
      %v577 = vpop.f32.mrf.mxu0
      %578 = vmatprep.mubr.bf16.mxu0 0
      %579 = vmatmul.mubr.bf16.gmra.mxu0 %v471
      %v580 = vpop.f32.mrf.mxu0
      %v581 = vadd.f32 0.0, %v580
      %v582 = vpop.f32.mrf.mxu0
      %v583 = vpop.f32.mrf.mxu0
      %v584 = vadd.f32 0.0, %v583
      %v585 = vpop.f32.mrf.mxu0
      %586 = vmatprep.mubr.bf16.mxu0 0
      %587 = vmatmul.mubr.bf16.gmra.mxu0 %v474
      %v588 = vpop.f32.mrf.mxu0
      %v589 = vadd.f32 0.0, %v588
      %v590 = vpop.f32.mrf.mxu0
      %v591 = vpop.f32.mrf.mxu0
      %v592 = vadd.f32 0.0, %v591
      %v593 = vpop.f32.mrf.mxu0
      %594 = vmatprep.mubr.bf16.mxu0 0
      %595 = vmatmul.mubr.bf16.gmra.mxu0 %v477
      %v596 = vpop.f32.mrf.mxu0
      %v597 = vadd.f32 0.0, %v596
      %v598 = vpop.f32.mrf.mxu0
      %v599 = vpop.f32.mrf.mxu0
      %v600 = vadd.f32 0.0, %v599
      %v601 = vpop.f32.mrf.mxu0
      %602 = vmatprep.mubr.bf16.mxu0 0
      %603 = vmatmul.mubr.bf16.gmra.mxu0 %v480
      %v604 = vpop.f32.mrf.mxu0
      %v605 = vadd.f32 0.0, %v604
      %v606 = vpop.f32.mrf.mxu0
      %v607 = vpop.f32.mrf.mxu0
      %v608 = vadd.f32 0.0, %v607
      %v609 = vpop.f32.mrf.mxu0
      %610 = vmatprep.mubr.bf16.mxu0 0
      %611 = vmatmul.mubr.bf16.gmra.mxu0 %v483
      %v612 = vpop.f32.mrf.mxu0
      %v613 = vadd.f32 0.0, %v612
      %v614 = vpop.f32.mrf.mxu0
      %v615 = vpop.f32.mrf.mxu0
      %v616 = vadd.f32 0.0, %v615
      %v617 = vpop.f32.mrf.mxu0
      %618 = vmatprep.mubr.bf16.mxu0 0
      %619 = vmatmul.mubr.bf16.gmra.mxu0 %v486
      %v620 = vpop.f32.mrf.mxu0
      %v621 = vadd.f32 0.0, %v620
      %v622 = vpop.f32.mrf.mxu0
      %v623 = vpop.f32.mrf.mxu0
      %v624 = vadd.f32 0.0, %v623
      %v625 = vpop.f32.mrf.mxu0
      %626 = vmatprep.mubr.bf16.mxu0 0
      %627 = vmatmul.mubr.bf16.gmra.mxu0 %v489
      %v628 = vpop.f32.mrf.mxu0
      %v629 = vadd.f32 0.0, %v628
      %v630 = vpop.f32.mrf.mxu0
      %v631 = vpop.f32.mrf.mxu0
      %v632 = vadd.f32 0.0, %v631
      %v633 = vpop.f32.mrf.mxu0
      %634 = vmatprep.mubr.bf16.mxu0 0
      %635 = vmatmul.mubr.bf16.gmra.mxu0 %v492
      %v636 = vpop.f32.mrf.mxu0
      %v637 = vadd.f32 0.0, %v636
      %v638 = vpop.f32.mrf.mxu0
      %v639 = vpop.f32.mrf.mxu0
      %v640 = vadd.f32 0.0, %v639
      %v641 = vpop.f32.mrf.mxu0
      %642 = vdwg.mxu0
      %v643 = vadd.f32 %v322, %v533
      %v644 = vadd.f32 %v322, %v536
      %v645 = vadd.f32 %v322, %v541
      %v646 = vadd.f32 %v322, %v544
      %v647 = vadd.f32 %v322, %v549
      %v648 = vadd.f32 %v322, %v552
      %v649 = vadd.f32 %v322, %v557
      %v650 = vadd.f32 %v322, %v560
      %v651 = vadd.f32 %v322, %v565
      %v652 = vadd.f32 %v322, %v568
      %v653 = vadd.f32 %v322, %v573
      %v654 = vadd.f32 %v322, %v576
      %v655 = vadd.f32 %v322, %v581
      %v656 = vadd.f32 %v322, %v584
      %v657 = vadd.f32 %v322, %v589
      %v658 = vadd.f32 %v322, %v592
      %v659 = vadd.f32 %v322, %v597
      %v660 = vadd.f32 %v322, %v600
      %v661 = vadd.f32 %v322, %v605
      %v662 = vadd.f32 %v322, %v608
      %v663 = vadd.f32 %v322, %v613
      %v664 = vadd.f32 %v322, %v616
      %v665 = vadd.f32 %v322, %v621
      %v666 = vadd.f32 %v322, %v624
      %v667 = vadd.f32 %v322, %v629
      %v668 = vadd.f32 %v322, %v632
      %v669 = vadd.f32 %v322, %v637
      %v670 = vadd.f32 %v322, %v640
      %v671 = vld [vmem:[%s3] sm:$0x3]
      %v700 = vunpack.c.l.b16 %v352
      %v701 = vunpack.c.l.b16 %v353
      %v702 = vunpack.c.l.b16 %v354
      %v703 = vunpack.c.l.b16 %v355
      %v704 = vunpack.c.l.b16 %v356
      %v705 = vunpack.c.l.b16 %v357
      %v706 = vunpack.c.l.b16 %v358
      %v707 = vunpack.c.l.b16 %v359
      %v708 = vunpack.c.l.b16 %v360
      %v709 = vunpack.c.l.b16 %v361
      %v710 = vunpack.c.l.b16 %v362
      %v711 = vunpack.c.l.b16 %v363
      %v712 = vunpack.c.l.b16 %v364
      %v713 = vunpack.c.l.b16 %v365
      %v714 = vunpack.c.l.b16 %v366
      %v715 = vunpack.c.l.b16 %v367
      %v716 = vunpack.c.l.b16 %v368
      %v717 = vunpack.c.l.b16 %v369
      %v718 = vunpack.c.l.b16 %v370
      %v719 = vunpack.c.l.b16 %v371
      %v720 = vunpack.c.l.b16 %v372
      %v721 = vunpack.c.l.b16 %v373
      %v722 = vunpack.c.l.b16 %v374
      %v723 = vunpack.c.l.b16 %v375
      %v724 = vunpack.c.l.b16 %v376
      %v725 = vunpack.c.l.b16 %v377
      %v726 = vunpack.c.l.b16 %v378
      %v727 = vunpack.c.l.b16 %v379
      %v728 = vpack.c.b16 %v701, %v700
      %v729 = vpack.c.b16 %v703, %v702
      %v730 = vpack.c.b16 %v705, %v704
      %v731 = vpack.c.b16 %v707, %v706
      %v732 = vpack.c.b16 %v709, %v708
      %v733 = vpack.c.b16 %v711, %v710
      %v734 = vpack.c.b16 %v713, %v712
      %v735 = vpack.c.b16 %v715, %v714
      %v736 = vpack.c.b16 %v717, %v716
      %v737 = vpack.c.b16 %v719, %v718
      %v738 = vpack.c.b16 %v721, %v720
      %v739 = vpack.c.b16 %v723, %v722
      %v740 = vpack.c.b16 %v725, %v724
      %v741 = vpack.c.b16 %v727, %v726
      %v743 = vsel %vm451, %v728, 0
      %v746 = vsel %vm451, %v729, 0
      %v749 = vsel %vm451, %v730, 0
      %v752 = vsel %vm451, %v731, 0
      %v755 = vsel %vm451, %v732, 0
      %v758 = vsel %vm451, %v733, 0
      %v761 = vsel %vm451, %v734, 0
      %v764 = vsel %vm451, %v735, 0
      %v767 = vsel %vm451, %v736, 0
      %v770 = vsel %vm451, %v737, 0
      %v773 = vsel %vm451, %v738, 0
      %v776 = vsel %vm451, %v739, 0
      %v779 = vsel %vm451, %v740, 0
      %v782 = vsel %vm451, %v741, 0
      %v785 = vsel %vm494, %v671, 0
      %787 = vmatprep.subr.bf16.mxu0 0
      %788 = vmatpush1.bf16.msra.mxu0 0
      %789 = vmatprep.subr.bf16.mxu0 0
      %790 = vmatpush1.bf16.msra.mxu0 0
      %791 = vmatprep.subr.bf16.mxu0 0
      %792 = vmatpush1.bf16.msra.mxu0 0
      %793 = vmatprep.subr.bf16.mxu0 0
      %794 = vmatpush1.bf16.msra.mxu0 0
      %795 = vmatprep.subr.bf16.mxu0 0
      %796 = vmatpush1.bf16.msra.mxu0 0
      %797 = vmatprep.subr.bf16.mxu0 0
      %798 = vmatpush1.bf16.msra.mxu0 0
      %799 = vmatprep.subr.bf16.mxu0 0
      %800 = vmatpush1.bf16.msra.mxu0 0
      %801 = vmatprep.subr.bf16.mxu0 0
      %802 = vmatpush1.bf16.msra.mxu0 %v785
      %803 = vmatprep.subr.bf16.mxu0 0
      %804 = vmatpush2.bf16.msra.mxu0 0
      %805 = vmatprep.subr.bf16.mxu0 0
      %806 = vmatpush2.bf16.msra.mxu0 0
      %807 = vmatprep.subr.bf16.mxu0 0
      %808 = vmatpush2.bf16.msra.mxu0 0
      %809 = vmatprep.subr.bf16.mxu0 0
      %810 = vmatpush2.bf16.msra.mxu0 0
      %811 = vmatprep.subr.bf16.mxu0 0
      %812 = vmatpush2.bf16.msra.mxu0 0
      %813 = vmatprep.subr.bf16.mxu0 0
      %814 = vmatpush2.bf16.msra.mxu0 0
      %815 = vmatprep.subr.bf16.mxu0 0
      %816 = vmatpush2.bf16.msra.mxu0 0
      %817 = vmatprep.subr.bf16.mxu0 0
      %818 = vmatpush2.bf16.msra.mxu0 0
      %819 = vmatprep.mubr.bf16.mxu0 0
      %820 = vmatmul.mubr.bf16.gmra.mxu0 %v743
      %v821 = vpop.f32.mrf.mxu0
      %v822 = vadd.f32 0.0, %v821
      %v823 = vpop.f32.mrf.mxu0
      %v824 = vpop.f32.mrf.mxu0
      %v825 = vadd.f32 0.0, %v824
      %v826 = vpop.f32.mrf.mxu0
      %827 = vmatprep.mubr.bf16.mxu0 0
      %828 = vmatmul.mubr.bf16.gmra.mxu0 %v746
      %v829 = vpop.f32.mrf.mxu0
      %v830 = vadd.f32 0.0, %v829
      %v831 = vpop.f32.mrf.mxu0
      %v832 = vpop.f32.mrf.mxu0
      %v833 = vadd.f32 0.0, %v832
      %v834 = vpop.f32.mrf.mxu0
      %835 = vmatprep.mubr.bf16.mxu0 0
      %836 = vmatmul.mubr.bf16.gmra.mxu0 %v749
      %v837 = vpop.f32.mrf.mxu0
      %v838 = vadd.f32 0.0, %v837
      %v839 = vpop.f32.mrf.mxu0
      %v840 = vpop.f32.mrf.mxu0
      %v841 = vadd.f32 0.0, %v840
      %v842 = vpop.f32.mrf.mxu0
      %843 = vmatprep.mubr.bf16.mxu0 0
      %844 = vmatmul.mubr.bf16.gmra.mxu0 %v752
      %v845 = vpop.f32.mrf.mxu0
      %v846 = vadd.f32 0.0, %v845
      %v847 = vpop.f32.mrf.mxu0
      %v848 = vpop.f32.mrf.mxu0
      %v849 = vadd.f32 0.0, %v848
      %v850 = vpop.f32.mrf.mxu0
      %851 = vmatprep.mubr.bf16.mxu0 0
      %852 = vmatmul.mubr.bf16.gmra.mxu0 %v755
      %v853 = vpop.f32.mrf.mxu0
      %v854 = vadd.f32 0.0, %v853
      %v855 = vpop.f32.mrf.mxu0
      %v856 = vpop.f32.mrf.mxu0
      %v857 = vadd.f32 0.0, %v856
      %v858 = vpop.f32.mrf.mxu0
      %859 = vmatprep.mubr.bf16.mxu0 0
      %860 = vmatmul.mubr.bf16.gmra.mxu0 %v758
      %v861 = vpop.f32.mrf.mxu0
      %v862 = vadd.f32 0.0, %v861
      %v863 = vpop.f32.mrf.mxu0
      %v864 = vpop.f32.mrf.mxu0
      %v865 = vadd.f32 0.0, %v864
      %v866 = vpop.f32.mrf.mxu0
      %867 = vmatprep.mubr.bf16.mxu0 0
      %868 = vmatmul.mubr.bf16.gmra.mxu0 %v761
      %v869 = vpop.f32.mrf.mxu0
      %v870 = vadd.f32 0.0, %v869
      %v871 = vpop.f32.mrf.mxu0
      %v872 = vpop.f32.mrf.mxu0
      %v873 = vadd.f32 0.0, %v872
      %v874 = vpop.f32.mrf.mxu0
      %875 = vmatprep.mubr.bf16.mxu0 0
      %876 = vmatmul.mubr.bf16.gmra.mxu0 %v764
      %v877 = vpop.f32.mrf.mxu0
      %v878 = vadd.f32 0.0, %v877
      %v879 = vpop.f32.mrf.mxu0
      %v880 = vpop.f32.mrf.mxu0
      %v881 = vadd.f32 0.0, %v880
      %v882 = vpop.f32.mrf.mxu0
      %883 = vmatprep.mubr.bf16.mxu0 0
      %884 = vmatmul.mubr.bf16.gmra.mxu0 %v767
      %v885 = vpop.f32.mrf.mxu0
      %v886 = vadd.f32 0.0, %v885
      %v887 = vpop.f32.mrf.mxu0
      %v888 = vpop.f32.mrf.mxu0
      %v889 = vadd.f32 0.0, %v888
      %v890 = vpop.f32.mrf.mxu0
      %891 = vmatprep.mubr.bf16.mxu0 0
      %892 = vmatmul.mubr.bf16.gmra.mxu0 %v770
      %v893 = vpop.f32.mrf.mxu0
      %v894 = vadd.f32 0.0, %v893
      %v895 = vpop.f32.mrf.mxu0
      %v896 = vpop.f32.mrf.mxu0
      %v897 = vadd.f32 0.0, %v896
      %v898 = vpop.f32.mrf.mxu0
      %899 = vmatprep.mubr.bf16.mxu0 0
      %900 = vmatmul.mubr.bf16.gmra.mxu0 %v773
      %v901 = vpop.f32.mrf.mxu0
      %v902 = vadd.f32 0.0, %v901
      %v903 = vpop.f32.mrf.mxu0
      %v904 = vpop.f32.mrf.mxu0
      %v905 = vadd.f32 0.0, %v904
      %v906 = vpop.f32.mrf.mxu0
      %907 = vmatprep.mubr.bf16.mxu0 0
      %908 = vmatmul.mubr.bf16.gmra.mxu0 %v776
      %v909 = vpop.f32.mrf.mxu0
      %v910 = vadd.f32 0.0, %v909
      %v911 = vpop.f32.mrf.mxu0
      %v912 = vpop.f32.mrf.mxu0
      %v913 = vadd.f32 0.0, %v912
      %v914 = vpop.f32.mrf.mxu0
      %915 = vmatprep.mubr.bf16.mxu0 0
      %916 = vmatmul.mubr.bf16.gmra.mxu0 %v779
      %v917 = vpop.f32.mrf.mxu0
      %v918 = vadd.f32 0.0, %v917
      %v919 = vpop.f32.mrf.mxu0
      %v920 = vpop.f32.mrf.mxu0
      %v921 = vadd.f32 0.0, %v920
      %v922 = vpop.f32.mrf.mxu0
      %923 = vmatprep.mubr.bf16.mxu0 0
      %924 = vmatmul.mubr.bf16.gmra.mxu0 %v782
      %v925 = vpop.f32.mrf.mxu0
      %v926 = vadd.f32 0.0, %v925
      %v927 = vpop.f32.mrf.mxu0
      %v928 = vpop.f32.mrf.mxu0
      %v929 = vadd.f32 0.0, %v928
      %v930 = vpop.f32.mrf.mxu0
      %931 = vdwg.mxu0
      %v932 = vadd.f32 %v643, %v822
      %v933 = vadd.f32 %v644, %v825
      %v934 = vadd.f32 %v645, %v830
      %v935 = vadd.f32 %v646, %v833
      %v936 = vadd.f32 %v647, %v838
      %v937 = vadd.f32 %v648, %v841
      %v938 = vadd.f32 %v649, %v846
      %v939 = vadd.f32 %v650, %v849
      %v940 = vadd.f32 %v651, %v854
      %v941 = vadd.f32 %v652, %v857
      %v942 = vadd.f32 %v653, %v862
      %v943 = vadd.f32 %v654, %v865
      %v944 = vadd.f32 %v655, %v870
      %v945 = vadd.f32 %v656, %v873
      %v946 = vadd.f32 %v657, %v878
      %v947 = vadd.f32 %v658, %v881
      %v948 = vadd.f32 %v659, %v886
      %v949 = vadd.f32 %v660, %v889
      %v950 = vadd.f32 %v661, %v894
      %v951 = vadd.f32 %v662, %v897
      %v952 = vadd.f32 %v663, %v902
      %v953 = vadd.f32 %v664, %v905
      %v954 = vadd.f32 %v665, %v910
      %v955 = vadd.f32 %v666, %v913
      %v956 = vadd.f32 %v667, %v918
      %v957 = vadd.f32 %v668, %v921
      %v958 = vadd.f32 %v669, %v926
      %v959 = vadd.f32 %v670, %v929
      %s960 = scalar_lea.vmem %s2, 2
      %v961 = vld [vmem:[%s960] sm:$0x3]
      %vm962 = vsmask.f32 7424
      %v963 = vshrl.u32 %v437, 16
      %v965 = vshll.u32 %v437, 16
      %v967 = vrot.slane %v965, 1
      %v968 = vor.u32 %v963, %v967
      %v969 = vshll.u32 %v438, 16
      %v971 = vrot.slane %v969, 1
      %v972 = vsel %vm962, %v968, %v971
      %v973 = vshrl.u32 %v438, 16
      %v975 = vor.u32 %v973, %v971
      %v976 = vshll.u32 %v439, 16
      %v978 = vrot.slane %v976, 1
      %v979 = vsel %vm962, %v975, %v978
      %v980 = vshrl.u32 %v439, 16
      %v982 = vor.u32 %v980, %v978
      %v983 = vshll.u32 %v440, 16
      %v985 = vrot.slane %v983, 1
      %v986 = vsel %vm962, %v982, %v985
      %v987 = vshrl.u32 %v440, 16
      %v989 = vor.u32 %v987, %v985
      %v990 = vshll.u32 %v441, 16
      %v992 = vrot.slane %v990, 1
      %v993 = vsel %vm962, %v989, %v992
      %v994 = vshrl.u32 %v441, 16
      %v996 = vor.u32 %v994, %v992
      %v997 = vshll.u32 %v442, 16
      %v999 = vrot.slane %v997, 1
      %v1000 = vsel %vm962, %v996, %v999
      %v1001 = vshrl.u32 %v442, 16
      %v1003 = vor.u32 %v1001, %v999
      %v1004 = vshll.u32 %v443, 16
      %v1006 = vrot.slane %v1004, 1
      %v1007 = vsel %vm962, %v1003, %v1006
      %v1008 = vshrl.u32 %v443, 16
      %v1010 = vor.u32 %v1008, %v1006
      %v1011 = vshll.u32 %v444, 16
      %v1013 = vrot.slane %v1011, 1
      %v1014 = vsel %vm962, %v1010, %v1013
      %v1015 = vshrl.u32 %v444, 16
      %v1017 = vor.u32 %v1015, %v1013
      %v1018 = vshll.u32 %v445, 16
      %v1020 = vrot.slane %v1018, 1
      %v1021 = vsel %vm962, %v1017, %v1020
      %v1022 = vshrl.u32 %v445, 16
      %v1024 = vor.u32 %v1022, %v1020
      %v1025 = vshll.u32 %v446, 16
      %v1027 = vrot.slane %v1025, 1
      %v1028 = vsel %vm962, %v1024, %v1027
      %v1029 = vshrl.u32 %v446, 16
      %v1031 = vor.u32 %v1029, %v1027
      %v1032 = vshll.u32 %v447, 16
      %v1034 = vrot.slane %v1032, 1
      %v1035 = vsel %vm962, %v1031, %v1034
      %v1036 = vshrl.u32 %v447, 16
      %v1038 = vor.u32 %v1036, %v1034
      %v1039 = vshll.u32 %v448, 16
      %v1041 = vrot.slane %v1039, 1
      %v1042 = vsel %vm962, %v1038, %v1041
      %v1043 = vshrl.u32 %v448, 16
      %v1045 = vor.u32 %v1043, %v1041
      %v1046 = vshll.u32 %v449, 16
      %v1048 = vrot.slane %v1046, 1
      %v1049 = vsel %vm962, %v1045, %v1048
      %v1050 = vshrl.u32 %v449, 16
      %v1052 = vor.u32 %v1050, %v1048
      %v1053 = vshll.u32 %v450, 16
      %v1055 = vrot.slane %v1053, 1
      %v1056 = vsel %vm962, %v1052, %v1055
      %v1057 = vshrl.u32 %v450, 16
      %v1059 = vor.u32 %v1057, %v1055
      %v1061 = vsel %vm451, %v972, 0
      %v1064 = vsel %vm451, %v979, 0
      %v1067 = vsel %vm451, %v986, 0
      %v1070 = vsel %vm451, %v993, 0
      %v1073 = vsel %vm451, %v1000, 0
      %v1076 = vsel %vm451, %v1007, 0
      %v1079 = vsel %vm451, %v1014, 0
      %v1082 = vsel %vm451, %v1021, 0
      %v1085 = vsel %vm451, %v1028, 0
      %v1088 = vsel %vm451, %v1035, 0
      %v1091 = vsel %vm451, %v1042, 0
      %v1094 = vsel %vm451, %v1049, 0
      %v1097 = vsel %vm451, %v1056, 0
      %v1100 = vsel %vm451, %v1059, 0
      %v1103 = vsel %vm494, %v961, 0
      %1105 = vmatprep.subr.bf16.mxu0 0
      %1106 = vmatpush1.bf16.msra.mxu0 0
      %1107 = vmatprep.subr.bf16.mxu0 0
      %1108 = vmatpush1.bf16.msra.mxu0 0
      %1109 = vmatprep.subr.bf16.mxu0 0
      %1110 = vmatpush1.bf16.msra.mxu0 0
      %1111 = vmatprep.subr.bf16.mxu0 0
      %1112 = vmatpush1.bf16.msra.mxu0 0
      %1113 = vmatprep.subr.bf16.mxu0 0
      %1114 = vmatpush1.bf16.msra.mxu0 0
      %1115 = vmatprep.subr.bf16.mxu0 0
      %1116 = vmatpush1.bf16.msra.mxu0 0
      %1117 = vmatprep.subr.bf16.mxu0 0
      %1118 = vmatpush1.bf16.msra.mxu0 0
      %1119 = vmatprep.subr.bf16.mxu0 0
      %1120 = vmatpush1.bf16.msra.mxu0 %v1103
      %1121 = vmatprep.subr.bf16.mxu0 0
      %1122 = vmatpush2.bf16.msra.mxu0 0
      %1123 = vmatprep.subr.bf16.mxu0 0
      %1124 = vmatpush2.bf16.msra.mxu0 0
      %1125 = vmatprep.subr.bf16.mxu0 0
      %1126 = vmatpush2.bf16.msra.mxu0 0
      %1127 = vmatprep.subr.bf16.mxu0 0
      %1128 = vmatpush2.bf16.msra.mxu0 0
      %1129 = vmatprep.subr.bf16.mxu0 0
      %1130 = vmatpush2.bf16.msra.mxu0 0
      %1131 = vmatprep.subr.bf16.mxu0 0
      %1132 = vmatpush2.bf16.msra.mxu0 0
      %1133 = vmatprep.subr.bf16.mxu0 0
      %1134 = vmatpush2.bf16.msra.mxu0 0
      %1135 = vmatprep.subr.bf16.mxu0 0
      %1136 = vmatpush2.bf16.msra.mxu0 0
      %1137 = vmatprep.mubr.bf16.mxu0 0
      %1138 = vmatmul.mubr.bf16.gmra.mxu0 %v1061
      %v1139 = vpop.f32.mrf.mxu0
      %v1140 = vadd.f32 0.0, %v1139
      %v1141 = vpop.f32.mrf.mxu0
      %v1142 = vpop.f32.mrf.mxu0
      %v1143 = vadd.f32 0.0, %v1142
      %v1144 = vpop.f32.mrf.mxu0
      %1145 = vmatprep.mubr.bf16.mxu0 0
      %1146 = vmatmul.mubr.bf16.gmra.mxu0 %v1064
      %v1147 = vpop.f32.mrf.mxu0
      %v1148 = vadd.f32 0.0, %v1147
      %v1149 = vpop.f32.mrf.mxu0
      %v1150 = vpop.f32.mrf.mxu0
      %v1151 = vadd.f32 0.0, %v1150
      %v1152 = vpop.f32.mrf.mxu0
      %1153 = vmatprep.mubr.bf16.mxu0 0
      %1154 = vmatmul.mubr.bf16.gmra.mxu0 %v1067
      %v1155 = vpop.f32.mrf.mxu0
      %v1156 = vadd.f32 0.0, %v1155
      %v1157 = vpop.f32.mrf.mxu0
      %v1158 = vpop.f32.mrf.mxu0
      %v1159 = vadd.f32 0.0, %v1158
      %v1160 = vpop.f32.mrf.mxu0
      %1161 = vmatprep.mubr.bf16.mxu0 0
      %1162 = vmatmul.mubr.bf16.gmra.mxu0 %v1070
      %v1163 = vpop.f32.mrf.mxu0
      %v1164 = vadd.f32 0.0, %v1163
      %v1165 = vpop.f32.mrf.mxu0
      %v1166 = vpop.f32.mrf.mxu0
      %v1167 = vadd.f32 0.0, %v1166
      %v1168 = vpop.f32.mrf.mxu0
      %1169 = vmatprep.mubr.bf16.mxu0 0
      %1170 = vmatmul.mubr.bf16.gmra.mxu0 %v1073
      %v1171 = vpop.f32.mrf.mxu0
      %v1172 = vadd.f32 0.0, %v1171
      %v1173 = vpop.f32.mrf.mxu0
      %v1174 = vpop.f32.mrf.mxu0
      %v1175 = vadd.f32 0.0, %v1174
      %v1176 = vpop.f32.mrf.mxu0
      %1177 = vmatprep.mubr.bf16.mxu0 0
      %1178 = vmatmul.mubr.bf16.gmra.mxu0 %v1076
      %v1179 = vpop.f32.mrf.mxu0
      %v1180 = vadd.f32 0.0, %v1179
      %v1181 = vpop.f32.mrf.mxu0
      %v1182 = vpop.f32.mrf.mxu0
      %v1183 = vadd.f32 0.0, %v1182
      %v1184 = vpop.f32.mrf.mxu0
      %1185 = vmatprep.mubr.bf16.mxu0 0
      %1186 = vmatmul.mubr.bf16.gmra.mxu0 %v1079
      %v1187 = vpop.f32.mrf.mxu0
      %v1188 = vadd.f32 0.0, %v1187
      %v1189 = vpop.f32.mrf.mxu0
      %v1190 = vpop.f32.mrf.mxu0
      %v1191 = vadd.f32 0.0, %v1190
      %v1192 = vpop.f32.mrf.mxu0
      %1193 = vmatprep.mubr.bf16.mxu0 0
      %1194 = vmatmul.mubr.bf16.gmra.mxu0 %v1082
      %v1195 = vpop.f32.mrf.mxu0
      %v1196 = vadd.f32 0.0, %v1195
      %v1197 = vpop.f32.mrf.mxu0
      %v1198 = vpop.f32.mrf.mxu0
      %v1199 = vadd.f32 0.0, %v1198
      %v1200 = vpop.f32.mrf.mxu0
      %1201 = vmatprep.mubr.bf16.mxu0 0
      %1202 = vmatmul.mubr.bf16.gmra.mxu0 %v1085
      %v1203 = vpop.f32.mrf.mxu0
      %v1204 = vadd.f32 0.0, %v1203
      %v1205 = vpop.f32.mrf.mxu0
      %v1206 = vpop.f32.mrf.mxu0
      %v1207 = vadd.f32 0.0, %v1206
      %v1208 = vpop.f32.mrf.mxu0
      %1209 = vmatprep.mubr.bf16.mxu0 0
      %1210 = vmatmul.mubr.bf16.gmra.mxu0 %v1088
      %v1211 = vpop.f32.mrf.mxu0
      %v1212 = vadd.f32 0.0, %v1211
      %v1213 = vpop.f32.mrf.mxu0
      %v1214 = vpop.f32.mrf.mxu0
      %v1215 = vadd.f32 0.0, %v1214
      %v1216 = vpop.f32.mrf.mxu0
      %1217 = vmatprep.mubr.bf16.mxu0 0
      %1218 = vmatmul.mubr.bf16.gmra.mxu0 %v1091
      %v1219 = vpop.f32.mrf.mxu0
      %v1220 = vadd.f32 0.0, %v1219
      %v1221 = vpop.f32.mrf.mxu0
      %v1222 = vpop.f32.mrf.mxu0
      %v1223 = vadd.f32 0.0, %v1222
      %v1224 = vpop.f32.mrf.mxu0
      %1225 = vmatprep.mubr.bf16.mxu0 0
      %1226 = vmatmul.mubr.bf16.gmra.mxu0 %v1094
      %v1227 = vpop.f32.mrf.mxu0
      %v1228 = vadd.f32 0.0, %v1227
      %v1229 = vpop.f32.mrf.mxu0
      %v1230 = vpop.f32.mrf.mxu0
      %v1231 = vadd.f32 0.0, %v1230
      %v1232 = vpop.f32.mrf.mxu0
      %1233 = vmatprep.mubr.bf16.mxu0 0
      %1234 = vmatmul.mubr.bf16.gmra.mxu0 %v1097
      %v1235 = vpop.f32.mrf.mxu0
      %v1236 = vadd.f32 0.0, %v1235
      %v1237 = vpop.f32.mrf.mxu0
      %v1238 = vpop.f32.mrf.mxu0
      %v1239 = vadd.f32 0.0, %v1238
      %v1240 = vpop.f32.mrf.mxu0
      %1241 = vmatprep.mubr.bf16.mxu0 0
      %1242 = vmatmul.mubr.bf16.gmra.mxu0 %v1100
      %v1243 = vpop.f32.mrf.mxu0
      %v1244 = vadd.f32 0.0, %v1243
      %v1245 = vpop.f32.mrf.mxu0
      %v1246 = vpop.f32.mrf.mxu0
      %v1247 = vadd.f32 0.0, %v1246
      %v1248 = vpop.f32.mrf.mxu0
      %1249 = vdwg.mxu0
      %v1250 = vadd.f32 %v932, %v1140
      %v1251 = vadd.f32 %v933, %v1143
      %v1252 = vadd.f32 %v934, %v1148
      %v1253 = vadd.f32 %v935, %v1151
      %v1254 = vadd.f32 %v936, %v1156
      %v1255 = vadd.f32 %v937, %v1159
      %v1256 = vadd.f32 %v938, %v1164
      %v1257 = vadd.f32 %v939, %v1167
      %v1258 = vadd.f32 %v940, %v1172
      %v1259 = vadd.f32 %v941, %v1175
      %v1260 = vadd.f32 %v942, %v1180
      %v1261 = vadd.f32 %v943, %v1183
      %v1262 = vadd.f32 %v944, %v1188
      %v1263 = vadd.f32 %v945, %v1191
      %v1264 = vadd.f32 %v946, %v1196
      %v1265 = vadd.f32 %v947, %v1199
      %v1266 = vadd.f32 %v948, %v1204
      %v1267 = vadd.f32 %v949, %v1207
      %v1268 = vadd.f32 %v950, %v1212
      %v1269 = vadd.f32 %v951, %v1215
      %v1270 = vadd.f32 %v952, %v1220
      %v1271 = vadd.f32 %v953, %v1223
      %v1272 = vadd.f32 %v954, %v1228
      %v1273 = vadd.f32 %v955, %v1231
      %v1274 = vadd.f32 %v956, %v1236
      %v1275 = vadd.f32 %v957, %v1239
      %v1276 = vadd.f32 %v958, %v1244
      %v1277 = vadd.f32 %v959, %v1247
      %s1278 = scalar_lea.vmem %s3, 2
      %v1279 = vld [vmem:[%s1278] sm:$0x3]
      %v1280 = vshrl.u32 %v728, 16
      %v1282 = vshll.u32 %v728, 16
      %v1284 = vrot.slane %v1282, 1
      %v1285 = vor.u32 %v1280, %v1284
      %v1286 = vshll.u32 %v729, 16
      %v1288 = vrot.slane %v1286, 1
      %v1289 = vsel %vm962, %v1285, %v1288
      %v1290 = vshrl.u32 %v729, 16
      %v1292 = vor.u32 %v1290, %v1288
      %v1293 = vshll.u32 %v730, 16
      %v1295 = vrot.slane %v1293, 1
      %v1296 = vsel %vm962, %v1292, %v1295
      %v1297 = vshrl.u32 %v730, 16
      %v1299 = vor.u32 %v1297, %v1295
      %v1300 = vshll.u32 %v731, 16
      %v1302 = vrot.slane %v1300, 1
      %v1303 = vsel %vm962, %v1299, %v1302
      %v1304 = vshrl.u32 %v731, 16
      %v1306 = vor.u32 %v1304, %v1302
      %v1307 = vshll.u32 %v732, 16
      %v1309 = vrot.slane %v1307, 1
      %v1310 = vsel %vm962, %v1306, %v1309
      %v1311 = vshrl.u32 %v732, 16
      %v1313 = vor.u32 %v1311, %v1309
      %v1314 = vshll.u32 %v733, 16
      %v1316 = vrot.slane %v1314, 1
      %v1317 = vsel %vm962, %v1313, %v1316
      %v1318 = vshrl.u32 %v733, 16
      %v1320 = vor.u32 %v1318, %v1316
      %v1321 = vshll.u32 %v734, 16
      %v1323 = vrot.slane %v1321, 1
      %v1324 = vsel %vm962, %v1320, %v1323
      %v1325 = vshrl.u32 %v734, 16
      %v1327 = vor.u32 %v1325, %v1323
      %v1328 = vshll.u32 %v735, 16
      %v1330 = vrot.slane %v1328, 1
      %v1331 = vsel %vm962, %v1327, %v1330
      %v1332 = vshrl.u32 %v735, 16
      %v1334 = vor.u32 %v1332, %v1330
      %v1335 = vshll.u32 %v736, 16
      %v1337 = vrot.slane %v1335, 1
      %v1338 = vsel %vm962, %v1334, %v1337
      %v1339 = vshrl.u32 %v736, 16
      %v1341 = vor.u32 %v1339, %v1337
      %v1342 = vshll.u32 %v737, 16
      %v1344 = vrot.slane %v1342, 1
      %v1345 = vsel %vm962, %v1341, %v1344
      %v1346 = vshrl.u32 %v737, 16
      %v1348 = vor.u32 %v1346, %v1344
      %v1349 = vshll.u32 %v738, 16
      %v1351 = vrot.slane %v1349, 1
      %v1352 = vsel %vm962, %v1348, %v1351
      %v1353 = vshrl.u32 %v738, 16
      %v1355 = vor.u32 %v1353, %v1351
      %v1356 = vshll.u32 %v739, 16
      %v1358 = vrot.slane %v1356, 1
      %v1359 = vsel %vm962, %v1355, %v1358
      %v1360 = vshrl.u32 %v739, 16
      %v1362 = vor.u32 %v1360, %v1358
      %v1363 = vshll.u32 %v740, 16
      %v1365 = vrot.slane %v1363, 1
      %v1366 = vsel %vm962, %v1362, %v1365
      %v1367 = vshrl.u32 %v740, 16
      %v1369 = vor.u32 %v1367, %v1365
      %v1370 = vshll.u32 %v741, 16
      %v1372 = vrot.slane %v1370, 1
      %v1373 = vsel %vm962, %v1369, %v1372
      %v1374 = vshrl.u32 %v741, 16
      %v1376 = vor.u32 %v1374, %v1372
      %v1378 = vsel %vm451, %v1289, 0
      %v1381 = vsel %vm451, %v1296, 0
      %v1384 = vsel %vm451, %v1303, 0
      %v1387 = vsel %vm451, %v1310, 0
      %v1390 = vsel %vm451, %v1317, 0
      %v1393 = vsel %vm451, %v1324, 0
      %v1396 = vsel %vm451, %v1331, 0
      %v1399 = vsel %vm451, %v1338, 0
      %v1402 = vsel %vm451, %v1345, 0
      %v1405 = vsel %vm451, %v1352, 0
      %v1408 = vsel %vm451, %v1359, 0
      %v1411 = vsel %vm451, %v1366, 0
      %v1414 = vsel %vm451, %v1373, 0
      %v1417 = vsel %vm451, %v1376, 0
      %v1420 = vsel %vm494, %v1279, 0
      %1422 = vmatprep.subr.bf16.mxu0 0
      %1423 = vmatpush1.bf16.msra.mxu0 0
      %1424 = vmatprep.subr.bf16.mxu0 0
      %1425 = vmatpush1.bf16.msra.mxu0 0
      %1426 = vmatprep.subr.bf16.mxu0 0
      %1427 = vmatpush1.bf16.msra.mxu0 0
      %1428 = vmatprep.subr.bf16.mxu0 0
      %1429 = vmatpush1.bf16.msra.mxu0 0
      %1430 = vmatprep.subr.bf16.mxu0 0
      %1431 = vmatpush1.bf16.msra.mxu0 0
      %1432 = vmatprep.subr.bf16.mxu0 0
      %1433 = vmatpush1.bf16.msra.mxu0 0
      %1434 = vmatprep.subr.bf16.mxu0 0
      %1435 = vmatpush1.bf16.msra.mxu0 0
      %1436 = vmatprep.subr.bf16.mxu0 0
      %1437 = vmatpush1.bf16.msra.mxu0 %v1420
      %1438 = vmatprep.subr.bf16.mxu0 0
      %1439 = vmatpush2.bf16.msra.mxu0 0
      %1440 = vmatprep.subr.bf16.mxu0 0
      %1441 = vmatpush2.bf16.msra.mxu0 0
      %1442 = vmatprep.subr.bf16.mxu0 0
      %1443 = vmatpush2.bf16.msra.mxu0 0
      %1444 = vmatprep.subr.bf16.mxu0 0
      %1445 = vmatpush2.bf16.msra.mxu0 0
      %1446 = vmatprep.subr.bf16.mxu0 0
      %1447 = vmatpush2.bf16.msra.mxu0 0
      %1448 = vmatprep.subr.bf16.mxu0 0
      %1449 = vmatpush2.bf16.msra.mxu0 0
      %1450 = vmatprep.subr.bf16.mxu0 0
      %1451 = vmatpush2.bf16.msra.mxu0 0
      %1452 = vmatprep.subr.bf16.mxu0 0
      %1453 = vmatpush2.bf16.msra.mxu0 0
      %1454 = vmatprep.mubr.bf16.mxu0 0
      %1455 = vmatmul.mubr.bf16.gmra.mxu0 %v1378
      %v1456 = vpop.f32.mrf.mxu0
      %v1457 = vadd.f32 0.0, %v1456
      %v1458 = vpop.f32.mrf.mxu0
      %v1459 = vpop.f32.mrf.mxu0
      %v1460 = vadd.f32 0.0, %v1459
      %v1461 = vpop.f32.mrf.mxu0
      %1462 = vmatprep.mubr.bf16.mxu0 0
      %1463 = vmatmul.mubr.bf16.gmra.mxu0 %v1381
      %v1464 = vpop.f32.mrf.mxu0
      %v1465 = vadd.f32 0.0, %v1464
      %v1466 = vpop.f32.mrf.mxu0
      %v1467 = vpop.f32.mrf.mxu0
      %v1468 = vadd.f32 0.0, %v1467
      %v1469 = vpop.f32.mrf.mxu0
      %1470 = vmatprep.mubr.bf16.mxu0 0
      %1471 = vmatmul.mubr.bf16.gmra.mxu0 %v1384
      %v1472 = vpop.f32.mrf.mxu0
      %v1473 = vadd.f32 0.0, %v1472
      %v1474 = vpop.f32.mrf.mxu0
      %v1475 = vpop.f32.mrf.mxu0
      %v1476 = vadd.f32 0.0, %v1475
      %v1477 = vpop.f32.mrf.mxu0
      %1478 = vmatprep.mubr.bf16.mxu0 0
      %1479 = vmatmul.mubr.bf16.gmra.mxu0 %v1387
      %v1480 = vpop.f32.mrf.mxu0
      %v1481 = vadd.f32 0.0, %v1480
      %v1482 = vpop.f32.mrf.mxu0
      %v1483 = vpop.f32.mrf.mxu0
      %v1484 = vadd.f32 0.0, %v1483
      %v1485 = vpop.f32.mrf.mxu0
      %1486 = vmatprep.mubr.bf16.mxu0 0
      %1487 = vmatmul.mubr.bf16.gmra.mxu0 %v1390
      %v1488 = vpop.f32.mrf.mxu0
      %v1489 = vadd.f32 0.0, %v1488
      %v1490 = vpop.f32.mrf.mxu0
      %v1491 = vpop.f32.mrf.mxu0
      %v1492 = vadd.f32 0.0, %v1491
      %v1493 = vpop.f32.mrf.mxu0
      %1494 = vmatprep.mubr.bf16.mxu0 0
      %1495 = vmatmul.mubr.bf16.gmra.mxu0 %v1393
      %v1496 = vpop.f32.mrf.mxu0
      %v1497 = vadd.f32 0.0, %v1496
      %v1498 = vpop.f32.mrf.mxu0
      %v1499 = vpop.f32.mrf.mxu0
      %v1500 = vadd.f32 0.0, %v1499
      %v1501 = vpop.f32.mrf.mxu0
      %1502 = vmatprep.mubr.bf16.mxu0 0
      %1503 = vmatmul.mubr.bf16.gmra.mxu0 %v1396
      %v1504 = vpop.f32.mrf.mxu0
      %v1505 = vadd.f32 0.0, %v1504
      %v1506 = vpop.f32.mrf.mxu0
      %v1507 = vpop.f32.mrf.mxu0
      %v1508 = vadd.f32 0.0, %v1507
      %v1509 = vpop.f32.mrf.mxu0
      %1510 = vmatprep.mubr.bf16.mxu0 0
      %1511 = vmatmul.mubr.bf16.gmra.mxu0 %v1399
      %v1512 = vpop.f32.mrf.mxu0
      %v1513 = vadd.f32 0.0, %v1512
      %v1514 = vpop.f32.mrf.mxu0
      %v1515 = vpop.f32.mrf.mxu0
      %v1516 = vadd.f32 0.0, %v1515
      %v1517 = vpop.f32.mrf.mxu0
      %1518 = vmatprep.mubr.bf16.mxu0 0
      %1519 = vmatmul.mubr.bf16.gmra.mxu0 %v1402
      %v1520 = vpop.f32.mrf.mxu0
      %v1521 = vadd.f32 0.0, %v1520
      %v1522 = vpop.f32.mrf.mxu0
      %v1523 = vpop.f32.mrf.mxu0
      %v1524 = vadd.f32 0.0, %v1523
      %v1525 = vpop.f32.mrf.mxu0
      %1526 = vmatprep.mubr.bf16.mxu0 0
      %1527 = vmatmul.mubr.bf16.gmra.mxu0 %v1405
      %v1528 = vpop.f32.mrf.mxu0
      %v1529 = vadd.f32 0.0, %v1528
      %v1530 = vpop.f32.mrf.mxu0
      %v1531 = vpop.f32.mrf.mxu0
      %v1532 = vadd.f32 0.0, %v1531
      %v1533 = vpop.f32.mrf.mxu0
      %1534 = vmatprep.mubr.bf16.mxu0 0
      %1535 = vmatmul.mubr.bf16.gmra.mxu0 %v1408
      %v1536 = vpop.f32.mrf.mxu0
      %v1537 = vadd.f32 0.0, %v1536
      %v1538 = vpop.f32.mrf.mxu0
      %v1539 = vpop.f32.mrf.mxu0
      %v1540 = vadd.f32 0.0, %v1539
      %v1541 = vpop.f32.mrf.mxu0
      %1542 = vmatprep.mubr.bf16.mxu0 0
      %1543 = vmatmul.mubr.bf16.gmra.mxu0 %v1411
      %v1544 = vpop.f32.mrf.mxu0
      %v1545 = vadd.f32 0.0, %v1544
      %v1546 = vpop.f32.mrf.mxu0
      %v1547 = vpop.f32.mrf.mxu0
      %v1548 = vadd.f32 0.0, %v1547
      %v1549 = vpop.f32.mrf.mxu0
      %1550 = vmatprep.mubr.bf16.mxu0 0
      %1551 = vmatmul.mubr.bf16.gmra.mxu0 %v1414
      %v1552 = vpop.f32.mrf.mxu0
      %v1553 = vadd.f32 0.0, %v1552
      %v1554 = vpop.f32.mrf.mxu0
      %v1555 = vpop.f32.mrf.mxu0
      %v1556 = vadd.f32 0.0, %v1555
      %v1557 = vpop.f32.mrf.mxu0
      %1558 = vmatprep.mubr.bf16.mxu0 0
      %1559 = vmatmul.mubr.bf16.gmra.mxu0 %v1417
      %v1560 = vpop.f32.mrf.mxu0
      %v1561 = vadd.f32 0.0, %v1560
      %v1562 = vpop.f32.mrf.mxu0
      %v1563 = vpop.f32.mrf.mxu0
      %v1564 = vadd.f32 0.0, %v1563
      %v1565 = vpop.f32.mrf.mxu0
      %1566 = vdwg.mxu0
      %v1567 = vadd.f32 %v1250, %v1457
      %v1568 = vadd.f32 %v1251, %v1460
      %v1569 = vadd.f32 %v1252, %v1465
      %v1570 = vadd.f32 %v1253, %v1468
      %v1571 = vadd.f32 %v1254, %v1473
      %v1572 = vadd.f32 %v1255, %v1476
      %v1573 = vadd.f32 %v1256, %v1481
      %v1574 = vadd.f32 %v1257, %v1484
      %v1575 = vadd.f32 %v1258, %v1489
      %v1576 = vadd.f32 %v1259, %v1492
      %v1577 = vadd.f32 %v1260, %v1497
      %v1578 = vadd.f32 %v1261, %v1500
      %v1579 = vadd.f32 %v1262, %v1505
      %v1580 = vadd.f32 %v1263, %v1508
      %v1581 = vadd.f32 %v1264, %v1513
      %v1582 = vadd.f32 %v1265, %v1516
      %v1583 = vadd.f32 %v1266, %v1521
      %v1584 = vadd.f32 %v1267, %v1524
      %v1585 = vadd.f32 %v1268, %v1529
      %v1586 = vadd.f32 %v1269, %v1532
      %v1587 = vadd.f32 %v1270, %v1537
      %v1588 = vadd.f32 %v1271, %v1540
      %v1589 = vadd.f32 %v1272, %v1545
      %v1590 = vadd.f32 %v1273, %v1548
      %v1591 = vadd.f32 %v1274, %v1553
      %v1592 = vadd.f32 %v1275, %v1556
      %v1593 = vadd.f32 %v1276, %v1561
      %v1594 = vadd.f32 %v1277, %v1564
      %s1595 = scalar_lea.vmem %s2, 4
      %v1596 = vld [vmem:[%s1595] sm:$0x3]
      %vm1597 = vcmask 1046528
      %v1598 = vrot.slane %v437, 1
      %v1599 = vrot.slane %v438, 1
      %v1600 = vsel %vm1597, %v1598, %v1599
      %v1601 = vrot.slane %v439, 1
      %v1602 = vsel %vm1597, %v1599, %v1601
      %v1603 = vrot.slane %v440, 1
      %v1604 = vsel %vm1597, %v1601, %v1603
      %v1605 = vrot.slane %v441, 1
      %v1606 = vsel %vm1597, %v1603, %v1605
      %v1607 = vrot.slane %v442, 1
      %v1608 = vsel %vm1597, %v1605, %v1607
      %v1609 = vrot.slane %v443, 1
      %v1610 = vsel %vm1597, %v1607, %v1609
      %v1611 = vrot.slane %v444, 1
      %v1612 = vsel %vm1597, %v1609, %v1611
      %v1613 = vrot.slane %v445, 1
      %v1614 = vsel %vm1597, %v1611, %v1613
      %v1615 = vrot.slane %v446, 1
      %v1616 = vsel %vm1597, %v1613, %v1615
      %v1617 = vrot.slane %v447, 1
      %v1618 = vsel %vm1597, %v1615, %v1617
      %v1619 = vrot.slane %v448, 1
      %v1620 = vsel %vm1597, %v1617, %v1619
      %v1621 = vrot.slane %v449, 1
      %v1622 = vsel %vm1597, %v1619, %v1621
      %v1623 = vrot.slane %v450, 1
      %v1624 = vsel %vm1597, %v1621, %v1623
      %v1626 = vsel %vm451, %v1600, 0
      %v1629 = vsel %vm451, %v1602, 0
      %v1632 = vsel %vm451, %v1604, 0
      %v1635 = vsel %vm451, %v1606, 0
      %v1638 = vsel %vm451, %v1608, 0
      %v1641 = vsel %vm451, %v1610, 0
      %v1644 = vsel %vm451, %v1612, 0
      %v1647 = vsel %vm451, %v1614, 0
      %v1650 = vsel %vm451, %v1616, 0
      %v1653 = vsel %vm451, %v1618, 0
      %v1656 = vsel %vm451, %v1620, 0
      %v1659 = vsel %vm451, %v1622, 0
      %v1662 = vsel %vm451, %v1624, 0
      %v1665 = vsel %vm451, %v1623, 0
      %v1668 = vsel %vm494, %v1596, 0
      %1670 = vmatprep.subr.bf16.mxu0 0
      %1671 = vmatpush1.bf16.msra.mxu0 0
      %1672 = vmatprep.subr.bf16.mxu0 0
      %1673 = vmatpush1.bf16.msra.mxu0 0
      %1674 = vmatprep.subr.bf16.mxu0 0
      %1675 = vmatpush1.bf16.msra.mxu0 0
      %1676 = vmatprep.subr.bf16.mxu0 0
      %1677 = vmatpush1.bf16.msra.mxu0 0
      %1678 = vmatprep.subr.bf16.mxu0 0
      %1679 = vmatpush1.bf16.msra.mxu0 0
      %1680 = vmatprep.subr.bf16.mxu0 0
      %1681 = vmatpush1.bf16.msra.mxu0 0
      %1682 = vmatprep.subr.bf16.mxu0 0
      %1683 = vmatpush1.bf16.msra.mxu0 0
      %1684 = vmatprep.subr.bf16.mxu0 0
      %1685 = vmatpush1.bf16.msra.mxu0 %v1668
      %1686 = vmatprep.subr.bf16.mxu0 0
      %1687 = vmatpush2.bf16.msra.mxu0 0
      %1688 = vmatprep.subr.bf16.mxu0 0
      %1689 = vmatpush2.bf16.msra.mxu0 0
      %1690 = vmatprep.subr.bf16.mxu0 0
      %1691 = vmatpush2.bf16.msra.mxu0 0
      %1692 = vmatprep.subr.bf16.mxu0 0
      %1693 = vmatpush2.bf16.msra.mxu0 0
      %1694 = vmatprep.subr.bf16.mxu0 0
      %1695 = vmatpush2.bf16.msra.mxu0 0
      %1696 = vmatprep.subr.bf16.mxu0 0
      %1697 = vmatpush2.bf16.msra.mxu0 0
      %1698 = vmatprep.subr.bf16.mxu0 0
      %1699 = vmatpush2.bf16.msra.mxu0 0
      %1700 = vmatprep.subr.bf16.mxu0 0
      %1701 = vmatpush2.bf16.msra.mxu0 0
      %1702 = vmatprep.mubr.bf16.mxu0 0
      %1703 = vmatmul.mubr.bf16.gmra.mxu0 %v1626
      %v1704 = vpop.f32.mrf.mxu0
      %v1705 = vadd.f32 0.0, %v1704
      %v1706 = vpop.f32.mrf.mxu0
      %v1707 = vpop.f32.mrf.mxu0
      %v1708 = vadd.f32 0.0, %v1707
      %v1709 = vpop.f32.mrf.mxu0
      %1710 = vmatprep.mubr.bf16.mxu0 0
      %1711 = vmatmul.mubr.bf16.gmra.mxu0 %v1629
      %v1712 = vpop.f32.mrf.mxu0
      %v1713 = vadd.f32 0.0, %v1712
      %v1714 = vpop.f32.mrf.mxu0
      %v1715 = vpop.f32.mrf.mxu0
      %v1716 = vadd.f32 0.0, %v1715
      %v1717 = vpop.f32.mrf.mxu0
      %1718 = vmatprep.mubr.bf16.mxu0 0
      %1719 = vmatmul.mubr.bf16.gmra.mxu0 %v1632
      %v1720 = vpop.f32.mrf.mxu0
      %v1721 = vadd.f32 0.0, %v1720
      %v1722 = vpop.f32.mrf.mxu0
      %v1723 = vpop.f32.mrf.mxu0
      %v1724 = vadd.f32 0.0, %v1723
      %v1725 = vpop.f32.mrf.mxu0
      %1726 = vmatprep.mubr.bf16.mxu0 0
      %1727 = vmatmul.mubr.bf16.gmra.mxu0 %v1635
      %v1728 = vpop.f32.mrf.mxu0
      %v1729 = vadd.f32 0.0, %v1728
      %v1730 = vpop.f32.mrf.mxu0
      %v1731 = vpop.f32.mrf.mxu0
      %v1732 = vadd.f32 0.0, %v1731
      %v1733 = vpop.f32.mrf.mxu0
      %1734 = vmatprep.mubr.bf16.mxu0 0
      %1735 = vmatmul.mubr.bf16.gmra.mxu0 %v1638
      %v1736 = vpop.f32.mrf.mxu0
      %v1737 = vadd.f32 0.0, %v1736
      %v1738 = vpop.f32.mrf.mxu0
      %v1739 = vpop.f32.mrf.mxu0
      %v1740 = vadd.f32 0.0, %v1739
      %v1741 = vpop.f32.mrf.mxu0
      %1742 = vmatprep.mubr.bf16.mxu0 0
      %1743 = vmatmul.mubr.bf16.gmra.mxu0 %v1641
      %v1744 = vpop.f32.mrf.mxu0
      %v1745 = vadd.f32 0.0, %v1744
      %v1746 = vpop.f32.mrf.mxu0
      %v1747 = vpop.f32.mrf.mxu0
      %v1748 = vadd.f32 0.0, %v1747
      %v1749 = vpop.f32.mrf.mxu0
      %1750 = vmatprep.mubr.bf16.mxu0 0
      %1751 = vmatmul.mubr.bf16.gmra.mxu0 %v1644
      %v1752 = vpop.f32.mrf.mxu0
      %v1753 = vadd.f32 0.0, %v1752
      %v1754 = vpop.f32.mrf.mxu0
      %v1755 = vpop.f32.mrf.mxu0
      %v1756 = vadd.f32 0.0, %v1755
      %v1757 = vpop.f32.mrf.mxu0
      %1758 = vmatprep.mubr.bf16.mxu0 0
      %1759 = vmatmul.mubr.bf16.gmra.mxu0 %v1647
      %v1760 = vpop.f32.mrf.mxu0
      %v1761 = vadd.f32 0.0, %v1760
      %v1762 = vpop.f32.mrf.mxu0
      %v1763 = vpop.f32.mrf.mxu0
      %v1764 = vadd.f32 0.0, %v1763
      %v1765 = vpop.f32.mrf.mxu0
      %1766 = vmatprep.mubr.bf16.mxu0 0
      %1767 = vmatmul.mubr.bf16.gmra.mxu0 %v1650
      %v1768 = vpop.f32.mrf.mxu0
      %v1769 = vadd.f32 0.0, %v1768
      %v1770 = vpop.f32.mrf.mxu0
      %v1771 = vpop.f32.mrf.mxu0
      %v1772 = vadd.f32 0.0, %v1771
      %v1773 = vpop.f32.mrf.mxu0
      %1774 = vmatprep.mubr.bf16.mxu0 0
      %1775 = vmatmul.mubr.bf16.gmra.mxu0 %v1653
      %v1776 = vpop.f32.mrf.mxu0
      %v1777 = vadd.f32 0.0, %v1776
      %v1778 = vpop.f32.mrf.mxu0
      %v1779 = vpop.f32.mrf.mxu0
      %v1780 = vadd.f32 0.0, %v1779
      %v1781 = vpop.f32.mrf.mxu0
      %1782 = vmatprep.mubr.bf16.mxu0 0
      %1783 = vmatmul.mubr.bf16.gmra.mxu0 %v1656
      %v1784 = vpop.f32.mrf.mxu0
      %v1785 = vadd.f32 0.0, %v1784
      %v1786 = vpop.f32.mrf.mxu0
      %v1787 = vpop.f32.mrf.mxu0
      %v1788 = vadd.f32 0.0, %v1787
      %v1789 = vpop.f32.mrf.mxu0
      %1790 = vmatprep.mubr.bf16.mxu0 0
      %1791 = vmatmul.mubr.bf16.gmra.mxu0 %v1659
      %v1792 = vpop.f32.mrf.mxu0
      %v1793 = vadd.f32 0.0, %v1792
      %v1794 = vpop.f32.mrf.mxu0
      %v1795 = vpop.f32.mrf.mxu0
      %v1796 = vadd.f32 0.0, %v1795
      %v1797 = vpop.f32.mrf.mxu0
      %1798 = vmatprep.mubr.bf16.mxu0 0
      %1799 = vmatmul.mubr.bf16.gmra.mxu0 %v1662
      %v1800 = vpop.f32.mrf.mxu0
      %v1801 = vadd.f32 0.0, %v1800
      %v1802 = vpop.f32.mrf.mxu0
      %v1803 = vpop.f32.mrf.mxu0
      %v1804 = vadd.f32 0.0, %v1803
      %v1805 = vpop.f32.mrf.mxu0
      %1806 = vmatprep.mubr.bf16.mxu0 0
      %1807 = vmatmul.mubr.bf16.gmra.mxu0 %v1665
      %v1808 = vpop.f32.mrf.mxu0
      %v1809 = vadd.f32 0.0, %v1808
      %v1810 = vpop.f32.mrf.mxu0
      %v1811 = vpop.f32.mrf.mxu0
      %v1812 = vadd.f32 0.0, %v1811
      %v1813 = vpop.f32.mrf.mxu0
      %1814 = vdwg.mxu0
      %v1815 = vadd.f32 %v1567, %v1705
      %v1816 = vadd.f32 %v1568, %v1708
      %v1817 = vadd.f32 %v1569, %v1713
      %v1818 = vadd.f32 %v1570, %v1716
      %v1819 = vadd.f32 %v1571, %v1721
      %v1820 = vadd.f32 %v1572, %v1724
      %v1821 = vadd.f32 %v1573, %v1729
      %v1822 = vadd.f32 %v1574, %v1732
      %v1823 = vadd.f32 %v1575, %v1737
      %v1824 = vadd.f32 %v1576, %v1740
      %v1825 = vadd.f32 %v1577, %v1745
      %v1826 = vadd.f32 %v1578, %v1748
      %v1827 = vadd.f32 %v1579, %v1753
      %v1828 = vadd.f32 %v1580, %v1756
      %v1829 = vadd.f32 %v1581, %v1761
      %v1830 = vadd.f32 %v1582, %v1764
      %v1831 = vadd.f32 %v1583, %v1769
      %v1832 = vadd.f32 %v1584, %v1772
      %v1833 = vadd.f32 %v1585, %v1777
      %v1834 = vadd.f32 %v1586, %v1780
      %v1835 = vadd.f32 %v1587, %v1785
      %v1836 = vadd.f32 %v1588, %v1788
      %v1837 = vadd.f32 %v1589, %v1793
      %v1838 = vadd.f32 %v1590, %v1796
      %v1839 = vadd.f32 %v1591, %v1801
      %v1840 = vadd.f32 %v1592, %v1804
      %v1841 = vadd.f32 %v1593, %v1809
      %v1842 = vadd.f32 %v1594, %v1812
      %s1843 = scalar_lea.vmem %s3, 4
      %v1844 = vld [vmem:[%s1843] sm:$0x3]
      %v1845 = vrot.slane %v728, 1
      %v1846 = vrot.slane %v729, 1
      %v1847 = vsel %vm1597, %v1845, %v1846
      %v1848 = vrot.slane %v730, 1
      %v1849 = vsel %vm1597, %v1846, %v1848
      %v1850 = vrot.slane %v731, 1
      %v1851 = vsel %vm1597, %v1848, %v1850
      %v1852 = vrot.slane %v732, 1
      %v1853 = vsel %vm1597, %v1850, %v1852
      %v1854 = vrot.slane %v733, 1
      %v1855 = vsel %vm1597, %v1852, %v1854
      %v1856 = vrot.slane %v734, 1
      %v1857 = vsel %vm1597, %v1854, %v1856
      %v1858 = vrot.slane %v735, 1
      %v1859 = vsel %vm1597, %v1856, %v1858
      %v1860 = vrot.slane %v736, 1
      %v1861 = vsel %vm1597, %v1858, %v1860
      %v1862 = vrot.slane %v737, 1
      %v1863 = vsel %vm1597, %v1860, %v1862
      %v1864 = vrot.slane %v738, 1
      %v1865 = vsel %vm1597, %v1862, %v1864
      %v1866 = vrot.slane %v739, 1
      %v1867 = vsel %vm1597, %v1864, %v1866
      %v1868 = vrot.slane %v740, 1
      %v1869 = vsel %vm1597, %v1866, %v1868
      %v1870 = vrot.slane %v741, 1
      %v1871 = vsel %vm1597, %v1868, %v1870
      %v1873 = vsel %vm451, %v1847, 0
      %v1876 = vsel %vm451, %v1849, 0
      %v1879 = vsel %vm451, %v1851, 0
      %v1882 = vsel %vm451, %v1853, 0
      %v1885 = vsel %vm451, %v1855, 0
      %v1888 = vsel %vm451, %v1857, 0
      %v1891 = vsel %vm451, %v1859, 0
      %v1894 = vsel %vm451, %v1861, 0
      %v1897 = vsel %vm451, %v1863, 0
      %v1900 = vsel %vm451, %v1865, 0
      %v1903 = vsel %vm451, %v1867, 0
      %v1906 = vsel %vm451, %v1869, 0
      %v1909 = vsel %vm451, %v1871, 0
      %v1912 = vsel %vm451, %v1870, 0
      %v1915 = vsel %vm494, %v1844, 0
      %1917 = vmatprep.subr.bf16.mxu0 0
      %1918 = vmatpush1.bf16.msra.mxu0 0
      %1919 = vmatprep.subr.bf16.mxu0 0
      %1920 = vmatpush1.bf16.msra.mxu0 0
      %1921 = vmatprep.subr.bf16.mxu0 0
      %1922 = vmatpush1.bf16.msra.mxu0 0
      %1923 = vmatprep.subr.bf16.mxu0 0
      %1924 = vmatpush1.bf16.msra.mxu0 0
      %1925 = vmatprep.subr.bf16.mxu0 0
      %1926 = vmatpush1.bf16.msra.mxu0 0
      %1927 = vmatprep.subr.bf16.mxu0 0
      %1928 = vmatpush1.bf16.msra.mxu0 0
      %1929 = vmatprep.subr.bf16.mxu0 0
      %1930 = vmatpush1.bf16.msra.mxu0 0
      %1931 = vmatprep.subr.bf16.mxu0 0
      %1932 = vmatpush1.bf16.msra.mxu0 %v1915
      %1933 = vmatprep.subr.bf16.mxu0 0
      %1934 = vmatpush2.bf16.msra.mxu0 0
      %1935 = vmatprep.subr.bf16.mxu0 0
      %1936 = vmatpush2.bf16.msra.mxu0 0
      %1937 = vmatprep.subr.bf16.mxu0 0
      %1938 = vmatpush2.bf16.msra.mxu0 0
      %1939 = vmatprep.subr.bf16.mxu0 0
      %1940 = vmatpush2.bf16.msra.mxu0 0
      %1941 = vmatprep.subr.bf16.mxu0 0
      %1942 = vmatpush2.bf16.msra.mxu0 0
      %1943 = vmatprep.subr.bf16.mxu0 0
      %1944 = vmatpush2.bf16.msra.mxu0 0
      %1945 = vmatprep.subr.bf16.mxu0 0
      %1946 = vmatpush2.bf16.msra.mxu0 0
      %1947 = vmatprep.subr.bf16.mxu0 0
      %1948 = vmatpush2.bf16.msra.mxu0 0
      %1949 = vmatprep.mubr.bf16.mxu0 0
      %1950 = vmatmul.mubr.bf16.gmra.mxu0 %v1873
      %v1951 = vpop.f32.mrf.mxu0
      %v1952 = vadd.f32 0.0, %v1951
      %v1953 = vpop.f32.mrf.mxu0
      %v1954 = vpop.f32.mrf.mxu0
      %v1955 = vadd.f32 0.0, %v1954
      %v1956 = vpop.f32.mrf.mxu0
      %1957 = vmatprep.mubr.bf16.mxu0 0
      %1958 = vmatmul.mubr.bf16.gmra.mxu0 %v1876
      %v1959 = vpop.f32.mrf.mxu0
      %v1960 = vadd.f32 0.0, %v1959
      %v1961 = vpop.f32.mrf.mxu0
      %v1962 = vpop.f32.mrf.mxu0
      %v1963 = vadd.f32 0.0, %v1962
      %v1964 = vpop.f32.mrf.mxu0
      %1965 = vmatprep.mubr.bf16.mxu0 0
      %1966 = vmatmul.mubr.bf16.gmra.mxu0 %v1879
      %v1967 = vpop.f32.mrf.mxu0
      %v1968 = vadd.f32 0.0, %v1967
      %v1969 = vpop.f32.mrf.mxu0
      %v1970 = vpop.f32.mrf.mxu0
      %v1971 = vadd.f32 0.0, %v1970
      %v1972 = vpop.f32.mrf.mxu0
      %1973 = vmatprep.mubr.bf16.mxu0 0
      %1974 = vmatmul.mubr.bf16.gmra.mxu0 %v1882
      %v1975 = vpop.f32.mrf.mxu0
      %v1976 = vadd.f32 0.0, %v1975
      %v1977 = vpop.f32.mrf.mxu0
      %v1978 = vpop.f32.mrf.mxu0
      %v1979 = vadd.f32 0.0, %v1978
      %v1980 = vpop.f32.mrf.mxu0
      %1981 = vmatprep.mubr.bf16.mxu0 0
      %1982 = vmatmul.mubr.bf16.gmra.mxu0 %v1885
      %v1983 = vpop.f32.mrf.mxu0
      %v1984 = vadd.f32 0.0, %v1983
      %v1985 = vpop.f32.mrf.mxu0
      %v1986 = vpop.f32.mrf.mxu0
      %v1987 = vadd.f32 0.0, %v1986
      %v1988 = vpop.f32.mrf.mxu0
      %1989 = vmatprep.mubr.bf16.mxu0 0
      %1990 = vmatmul.mubr.bf16.gmra.mxu0 %v1888
      %v1991 = vpop.f32.mrf.mxu0
      %v1992 = vadd.f32 0.0, %v1991
      %v1993 = vpop.f32.mrf.mxu0
      %v1994 = vpop.f32.mrf.mxu0
      %v1995 = vadd.f32 0.0, %v1994
      %v1996 = vpop.f32.mrf.mxu0
      %1997 = vmatprep.mubr.bf16.mxu0 0
      %1998 = vmatmul.mubr.bf16.gmra.mxu0 %v1891
      %v1999 = vpop.f32.mrf.mxu0
      %v2000 = vadd.f32 0.0, %v1999
      %v2001 = vpop.f32.mrf.mxu0
      %v2002 = vpop.f32.mrf.mxu0
      %v2003 = vadd.f32 0.0, %v2002
      %v2004 = vpop.f32.mrf.mxu0
      %2005 = vmatprep.mubr.bf16.mxu0 0
      %2006 = vmatmul.mubr.bf16.gmra.mxu0 %v1894
      %v2007 = vpop.f32.mrf.mxu0
      %v2008 = vadd.f32 0.0, %v2007
      %v2009 = vpop.f32.mrf.mxu0
      %v2010 = vpop.f32.mrf.mxu0
      %v2011 = vadd.f32 0.0, %v2010
      %v2012 = vpop.f32.mrf.mxu0
      %2013 = vmatprep.mubr.bf16.mxu0 0
      %2014 = vmatmul.mubr.bf16.gmra.mxu0 %v1897
      %v2015 = vpop.f32.mrf.mxu0
      %v2016 = vadd.f32 0.0, %v2015
      %v2017 = vpop.f32.mrf.mxu0
      %v2018 = vpop.f32.mrf.mxu0
      %v2019 = vadd.f32 0.0, %v2018
      %v2020 = vpop.f32.mrf.mxu0
      %2021 = vmatprep.mubr.bf16.mxu0 0
      %2022 = vmatmul.mubr.bf16.gmra.mxu0 %v1900
      %v2023 = vpop.f32.mrf.mxu0
      %v2024 = vadd.f32 0.0, %v2023
      %v2025 = vpop.f32.mrf.mxu0
      %v2026 = vpop.f32.mrf.mxu0
      %v2027 = vadd.f32 0.0, %v2026
      %v2028 = vpop.f32.mrf.mxu0
      %2029 = vmatprep.mubr.bf16.mxu0 0
      %2030 = vmatmul.mubr.bf16.gmra.mxu0 %v1903
      %v2031 = vpop.f32.mrf.mxu0
      %v2032 = vadd.f32 0.0, %v2031
      %v2033 = vpop.f32.mrf.mxu0
      %v2034 = vpop.f32.mrf.mxu0
      %v2035 = vadd.f32 0.0, %v2034
      %v2036 = vpop.f32.mrf.mxu0
      %2037 = vmatprep.mubr.bf16.mxu0 0
      %2038 = vmatmul.mubr.bf16.gmra.mxu0 %v1906
      %v2039 = vpop.f32.mrf.mxu0
      %v2040 = vadd.f32 0.0, %v2039
      %v2041 = vpop.f32.mrf.mxu0
      %v2042 = vpop.f32.mrf.mxu0
      %v2043 = vadd.f32 0.0, %v2042
      %v2044 = vpop.f32.mrf.mxu0
      %2045 = vmatprep.mubr.bf16.mxu0 0
      %2046 = vmatmul.mubr.bf16.gmra.mxu0 %v1909
      %v2047 = vpop.f32.mrf.mxu0
      %v2048 = vadd.f32 0.0, %v2047
      %v2049 = vpop.f32.mrf.mxu0
      %v2050 = vpop.f32.mrf.mxu0
      %v2051 = vadd.f32 0.0, %v2050
      %v2052 = vpop.f32.mrf.mxu0
      %2053 = vmatprep.mubr.bf16.mxu0 0
      %2054 = vmatmul.mubr.bf16.gmra.mxu0 %v1912
      %v2055 = vpop.f32.mrf.mxu0
      %v2056 = vadd.f32 0.0, %v2055
      %v2057 = vpop.f32.mrf.mxu0
      %v2058 = vpop.f32.mrf.mxu0
      %v2059 = vadd.f32 0.0, %v2058
      %v2060 = vpop.f32.mrf.mxu0
      %2061 = vdwg.mxu0
      %v2062 = vadd.f32 %v1815, %v1952
      %v2063 = vadd.f32 %v1816, %v1955
      %v2064 = vadd.f32 %v1817, %v1960
      %v2065 = vadd.f32 %v1818, %v1963
      %v2066 = vadd.f32 %v1819, %v1968
      %v2067 = vadd.f32 %v1820, %v1971
      %v2068 = vadd.f32 %v1821, %v1976
      %v2069 = vadd.f32 %v1822, %v1979
      %v2070 = vadd.f32 %v1823, %v1984
      %v2071 = vadd.f32 %v1824, %v1987
      %v2072 = vadd.f32 %v1825, %v1992
      %v2073 = vadd.f32 %v1826, %v1995
      %v2074 = vadd.f32 %v1827, %v2000
      %v2075 = vadd.f32 %v1828, %v2003
      %v2076 = vadd.f32 %v1829, %v2008
      %v2077 = vadd.f32 %v1830, %v2011
      %v2078 = vadd.f32 %v1831, %v2016
      %v2079 = vadd.f32 %v1832, %v2019
      %v2080 = vadd.f32 %v1833, %v2024
      %v2081 = vadd.f32 %v1834, %v2027
      %v2082 = vadd.f32 %v1835, %v2032
      %v2083 = vadd.f32 %v1836, %v2035
      %v2084 = vadd.f32 %v1837, %v2040
      %v2085 = vadd.f32 %v1838, %v2043
      %v2086 = vadd.f32 %v1839, %v2048
      %v2087 = vadd.f32 %v1840, %v2051
      %v2088 = vadd.f32 %v1841, %v2056
      %v2089 = vadd.f32 %v1842, %v2059
      %s2090 = scalar_lea.vmem %s299, 8
      %v2091 = vld [vmem:[%s2090] sm:$0xf]
      %v2092 = vld [vmem:[%s2090 + $0x4] sm:$0xf]
      %v2093 = vld [vmem:[%s2090 + $0x8] sm:$0xf]
      %v2094 = vld [vmem:[%s2090 + $0xc] sm:$0xf]
      %v2095 = vld [vmem:[%s2090 + $0x10] sm:$0xf]
      %v2096 = vld [vmem:[%s2090 + $0x14] sm:$0xf]
      %v2097 = vld [vmem:[%s2090 + $0x18] sm:$0xf]
      %v2098 = vld [vmem:[%s2090 + $0x1c] sm:$0xf]
      %v2099 = vld [vmem:[%s2090 + $0x20] sm:$0xf]
      %v2100 = vld [vmem:[%s2090 + $0x24] sm:$0xf]
      %v2101 = vld [vmem:[%s2090 + $0x28] sm:$0xf]
      %v2102 = vld [vmem:[%s2090 + $0x2c] sm:$0xf]
      %v2103 = vld [vmem:[%s2090 + $0x30] sm:$0xf]
      %v2104 = vld [vmem:[%s2090 + $0x34] sm:$0xf]
      %v2105 = vld [vmem:[%s2090 + $0x38] sm:$0xf]
      %v2106 = vld [vmem:[%s2090 + $0x3c] sm:$0xf]
      %v2107 = vld [vmem:[%s2090 + $0x40] sm:$0xf]
      %v2108 = vld [vmem:[%s2090 + $0x44] sm:$0xf]
      %v2109 = vld [vmem:[%s2090 + $0x48] sm:$0xf]
      %v2110 = vld [vmem:[%s2090 + $0x4c] sm:$0xf]
      %v2111 = vld [vmem:[%s2090 + $0x50] sm:$0xf]
      %v2112 = vld [vmem:[%s2090 + $0x54] sm:$0xf]
      %v2113 = vld [vmem:[%s2090 + $0x58] sm:$0xf]
      %v2114 = vld [vmem:[%s2090 + $0x5c] sm:$0xf]
      %v2115 = vld [vmem:[%s2090 + $0x60] sm:$0xf]
      %v2116 = vld [vmem:[%s2090 + $0x64] sm:$0xf]
      %v2117 = vld [vmem:[%s2090 + $0x68] sm:$0xf]
      %v2118 = vld [vmem:[%s2090 + $0x6c] sm:$0xf]
      %s2119 = scalar_lea.vmem %s304, 8
      %v2120 = vld [vmem:[%s2119] sm:$0xf]
      %v2121 = vld [vmem:[%s2119 + $0x4] sm:$0xf]
      %v2122 = vld [vmem:[%s2119 + $0x8] sm:$0xf]
      %v2123 = vld [vmem:[%s2119 + $0xc] sm:$0xf]
      %v2124 = vld [vmem:[%s2119 + $0x10] sm:$0xf]
      %v2125 = vld [vmem:[%s2119 + $0x14] sm:$0xf]
      %v2126 = vld [vmem:[%s2119 + $0x18] sm:$0xf]
      %v2127 = vld [vmem:[%s2119 + $0x1c] sm:$0xf]
      %v2128 = vld [vmem:[%s2119 + $0x20] sm:$0xf]
      %v2129 = vld [vmem:[%s2119 + $0x24] sm:$0xf]
      %v2130 = vld [vmem:[%s2119 + $0x28] sm:$0xf]
      %v2131 = vld [vmem:[%s2119 + $0x2c] sm:$0xf]
      %v2132 = vld [vmem:[%s2119 + $0x30] sm:$0xf]
      %v2133 = vld [vmem:[%s2119 + $0x34] sm:$0xf]
      %v2134 = vld [vmem:[%s2119 + $0x38] sm:$0xf]
      %v2135 = vld [vmem:[%s2119 + $0x3c] sm:$0xf]
      %v2136 = vld [vmem:[%s2119 + $0x40] sm:$0xf]
      %v2137 = vld [vmem:[%s2119 + $0x44] sm:$0xf]
      %v2138 = vld [vmem:[%s2119 + $0x48] sm:$0xf]
      %v2139 = vld [vmem:[%s2119 + $0x4c] sm:$0xf]
      %v2140 = vld [vmem:[%s2119 + $0x50] sm:$0xf]
      %v2141 = vld [vmem:[%s2119 + $0x54] sm:$0xf]
      %v2142 = vld [vmem:[%s2119 + $0x58] sm:$0xf]
      %v2143 = vld [vmem:[%s2119 + $0x5c] sm:$0xf]
      %v2144 = vld [vmem:[%s2119 + $0x60] sm:$0xf]
      %v2145 = vld [vmem:[%s2119 + $0x64] sm:$0xf]
      %v2146 = vld [vmem:[%s2119 + $0x68] sm:$0xf]
      %v2147 = vld [vmem:[%s2119 + $0x6c] sm:$0xf]
      %s2148 = scalar_lea.vmem %s2, 6
      %v2149 = vld [vmem:[%s2148] sm:$0x3]
      %v2178 = vunpack.c.l.b16 %v2091
      %v2179 = vunpack.c.l.b16 %v2092
      %v2180 = vunpack.c.l.b16 %v2093
      %v2181 = vunpack.c.l.b16 %v2094
      %v2182 = vunpack.c.l.b16 %v2095
      %v2183 = vunpack.c.l.b16 %v2096
      %v2184 = vunpack.c.l.b16 %v2097
      %v2185 = vunpack.c.l.b16 %v2098
      %v2186 = vunpack.c.l.b16 %v2099
      %v2187 = vunpack.c.l.b16 %v2100
      %v2188 = vunpack.c.l.b16 %v2101
      %v2189 = vunpack.c.l.b16 %v2102
      %v2190 = vunpack.c.l.b16 %v2103
      %v2191 = vunpack.c.l.b16 %v2104
      %v2192 = vunpack.c.l.b16 %v2105
      %v2193 = vunpack.c.l.b16 %v2106
      %v2194 = vunpack.c.l.b16 %v2107
      %v2195 = vunpack.c.l.b16 %v2108
      %v2196 = vunpack.c.l.b16 %v2109
      %v2197 = vunpack.c.l.b16 %v2110
      %v2198 = vunpack.c.l.b16 %v2111
      %v2199 = vunpack.c.l.b16 %v2112
      %v2200 = vunpack.c.l.b16 %v2113
      %v2201 = vunpack.c.l.b16 %v2114
      %v2202 = vunpack.c.l.b16 %v2115
      %v2203 = vunpack.c.l.b16 %v2116
      %v2204 = vunpack.c.l.b16 %v2117
      %v2205 = vunpack.c.l.b16 %v2118
      %v2206 = vpack.c.b16 %v2179, %v2178
      %v2207 = vpack.c.b16 %v2181, %v2180
      %v2208 = vpack.c.b16 %v2183, %v2182
      %v2209 = vpack.c.b16 %v2185, %v2184
      %v2210 = vpack.c.b16 %v2187, %v2186
      %v2211 = vpack.c.b16 %v2189, %v2188
      %v2212 = vpack.c.b16 %v2191, %v2190
      %v2213 = vpack.c.b16 %v2193, %v2192
      %v2214 = vpack.c.b16 %v2195, %v2194
      %v2215 = vpack.c.b16 %v2197, %v2196
      %v2216 = vpack.c.b16 %v2199, %v2198
      %v2217 = vpack.c.b16 %v2201, %v2200
      %v2218 = vpack.c.b16 %v2203, %v2202
      %v2219 = vpack.c.b16 %v2205, %v2204
      %v2221 = vsel %vm451, %v2206, 0
      %v2224 = vsel %vm451, %v2207, 0
      %v2227 = vsel %vm451, %v2208, 0
      %v2230 = vsel %vm451, %v2209, 0
      %v2233 = vsel %vm451, %v2210, 0
      %v2236 = vsel %vm451, %v2211, 0
      %v2239 = vsel %vm451, %v2212, 0
      %v2242 = vsel %vm451, %v2213, 0
      %v2245 = vsel %vm451, %v2214, 0
      %v2248 = vsel %vm451, %v2215, 0
      %v2251 = vsel %vm451, %v2216, 0
      %v2254 = vsel %vm451, %v2217, 0
      %v2257 = vsel %vm451, %v2218, 0
      %v2260 = vsel %vm451, %v2219, 0
      %v2263 = vsel %vm494, %v2149, 0
      %2265 = vmatprep.subr.bf16.mxu0 0
      %2266 = vmatpush1.bf16.msra.mxu0 0
      %2267 = vmatprep.subr.bf16.mxu0 0
      %2268 = vmatpush1.bf16.msra.mxu0 0
      %2269 = vmatprep.subr.bf16.mxu0 0
      %2270 = vmatpush1.bf16.msra.mxu0 0
      %2271 = vmatprep.subr.bf16.mxu0 0
      %2272 = vmatpush1.bf16.msra.mxu0 0
      %2273 = vmatprep.subr.bf16.mxu0 0
      %2274 = vmatpush1.bf16.msra.mxu0 0
      %2275 = vmatprep.subr.bf16.mxu0 0
      %2276 = vmatpush1.bf16.msra.mxu0 0
      %2277 = vmatprep.subr.bf16.mxu0 0
      %2278 = vmatpush1.bf16.msra.mxu0 0
      %2279 = vmatprep.subr.bf16.mxu0 0
      %2280 = vmatpush1.bf16.msra.mxu0 %v2263
      %2281 = vmatprep.subr.bf16.mxu0 0
      %2282 = vmatpush2.bf16.msra.mxu0 0
      %2283 = vmatprep.subr.bf16.mxu0 0
      %2284 = vmatpush2.bf16.msra.mxu0 0
      %2285 = vmatprep.subr.bf16.mxu0 0
      %2286 = vmatpush2.bf16.msra.mxu0 0
      %2287 = vmatprep.subr.bf16.mxu0 0
      %2288 = vmatpush2.bf16.msra.mxu0 0
      %2289 = vmatprep.subr.bf16.mxu0 0
      %2290 = vmatpush2.bf16.msra.mxu0 0
      %2291 = vmatprep.subr.bf16.mxu0 0
      %2292 = vmatpush2.bf16.msra.mxu0 0
      %2293 = vmatprep.subr.bf16.mxu0 0
      %2294 = vmatpush2.bf16.msra.mxu0 0
      %2295 = vmatprep.subr.bf16.mxu0 0
      %2296 = vmatpush2.bf16.msra.mxu0 0
      %2297 = vmatprep.mubr.bf16.mxu0 0
      %2298 = vmatmul.mubr.bf16.gmra.mxu0 %v2221
      %v2299 = vpop.f32.mrf.mxu0
      %v2300 = vadd.f32 0.0, %v2299
      %v2301 = vpop.f32.mrf.mxu0
      %v2302 = vpop.f32.mrf.mxu0
      %v2303 = vadd.f32 0.0, %v2302
      %v2304 = vpop.f32.mrf.mxu0
      %2305 = vmatprep.mubr.bf16.mxu0 0
      %2306 = vmatmul.mubr.bf16.gmra.mxu0 %v2224
      %v2307 = vpop.f32.mrf.mxu0
      %v2308 = vadd.f32 0.0, %v2307
      %v2309 = vpop.f32.mrf.mxu0
      %v2310 = vpop.f32.mrf.mxu0
      %v2311 = vadd.f32 0.0, %v2310
      %v2312 = vpop.f32.mrf.mxu0
      %2313 = vmatprep.mubr.bf16.mxu0 0
      %2314 = vmatmul.mubr.bf16.gmra.mxu0 %v2227
      %v2315 = vpop.f32.mrf.mxu0
      %v2316 = vadd.f32 0.0, %v2315
      %v2317 = vpop.f32.mrf.mxu0
      %v2318 = vpop.f32.mrf.mxu0
      %v2319 = vadd.f32 0.0, %v2318
      %v2320 = vpop.f32.mrf.mxu0
      %2321 = vmatprep.mubr.bf16.mxu0 0
      %2322 = vmatmul.mubr.bf16.gmra.mxu0 %v2230
      %v2323 = vpop.f32.mrf.mxu0
      %v2324 = vadd.f32 0.0, %v2323
      %v2325 = vpop.f32.mrf.mxu0
      %v2326 = vpop.f32.mrf.mxu0
      %v2327 = vadd.f32 0.0, %v2326
      %v2328 = vpop.f32.mrf.mxu0
      %2329 = vmatprep.mubr.bf16.mxu0 0
      %2330 = vmatmul.mubr.bf16.gmra.mxu0 %v2233
      %v2331 = vpop.f32.mrf.mxu0
      %v2332 = vadd.f32 0.0, %v2331
      %v2333 = vpop.f32.mrf.mxu0
      %v2334 = vpop.f32.mrf.mxu0
      %v2335 = vadd.f32 0.0, %v2334
      %v2336 = vpop.f32.mrf.mxu0
      %2337 = vmatprep.mubr.bf16.mxu0 0
      %2338 = vmatmul.mubr.bf16.gmra.mxu0 %v2236
      %v2339 = vpop.f32.mrf.mxu0
      %v2340 = vadd.f32 0.0, %v2339
      %v2341 = vpop.f32.mrf.mxu0
      %v2342 = vpop.f32.mrf.mxu0
      %v2343 = vadd.f32 0.0, %v2342
      %v2344 = vpop.f32.mrf.mxu0
      %2345 = vmatprep.mubr.bf16.mxu0 0
      %2346 = vmatmul.mubr.bf16.gmra.mxu0 %v2239
      %v2347 = vpop.f32.mrf.mxu0
      %v2348 = vadd.f32 0.0, %v2347
      %v2349 = vpop.f32.mrf.mxu0
      %v2350 = vpop.f32.mrf.mxu0
      %v2351 = vadd.f32 0.0, %v2350
      %v2352 = vpop.f32.mrf.mxu0
      %2353 = vmatprep.mubr.bf16.mxu0 0
      %2354 = vmatmul.mubr.bf16.gmra.mxu0 %v2242
      %v2355 = vpop.f32.mrf.mxu0
      %v2356 = vadd.f32 0.0, %v2355
      %v2357 = vpop.f32.mrf.mxu0
      %v2358 = vpop.f32.mrf.mxu0
      %v2359 = vadd.f32 0.0, %v2358
      %v2360 = vpop.f32.mrf.mxu0
      %2361 = vmatprep.mubr.bf16.mxu0 0
      %2362 = vmatmul.mubr.bf16.gmra.mxu0 %v2245
      %v2363 = vpop.f32.mrf.mxu0
      %v2364 = vadd.f32 0.0, %v2363
      %v2365 = vpop.f32.mrf.mxu0
      %v2366 = vpop.f32.mrf.mxu0
      %v2367 = vadd.f32 0.0, %v2366
      %v2368 = vpop.f32.mrf.mxu0
      %2369 = vmatprep.mubr.bf16.mxu0 0
      %2370 = vmatmul.mubr.bf16.gmra.mxu0 %v2248
      %v2371 = vpop.f32.mrf.mxu0
      %v2372 = vadd.f32 0.0, %v2371
      %v2373 = vpop.f32.mrf.mxu0
      %v2374 = vpop.f32.mrf.mxu0
      %v2375 = vadd.f32 0.0, %v2374
      %v2376 = vpop.f32.mrf.mxu0
      %2377 = vmatprep.mubr.bf16.mxu0 0
      %2378 = vmatmul.mubr.bf16.gmra.mxu0 %v2251
      %v2379 = vpop.f32.mrf.mxu0
      %v2380 = vadd.f32 0.0, %v2379
      %v2381 = vpop.f32.mrf.mxu0
      %v2382 = vpop.f32.mrf.mxu0
      %v2383 = vadd.f32 0.0, %v2382
      %v2384 = vpop.f32.mrf.mxu0
      %2385 = vmatprep.mubr.bf16.mxu0 0
      %2386 = vmatmul.mubr.bf16.gmra.mxu0 %v2254
      %v2387 = vpop.f32.mrf.mxu0
      %v2388 = vadd.f32 0.0, %v2387
      %v2389 = vpop.f32.mrf.mxu0
      %v2390 = vpop.f32.mrf.mxu0
      %v2391 = vadd.f32 0.0, %v2390
      %v2392 = vpop.f32.mrf.mxu0
      %2393 = vmatprep.mubr.bf16.mxu0 0
      %2394 = vmatmul.mubr.bf16.gmra.mxu0 %v2257
      %v2395 = vpop.f32.mrf.mxu0
      %v2396 = vadd.f32 0.0, %v2395
      %v2397 = vpop.f32.mrf.mxu0
      %v2398 = vpop.f32.mrf.mxu0
      %v2399 = vadd.f32 0.0, %v2398
      %v2400 = vpop.f32.mrf.mxu0
      %2401 = vmatprep.mubr.bf16.mxu0 0
      %2402 = vmatmul.mubr.bf16.gmra.mxu0 %v2260
      %v2403 = vpop.f32.mrf.mxu0
      %v2404 = vadd.f32 0.0, %v2403
      %v2405 = vpop.f32.mrf.mxu0
      %v2406 = vpop.f32.mrf.mxu0
      %v2407 = vadd.f32 0.0, %v2406
      %v2408 = vpop.f32.mrf.mxu0
      %2409 = vdwg.mxu0
      %v2410 = vadd.f32 %v2062, %v2300
      %v2411 = vadd.f32 %v2063, %v2303
      %v2412 = vadd.f32 %v2064, %v2308
      %v2413 = vadd.f32 %v2065, %v2311
      %v2414 = vadd.f32 %v2066, %v2316
      %v2415 = vadd.f32 %v2067, %v2319
      %v2416 = vadd.f32 %v2068, %v2324
      %v2417 = vadd.f32 %v2069, %v2327
      %v2418 = vadd.f32 %v2070, %v2332
      %v2419 = vadd.f32 %v2071, %v2335
      %v2420 = vadd.f32 %v2072, %v2340
      %v2421 = vadd.f32 %v2073, %v2343
      %v2422 = vadd.f32 %v2074, %v2348
      %v2423 = vadd.f32 %v2075, %v2351
      %v2424 = vadd.f32 %v2076, %v2356
      %v2425 = vadd.f32 %v2077, %v2359
      %v2426 = vadd.f32 %v2078, %v2364
      %v2427 = vadd.f32 %v2079, %v2367
      %v2428 = vadd.f32 %v2080, %v2372
      %v2429 = vadd.f32 %v2081, %v2375
      %v2430 = vadd.f32 %v2082, %v2380
      %v2431 = vadd.f32 %v2083, %v2383
      %v2432 = vadd.f32 %v2084, %v2388
      %v2433 = vadd.f32 %v2085, %v2391
      %v2434 = vadd.f32 %v2086, %v2396
      %v2435 = vadd.f32 %v2087, %v2399
      %v2436 = vadd.f32 %v2088, %v2404
      %v2437 = vadd.f32 %v2089, %v2407
      %s2438 = scalar_lea.vmem %s3, 6
      %v2439 = vld [vmem:[%s2438] sm:$0x3]
      %v2468 = vunpack.c.l.b16 %v2120
      %v2469 = vunpack.c.l.b16 %v2121
      %v2470 = vunpack.c.l.b16 %v2122
      %v2471 = vunpack.c.l.b16 %v2123
      %v2472 = vunpack.c.l.b16 %v2124
      %v2473 = vunpack.c.l.b16 %v2125
      %v2474 = vunpack.c.l.b16 %v2126
      %v2475 = vunpack.c.l.b16 %v2127
      %v2476 = vunpack.c.l.b16 %v2128
      %v2477 = vunpack.c.l.b16 %v2129
      %v2478 = vunpack.c.l.b16 %v2130
      %v2479 = vunpack.c.l.b16 %v2131
      %v2480 = vunpack.c.l.b16 %v2132
      %v2481 = vunpack.c.l.b16 %v2133
      %v2482 = vunpack.c.l.b16 %v2134
      %v2483 = vunpack.c.l.b16 %v2135
      %v2484 = vunpack.c.l.b16 %v2136
      %v2485 = vunpack.c.l.b16 %v2137
      %v2486 = vunpack.c.l.b16 %v2138
      %v2487 = vunpack.c.l.b16 %v2139
      %v2488 = vunpack.c.l.b16 %v2140
      %v2489 = vunpack.c.l.b16 %v2141
      %v2490 = vunpack.c.l.b16 %v2142
      %v2491 = vunpack.c.l.b16 %v2143
      %v2492 = vunpack.c.l.b16 %v2144
      %v2493 = vunpack.c.l.b16 %v2145
      %v2494 = vunpack.c.l.b16 %v2146
      %v2495 = vunpack.c.l.b16 %v2147
      %v2496 = vpack.c.b16 %v2469, %v2468
      %v2497 = vpack.c.b16 %v2471, %v2470
      %v2498 = vpack.c.b16 %v2473, %v2472
      %v2499 = vpack.c.b16 %v2475, %v2474
      %v2500 = vpack.c.b16 %v2477, %v2476
      %v2501 = vpack.c.b16 %v2479, %v2478
      %v2502 = vpack.c.b16 %v2481, %v2480
      %v2503 = vpack.c.b16 %v2483, %v2482
      %v2504 = vpack.c.b16 %v2485, %v2484
      %v2505 = vpack.c.b16 %v2487, %v2486
      %v2506 = vpack.c.b16 %v2489, %v2488
      %v2507 = vpack.c.b16 %v2491, %v2490
      %v2508 = vpack.c.b16 %v2493, %v2492
      %v2509 = vpack.c.b16 %v2495, %v2494
      %v2511 = vsel %vm451, %v2496, 0
      %v2514 = vsel %vm451, %v2497, 0
      %v2517 = vsel %vm451, %v2498, 0
      %v2520 = vsel %vm451, %v2499, 0
      %v2523 = vsel %vm451, %v2500, 0
      %v2526 = vsel %vm451, %v2501, 0
      %v2529 = vsel %vm451, %v2502, 0
      %v2532 = vsel %vm451, %v2503, 0
      %v2535 = vsel %vm451, %v2504, 0
      %v2538 = vsel %vm451, %v2505, 0
      %v2541 = vsel %vm451, %v2506, 0
      %v2544 = vsel %vm451, %v2507, 0
      %v2547 = vsel %vm451, %v2508, 0
      %v2550 = vsel %vm451, %v2509, 0
      %v2553 = vsel %vm494, %v2439, 0
      %2555 = vmatprep.subr.bf16.mxu0 0
      %2556 = vmatpush1.bf16.msra.mxu0 0
      %2557 = vmatprep.subr.bf16.mxu0 0
      %2558 = vmatpush1.bf16.msra.mxu0 0
      %2559 = vmatprep.subr.bf16.mxu0 0
      %2560 = vmatpush1.bf16.msra.mxu0 0
      %2561 = vmatprep.subr.bf16.mxu0 0
      %2562 = vmatpush1.bf16.msra.mxu0 0
      %2563 = vmatprep.subr.bf16.mxu0 0
      %2564 = vmatpush1.bf16.msra.mxu0 0
      %2565 = vmatprep.subr.bf16.mxu0 0
      %2566 = vmatpush1.bf16.msra.mxu0 0
      %2567 = vmatprep.subr.bf16.mxu0 0
      %2568 = vmatpush1.bf16.msra.mxu0 0
      %2569 = vmatprep.subr.bf16.mxu0 0
      %2570 = vmatpush1.bf16.msra.mxu0 %v2553
      %2571 = vmatprep.subr.bf16.mxu0 0
      %2572 = vmatpush2.bf16.msra.mxu0 0
      %2573 = vmatprep.subr.bf16.mxu0 0
      %2574 = vmatpush2.bf16.msra.mxu0 0
      %2575 = vmatprep.subr.bf16.mxu0 0
      %2576 = vmatpush2.bf16.msra.mxu0 0
      %2577 = vmatprep.subr.bf16.mxu0 0
      %2578 = vmatpush2.bf16.msra.mxu0 0
      %2579 = vmatprep.subr.bf16.mxu0 0
      %2580 = vmatpush2.bf16.msra.mxu0 0
      %2581 = vmatprep.subr.bf16.mxu0 0
      %2582 = vmatpush2.bf16.msra.mxu0 0
      %2583 = vmatprep.subr.bf16.mxu0 0
      %2584 = vmatpush2.bf16.msra.mxu0 0
      %2585 = vmatprep.subr.bf16.mxu0 0
      %2586 = vmatpush2.bf16.msra.mxu0 0
      %2587 = vmatprep.mubr.bf16.mxu0 0
      %2588 = vmatmul.mubr.bf16.gmra.mxu0 %v2511
      %v2589 = vpop.f32.mrf.mxu0
      %v2590 = vadd.f32 0.0, %v2589
      %v2591 = vpop.f32.mrf.mxu0
      %v2592 = vpop.f32.mrf.mxu0
      %v2593 = vadd.f32 0.0, %v2592
      %v2594 = vpop.f32.mrf.mxu0
      %2595 = vmatprep.mubr.bf16.mxu0 0
      %2596 = vmatmul.mubr.bf16.gmra.mxu0 %v2514
      %v2597 = vpop.f32.mrf.mxu0
      %v2598 = vadd.f32 0.0, %v2597
      %v2599 = vpop.f32.mrf.mxu0
      %v2600 = vpop.f32.mrf.mxu0
      %v2601 = vadd.f32 0.0, %v2600
      %v2602 = vpop.f32.mrf.mxu0
      %2603 = vmatprep.mubr.bf16.mxu0 0
      %2604 = vmatmul.mubr.bf16.gmra.mxu0 %v2517
      %v2605 = vpop.f32.mrf.mxu0
      %v2606 = vadd.f32 0.0, %v2605
      %v2607 = vpop.f32.mrf.mxu0
      %v2608 = vpop.f32.mrf.mxu0
      %v2609 = vadd.f32 0.0, %v2608
      %v2610 = vpop.f32.mrf.mxu0
      %2611 = vmatprep.mubr.bf16.mxu0 0
      %2612 = vmatmul.mubr.bf16.gmra.mxu0 %v2520
      %v2613 = vpop.f32.mrf.mxu0
      %v2614 = vadd.f32 0.0, %v2613
      %v2615 = vpop.f32.mrf.mxu0
      %v2616 = vpop.f32.mrf.mxu0
      %v2617 = vadd.f32 0.0, %v2616
      %v2618 = vpop.f32.mrf.mxu0
      %2619 = vmatprep.mubr.bf16.mxu0 0
      %2620 = vmatmul.mubr.bf16.gmra.mxu0 %v2523
      %v2621 = vpop.f32.mrf.mxu0
      %v2622 = vadd.f32 0.0, %v2621
      %v2623 = vpop.f32.mrf.mxu0
      %v2624 = vpop.f32.mrf.mxu0
      %v2625 = vadd.f32 0.0, %v2624
      %v2626 = vpop.f32.mrf.mxu0
      %2627 = vmatprep.mubr.bf16.mxu0 0
      %2628 = vmatmul.mubr.bf16.gmra.mxu0 %v2526
      %v2629 = vpop.f32.mrf.mxu0
      %v2630 = vadd.f32 0.0, %v2629
      %v2631 = vpop.f32.mrf.mxu0
      %v2632 = vpop.f32.mrf.mxu0
      %v2633 = vadd.f32 0.0, %v2632
      %v2634 = vpop.f32.mrf.mxu0
      %2635 = vmatprep.mubr.bf16.mxu0 0
      %2636 = vmatmul.mubr.bf16.gmra.mxu0 %v2529
      %v2637 = vpop.f32.mrf.mxu0
      %v2638 = vadd.f32 0.0, %v2637
      %v2639 = vpop.f32.mrf.mxu0
      %v2640 = vpop.f32.mrf.mxu0
      %v2641 = vadd.f32 0.0, %v2640
      %v2642 = vpop.f32.mrf.mxu0
      %2643 = vmatprep.mubr.bf16.mxu0 0
      %2644 = vmatmul.mubr.bf16.gmra.mxu0 %v2532
      %v2645 = vpop.f32.mrf.mxu0
      %v2646 = vadd.f32 0.0, %v2645
      %v2647 = vpop.f32.mrf.mxu0
      %v2648 = vpop.f32.mrf.mxu0
      %v2649 = vadd.f32 0.0, %v2648
      %v2650 = vpop.f32.mrf.mxu0
      %2651 = vmatprep.mubr.bf16.mxu0 0
      %2652 = vmatmul.mubr.bf16.gmra.mxu0 %v2535
      %v2653 = vpop.f32.mrf.mxu0
      %v2654 = vadd.f32 0.0, %v2653
      %v2655 = vpop.f32.mrf.mxu0
      %v2656 = vpop.f32.mrf.mxu0
      %v2657 = vadd.f32 0.0, %v2656
      %v2658 = vpop.f32.mrf.mxu0
      %2659 = vmatprep.mubr.bf16.mxu0 0
      %2660 = vmatmul.mubr.bf16.gmra.mxu0 %v2538
      %v2661 = vpop.f32.mrf.mxu0
      %v2662 = vadd.f32 0.0, %v2661
      %v2663 = vpop.f32.mrf.mxu0
      %v2664 = vpop.f32.mrf.mxu0
      %v2665 = vadd.f32 0.0, %v2664
      %v2666 = vpop.f32.mrf.mxu0
      %2667 = vmatprep.mubr.bf16.mxu0 0
      %2668 = vmatmul.mubr.bf16.gmra.mxu0 %v2541
      %v2669 = vpop.f32.mrf.mxu0
      %v2670 = vadd.f32 0.0, %v2669
      %v2671 = vpop.f32.mrf.mxu0
      %v2672 = vpop.f32.mrf.mxu0
      %v2673 = vadd.f32 0.0, %v2672
      %v2674 = vpop.f32.mrf.mxu0
      %2675 = vmatprep.mubr.bf16.mxu0 0
      %2676 = vmatmul.mubr.bf16.gmra.mxu0 %v2544
      %v2677 = vpop.f32.mrf.mxu0
      %v2678 = vadd.f32 0.0, %v2677
      %v2679 = vpop.f32.mrf.mxu0
      %v2680 = vpop.f32.mrf.mxu0
      %v2681 = vadd.f32 0.0, %v2680
      %v2682 = vpop.f32.mrf.mxu0
      %2683 = vmatprep.mubr.bf16.mxu0 0
      %2684 = vmatmul.mubr.bf16.gmra.mxu0 %v2547
      %v2685 = vpop.f32.mrf.mxu0
      %v2686 = vadd.f32 0.0, %v2685
      %v2687 = vpop.f32.mrf.mxu0
      %v2688 = vpop.f32.mrf.mxu0
      %v2689 = vadd.f32 0.0, %v2688
      %v2690 = vpop.f32.mrf.mxu0
      %2691 = vmatprep.mubr.bf16.mxu0 0
      %2692 = vmatmul.mubr.bf16.gmra.mxu0 %v2550
      %v2693 = vpop.f32.mrf.mxu0
      %v2694 = vadd.f32 0.0, %v2693
      %v2695 = vpop.f32.mrf.mxu0
      %v2696 = vpop.f32.mrf.mxu0
      %v2697 = vadd.f32 0.0, %v2696
      %v2698 = vpop.f32.mrf.mxu0
      %2699 = vdwg.mxu0
      %v2700 = vadd.f32 %v2410, %v2590
      %v2701 = vadd.f32 %v2411, %v2593
      %v2702 = vadd.f32 %v2412, %v2598
      %v2703 = vadd.f32 %v2413, %v2601
      %v2704 = vadd.f32 %v2414, %v2606
      %v2705 = vadd.f32 %v2415, %v2609
      %v2706 = vadd.f32 %v2416, %v2614
      %v2707 = vadd.f32 %v2417, %v2617
      %v2708 = vadd.f32 %v2418, %v2622
      %v2709 = vadd.f32 %v2419, %v2625
      %v2710 = vadd.f32 %v2420, %v2630
      %v2711 = vadd.f32 %v2421, %v2633
      %v2712 = vadd.f32 %v2422, %v2638
      %v2713 = vadd.f32 %v2423, %v2641
      %v2714 = vadd.f32 %v2424, %v2646
      %v2715 = vadd.f32 %v2425, %v2649
      %v2716 = vadd.f32 %v2426, %v2654
      %v2717 = vadd.f32 %v2427, %v2657
      %v2718 = vadd.f32 %v2428, %v2662
      %v2719 = vadd.f32 %v2429, %v2665
      %v2720 = vadd.f32 %v2430, %v2670
      %v2721 = vadd.f32 %v2431, %v2673
      %v2722 = vadd.f32 %v2432, %v2678
      %v2723 = vadd.f32 %v2433, %v2681
      %v2724 = vadd.f32 %v2434, %v2686
      %v2725 = vadd.f32 %v2435, %v2689
      %v2726 = vadd.f32 %v2436, %v2694
      %v2727 = vadd.f32 %v2437, %v2697
      %s2728 = scalar_lea.vmem %s2, 8
      %v2729 = vld [vmem:[%s2728] sm:$0x3]
      %v2730 = vshrl.u32 %v2206, 16
      %v2732 = vshll.u32 %v2206, 16
      %v2734 = vrot.slane %v2732, 1
      %v2735 = vor.u32 %v2730, %v2734
      %v2736 = vshll.u32 %v2207, 16
      %v2738 = vrot.slane %v2736, 1
      %v2739 = vsel %vm962, %v2735, %v2738
      %v2740 = vshrl.u32 %v2207, 16
      %v2742 = vor.u32 %v2740, %v2738
      %v2743 = vshll.u32 %v2208, 16
      %v2745 = vrot.slane %v2743, 1
      %v2746 = vsel %vm962, %v2742, %v2745
      %v2747 = vshrl.u32 %v2208, 16
      %v2749 = vor.u32 %v2747, %v2745
      %v2750 = vshll.u32 %v2209, 16
      %v2752 = vrot.slane %v2750, 1
      %v2753 = vsel %vm962, %v2749, %v2752
      %v2754 = vshrl.u32 %v2209, 16
      %v2756 = vor.u32 %v2754, %v2752
      %v2757 = vshll.u32 %v2210, 16
      %v2759 = vrot.slane %v2757, 1
      %v2760 = vsel %vm962, %v2756, %v2759
      %v2761 = vshrl.u32 %v2210, 16
      %v2763 = vor.u32 %v2761, %v2759
      %v2764 = vshll.u32 %v2211, 16
      %v2766 = vrot.slane %v2764, 1
      %v2767 = vsel %vm962, %v2763, %v2766
      %v2768 = vshrl.u32 %v2211, 16
      %v2770 = vor.u32 %v2768, %v2766
      %v2771 = vshll.u32 %v2212, 16
      %v2773 = vrot.slane %v2771, 1
      %v2774 = vsel %vm962, %v2770, %v2773
      %v2775 = vshrl.u32 %v2212, 16
      %v2777 = vor.u32 %v2775, %v2773
      %v2778 = vshll.u32 %v2213, 16
      %v2780 = vrot.slane %v2778, 1
      %v2781 = vsel %vm962, %v2777, %v2780
      %v2782 = vshrl.u32 %v2213, 16
      %v2784 = vor.u32 %v2782, %v2780
      %v2785 = vshll.u32 %v2214, 16
      %v2787 = vrot.slane %v2785, 1
      %v2788 = vsel %vm962, %v2784, %v2787
      %v2789 = vshrl.u32 %v2214, 16
      %v2791 = vor.u32 %v2789, %v2787
      %v2792 = vshll.u32 %v2215, 16
      %v2794 = vrot.slane %v2792, 1
      %v2795 = vsel %vm962, %v2791, %v2794
      %v2796 = vshrl.u32 %v2215, 16
      %v2798 = vor.u32 %v2796, %v2794
      %v2799 = vshll.u32 %v2216, 16
      %v2801 = vrot.slane %v2799, 1
      %v2802 = vsel %vm962, %v2798, %v2801
      %v2803 = vshrl.u32 %v2216, 16
      %v2805 = vor.u32 %v2803, %v2801
      %v2806 = vshll.u32 %v2217, 16
      %v2808 = vrot.slane %v2806, 1
      %v2809 = vsel %vm962, %v2805, %v2808
      %v2810 = vshrl.u32 %v2217, 16
      %v2812 = vor.u32 %v2810, %v2808
      %v2813 = vshll.u32 %v2218, 16
      %v2815 = vrot.slane %v2813, 1
      %v2816 = vsel %vm962, %v2812, %v2815
      %v2817 = vshrl.u32 %v2218, 16
      %v2819 = vor.u32 %v2817, %v2815
      %v2820 = vshll.u32 %v2219, 16
      %v2822 = vrot.slane %v2820, 1
      %v2823 = vsel %vm962, %v2819, %v2822
      %v2824 = vshrl.u32 %v2219, 16
      %v2826 = vor.u32 %v2824, %v2822
      %v2828 = vsel %vm451, %v2739, 0
      %v2831 = vsel %vm451, %v2746, 0
      %v2834 = vsel %vm451, %v2753, 0
      %v2837 = vsel %vm451, %v2760, 0
      %v2840 = vsel %vm451, %v2767, 0
      %v2843 = vsel %vm451, %v2774, 0
      %v2846 = vsel %vm451, %v2781, 0
      %v2849 = vsel %vm451, %v2788, 0
      %v2852 = vsel %vm451, %v2795, 0
      %v2855 = vsel %vm451, %v2802, 0
      %v2858 = vsel %vm451, %v2809, 0
      %v2861 = vsel %vm451, %v2816, 0
      %v2864 = vsel %vm451, %v2823, 0
      %v2867 = vsel %vm451, %v2826, 0
      %v2870 = vsel %vm494, %v2729, 0
      %2872 = vmatprep.subr.bf16.mxu0 0
      %2873 = vmatpush1.bf16.msra.mxu0 0
      %2874 = vmatprep.subr.bf16.mxu0 0
      %2875 = vmatpush1.bf16.msra.mxu0 0
      %2876 = vmatprep.subr.bf16.mxu0 0
      %2877 = vmatpush1.bf16.msra.mxu0 0
      %2878 = vmatprep.subr.bf16.mxu0 0
      %2879 = vmatpush1.bf16.msra.mxu0 0
      %2880 = vmatprep.subr.bf16.mxu0 0
      %2881 = vmatpush1.bf16.msra.mxu0 0
      %2882 = vmatprep.subr.bf16.mxu0 0
      %2883 = vmatpush1.bf16.msra.mxu0 0
      %2884 = vmatprep.subr.bf16.mxu0 0
      %2885 = vmatpush1.bf16.msra.mxu0 0
      %2886 = vmatprep.subr.bf16.mxu0 0
      %2887 = vmatpush1.bf16.msra.mxu0 %v2870
      %2888 = vmatprep.subr.bf16.mxu0 0
      %2889 = vmatpush2.bf16.msra.mxu0 0
      %2890 = vmatprep.subr.bf16.mxu0 0
      %2891 = vmatpush2.bf16.msra.mxu0 0
      %2892 = vmatprep.subr.bf16.mxu0 0
      %2893 = vmatpush2.bf16.msra.mxu0 0
      %2894 = vmatprep.subr.bf16.mxu0 0
      %2895 = vmatpush2.bf16.msra.mxu0 0
      %2896 = vmatprep.subr.bf16.mxu0 0
      %2897 = vmatpush2.bf16.msra.mxu0 0
      %2898 = vmatprep.subr.bf16.mxu0 0
      %2899 = vmatpush2.bf16.msra.mxu0 0
      %2900 = vmatprep.subr.bf16.mxu0 0
      %2901 = vmatpush2.bf16.msra.mxu0 0
      %2902 = vmatprep.subr.bf16.mxu0 0
      %2903 = vmatpush2.bf16.msra.mxu0 0
      %2904 = vmatprep.mubr.bf16.mxu0 0
      %2905 = vmatmul.mubr.bf16.gmra.mxu0 %v2828
      %v2906 = vpop.f32.mrf.mxu0
      %v2907 = vadd.f32 0.0, %v2906
      %v2908 = vpop.f32.mrf.mxu0
      %v2909 = vpop.f32.mrf.mxu0
      %v2910 = vadd.f32 0.0, %v2909
      %v2911 = vpop.f32.mrf.mxu0
      %2912 = vmatprep.mubr.bf16.mxu0 0
      %2913 = vmatmul.mubr.bf16.gmra.mxu0 %v2831
      %v2914 = vpop.f32.mrf.mxu0
      %v2915 = vadd.f32 0.0, %v2914
      %v2916 = vpop.f32.mrf.mxu0
      %v2917 = vpop.f32.mrf.mxu0
      %v2918 = vadd.f32 0.0, %v2917
      %v2919 = vpop.f32.mrf.mxu0
      %2920 = vmatprep.mubr.bf16.mxu0 0
      %2921 = vmatmul.mubr.bf16.gmra.mxu0 %v2834
      %v2922 = vpop.f32.mrf.mxu0
      %v2923 = vadd.f32 0.0, %v2922
      %v2924 = vpop.f32.mrf.mxu0
      %v2925 = vpop.f32.mrf.mxu0
      %v2926 = vadd.f32 0.0, %v2925
      %v2927 = vpop.f32.mrf.mxu0
      %2928 = vmatprep.mubr.bf16.mxu0 0
      %2929 = vmatmul.mubr.bf16.gmra.mxu0 %v2837
      %v2930 = vpop.f32.mrf.mxu0
      %v2931 = vadd.f32 0.0, %v2930
      %v2932 = vpop.f32.mrf.mxu0
      %v2933 = vpop.f32.mrf.mxu0
      %v2934 = vadd.f32 0.0, %v2933
      %v2935 = vpop.f32.mrf.mxu0
      %2936 = vmatprep.mubr.bf16.mxu0 0
      %2937 = vmatmul.mubr.bf16.gmra.mxu0 %v2840
      %v2938 = vpop.f32.mrf.mxu0
      %v2939 = vadd.f32 0.0, %v2938
      %v2940 = vpop.f32.mrf.mxu0
      %v2941 = vpop.f32.mrf.mxu0
      %v2942 = vadd.f32 0.0, %v2941
      %v2943 = vpop.f32.mrf.mxu0
      %2944 = vmatprep.mubr.bf16.mxu0 0
      %2945 = vmatmul.mubr.bf16.gmra.mxu0 %v2843
      %v2946 = vpop.f32.mrf.mxu0
      %v2947 = vadd.f32 0.0, %v2946
      %v2948 = vpop.f32.mrf.mxu0
      %v2949 = vpop.f32.mrf.mxu0
      %v2950 = vadd.f32 0.0, %v2949
      %v2951 = vpop.f32.mrf.mxu0
      %2952 = vmatprep.mubr.bf16.mxu0 0
      %2953 = vmatmul.mubr.bf16.gmra.mxu0 %v2846
      %v2954 = vpop.f32.mrf.mxu0
      %v2955 = vadd.f32 0.0, %v2954
      %v2956 = vpop.f32.mrf.mxu0
      %v2957 = vpop.f32.mrf.mxu0
      %v2958 = vadd.f32 0.0, %v2957
      %v2959 = vpop.f32.mrf.mxu0
      %2960 = vmatprep.mubr.bf16.mxu0 0
      %2961 = vmatmul.mubr.bf16.gmra.mxu0 %v2849
      %v2962 = vpop.f32.mrf.mxu0
      %v2963 = vadd.f32 0.0, %v2962
      %v2964 = vpop.f32.mrf.mxu0
      %v2965 = vpop.f32.mrf.mxu0
      %v2966 = vadd.f32 0.0, %v2965
      %v2967 = vpop.f32.mrf.mxu0
      %2968 = vmatprep.mubr.bf16.mxu0 0
      %2969 = vmatmul.mubr.bf16.gmra.mxu0 %v2852
      %v2970 = vpop.f32.mrf.mxu0
      %v2971 = vadd.f32 0.0, %v2970
      %v2972 = vpop.f32.mrf.mxu0
      %v2973 = vpop.f32.mrf.mxu0
      %v2974 = vadd.f32 0.0, %v2973
      %v2975 = vpop.f32.mrf.mxu0
      %2976 = vmatprep.mubr.bf16.mxu0 0
      %2977 = vmatmul.mubr.bf16.gmra.mxu0 %v2855
      %v2978 = vpop.f32.mrf.mxu0
      %v2979 = vadd.f32 0.0, %v2978
      %v2980 = vpop.f32.mrf.mxu0
      %v2981 = vpop.f32.mrf.mxu0
      %v2982 = vadd.f32 0.0, %v2981
      %v2983 = vpop.f32.mrf.mxu0
      %2984 = vmatprep.mubr.bf16.mxu0 0
      %2985 = vmatmul.mubr.bf16.gmra.mxu0 %v2858
      %v2986 = vpop.f32.mrf.mxu0
      %v2987 = vadd.f32 0.0, %v2986
      %v2988 = vpop.f32.mrf.mxu0
      %v2989 = vpop.f32.mrf.mxu0
      %v2990 = vadd.f32 0.0, %v2989
      %v2991 = vpop.f32.mrf.mxu0
      %2992 = vmatprep.mubr.bf16.mxu0 0
      %2993 = vmatmul.mubr.bf16.gmra.mxu0 %v2861
      %v2994 = vpop.f32.mrf.mxu0
      %v2995 = vadd.f32 0.0, %v2994
      %v2996 = vpop.f32.mrf.mxu0
      %v2997 = vpop.f32.mrf.mxu0
      %v2998 = vadd.f32 0.0, %v2997
      %v2999 = vpop.f32.mrf.mxu0
      %3000 = vmatprep.mubr.bf16.mxu0 0
      %3001 = vmatmul.mubr.bf16.gmra.mxu0 %v2864
      %v3002 = vpop.f32.mrf.mxu0
      %v3003 = vadd.f32 0.0, %v3002
      %v3004 = vpop.f32.mrf.mxu0
      %v3005 = vpop.f32.mrf.mxu0
      %v3006 = vadd.f32 0.0, %v3005
      %v3007 = vpop.f32.mrf.mxu0
      %3008 = vmatprep.mubr.bf16.mxu0 0
      %3009 = vmatmul.mubr.bf16.gmra.mxu0 %v2867
      %v3010 = vpop.f32.mrf.mxu0
      %v3011 = vadd.f32 0.0, %v3010
      %v3012 = vpop.f32.mrf.mxu0
      %v3013 = vpop.f32.mrf.mxu0
      %v3014 = vadd.f32 0.0, %v3013
      %v3015 = vpop.f32.mrf.mxu0
      %3016 = vdwg.mxu0
      %v3017 = vadd.f32 %v2700, %v2907
      %v3018 = vadd.f32 %v2701, %v2910
      %v3019 = vadd.f32 %v2702, %v2915
      %v3020 = vadd.f32 %v2703, %v2918
      %v3021 = vadd.f32 %v2704, %v2923
      %v3022 = vadd.f32 %v2705, %v2926
      %v3023 = vadd.f32 %v2706, %v2931
      %v3024 = vadd.f32 %v2707, %v2934
      %v3025 = vadd.f32 %v2708, %v2939
      %v3026 = vadd.f32 %v2709, %v2942
      %v3027 = vadd.f32 %v2710, %v2947
      %v3028 = vadd.f32 %v2711, %v2950
      %v3029 = vadd.f32 %v2712, %v2955
      %v3030 = vadd.f32 %v2713, %v2958
      %v3031 = vadd.f32 %v2714, %v2963
      %v3032 = vadd.f32 %v2715, %v2966
      %v3033 = vadd.f32 %v2716, %v2971
      %v3034 = vadd.f32 %v2717, %v2974
      %v3035 = vadd.f32 %v2718, %v2979
      %v3036 = vadd.f32 %v2719, %v2982
      %v3037 = vadd.f32 %v2720, %v2987
      %v3038 = vadd.f32 %v2721, %v2990
      %v3039 = vadd.f32 %v2722, %v2995
      %v3040 = vadd.f32 %v2723, %v2998
      %v3041 = vadd.f32 %v2724, %v3003
      %v3042 = vadd.f32 %v2725, %v3006
      %v3043 = vadd.f32 %v2726, %v3011
      %v3044 = vadd.f32 %v2727, %v3014
      %s3045 = scalar_lea.vmem %s3, 8
      %v3046 = vld [vmem:[%s3045] sm:$0x3]
      %v3047 = vshrl.u32 %v2496, 16
      %v3049 = vshll.u32 %v2496, 16
      %v3051 = vrot.slane %v3049, 1
      %v3052 = vor.u32 %v3047, %v3051
      %v3053 = vshll.u32 %v2497, 16
      %v3055 = vrot.slane %v3053, 1
      %v3056 = vsel %vm962, %v3052, %v3055
      %v3057 = vshrl.u32 %v2497, 16
      %v3059 = vor.u32 %v3057, %v3055
      %v3060 = vshll.u32 %v2498, 16
      %v3062 = vrot.slane %v3060, 1
      %v3063 = vsel %vm962, %v3059, %v3062
      %v3064 = vshrl.u32 %v2498, 16
      %v3066 = vor.u32 %v3064, %v3062
      %v3067 = vshll.u32 %v2499, 16
      %v3069 = vrot.slane %v3067, 1
      %v3070 = vsel %vm962, %v3066, %v3069
      %v3071 = vshrl.u32 %v2499, 16
      %v3073 = vor.u32 %v3071, %v3069
      %v3074 = vshll.u32 %v2500, 16
      %v3076 = vrot.slane %v3074, 1
      %v3077 = vsel %vm962, %v3073, %v3076
      %v3078 = vshrl.u32 %v2500, 16
      %v3080 = vor.u32 %v3078, %v3076
      %v3081 = vshll.u32 %v2501, 16
      %v3083 = vrot.slane %v3081, 1
      %v3084 = vsel %vm962, %v3080, %v3083
      %v3085 = vshrl.u32 %v2501, 16
      %v3087 = vor.u32 %v3085, %v3083
      %v3088 = vshll.u32 %v2502, 16
      %v3090 = vrot.slane %v3088, 1
      %v3091 = vsel %vm962, %v3087, %v3090
      %v3092 = vshrl.u32 %v2502, 16
      %v3094 = vor.u32 %v3092, %v3090
      %v3095 = vshll.u32 %v2503, 16
      %v3097 = vrot.slane %v3095, 1
      %v3098 = vsel %vm962, %v3094, %v3097
      %v3099 = vshrl.u32 %v2503, 16
      %v3101 = vor.u32 %v3099, %v3097
      %v3102 = vshll.u32 %v2504, 16
      %v3104 = vrot.slane %v3102, 1
      %v3105 = vsel %vm962, %v3101, %v3104
      %v3106 = vshrl.u32 %v2504, 16
      %v3108 = vor.u32 %v3106, %v3104
      %v3109 = vshll.u32 %v2505, 16
      %v3111 = vrot.slane %v3109, 1
      %v3112 = vsel %vm962, %v3108, %v3111
      %v3113 = vshrl.u32 %v2505, 16
      %v3115 = vor.u32 %v3113, %v3111
      %v3116 = vshll.u32 %v2506, 16
      %v3118 = vrot.slane %v3116, 1
      %v3119 = vsel %vm962, %v3115, %v3118
      %v3120 = vshrl.u32 %v2506, 16
      %v3122 = vor.u32 %v3120, %v3118
      %v3123 = vshll.u32 %v2507, 16
      %v3125 = vrot.slane %v3123, 1
      %v3126 = vsel %vm962, %v3122, %v3125
      %v3127 = vshrl.u32 %v2507, 16
      %v3129 = vor.u32 %v3127, %v3125
      %v3130 = vshll.u32 %v2508, 16
      %v3132 = vrot.slane %v3130, 1
      %v3133 = vsel %vm962, %v3129, %v3132
      %v3134 = vshrl.u32 %v2508, 16
      %v3136 = vor.u32 %v3134, %v3132
      %v3137 = vshll.u32 %v2509, 16
      %v3139 = vrot.slane %v3137, 1
      %v3140 = vsel %vm962, %v3136, %v3139
      %v3141 = vshrl.u32 %v2509, 16
      %v3143 = vor.u32 %v3141, %v3139
      %v3145 = vsel %vm451, %v3056, 0
      %v3148 = vsel %vm451, %v3063, 0
      %v3151 = vsel %vm451, %v3070, 0
      %v3154 = vsel %vm451, %v3077, 0
      %v3157 = vsel %vm451, %v3084, 0
      %v3160 = vsel %vm451, %v3091, 0
      %v3163 = vsel %vm451, %v3098, 0
      %v3166 = vsel %vm451, %v3105, 0
      %v3169 = vsel %vm451, %v3112, 0
      %v3172 = vsel %vm451, %v3119, 0
      %v3175 = vsel %vm451, %v3126, 0
      %v3178 = vsel %vm451, %v3133, 0
      %v3181 = vsel %vm451, %v3140, 0
      %v3184 = vsel %vm451, %v3143, 0
      %v3187 = vsel %vm494, %v3046, 0
      %3189 = vmatprep.subr.bf16.mxu0 0
      %3190 = vmatpush1.bf16.msra.mxu0 0
      %3191 = vmatprep.subr.bf16.mxu0 0
      %3192 = vmatpush1.bf16.msra.mxu0 0
      %3193 = vmatprep.subr.bf16.mxu0 0
      %3194 = vmatpush1.bf16.msra.mxu0 0
      %3195 = vmatprep.subr.bf16.mxu0 0
      %3196 = vmatpush1.bf16.msra.mxu0 0
      %3197 = vmatprep.subr.bf16.mxu0 0
      %3198 = vmatpush1.bf16.msra.mxu0 0
      %3199 = vmatprep.subr.bf16.mxu0 0
      %3200 = vmatpush1.bf16.msra.mxu0 0
      %3201 = vmatprep.subr.bf16.mxu0 0
      %3202 = vmatpush1.bf16.msra.mxu0 0
      %3203 = vmatprep.subr.bf16.mxu0 0
      %3204 = vmatpush1.bf16.msra.mxu0 %v3187
      %3205 = vmatprep.subr.bf16.mxu0 0
      %3206 = vmatpush2.bf16.msra.mxu0 0
      %3207 = vmatprep.subr.bf16.mxu0 0
      %3208 = vmatpush2.bf16.msra.mxu0 0
      %3209 = vmatprep.subr.bf16.mxu0 0
      %3210 = vmatpush2.bf16.msra.mxu0 0
      %3211 = vmatprep.subr.bf16.mxu0 0
      %3212 = vmatpush2.bf16.msra.mxu0 0
      %3213 = vmatprep.subr.bf16.mxu0 0
      %3214 = vmatpush2.bf16.msra.mxu0 0
      %3215 = vmatprep.subr.bf16.mxu0 0
      %3216 = vmatpush2.bf16.msra.mxu0 0
      %3217 = vmatprep.subr.bf16.mxu0 0
      %3218 = vmatpush2.bf16.msra.mxu0 0
      %3219 = vmatprep.subr.bf16.mxu0 0
      %3220 = vmatpush2.bf16.msra.mxu0 0
      %3221 = vmatprep.mubr.bf16.mxu0 0
      %3222 = vmatmul.mubr.bf16.gmra.mxu0 %v3145
      %v3223 = vpop.f32.mrf.mxu0
      %v3224 = vadd.f32 0.0, %v3223
      %v3225 = vpop.f32.mrf.mxu0
      %v3226 = vpop.f32.mrf.mxu0
      %v3227 = vadd.f32 0.0, %v3226
      %v3228 = vpop.f32.mrf.mxu0
      %3229 = vmatprep.mubr.bf16.mxu0 0
      %3230 = vmatmul.mubr.bf16.gmra.mxu0 %v3148
      %v3231 = vpop.f32.mrf.mxu0
      %v3232 = vadd.f32 0.0, %v3231
      %v3233 = vpop.f32.mrf.mxu0
      %v3234 = vpop.f32.mrf.mxu0
      %v3235 = vadd.f32 0.0, %v3234
      %v3236 = vpop.f32.mrf.mxu0
      %3237 = vmatprep.mubr.bf16.mxu0 0
      %3238 = vmatmul.mubr.bf16.gmra.mxu0 %v3151
      %v3239 = vpop.f32.mrf.mxu0
      %v3240 = vadd.f32 0.0, %v3239
      %v3241 = vpop.f32.mrf.mxu0
      %v3242 = vpop.f32.mrf.mxu0
      %v3243 = vadd.f32 0.0, %v3242
      %v3244 = vpop.f32.mrf.mxu0
      %3245 = vmatprep.mubr.bf16.mxu0 0
      %3246 = vmatmul.mubr.bf16.gmra.mxu0 %v3154
      %v3247 = vpop.f32.mrf.mxu0
      %v3248 = vadd.f32 0.0, %v3247
      %v3249 = vpop.f32.mrf.mxu0
      %v3250 = vpop.f32.mrf.mxu0
      %v3251 = vadd.f32 0.0, %v3250
      %v3252 = vpop.f32.mrf.mxu0
      %3253 = vmatprep.mubr.bf16.mxu0 0
      %3254 = vmatmul.mubr.bf16.gmra.mxu0 %v3157
      %v3255 = vpop.f32.mrf.mxu0
      %v3256 = vadd.f32 0.0, %v3255
      %v3257 = vpop.f32.mrf.mxu0
      %v3258 = vpop.f32.mrf.mxu0
      %v3259 = vadd.f32 0.0, %v3258
      %v3260 = vpop.f32.mrf.mxu0
      %3261 = vmatprep.mubr.bf16.mxu0 0
      %3262 = vmatmul.mubr.bf16.gmra.mxu0 %v3160
      %v3263 = vpop.f32.mrf.mxu0
      %v3264 = vadd.f32 0.0, %v3263
      %v3265 = vpop.f32.mrf.mxu0
      %v3266 = vpop.f32.mrf.mxu0
      %v3267 = vadd.f32 0.0, %v3266
      %v3268 = vpop.f32.mrf.mxu0
      %3269 = vmatprep.mubr.bf16.mxu0 0
      %3270 = vmatmul.mubr.bf16.gmra.mxu0 %v3163
      %v3271 = vpop.f32.mrf.mxu0
      %v3272 = vadd.f32 0.0, %v3271
      %v3273 = vpop.f32.mrf.mxu0
      %v3274 = vpop.f32.mrf.mxu0
      %v3275 = vadd.f32 0.0, %v3274
      %v3276 = vpop.f32.mrf.mxu0
      %3277 = vmatprep.mubr.bf16.mxu0 0
      %3278 = vmatmul.mubr.bf16.gmra.mxu0 %v3166
      %v3279 = vpop.f32.mrf.mxu0
      %v3280 = vadd.f32 0.0, %v3279
      %v3281 = vpop.f32.mrf.mxu0
      %v3282 = vpop.f32.mrf.mxu0
      %v3283 = vadd.f32 0.0, %v3282
      %v3284 = vpop.f32.mrf.mxu0
      %3285 = vmatprep.mubr.bf16.mxu0 0
      %3286 = vmatmul.mubr.bf16.gmra.mxu0 %v3169
      %v3287 = vpop.f32.mrf.mxu0
      %v3288 = vadd.f32 0.0, %v3287
      %v3289 = vpop.f32.mrf.mxu0
      %v3290 = vpop.f32.mrf.mxu0
      %v3291 = vadd.f32 0.0, %v3290
      %v3292 = vpop.f32.mrf.mxu0
      %3293 = vmatprep.mubr.bf16.mxu0 0
      %3294 = vmatmul.mubr.bf16.gmra.mxu0 %v3172
      %v3295 = vpop.f32.mrf.mxu0
      %v3296 = vadd.f32 0.0, %v3295
      %v3297 = vpop.f32.mrf.mxu0
      %v3298 = vpop.f32.mrf.mxu0
      %v3299 = vadd.f32 0.0, %v3298
      %v3300 = vpop.f32.mrf.mxu0
      %3301 = vmatprep.mubr.bf16.mxu0 0
      %3302 = vmatmul.mubr.bf16.gmra.mxu0 %v3175
      %v3303 = vpop.f32.mrf.mxu0
      %v3304 = vadd.f32 0.0, %v3303
      %v3305 = vpop.f32.mrf.mxu0
      %v3306 = vpop.f32.mrf.mxu0
      %v3307 = vadd.f32 0.0, %v3306
      %v3308 = vpop.f32.mrf.mxu0
      %3309 = vmatprep.mubr.bf16.mxu0 0
      %3310 = vmatmul.mubr.bf16.gmra.mxu0 %v3178
      %v3311 = vpop.f32.mrf.mxu0
      %v3312 = vadd.f32 0.0, %v3311
      %v3313 = vpop.f32.mrf.mxu0
      %v3314 = vpop.f32.mrf.mxu0
      %v3315 = vadd.f32 0.0, %v3314
      %v3316 = vpop.f32.mrf.mxu0
      %3317 = vmatprep.mubr.bf16.mxu0 0
      %3318 = vmatmul.mubr.bf16.gmra.mxu0 %v3181
      %v3319 = vpop.f32.mrf.mxu0
      %v3320 = vadd.f32 0.0, %v3319
      %v3321 = vpop.f32.mrf.mxu0
      %v3322 = vpop.f32.mrf.mxu0
      %v3323 = vadd.f32 0.0, %v3322
      %v3324 = vpop.f32.mrf.mxu0
      %3325 = vmatprep.mubr.bf16.mxu0 0
      %3326 = vmatmul.mubr.bf16.gmra.mxu0 %v3184
      %v3327 = vpop.f32.mrf.mxu0
      %v3328 = vadd.f32 0.0, %v3327
      %v3329 = vpop.f32.mrf.mxu0
      %v3330 = vpop.f32.mrf.mxu0
      %v3331 = vadd.f32 0.0, %v3330
      %v3332 = vpop.f32.mrf.mxu0
      %3333 = vdwg.mxu0
      %v3334 = vadd.f32 %v3017, %v3224
      %v3335 = vadd.f32 %v3018, %v3227
      %v3336 = vadd.f32 %v3019, %v3232
      %v3337 = vadd.f32 %v3020, %v3235
      %v3338 = vadd.f32 %v3021, %v3240
      %v3339 = vadd.f32 %v3022, %v3243
      %v3340 = vadd.f32 %v3023, %v3248
      %v3341 = vadd.f32 %v3024, %v3251
      %v3342 = vadd.f32 %v3025, %v3256
      %v3343 = vadd.f32 %v3026, %v3259
      %v3344 = vadd.f32 %v3027, %v3264
      %v3345 = vadd.f32 %v3028, %v3267
      %v3346 = vadd.f32 %v3029, %v3272
      %v3347 = vadd.f32 %v3030, %v3275
      %v3348 = vadd.f32 %v3031, %v3280
      %v3349 = vadd.f32 %v3032, %v3283
      %v3350 = vadd.f32 %v3033, %v3288
      %v3351 = vadd.f32 %v3034, %v3291
      %v3352 = vadd.f32 %v3035, %v3296
      %v3353 = vadd.f32 %v3036, %v3299
      %v3354 = vadd.f32 %v3037, %v3304
      %v3355 = vadd.f32 %v3038, %v3307
      %v3356 = vadd.f32 %v3039, %v3312
      %v3357 = vadd.f32 %v3040, %v3315
      %v3358 = vadd.f32 %v3041, %v3320
      %v3359 = vadd.f32 %v3042, %v3323
      %v3360 = vadd.f32 %v3043, %v3328
      %v3361 = vadd.f32 %v3044, %v3331
      %s3362 = scalar_lea.vmem %s2, 10
      %v3363 = vld [vmem:[%s3362] sm:$0x3]
      %v3364 = vrot.slane %v2206, 1
      %v3365 = vrot.slane %v2207, 1
      %v3366 = vsel %vm1597, %v3364, %v3365
      %v3367 = vrot.slane %v2208, 1
      %v3368 = vsel %vm1597, %v3365, %v3367
      %v3369 = vrot.slane %v2209, 1
      %v3370 = vsel %vm1597, %v3367, %v3369
      %v3371 = vrot.slane %v2210, 1
      %v3372 = vsel %vm1597, %v3369, %v3371
      %v3373 = vrot.slane %v2211, 1
      %v3374 = vsel %vm1597, %v3371, %v3373
      %v3375 = vrot.slane %v2212, 1
      %v3376 = vsel %vm1597, %v3373, %v3375
      %v3377 = vrot.slane %v2213, 1
      %v3378 = vsel %vm1597, %v3375, %v3377
      %v3379 = vrot.slane %v2214, 1
      %v3380 = vsel %vm1597, %v3377, %v3379
      %v3381 = vrot.slane %v2215, 1
      %v3382 = vsel %vm1597, %v3379, %v3381
      %v3383 = vrot.slane %v2216, 1
      %v3384 = vsel %vm1597, %v3381, %v3383
      %v3385 = vrot.slane %v2217, 1
      %v3386 = vsel %vm1597, %v3383, %v3385
      %v3387 = vrot.slane %v2218, 1
      %v3388 = vsel %vm1597, %v3385, %v3387
      %v3389 = vrot.slane %v2219, 1
      %v3390 = vsel %vm1597, %v3387, %v3389
      %v3392 = vsel %vm451, %v3366, 0
      %v3395 = vsel %vm451, %v3368, 0
      %v3398 = vsel %vm451, %v3370, 0
      %v3401 = vsel %vm451, %v3372, 0
      %v3404 = vsel %vm451, %v3374, 0
      %v3407 = vsel %vm451, %v3376, 0
      %v3410 = vsel %vm451, %v3378, 0
      %v3413 = vsel %vm451, %v3380, 0
      %v3416 = vsel %vm451, %v3382, 0
      %v3419 = vsel %vm451, %v3384, 0
      %v3422 = vsel %vm451, %v3386, 0
      %v3425 = vsel %vm451, %v3388, 0
      %v3428 = vsel %vm451, %v3390, 0
      %v3431 = vsel %vm451, %v3389, 0
      %v3434 = vsel %vm494, %v3363, 0
      %3436 = vmatprep.subr.bf16.mxu0 0
      %3437 = vmatpush1.bf16.msra.mxu0 0
      %3438 = vmatprep.subr.bf16.mxu0 0
      %3439 = vmatpush1.bf16.msra.mxu0 0
      %3440 = vmatprep.subr.bf16.mxu0 0
      %3441 = vmatpush1.bf16.msra.mxu0 0
      %3442 = vmatprep.subr.bf16.mxu0 0
      %3443 = vmatpush1.bf16.msra.mxu0 0
      %3444 = vmatprep.subr.bf16.mxu0 0
      %3445 = vmatpush1.bf16.msra.mxu0 0
      %3446 = vmatprep.subr.bf16.mxu0 0
      %3447 = vmatpush1.bf16.msra.mxu0 0
      %3448 = vmatprep.subr.bf16.mxu0 0
      %3449 = vmatpush1.bf16.msra.mxu0 0
      %3450 = vmatprep.subr.bf16.mxu0 0
      %3451 = vmatpush1.bf16.msra.mxu0 %v3434
      %3452 = vmatprep.subr.bf16.mxu0 0
      %3453 = vmatpush2.bf16.msra.mxu0 0
      %3454 = vmatprep.subr.bf16.mxu0 0
      %3455 = vmatpush2.bf16.msra.mxu0 0
      %3456 = vmatprep.subr.bf16.mxu0 0
      %3457 = vmatpush2.bf16.msra.mxu0 0
      %3458 = vmatprep.subr.bf16.mxu0 0
      %3459 = vmatpush2.bf16.msra.mxu0 0
      %3460 = vmatprep.subr.bf16.mxu0 0
      %3461 = vmatpush2.bf16.msra.mxu0 0
      %3462 = vmatprep.subr.bf16.mxu0 0
      %3463 = vmatpush2.bf16.msra.mxu0 0
      %3464 = vmatprep.subr.bf16.mxu0 0
      %3465 = vmatpush2.bf16.msra.mxu0 0
      %3466 = vmatprep.subr.bf16.mxu0 0
      %3467 = vmatpush2.bf16.msra.mxu0 0
      %3468 = vmatprep.mubr.bf16.mxu0 0
      %3469 = vmatmul.mubr.bf16.gmra.mxu0 %v3392
      %v3470 = vpop.f32.mrf.mxu0
      %v3471 = vadd.f32 0.0, %v3470
      %v3472 = vpop.f32.mrf.mxu0
      %v3473 = vpop.f32.mrf.mxu0
      %v3474 = vadd.f32 0.0, %v3473
      %v3475 = vpop.f32.mrf.mxu0
      %3476 = vmatprep.mubr.bf16.mxu0 0
      %3477 = vmatmul.mubr.bf16.gmra.mxu0 %v3395
      %v3478 = vpop.f32.mrf.mxu0
      %v3479 = vadd.f32 0.0, %v3478
      %v3480 = vpop.f32.mrf.mxu0
      %v3481 = vpop.f32.mrf.mxu0
      %v3482 = vadd.f32 0.0, %v3481
      %v3483 = vpop.f32.mrf.mxu0
      %3484 = vmatprep.mubr.bf16.mxu0 0
      %3485 = vmatmul.mubr.bf16.gmra.mxu0 %v3398
      %v3486 = vpop.f32.mrf.mxu0
      %v3487 = vadd.f32 0.0, %v3486
      %v3488 = vpop.f32.mrf.mxu0
      %v3489 = vpop.f32.mrf.mxu0
      %v3490 = vadd.f32 0.0, %v3489
      %v3491 = vpop.f32.mrf.mxu0
      %3492 = vmatprep.mubr.bf16.mxu0 0
      %3493 = vmatmul.mubr.bf16.gmra.mxu0 %v3401
      %v3494 = vpop.f32.mrf.mxu0
      %v3495 = vadd.f32 0.0, %v3494
      %v3496 = vpop.f32.mrf.mxu0
      %v3497 = vpop.f32.mrf.mxu0
      %v3498 = vadd.f32 0.0, %v3497
      %v3499 = vpop.f32.mrf.mxu0
      %3500 = vmatprep.mubr.bf16.mxu0 0
      %3501 = vmatmul.mubr.bf16.gmra.mxu0 %v3404
      %v3502 = vpop.f32.mrf.mxu0
      %v3503 = vadd.f32 0.0, %v3502
      %v3504 = vpop.f32.mrf.mxu0
      %v3505 = vpop.f32.mrf.mxu0
      %v3506 = vadd.f32 0.0, %v3505
      %v3507 = vpop.f32.mrf.mxu0
      %3508 = vmatprep.mubr.bf16.mxu0 0
      %3509 = vmatmul.mubr.bf16.gmra.mxu0 %v3407
      %v3510 = vpop.f32.mrf.mxu0
      %v3511 = vadd.f32 0.0, %v3510
      %v3512 = vpop.f32.mrf.mxu0
      %v3513 = vpop.f32.mrf.mxu0
      %v3514 = vadd.f32 0.0, %v3513
      %v3515 = vpop.f32.mrf.mxu0
      %3516 = vmatprep.mubr.bf16.mxu0 0
      %3517 = vmatmul.mubr.bf16.gmra.mxu0 %v3410
      %v3518 = vpop.f32.mrf.mxu0
      %v3519 = vadd.f32 0.0, %v3518
      %v3520 = vpop.f32.mrf.mxu0
      %v3521 = vpop.f32.mrf.mxu0
      %v3522 = vadd.f32 0.0, %v3521
      %v3523 = vpop.f32.mrf.mxu0
      %3524 = vmatprep.mubr.bf16.mxu0 0
      %3525 = vmatmul.mubr.bf16.gmra.mxu0 %v3413
      %v3526 = vpop.f32.mrf.mxu0
      %v3527 = vadd.f32 0.0, %v3526
      %v3528 = vpop.f32.mrf.mxu0
      %v3529 = vpop.f32.mrf.mxu0
      %v3530 = vadd.f32 0.0, %v3529
      %v3531 = vpop.f32.mrf.mxu0
      %3532 = vmatprep.mubr.bf16.mxu0 0
      %3533 = vmatmul.mubr.bf16.gmra.mxu0 %v3416
      %v3534 = vpop.f32.mrf.mxu0
      %v3535 = vadd.f32 0.0, %v3534
      %v3536 = vpop.f32.mrf.mxu0
      %v3537 = vpop.f32.mrf.mxu0
      %v3538 = vadd.f32 0.0, %v3537
      %v3539 = vpop.f32.mrf.mxu0
      %3540 = vmatprep.mubr.bf16.mxu0 0
      %3541 = vmatmul.mubr.bf16.gmra.mxu0 %v3419
      %v3542 = vpop.f32.mrf.mxu0
      %v3543 = vadd.f32 0.0, %v3542
      %v3544 = vpop.f32.mrf.mxu0
      %v3545 = vpop.f32.mrf.mxu0
      %v3546 = vadd.f32 0.0, %v3545
      %v3547 = vpop.f32.mrf.mxu0
      %3548 = vmatprep.mubr.bf16.mxu0 0
      %3549 = vmatmul.mubr.bf16.gmra.mxu0 %v3422
      %v3550 = vpop.f32.mrf.mxu0
      %v3551 = vadd.f32 0.0, %v3550
      %v3552 = vpop.f32.mrf.mxu0
      %v3553 = vpop.f32.mrf.mxu0
      %v3554 = vadd.f32 0.0, %v3553
      %v3555 = vpop.f32.mrf.mxu0
      %3556 = vmatprep.mubr.bf16.mxu0 0
      %3557 = vmatmul.mubr.bf16.gmra.mxu0 %v3425
      %v3558 = vpop.f32.mrf.mxu0
      %v3559 = vadd.f32 0.0, %v3558
      %v3560 = vpop.f32.mrf.mxu0
      %v3561 = vpop.f32.mrf.mxu0
      %v3562 = vadd.f32 0.0, %v3561
      %v3563 = vpop.f32.mrf.mxu0
      %3564 = vmatprep.mubr.bf16.mxu0 0
      %3565 = vmatmul.mubr.bf16.gmra.mxu0 %v3428
      %v3566 = vpop.f32.mrf.mxu0
      %v3567 = vadd.f32 0.0, %v3566
      %v3568 = vpop.f32.mrf.mxu0
      %v3569 = vpop.f32.mrf.mxu0
      %v3570 = vadd.f32 0.0, %v3569
      %v3571 = vpop.f32.mrf.mxu0
      %3572 = vmatprep.mubr.bf16.mxu0 0
      %3573 = vmatmul.mubr.bf16.gmra.mxu0 %v3431
      %v3574 = vpop.f32.mrf.mxu0
      %v3575 = vadd.f32 0.0, %v3574
      %v3576 = vpop.f32.mrf.mxu0
      %v3577 = vpop.f32.mrf.mxu0
      %v3578 = vadd.f32 0.0, %v3577
      %v3579 = vpop.f32.mrf.mxu0
      %3580 = vdwg.mxu0
      %v3581 = vadd.f32 %v3334, %v3471
      %v3582 = vadd.f32 %v3335, %v3474
      %v3583 = vadd.f32 %v3336, %v3479
      %v3584 = vadd.f32 %v3337, %v3482
      %v3585 = vadd.f32 %v3338, %v3487
      %v3586 = vadd.f32 %v3339, %v3490
      %v3587 = vadd.f32 %v3340, %v3495
      %v3588 = vadd.f32 %v3341, %v3498
      %v3589 = vadd.f32 %v3342, %v3503
      %v3590 = vadd.f32 %v3343, %v3506
      %v3591 = vadd.f32 %v3344, %v3511
      %v3592 = vadd.f32 %v3345, %v3514
      %v3593 = vadd.f32 %v3346, %v3519
      %v3594 = vadd.f32 %v3347, %v3522
      %v3595 = vadd.f32 %v3348, %v3527
      %v3596 = vadd.f32 %v3349, %v3530
      %v3597 = vadd.f32 %v3350, %v3535
      %v3598 = vadd.f32 %v3351, %v3538
      %v3599 = vadd.f32 %v3352, %v3543
      %v3600 = vadd.f32 %v3353, %v3546
      %v3601 = vadd.f32 %v3354, %v3551
      %v3602 = vadd.f32 %v3355, %v3554
      %v3603 = vadd.f32 %v3356, %v3559
      %v3604 = vadd.f32 %v3357, %v3562
      %v3605 = vadd.f32 %v3358, %v3567
      %v3606 = vadd.f32 %v3359, %v3570
      %v3607 = vadd.f32 %v3360, %v3575
      %v3608 = vadd.f32 %v3361, %v3578
      %s3609 = scalar_lea.vmem %s3, 10
      %v3610 = vld [vmem:[%s3609] sm:$0x3]
      %v3611 = vrot.slane %v2496, 1
      %v3612 = vrot.slane %v2497, 1
      %v3613 = vsel %vm1597, %v3611, %v3612
      %v3614 = vrot.slane %v2498, 1
      %v3615 = vsel %vm1597, %v3612, %v3614
      %v3616 = vrot.slane %v2499, 1
      %v3617 = vsel %vm1597, %v3614, %v3616
      %v3618 = vrot.slane %v2500, 1
      %v3619 = vsel %vm1597, %v3616, %v3618
      %v3620 = vrot.slane %v2501, 1
      %v3621 = vsel %vm1597, %v3618, %v3620
      %v3622 = vrot.slane %v2502, 1
      %v3623 = vsel %vm1597, %v3620, %v3622
      %v3624 = vrot.slane %v2503, 1
      %v3625 = vsel %vm1597, %v3622, %v3624
      %v3626 = vrot.slane %v2504, 1
      %v3627 = vsel %vm1597, %v3624, %v3626
      %v3628 = vrot.slane %v2505, 1
      %v3629 = vsel %vm1597, %v3626, %v3628
      %v3630 = vrot.slane %v2506, 1
      %v3631 = vsel %vm1597, %v3628, %v3630
      %v3632 = vrot.slane %v2507, 1
      %v3633 = vsel %vm1597, %v3630, %v3632
      %v3634 = vrot.slane %v2508, 1
      %v3635 = vsel %vm1597, %v3632, %v3634
      %v3636 = vrot.slane %v2509, 1
      %v3637 = vsel %vm1597, %v3634, %v3636
      %v3639 = vsel %vm451, %v3613, 0
      %v3642 = vsel %vm451, %v3615, 0
      %v3645 = vsel %vm451, %v3617, 0
      %v3648 = vsel %vm451, %v3619, 0
      %v3651 = vsel %vm451, %v3621, 0
      %v3654 = vsel %vm451, %v3623, 0
      %v3657 = vsel %vm451, %v3625, 0
      %v3660 = vsel %vm451, %v3627, 0
      %v3663 = vsel %vm451, %v3629, 0
      %v3666 = vsel %vm451, %v3631, 0
      %v3669 = vsel %vm451, %v3633, 0
      %v3672 = vsel %vm451, %v3635, 0
      %v3675 = vsel %vm451, %v3637, 0
      %v3678 = vsel %vm451, %v3636, 0
      %v3681 = vsel %vm494, %v3610, 0
      %3683 = vmatprep.subr.bf16.mxu0 0
      %3684 = vmatpush1.bf16.msra.mxu0 0
      %3685 = vmatprep.subr.bf16.mxu0 0
      %3686 = vmatpush1.bf16.msra.mxu0 0
      %3687 = vmatprep.subr.bf16.mxu0 0
      %3688 = vmatpush1.bf16.msra.mxu0 0
      %3689 = vmatprep.subr.bf16.mxu0 0
      %3690 = vmatpush1.bf16.msra.mxu0 0
      %3691 = vmatprep.subr.bf16.mxu0 0
      %3692 = vmatpush1.bf16.msra.mxu0 0
      %3693 = vmatprep.subr.bf16.mxu0 0
      %3694 = vmatpush1.bf16.msra.mxu0 0
      %3695 = vmatprep.subr.bf16.mxu0 0
      %3696 = vmatpush1.bf16.msra.mxu0 0
      %3697 = vmatprep.subr.bf16.mxu0 0
      %3698 = vmatpush1.bf16.msra.mxu0 %v3681
      %3699 = vmatprep.subr.bf16.mxu0 0
      %3700 = vmatpush2.bf16.msra.mxu0 0
      %3701 = vmatprep.subr.bf16.mxu0 0
      %3702 = vmatpush2.bf16.msra.mxu0 0
      %3703 = vmatprep.subr.bf16.mxu0 0
      %3704 = vmatpush2.bf16.msra.mxu0 0
      %3705 = vmatprep.subr.bf16.mxu0 0
      %3706 = vmatpush2.bf16.msra.mxu0 0
      %3707 = vmatprep.subr.bf16.mxu0 0
      %3708 = vmatpush2.bf16.msra.mxu0 0
      %3709 = vmatprep.subr.bf16.mxu0 0
      %3710 = vmatpush2.bf16.msra.mxu0 0
      %3711 = vmatprep.subr.bf16.mxu0 0
      %3712 = vmatpush2.bf16.msra.mxu0 0
      %3713 = vmatprep.subr.bf16.mxu0 0
      %3714 = vmatpush2.bf16.msra.mxu0 0
      %3715 = vmatprep.mubr.bf16.mxu0 0
      %3716 = vmatmul.mubr.bf16.gmra.mxu0 %v3639
      %v3717 = vpop.f32.mrf.mxu0
      %v3718 = vadd.f32 0.0, %v3717
      %v3719 = vpop.f32.mrf.mxu0
      %v3720 = vpop.f32.mrf.mxu0
      %v3721 = vadd.f32 0.0, %v3720
      %v3722 = vpop.f32.mrf.mxu0
      %3723 = vmatprep.mubr.bf16.mxu0 0
      %3724 = vmatmul.mubr.bf16.gmra.mxu0 %v3642
      %v3725 = vpop.f32.mrf.mxu0
      %v3726 = vadd.f32 0.0, %v3725
      %v3727 = vpop.f32.mrf.mxu0
      %v3728 = vpop.f32.mrf.mxu0
      %v3729 = vadd.f32 0.0, %v3728
      %v3730 = vpop.f32.mrf.mxu0
      %3731 = vmatprep.mubr.bf16.mxu0 0
      %3732 = vmatmul.mubr.bf16.gmra.mxu0 %v3645
      %v3733 = vpop.f32.mrf.mxu0
      %v3734 = vadd.f32 0.0, %v3733
      %v3735 = vpop.f32.mrf.mxu0
      %v3736 = vpop.f32.mrf.mxu0
      %v3737 = vadd.f32 0.0, %v3736
      %v3738 = vpop.f32.mrf.mxu0
      %3739 = vmatprep.mubr.bf16.mxu0 0
      %3740 = vmatmul.mubr.bf16.gmra.mxu0 %v3648
      %v3741 = vpop.f32.mrf.mxu0
      %v3742 = vadd.f32 0.0, %v3741
      %v3743 = vpop.f32.mrf.mxu0
      %v3744 = vpop.f32.mrf.mxu0
      %v3745 = vadd.f32 0.0, %v3744
      %v3746 = vpop.f32.mrf.mxu0
      %3747 = vmatprep.mubr.bf16.mxu0 0
      %3748 = vmatmul.mubr.bf16.gmra.mxu0 %v3651
      %v3749 = vpop.f32.mrf.mxu0
      %v3750 = vadd.f32 0.0, %v3749
      %v3751 = vpop.f32.mrf.mxu0
      %v3752 = vpop.f32.mrf.mxu0
      %v3753 = vadd.f32 0.0, %v3752
      %v3754 = vpop.f32.mrf.mxu0
      %3755 = vmatprep.mubr.bf16.mxu0 0
      %3756 = vmatmul.mubr.bf16.gmra.mxu0 %v3654
      %v3757 = vpop.f32.mrf.mxu0
      %v3758 = vadd.f32 0.0, %v3757
      %v3759 = vpop.f32.mrf.mxu0
      %v3760 = vpop.f32.mrf.mxu0
      %v3761 = vadd.f32 0.0, %v3760
      %v3762 = vpop.f32.mrf.mxu0
      %3763 = vmatprep.mubr.bf16.mxu0 0
      %3764 = vmatmul.mubr.bf16.gmra.mxu0 %v3657
      %v3765 = vpop.f32.mrf.mxu0
      %v3766 = vadd.f32 0.0, %v3765
      %v3767 = vpop.f32.mrf.mxu0
      %v3768 = vpop.f32.mrf.mxu0
      %v3769 = vadd.f32 0.0, %v3768
      %v3770 = vpop.f32.mrf.mxu0
      %3771 = vmatprep.mubr.bf16.mxu0 0
      %3772 = vmatmul.mubr.bf16.gmra.mxu0 %v3660
      %v3773 = vpop.f32.mrf.mxu0
      %v3774 = vadd.f32 0.0, %v3773
      %v3775 = vpop.f32.mrf.mxu0
      %v3776 = vpop.f32.mrf.mxu0
      %v3777 = vadd.f32 0.0, %v3776
      %v3778 = vpop.f32.mrf.mxu0
      %3779 = vmatprep.mubr.bf16.mxu0 0
      %3780 = vmatmul.mubr.bf16.gmra.mxu0 %v3663
      %v3781 = vpop.f32.mrf.mxu0
      %v3782 = vadd.f32 0.0, %v3781
      %v3783 = vpop.f32.mrf.mxu0
      %v3784 = vpop.f32.mrf.mxu0
      %v3785 = vadd.f32 0.0, %v3784
      %v3786 = vpop.f32.mrf.mxu0
      %3787 = vmatprep.mubr.bf16.mxu0 0
      %3788 = vmatmul.mubr.bf16.gmra.mxu0 %v3666
      %v3789 = vpop.f32.mrf.mxu0
      %v3790 = vadd.f32 0.0, %v3789
      %v3791 = vpop.f32.mrf.mxu0
      %v3792 = vpop.f32.mrf.mxu0
      %v3793 = vadd.f32 0.0, %v3792
      %v3794 = vpop.f32.mrf.mxu0
      %3795 = vmatprep.mubr.bf16.mxu0 0
      %3796 = vmatmul.mubr.bf16.gmra.mxu0 %v3669
      %v3797 = vpop.f32.mrf.mxu0
      %v3798 = vadd.f32 0.0, %v3797
      %v3799 = vpop.f32.mrf.mxu0
      %v3800 = vpop.f32.mrf.mxu0
      %v3801 = vadd.f32 0.0, %v3800
      %v3802 = vpop.f32.mrf.mxu0
      %3803 = vmatprep.mubr.bf16.mxu0 0
      %3804 = vmatmul.mubr.bf16.gmra.mxu0 %v3672
      %v3805 = vpop.f32.mrf.mxu0
      %v3806 = vadd.f32 0.0, %v3805
      %v3807 = vpop.f32.mrf.mxu0
      %v3808 = vpop.f32.mrf.mxu0
      %v3809 = vadd.f32 0.0, %v3808
      %v3810 = vpop.f32.mrf.mxu0
      %3811 = vmatprep.mubr.bf16.mxu0 0
      %3812 = vmatmul.mubr.bf16.gmra.mxu0 %v3675
      %v3813 = vpop.f32.mrf.mxu0
      %v3814 = vadd.f32 0.0, %v3813
      %v3815 = vpop.f32.mrf.mxu0
      %v3816 = vpop.f32.mrf.mxu0
      %v3817 = vadd.f32 0.0, %v3816
      %v3818 = vpop.f32.mrf.mxu0
      %3819 = vmatprep.mubr.bf16.mxu0 0
      %3820 = vmatmul.mubr.bf16.gmra.mxu0 %v3678
      %v3821 = vpop.f32.mrf.mxu0
      %v3822 = vadd.f32 0.0, %v3821
      %v3823 = vpop.f32.mrf.mxu0
      %v3824 = vpop.f32.mrf.mxu0
      %v3825 = vadd.f32 0.0, %v3824
      %v3826 = vpop.f32.mrf.mxu0
      %3827 = vdwg.mxu0
      %v3828 = vadd.f32 %v3581, %v3718
      %v3829 = vadd.f32 %v3582, %v3721
      %v3830 = vadd.f32 %v3583, %v3726
      %v3831 = vadd.f32 %v3584, %v3729
      %v3832 = vadd.f32 %v3585, %v3734
      %v3833 = vadd.f32 %v3586, %v3737
      %v3834 = vadd.f32 %v3587, %v3742
      %v3835 = vadd.f32 %v3588, %v3745
      %v3836 = vadd.f32 %v3589, %v3750
      %v3837 = vadd.f32 %v3590, %v3753
      %v3838 = vadd.f32 %v3591, %v3758
      %v3839 = vadd.f32 %v3592, %v3761
      %v3840 = vadd.f32 %v3593, %v3766
      %v3841 = vadd.f32 %v3594, %v3769
      %v3842 = vadd.f32 %v3595, %v3774
      %v3843 = vadd.f32 %v3596, %v3777
      %v3844 = vadd.f32 %v3597, %v3782
      %v3845 = vadd.f32 %v3598, %v3785
      %v3846 = vadd.f32 %v3599, %v3790
      %v3847 = vadd.f32 %v3600, %v3793
      %v3848 = vadd.f32 %v3601, %v3798
      %v3849 = vadd.f32 %v3602, %v3801
      %v3850 = vadd.f32 %v3603, %v3806
      %v3851 = vadd.f32 %v3604, %v3809
      %v3852 = vadd.f32 %v3605, %v3814
      %v3853 = vadd.f32 %v3606, %v3817
      %v3854 = vadd.f32 %v3607, %v3822
      %v3855 = vadd.f32 %v3608, %v3825
      %s3856 = scalar_lea.vmem %s299, 16
      %v3857 = vld [vmem:[%s3856] sm:$0xf]
      %v3858 = vld [vmem:[%s3856 + $0x4] sm:$0xf]
      %v3859 = vld [vmem:[%s3856 + $0x8] sm:$0xf]
      %v3860 = vld [vmem:[%s3856 + $0xc] sm:$0xf]
      %v3861 = vld [vmem:[%s3856 + $0x10] sm:$0xf]
      %v3862 = vld [vmem:[%s3856 + $0x14] sm:$0xf]
      %v3863 = vld [vmem:[%s3856 + $0x18] sm:$0xf]
      %v3864 = vld [vmem:[%s3856 + $0x1c] sm:$0xf]
      %v3865 = vld [vmem:[%s3856 + $0x20] sm:$0xf]
      %v3866 = vld [vmem:[%s3856 + $0x24] sm:$0xf]
      %v3867 = vld [vmem:[%s3856 + $0x28] sm:$0xf]
      %v3868 = vld [vmem:[%s3856 + $0x2c] sm:$0xf]
      %v3869 = vld [vmem:[%s3856 + $0x30] sm:$0xf]
      %v3870 = vld [vmem:[%s3856 + $0x34] sm:$0xf]
      %v3871 = vld [vmem:[%s3856 + $0x38] sm:$0xf]
      %v3872 = vld [vmem:[%s3856 + $0x3c] sm:$0xf]
      %v3873 = vld [vmem:[%s3856 + $0x40] sm:$0xf]
      %v3874 = vld [vmem:[%s3856 + $0x44] sm:$0xf]
      %v3875 = vld [vmem:[%s3856 + $0x48] sm:$0xf]
      %v3876 = vld [vmem:[%s3856 + $0x4c] sm:$0xf]
      %v3877 = vld [vmem:[%s3856 + $0x50] sm:$0xf]
      %v3878 = vld [vmem:[%s3856 + $0x54] sm:$0xf]
      %v3879 = vld [vmem:[%s3856 + $0x58] sm:$0xf]
      %v3880 = vld [vmem:[%s3856 + $0x5c] sm:$0xf]
      %v3881 = vld [vmem:[%s3856 + $0x60] sm:$0xf]
      %v3882 = vld [vmem:[%s3856 + $0x64] sm:$0xf]
      %v3883 = vld [vmem:[%s3856 + $0x68] sm:$0xf]
      %v3884 = vld [vmem:[%s3856 + $0x6c] sm:$0xf]
      %s3885 = scalar_lea.vmem %s304, 16
      %v3886 = vld [vmem:[%s3885] sm:$0xf]
      %v3887 = vld [vmem:[%s3885 + $0x4] sm:$0xf]
      %v3888 = vld [vmem:[%s3885 + $0x8] sm:$0xf]
      %v3889 = vld [vmem:[%s3885 + $0xc] sm:$0xf]
      %v3890 = vld [vmem:[%s3885 + $0x10] sm:$0xf]
      %v3891 = vld [vmem:[%s3885 + $0x14] sm:$0xf]
      %v3892 = vld [vmem:[%s3885 + $0x18] sm:$0xf]
      %v3893 = vld [vmem:[%s3885 + $0x1c] sm:$0xf]
      %v3894 = vld [vmem:[%s3885 + $0x20] sm:$0xf]
      %v3895 = vld [vmem:[%s3885 + $0x24] sm:$0xf]
      %v3896 = vld [vmem:[%s3885 + $0x28] sm:$0xf]
      %v3897 = vld [vmem:[%s3885 + $0x2c] sm:$0xf]
      %v3898 = vld [vmem:[%s3885 + $0x30] sm:$0xf]
      %v3899 = vld [vmem:[%s3885 + $0x34] sm:$0xf]
      %v3900 = vld [vmem:[%s3885 + $0x38] sm:$0xf]
      %v3901 = vld [vmem:[%s3885 + $0x3c] sm:$0xf]
      %v3902 = vld [vmem:[%s3885 + $0x40] sm:$0xf]
      %v3903 = vld [vmem:[%s3885 + $0x44] sm:$0xf]
      %v3904 = vld [vmem:[%s3885 + $0x48] sm:$0xf]
      %v3905 = vld [vmem:[%s3885 + $0x4c] sm:$0xf]
      %v3906 = vld [vmem:[%s3885 + $0x50] sm:$0xf]
      %v3907 = vld [vmem:[%s3885 + $0x54] sm:$0xf]
      %v3908 = vld [vmem:[%s3885 + $0x58] sm:$0xf]
      %v3909 = vld [vmem:[%s3885 + $0x5c] sm:$0xf]
      %v3910 = vld [vmem:[%s3885 + $0x60] sm:$0xf]
      %v3911 = vld [vmem:[%s3885 + $0x64] sm:$0xf]
      %v3912 = vld [vmem:[%s3885 + $0x68] sm:$0xf]
      %v3913 = vld [vmem:[%s3885 + $0x6c] sm:$0xf]
      %s3914 = scalar_lea.vmem %s2, 12
      %v3915 = vld [vmem:[%s3914] sm:$0x3]
      %v3944 = vunpack.c.l.b16 %v3857
      %v3945 = vunpack.c.l.b16 %v3858
      %v3946 = vunpack.c.l.b16 %v3859
      %v3947 = vunpack.c.l.b16 %v3860
      %v3948 = vunpack.c.l.b16 %v3861
      %v3949 = vunpack.c.l.b16 %v3862
      %v3950 = vunpack.c.l.b16 %v3863
      %v3951 = vunpack.c.l.b16 %v3864
      %v3952 = vunpack.c.l.b16 %v3865
      %v3953 = vunpack.c.l.b16 %v3866
      %v3954 = vunpack.c.l.b16 %v3867
      %v3955 = vunpack.c.l.b16 %v3868
      %v3956 = vunpack.c.l.b16 %v3869
      %v3957 = vunpack.c.l.b16 %v3870
      %v3958 = vunpack.c.l.b16 %v3871
      %v3959 = vunpack.c.l.b16 %v3872
      %v3960 = vunpack.c.l.b16 %v3873
      %v3961 = vunpack.c.l.b16 %v3874
      %v3962 = vunpack.c.l.b16 %v3875
      %v3963 = vunpack.c.l.b16 %v3876
      %v3964 = vunpack.c.l.b16 %v3877
      %v3965 = vunpack.c.l.b16 %v3878
      %v3966 = vunpack.c.l.b16 %v3879
      %v3967 = vunpack.c.l.b16 %v3880
      %v3968 = vunpack.c.l.b16 %v3881
      %v3969 = vunpack.c.l.b16 %v3882
      %v3970 = vunpack.c.l.b16 %v3883
      %v3971 = vunpack.c.l.b16 %v3884
      %v3972 = vpack.c.b16 %v3945, %v3944
      %v3973 = vpack.c.b16 %v3947, %v3946
      %v3974 = vpack.c.b16 %v3949, %v3948
      %v3975 = vpack.c.b16 %v3951, %v3950
      %v3976 = vpack.c.b16 %v3953, %v3952
      %v3977 = vpack.c.b16 %v3955, %v3954
      %v3978 = vpack.c.b16 %v3957, %v3956
      %v3979 = vpack.c.b16 %v3959, %v3958
      %v3980 = vpack.c.b16 %v3961, %v3960
      %v3981 = vpack.c.b16 %v3963, %v3962
      %v3982 = vpack.c.b16 %v3965, %v3964
      %v3983 = vpack.c.b16 %v3967, %v3966
      %v3984 = vpack.c.b16 %v3969, %v3968
      %v3985 = vpack.c.b16 %v3971, %v3970
      %v3987 = vsel %vm451, %v3972, 0
      %v3990 = vsel %vm451, %v3973, 0
      %v3993 = vsel %vm451, %v3974, 0
      %v3996 = vsel %vm451, %v3975, 0
      %v3999 = vsel %vm451, %v3976, 0
      %v4002 = vsel %vm451, %v3977, 0
      %v4005 = vsel %vm451, %v3978, 0
      %v4008 = vsel %vm451, %v3979, 0
      %v4011 = vsel %vm451, %v3980, 0
      %v4014 = vsel %vm451, %v3981, 0
      %v4017 = vsel %vm451, %v3982, 0
      %v4020 = vsel %vm451, %v3983, 0
      %v4023 = vsel %vm451, %v3984, 0
      %v4026 = vsel %vm451, %v3985, 0
      %v4029 = vsel %vm494, %v3915, 0
      %4031 = vmatprep.subr.bf16.mxu0 0
      %4032 = vmatpush1.bf16.msra.mxu0 0
      %4033 = vmatprep.subr.bf16.mxu0 0
      %4034 = vmatpush1.bf16.msra.mxu0 0
      %4035 = vmatprep.subr.bf16.mxu0 0
      %4036 = vmatpush1.bf16.msra.mxu0 0
      %4037 = vmatprep.subr.bf16.mxu0 0
      %4038 = vmatpush1.bf16.msra.mxu0 0
      %4039 = vmatprep.subr.bf16.mxu0 0
      %4040 = vmatpush1.bf16.msra.mxu0 0
      %4041 = vmatprep.subr.bf16.mxu0 0
      %4042 = vmatpush1.bf16.msra.mxu0 0
      %4043 = vmatprep.subr.bf16.mxu0 0
      %4044 = vmatpush1.bf16.msra.mxu0 0
      %4045 = vmatprep.subr.bf16.mxu0 0
      %4046 = vmatpush1.bf16.msra.mxu0 %v4029
      %4047 = vmatprep.subr.bf16.mxu0 0
      %4048 = vmatpush2.bf16.msra.mxu0 0
      %4049 = vmatprep.subr.bf16.mxu0 0
      %4050 = vmatpush2.bf16.msra.mxu0 0
      %4051 = vmatprep.subr.bf16.mxu0 0
      %4052 = vmatpush2.bf16.msra.mxu0 0
      %4053 = vmatprep.subr.bf16.mxu0 0
      %4054 = vmatpush2.bf16.msra.mxu0 0
      %4055 = vmatprep.subr.bf16.mxu0 0
      %4056 = vmatpush2.bf16.msra.mxu0 0
      %4057 = vmatprep.subr.bf16.mxu0 0
      %4058 = vmatpush2.bf16.msra.mxu0 0
      %4059 = vmatprep.subr.bf16.mxu0 0
      %4060 = vmatpush2.bf16.msra.mxu0 0
      %4061 = vmatprep.subr.bf16.mxu0 0
      %4062 = vmatpush2.bf16.msra.mxu0 0
      %4063 = vmatprep.mubr.bf16.mxu0 0
      %4064 = vmatmul.mubr.bf16.gmra.mxu0 %v3987
      %v4065 = vpop.f32.mrf.mxu0
      %v4066 = vadd.f32 0.0, %v4065
      %v4067 = vpop.f32.mrf.mxu0
      %v4068 = vpop.f32.mrf.mxu0
      %v4069 = vadd.f32 0.0, %v4068
      %v4070 = vpop.f32.mrf.mxu0
      %4071 = vmatprep.mubr.bf16.mxu0 0
      %4072 = vmatmul.mubr.bf16.gmra.mxu0 %v3990
      %v4073 = vpop.f32.mrf.mxu0
      %v4074 = vadd.f32 0.0, %v4073
      %v4075 = vpop.f32.mrf.mxu0
      %v4076 = vpop.f32.mrf.mxu0
      %v4077 = vadd.f32 0.0, %v4076
      %v4078 = vpop.f32.mrf.mxu0
      %4079 = vmatprep.mubr.bf16.mxu0 0
      %4080 = vmatmul.mubr.bf16.gmra.mxu0 %v3993
      %v4081 = vpop.f32.mrf.mxu0
      %v4082 = vadd.f32 0.0, %v4081
      %v4083 = vpop.f32.mrf.mxu0
      %v4084 = vpop.f32.mrf.mxu0
      %v4085 = vadd.f32 0.0, %v4084
      %v4086 = vpop.f32.mrf.mxu0
      %4087 = vmatprep.mubr.bf16.mxu0 0
      %4088 = vmatmul.mubr.bf16.gmra.mxu0 %v3996
      %v4089 = vpop.f32.mrf.mxu0
      %v4090 = vadd.f32 0.0, %v4089
      %v4091 = vpop.f32.mrf.mxu0
      %v4092 = vpop.f32.mrf.mxu0
      %v4093 = vadd.f32 0.0, %v4092
      %v4094 = vpop.f32.mrf.mxu0
      %4095 = vmatprep.mubr.bf16.mxu0 0
      %4096 = vmatmul.mubr.bf16.gmra.mxu0 %v3999
      %v4097 = vpop.f32.mrf.mxu0
      %v4098 = vadd.f32 0.0, %v4097
      %v4099 = vpop.f32.mrf.mxu0
      %v4100 = vpop.f32.mrf.mxu0
      %v4101 = vadd.f32 0.0, %v4100
      %v4102 = vpop.f32.mrf.mxu0
      %4103 = vmatprep.mubr.bf16.mxu0 0
      %4104 = vmatmul.mubr.bf16.gmra.mxu0 %v4002
      %v4105 = vpop.f32.mrf.mxu0
      %v4106 = vadd.f32 0.0, %v4105
      %v4107 = vpop.f32.mrf.mxu0
      %v4108 = vpop.f32.mrf.mxu0
      %v4109 = vadd.f32 0.0, %v4108
      %v4110 = vpop.f32.mrf.mxu0
      %4111 = vmatprep.mubr.bf16.mxu0 0
      %4112 = vmatmul.mubr.bf16.gmra.mxu0 %v4005
      %v4113 = vpop.f32.mrf.mxu0
      %v4114 = vadd.f32 0.0, %v4113
      %v4115 = vpop.f32.mrf.mxu0
      %v4116 = vpop.f32.mrf.mxu0
      %v4117 = vadd.f32 0.0, %v4116
      %v4118 = vpop.f32.mrf.mxu0
      %4119 = vmatprep.mubr.bf16.mxu0 0
      %4120 = vmatmul.mubr.bf16.gmra.mxu0 %v4008
      %v4121 = vpop.f32.mrf.mxu0
      %v4122 = vadd.f32 0.0, %v4121
      %v4123 = vpop.f32.mrf.mxu0
      %v4124 = vpop.f32.mrf.mxu0
      %v4125 = vadd.f32 0.0, %v4124
      %v4126 = vpop.f32.mrf.mxu0
      %4127 = vmatprep.mubr.bf16.mxu0 0
      %4128 = vmatmul.mubr.bf16.gmra.mxu0 %v4011
      %v4129 = vpop.f32.mrf.mxu0
      %v4130 = vadd.f32 0.0, %v4129
      %v4131 = vpop.f32.mrf.mxu0
      %v4132 = vpop.f32.mrf.mxu0
      %v4133 = vadd.f32 0.0, %v4132
      %v4134 = vpop.f32.mrf.mxu0
      %4135 = vmatprep.mubr.bf16.mxu0 0
      %4136 = vmatmul.mubr.bf16.gmra.mxu0 %v4014
      %v4137 = vpop.f32.mrf.mxu0
      %v4138 = vadd.f32 0.0, %v4137
      %v4139 = vpop.f32.mrf.mxu0
      %v4140 = vpop.f32.mrf.mxu0
      %v4141 = vadd.f32 0.0, %v4140
      %v4142 = vpop.f32.mrf.mxu0
      %4143 = vmatprep.mubr.bf16.mxu0 0
      %4144 = vmatmul.mubr.bf16.gmra.mxu0 %v4017
      %v4145 = vpop.f32.mrf.mxu0
      %v4146 = vadd.f32 0.0, %v4145
      %v4147 = vpop.f32.mrf.mxu0
      %v4148 = vpop.f32.mrf.mxu0
      %v4149 = vadd.f32 0.0, %v4148
      %v4150 = vpop.f32.mrf.mxu0
      %4151 = vmatprep.mubr.bf16.mxu0 0
      %4152 = vmatmul.mubr.bf16.gmra.mxu0 %v4020
      %v4153 = vpop.f32.mrf.mxu0
      %v4154 = vadd.f32 0.0, %v4153
      %v4155 = vpop.f32.mrf.mxu0
      %v4156 = vpop.f32.mrf.mxu0
      %v4157 = vadd.f32 0.0, %v4156
      %v4158 = vpop.f32.mrf.mxu0
      %4159 = vmatprep.mubr.bf16.mxu0 0
      %4160 = vmatmul.mubr.bf16.gmra.mxu0 %v4023
      %v4161 = vpop.f32.mrf.mxu0
      %v4162 = vadd.f32 0.0, %v4161
      %v4163 = vpop.f32.mrf.mxu0
      %v4164 = vpop.f32.mrf.mxu0
      %v4165 = vadd.f32 0.0, %v4164
      %v4166 = vpop.f32.mrf.mxu0
      %4167 = vmatprep.mubr.bf16.mxu0 0
      %4168 = vmatmul.mubr.bf16.gmra.mxu0 %v4026
      %v4169 = vpop.f32.mrf.mxu0
      %v4170 = vadd.f32 0.0, %v4169
      %v4171 = vpop.f32.mrf.mxu0
      %v4172 = vpop.f32.mrf.mxu0
      %v4173 = vadd.f32 0.0, %v4172
      %v4174 = vpop.f32.mrf.mxu0
      %4175 = vdwg.mxu0
      %v4176 = vadd.f32 %v3828, %v4066
      %v4177 = vadd.f32 %v3829, %v4069
      %v4178 = vadd.f32 %v3830, %v4074
      %v4179 = vadd.f32 %v3831, %v4077
      %v4180 = vadd.f32 %v3832, %v4082
      %v4181 = vadd.f32 %v3833, %v4085
      %v4182 = vadd.f32 %v3834, %v4090
      %v4183 = vadd.f32 %v3835, %v4093
      %v4184 = vadd.f32 %v3836, %v4098
      %v4185 = vadd.f32 %v3837, %v4101
      %v4186 = vadd.f32 %v3838, %v4106
      %v4187 = vadd.f32 %v3839, %v4109
      %v4188 = vadd.f32 %v3840, %v4114
      %v4189 = vadd.f32 %v3841, %v4117
      %v4190 = vadd.f32 %v3842, %v4122
      %v4191 = vadd.f32 %v3843, %v4125
      %v4192 = vadd.f32 %v3844, %v4130
      %v4193 = vadd.f32 %v3845, %v4133
      %v4194 = vadd.f32 %v3846, %v4138
      %v4195 = vadd.f32 %v3847, %v4141
      %v4196 = vadd.f32 %v3848, %v4146
      %v4197 = vadd.f32 %v3849, %v4149
      %v4198 = vadd.f32 %v3850, %v4154
      %v4199 = vadd.f32 %v3851, %v4157
      %v4200 = vadd.f32 %v3852, %v4162
      %v4201 = vadd.f32 %v3853, %v4165
      %v4202 = vadd.f32 %v3854, %v4170
      %v4203 = vadd.f32 %v3855, %v4173
      %s4204 = scalar_lea.vmem %s3, 12
      %v4205 = vld [vmem:[%s4204] sm:$0x3]
      %v4234 = vunpack.c.l.b16 %v3886
      %v4235 = vunpack.c.l.b16 %v3887
      %v4236 = vunpack.c.l.b16 %v3888
      %v4237 = vunpack.c.l.b16 %v3889
      %v4238 = vunpack.c.l.b16 %v3890
      %v4239 = vunpack.c.l.b16 %v3891
      %v4240 = vunpack.c.l.b16 %v3892
      %v4241 = vunpack.c.l.b16 %v3893
      %v4242 = vunpack.c.l.b16 %v3894
      %v4243 = vunpack.c.l.b16 %v3895
      %v4244 = vunpack.c.l.b16 %v3896
      %v4245 = vunpack.c.l.b16 %v3897
      %v4246 = vunpack.c.l.b16 %v3898
      %v4247 = vunpack.c.l.b16 %v3899
      %v4248 = vunpack.c.l.b16 %v3900
      %v4249 = vunpack.c.l.b16 %v3901
      %v4250 = vunpack.c.l.b16 %v3902
      %v4251 = vunpack.c.l.b16 %v3903
      %v4252 = vunpack.c.l.b16 %v3904
      %v4253 = vunpack.c.l.b16 %v3905
      %v4254 = vunpack.c.l.b16 %v3906
      %v4255 = vunpack.c.l.b16 %v3907
      %v4256 = vunpack.c.l.b16 %v3908
      %v4257 = vunpack.c.l.b16 %v3909
      %v4258 = vunpack.c.l.b16 %v3910
      %v4259 = vunpack.c.l.b16 %v3911
      %v4260 = vunpack.c.l.b16 %v3912
      %v4261 = vunpack.c.l.b16 %v3913
      %v4262 = vpack.c.b16 %v4235, %v4234
      %v4263 = vpack.c.b16 %v4237, %v4236
      %v4264 = vpack.c.b16 %v4239, %v4238
      %v4265 = vpack.c.b16 %v4241, %v4240
      %v4266 = vpack.c.b16 %v4243, %v4242
      %v4267 = vpack.c.b16 %v4245, %v4244
      %v4268 = vpack.c.b16 %v4247, %v4246
      %v4269 = vpack.c.b16 %v4249, %v4248
      %v4270 = vpack.c.b16 %v4251, %v4250
      %v4271 = vpack.c.b16 %v4253, %v4252
      %v4272 = vpack.c.b16 %v4255, %v4254
      %v4273 = vpack.c.b16 %v4257, %v4256
      %v4274 = vpack.c.b16 %v4259, %v4258
      %v4275 = vpack.c.b16 %v4261, %v4260
      %v4277 = vsel %vm451, %v4262, 0
      %v4280 = vsel %vm451, %v4263, 0
      %v4283 = vsel %vm451, %v4264, 0
      %v4286 = vsel %vm451, %v4265, 0
      %v4289 = vsel %vm451, %v4266, 0
      %v4292 = vsel %vm451, %v4267, 0
      %v4295 = vsel %vm451, %v4268, 0
      %v4298 = vsel %vm451, %v4269, 0
      %v4301 = vsel %vm451, %v4270, 0
      %v4304 = vsel %vm451, %v4271, 0
      %v4307 = vsel %vm451, %v4272, 0
      %v4310 = vsel %vm451, %v4273, 0
      %v4313 = vsel %vm451, %v4274, 0
      %v4316 = vsel %vm451, %v4275, 0
      %v4319 = vsel %vm494, %v4205, 0
      %4321 = vmatprep.subr.bf16.mxu0 0
      %4322 = vmatpush1.bf16.msra.mxu0 0
      %4323 = vmatprep.subr.bf16.mxu0 0
      %4324 = vmatpush1.bf16.msra.mxu0 0
      %4325 = vmatprep.subr.bf16.mxu0 0
      %4326 = vmatpush1.bf16.msra.mxu0 0
      %4327 = vmatprep.subr.bf16.mxu0 0
      %4328 = vmatpush1.bf16.msra.mxu0 0
      %4329 = vmatprep.subr.bf16.mxu0 0
      %4330 = vmatpush1.bf16.msra.mxu0 0
      %4331 = vmatprep.subr.bf16.mxu0 0
      %4332 = vmatpush1.bf16.msra.mxu0 0
      %4333 = vmatprep.subr.bf16.mxu0 0
      %4334 = vmatpush1.bf16.msra.mxu0 0
      %4335 = vmatprep.subr.bf16.mxu0 0
      %4336 = vmatpush1.bf16.msra.mxu0 %v4319
      %4337 = vmatprep.subr.bf16.mxu0 0
      %4338 = vmatpush2.bf16.msra.mxu0 0
      %4339 = vmatprep.subr.bf16.mxu0 0
      %4340 = vmatpush2.bf16.msra.mxu0 0
      %4341 = vmatprep.subr.bf16.mxu0 0
      %4342 = vmatpush2.bf16.msra.mxu0 0
      %4343 = vmatprep.subr.bf16.mxu0 0
      %4344 = vmatpush2.bf16.msra.mxu0 0
      %4345 = vmatprep.subr.bf16.mxu0 0
      %4346 = vmatpush2.bf16.msra.mxu0 0
      %4347 = vmatprep.subr.bf16.mxu0 0
      %4348 = vmatpush2.bf16.msra.mxu0 0
      %4349 = vmatprep.subr.bf16.mxu0 0
      %4350 = vmatpush2.bf16.msra.mxu0 0
      %4351 = vmatprep.subr.bf16.mxu0 0
      %4352 = vmatpush2.bf16.msra.mxu0 0
      %4353 = vmatprep.mubr.bf16.mxu0 0
      %4354 = vmatmul.mubr.bf16.gmra.mxu0 %v4277
      %v4355 = vpop.f32.mrf.mxu0
      %v4356 = vadd.f32 0.0, %v4355
      %v4357 = vpop.f32.mrf.mxu0
      %v4358 = vpop.f32.mrf.mxu0
      %v4359 = vadd.f32 0.0, %v4358
      %v4360 = vpop.f32.mrf.mxu0
      %4361 = vmatprep.mubr.bf16.mxu0 0
      %4362 = vmatmul.mubr.bf16.gmra.mxu0 %v4280
      %v4363 = vpop.f32.mrf.mxu0
      %v4364 = vadd.f32 0.0, %v4363
      %v4365 = vpop.f32.mrf.mxu0
      %v4366 = vpop.f32.mrf.mxu0
      %v4367 = vadd.f32 0.0, %v4366
      %v4368 = vpop.f32.mrf.mxu0
      %4369 = vmatprep.mubr.bf16.mxu0 0
      %4370 = vmatmul.mubr.bf16.gmra.mxu0 %v4283
      %v4371 = vpop.f32.mrf.mxu0
      %v4372 = vadd.f32 0.0, %v4371
      %v4373 = vpop.f32.mrf.mxu0
      %v4374 = vpop.f32.mrf.mxu0
      %v4375 = vadd.f32 0.0, %v4374
      %v4376 = vpop.f32.mrf.mxu0
      %4377 = vmatprep.mubr.bf16.mxu0 0
      %4378 = vmatmul.mubr.bf16.gmra.mxu0 %v4286
      %v4379 = vpop.f32.mrf.mxu0
      %v4380 = vadd.f32 0.0, %v4379
      %v4381 = vpop.f32.mrf.mxu0
      %v4382 = vpop.f32.mrf.mxu0
      %v4383 = vadd.f32 0.0, %v4382
      %v4384 = vpop.f32.mrf.mxu0
      %4385 = vmatprep.mubr.bf16.mxu0 0
      %4386 = vmatmul.mubr.bf16.gmra.mxu0 %v4289
      %v4387 = vpop.f32.mrf.mxu0
      %v4388 = vadd.f32 0.0, %v4387
      %v4389 = vpop.f32.mrf.mxu0
      %v4390 = vpop.f32.mrf.mxu0
      %v4391 = vadd.f32 0.0, %v4390
      %v4392 = vpop.f32.mrf.mxu0
      %4393 = vmatprep.mubr.bf16.mxu0 0
      %4394 = vmatmul.mubr.bf16.gmra.mxu0 %v4292
      %v4395 = vpop.f32.mrf.mxu0
      %v4396 = vadd.f32 0.0, %v4395
      %v4397 = vpop.f32.mrf.mxu0
      %v4398 = vpop.f32.mrf.mxu0
      %v4399 = vadd.f32 0.0, %v4398
      %v4400 = vpop.f32.mrf.mxu0
      %4401 = vmatprep.mubr.bf16.mxu0 0
      %4402 = vmatmul.mubr.bf16.gmra.mxu0 %v4295
      %v4403 = vpop.f32.mrf.mxu0
      %v4404 = vadd.f32 0.0, %v4403
      %v4405 = vpop.f32.mrf.mxu0
      %v4406 = vpop.f32.mrf.mxu0
      %v4407 = vadd.f32 0.0, %v4406
      %v4408 = vpop.f32.mrf.mxu0
      %4409 = vmatprep.mubr.bf16.mxu0 0
      %4410 = vmatmul.mubr.bf16.gmra.mxu0 %v4298
      %v4411 = vpop.f32.mrf.mxu0
      %v4412 = vadd.f32 0.0, %v4411
      %v4413 = vpop.f32.mrf.mxu0
      %v4414 = vpop.f32.mrf.mxu0
      %v4415 = vadd.f32 0.0, %v4414
      %v4416 = vpop.f32.mrf.mxu0
      %4417 = vmatprep.mubr.bf16.mxu0 0
      %4418 = vmatmul.mubr.bf16.gmra.mxu0 %v4301
      %v4419 = vpop.f32.mrf.mxu0
      %v4420 = vadd.f32 0.0, %v4419
      %v4421 = vpop.f32.mrf.mxu0
      %v4422 = vpop.f32.mrf.mxu0
      %v4423 = vadd.f32 0.0, %v4422
      %v4424 = vpop.f32.mrf.mxu0
      %4425 = vmatprep.mubr.bf16.mxu0 0
      %4426 = vmatmul.mubr.bf16.gmra.mxu0 %v4304
      %v4427 = vpop.f32.mrf.mxu0
      %v4428 = vadd.f32 0.0, %v4427
      %v4429 = vpop.f32.mrf.mxu0
      %v4430 = vpop.f32.mrf.mxu0
      %v4431 = vadd.f32 0.0, %v4430
      %v4432 = vpop.f32.mrf.mxu0
      %4433 = vmatprep.mubr.bf16.mxu0 0
      %4434 = vmatmul.mubr.bf16.gmra.mxu0 %v4307
      %v4435 = vpop.f32.mrf.mxu0
      %v4436 = vadd.f32 0.0, %v4435
      %v4437 = vpop.f32.mrf.mxu0
      %v4438 = vpop.f32.mrf.mxu0
      %v4439 = vadd.f32 0.0, %v4438
      %v4440 = vpop.f32.mrf.mxu0
      %4441 = vmatprep.mubr.bf16.mxu0 0
      %4442 = vmatmul.mubr.bf16.gmra.mxu0 %v4310
      %v4443 = vpop.f32.mrf.mxu0
      %v4444 = vadd.f32 0.0, %v4443
      %v4445 = vpop.f32.mrf.mxu0
      %v4446 = vpop.f32.mrf.mxu0
      %v4447 = vadd.f32 0.0, %v4446
      %v4448 = vpop.f32.mrf.mxu0
      %4449 = vmatprep.mubr.bf16.mxu0 0
      %4450 = vmatmul.mubr.bf16.gmra.mxu0 %v4313
      %v4451 = vpop.f32.mrf.mxu0
      %v4452 = vadd.f32 0.0, %v4451
      %v4453 = vpop.f32.mrf.mxu0
      %v4454 = vpop.f32.mrf.mxu0
      %v4455 = vadd.f32 0.0, %v4454
      %v4456 = vpop.f32.mrf.mxu0
      %4457 = vmatprep.mubr.bf16.mxu0 0
      %4458 = vmatmul.mubr.bf16.gmra.mxu0 %v4316
      %v4459 = vpop.f32.mrf.mxu0
      %v4460 = vadd.f32 0.0, %v4459
      %v4461 = vpop.f32.mrf.mxu0
      %v4462 = vpop.f32.mrf.mxu0
      %v4463 = vadd.f32 0.0, %v4462
      %v4464 = vpop.f32.mrf.mxu0
      %4465 = vdwg.mxu0
      %v4466 = vadd.f32 %v4176, %v4356
      %v4467 = vadd.f32 %v4177, %v4359
      %v4468 = vadd.f32 %v4178, %v4364
      %v4469 = vadd.f32 %v4179, %v4367
      %v4470 = vadd.f32 %v4180, %v4372
      %v4471 = vadd.f32 %v4181, %v4375
      %v4472 = vadd.f32 %v4182, %v4380
      %v4473 = vadd.f32 %v4183, %v4383
      %v4474 = vadd.f32 %v4184, %v4388
      %v4475 = vadd.f32 %v4185, %v4391
      %v4476 = vadd.f32 %v4186, %v4396
      %v4477 = vadd.f32 %v4187, %v4399
      %v4478 = vadd.f32 %v4188, %v4404
      %v4479 = vadd.f32 %v4189, %v4407
      %v4480 = vadd.f32 %v4190, %v4412
      %v4481 = vadd.f32 %v4191, %v4415
      %v4482 = vadd.f32 %v4192, %v4420
      %v4483 = vadd.f32 %v4193, %v4423
      %v4484 = vadd.f32 %v4194, %v4428
      %v4485 = vadd.f32 %v4195, %v4431
      %v4486 = vadd.f32 %v4196, %v4436
      %v4487 = vadd.f32 %v4197, %v4439
      %v4488 = vadd.f32 %v4198, %v4444
      %v4489 = vadd.f32 %v4199, %v4447
      %v4490 = vadd.f32 %v4200, %v4452
      %v4491 = vadd.f32 %v4201, %v4455
      %v4492 = vadd.f32 %v4202, %v4460
      %v4493 = vadd.f32 %v4203, %v4463
      %s4494 = scalar_lea.vmem %s2, 14
      %v4495 = vld [vmem:[%s4494] sm:$0x3]
      %v4496 = vshrl.u32 %v3972, 16
      %v4498 = vshll.u32 %v3972, 16
      %v4500 = vrot.slane %v4498, 1
      %v4501 = vor.u32 %v4496, %v4500
      %v4502 = vshll.u32 %v3973, 16
      %v4504 = vrot.slane %v4502, 1
      %v4505 = vsel %vm962, %v4501, %v4504
      %v4506 = vshrl.u32 %v3973, 16
      %v4508 = vor.u32 %v4506, %v4504
      %v4509 = vshll.u32 %v3974, 16
      %v4511 = vrot.slane %v4509, 1
      %v4512 = vsel %vm962, %v4508, %v4511
      %v4513 = vshrl.u32 %v3974, 16
      %v4515 = vor.u32 %v4513, %v4511
      %v4516 = vshll.u32 %v3975, 16
      %v4518 = vrot.slane %v4516, 1
      %v4519 = vsel %vm962, %v4515, %v4518
      %v4520 = vshrl.u32 %v3975, 16
      %v4522 = vor.u32 %v4520, %v4518
      %v4523 = vshll.u32 %v3976, 16
      %v4525 = vrot.slane %v4523, 1
      %v4526 = vsel %vm962, %v4522, %v4525
      %v4527 = vshrl.u32 %v3976, 16
      %v4529 = vor.u32 %v4527, %v4525
      %v4530 = vshll.u32 %v3977, 16
      %v4532 = vrot.slane %v4530, 1
      %v4533 = vsel %vm962, %v4529, %v4532
      %v4534 = vshrl.u32 %v3977, 16
      %v4536 = vor.u32 %v4534, %v4532
      %v4537 = vshll.u32 %v3978, 16
      %v4539 = vrot.slane %v4537, 1
      %v4540 = vsel %vm962, %v4536, %v4539
      %v4541 = vshrl.u32 %v3978, 16
      %v4543 = vor.u32 %v4541, %v4539
      %v4544 = vshll.u32 %v3979, 16
      %v4546 = vrot.slane %v4544, 1
      %v4547 = vsel %vm962, %v4543, %v4546
      %v4548 = vshrl.u32 %v3979, 16
      %v4550 = vor.u32 %v4548, %v4546
      %v4551 = vshll.u32 %v3980, 16
      %v4553 = vrot.slane %v4551, 1
      %v4554 = vsel %vm962, %v4550, %v4553
      %v4555 = vshrl.u32 %v3980, 16
      %v4557 = vor.u32 %v4555, %v4553
      %v4558 = vshll.u32 %v3981, 16
      %v4560 = vrot.slane %v4558, 1
      %v4561 = vsel %vm962, %v4557, %v4560
      %v4562 = vshrl.u32 %v3981, 16
      %v4564 = vor.u32 %v4562, %v4560
      %v4565 = vshll.u32 %v3982, 16
      %v4567 = vrot.slane %v4565, 1
      %v4568 = vsel %vm962, %v4564, %v4567
      %v4569 = vshrl.u32 %v3982, 16
      %v4571 = vor.u32 %v4569, %v4567
      %v4572 = vshll.u32 %v3983, 16
      %v4574 = vrot.slane %v4572, 1
      %v4575 = vsel %vm962, %v4571, %v4574
      %v4576 = vshrl.u32 %v3983, 16
      %v4578 = vor.u32 %v4576, %v4574
      %v4579 = vshll.u32 %v3984, 16
      %v4581 = vrot.slane %v4579, 1
      %v4582 = vsel %vm962, %v4578, %v4581
      %v4583 = vshrl.u32 %v3984, 16
      %v4585 = vor.u32 %v4583, %v4581
      %v4586 = vshll.u32 %v3985, 16
      %v4588 = vrot.slane %v4586, 1
      %v4589 = vsel %vm962, %v4585, %v4588
      %v4590 = vshrl.u32 %v3985, 16
      %v4592 = vor.u32 %v4590, %v4588
      %v4594 = vsel %vm451, %v4505, 0
      %v4597 = vsel %vm451, %v4512, 0
      %v4600 = vsel %vm451, %v4519, 0
      %v4603 = vsel %vm451, %v4526, 0
      %v4606 = vsel %vm451, %v4533, 0
      %v4609 = vsel %vm451, %v4540, 0
      %v4612 = vsel %vm451, %v4547, 0
      %v4615 = vsel %vm451, %v4554, 0
      %v4618 = vsel %vm451, %v4561, 0
      %v4621 = vsel %vm451, %v4568, 0
      %v4624 = vsel %vm451, %v4575, 0
      %v4627 = vsel %vm451, %v4582, 0
      %v4630 = vsel %vm451, %v4589, 0
      %v4633 = vsel %vm451, %v4592, 0
      %v4636 = vsel %vm494, %v4495, 0
      %4638 = vmatprep.subr.bf16.mxu0 0
      %4639 = vmatpush1.bf16.msra.mxu0 0
      %4640 = vmatprep.subr.bf16.mxu0 0
      %4641 = vmatpush1.bf16.msra.mxu0 0
      %4642 = vmatprep.subr.bf16.mxu0 0
      %4643 = vmatpush1.bf16.msra.mxu0 0
      %4644 = vmatprep.subr.bf16.mxu0 0
      %4645 = vmatpush1.bf16.msra.mxu0 0
      %4646 = vmatprep.subr.bf16.mxu0 0
      %4647 = vmatpush1.bf16.msra.mxu0 0
      %4648 = vmatprep.subr.bf16.mxu0 0
      %4649 = vmatpush1.bf16.msra.mxu0 0
      %4650 = vmatprep.subr.bf16.mxu0 0
      %4651 = vmatpush1.bf16.msra.mxu0 0
      %4652 = vmatprep.subr.bf16.mxu0 0
      %4653 = vmatpush1.bf16.msra.mxu0 %v4636
      %4654 = vmatprep.subr.bf16.mxu0 0
      %4655 = vmatpush2.bf16.msra.mxu0 0
      %4656 = vmatprep.subr.bf16.mxu0 0
      %4657 = vmatpush2.bf16.msra.mxu0 0
      %4658 = vmatprep.subr.bf16.mxu0 0
      %4659 = vmatpush2.bf16.msra.mxu0 0
      %4660 = vmatprep.subr.bf16.mxu0 0
      %4661 = vmatpush2.bf16.msra.mxu0 0
      %4662 = vmatprep.subr.bf16.mxu0 0
      %4663 = vmatpush2.bf16.msra.mxu0 0
      %4664 = vmatprep.subr.bf16.mxu0 0
      %4665 = vmatpush2.bf16.msra.mxu0 0
      %4666 = vmatprep.subr.bf16.mxu0 0
      %4667 = vmatpush2.bf16.msra.mxu0 0
      %4668 = vmatprep.subr.bf16.mxu0 0
      %4669 = vmatpush2.bf16.msra.mxu0 0
      %4670 = vmatprep.mubr.bf16.mxu0 0
      %4671 = vmatmul.mubr.bf16.gmra.mxu0 %v4594
      %v4672 = vpop.f32.mrf.mxu0
      %v4673 = vadd.f32 0.0, %v4672
      %v4674 = vpop.f32.mrf.mxu0
      %v4675 = vpop.f32.mrf.mxu0
      %v4676 = vadd.f32 0.0, %v4675
      %v4677 = vpop.f32.mrf.mxu0
      %4678 = vmatprep.mubr.bf16.mxu0 0
      %4679 = vmatmul.mubr.bf16.gmra.mxu0 %v4597
      %v4680 = vpop.f32.mrf.mxu0
      %v4681 = vadd.f32 0.0, %v4680
      %v4682 = vpop.f32.mrf.mxu0
      %v4683 = vpop.f32.mrf.mxu0
      %v4684 = vadd.f32 0.0, %v4683
      %v4685 = vpop.f32.mrf.mxu0
      %4686 = vmatprep.mubr.bf16.mxu0 0
      %4687 = vmatmul.mubr.bf16.gmra.mxu0 %v4600
      %v4688 = vpop.f32.mrf.mxu0
      %v4689 = vadd.f32 0.0, %v4688
      %v4690 = vpop.f32.mrf.mxu0
      %v4691 = vpop.f32.mrf.mxu0
      %v4692 = vadd.f32 0.0, %v4691
      %v4693 = vpop.f32.mrf.mxu0
      %4694 = vmatprep.mubr.bf16.mxu0 0
      %4695 = vmatmul.mubr.bf16.gmra.mxu0 %v4603
      %v4696 = vpop.f32.mrf.mxu0
      %v4697 = vadd.f32 0.0, %v4696
      %v4698 = vpop.f32.mrf.mxu0
      %v4699 = vpop.f32.mrf.mxu0
      %v4700 = vadd.f32 0.0, %v4699
      %v4701 = vpop.f32.mrf.mxu0
      %4702 = vmatprep.mubr.bf16.mxu0 0
      %4703 = vmatmul.mubr.bf16.gmra.mxu0 %v4606
      %v4704 = vpop.f32.mrf.mxu0
      %v4705 = vadd.f32 0.0, %v4704
      %v4706 = vpop.f32.mrf.mxu0
      %v4707 = vpop.f32.mrf.mxu0
      %v4708 = vadd.f32 0.0, %v4707
      %v4709 = vpop.f32.mrf.mxu0
      %4710 = vmatprep.mubr.bf16.mxu0 0
      %4711 = vmatmul.mubr.bf16.gmra.mxu0 %v4609
      %v4712 = vpop.f32.mrf.mxu0
      %v4713 = vadd.f32 0.0, %v4712
      %v4714 = vpop.f32.mrf.mxu0
      %v4715 = vpop.f32.mrf.mxu0
      %v4716 = vadd.f32 0.0, %v4715
      %v4717 = vpop.f32.mrf.mxu0
      %4718 = vmatprep.mubr.bf16.mxu0 0
      %4719 = vmatmul.mubr.bf16.gmra.mxu0 %v4612
      %v4720 = vpop.f32.mrf.mxu0
      %v4721 = vadd.f32 0.0, %v4720
      %v4722 = vpop.f32.mrf.mxu0
      %v4723 = vpop.f32.mrf.mxu0
      %v4724 = vadd.f32 0.0, %v4723
      %v4725 = vpop.f32.mrf.mxu0
      %4726 = vmatprep.mubr.bf16.mxu0 0
      %4727 = vmatmul.mubr.bf16.gmra.mxu0 %v4615
      %v4728 = vpop.f32.mrf.mxu0
      %v4729 = vadd.f32 0.0, %v4728
      %v4730 = vpop.f32.mrf.mxu0
      %v4731 = vpop.f32.mrf.mxu0
      %v4732 = vadd.f32 0.0, %v4731
      %v4733 = vpop.f32.mrf.mxu0
      %4734 = vmatprep.mubr.bf16.mxu0 0
      %4735 = vmatmul.mubr.bf16.gmra.mxu0 %v4618
      %v4736 = vpop.f32.mrf.mxu0
      %v4737 = vadd.f32 0.0, %v4736
      %v4738 = vpop.f32.mrf.mxu0
      %v4739 = vpop.f32.mrf.mxu0
      %v4740 = vadd.f32 0.0, %v4739
      %v4741 = vpop.f32.mrf.mxu0
      %4742 = vmatprep.mubr.bf16.mxu0 0
      %4743 = vmatmul.mubr.bf16.gmra.mxu0 %v4621
      %v4744 = vpop.f32.mrf.mxu0
      %v4745 = vadd.f32 0.0, %v4744
      %v4746 = vpop.f32.mrf.mxu0
      %v4747 = vpop.f32.mrf.mxu0
      %v4748 = vadd.f32 0.0, %v4747
      %v4749 = vpop.f32.mrf.mxu0
      %4750 = vmatprep.mubr.bf16.mxu0 0
      %4751 = vmatmul.mubr.bf16.gmra.mxu0 %v4624
      %v4752 = vpop.f32.mrf.mxu0
      %v4753 = vadd.f32 0.0, %v4752
      %v4754 = vpop.f32.mrf.mxu0
      %v4755 = vpop.f32.mrf.mxu0
      %v4756 = vadd.f32 0.0, %v4755
      %v4757 = vpop.f32.mrf.mxu0
      %4758 = vmatprep.mubr.bf16.mxu0 0
      %4759 = vmatmul.mubr.bf16.gmra.mxu0 %v4627
      %v4760 = vpop.f32.mrf.mxu0
      %v4761 = vadd.f32 0.0, %v4760
      %v4762 = vpop.f32.mrf.mxu0
      %v4763 = vpop.f32.mrf.mxu0
      %v4764 = vadd.f32 0.0, %v4763
      %v4765 = vpop.f32.mrf.mxu0
      %4766 = vmatprep.mubr.bf16.mxu0 0
      %4767 = vmatmul.mubr.bf16.gmra.mxu0 %v4630
      %v4768 = vpop.f32.mrf.mxu0
      %v4769 = vadd.f32 0.0, %v4768
      %v4770 = vpop.f32.mrf.mxu0
      %v4771 = vpop.f32.mrf.mxu0
      %v4772 = vadd.f32 0.0, %v4771
      %v4773 = vpop.f32.mrf.mxu0
      %4774 = vmatprep.mubr.bf16.mxu0 0
      %4775 = vmatmul.mubr.bf16.gmra.mxu0 %v4633
      %v4776 = vpop.f32.mrf.mxu0
      %v4777 = vadd.f32 0.0, %v4776
      %v4778 = vpop.f32.mrf.mxu0
      %v4779 = vpop.f32.mrf.mxu0
      %v4780 = vadd.f32 0.0, %v4779
      %v4781 = vpop.f32.mrf.mxu0
      %4782 = vdwg.mxu0
      %v4783 = vadd.f32 %v4466, %v4673
      %v4784 = vadd.f32 %v4467, %v4676
      %v4785 = vadd.f32 %v4468, %v4681
      %v4786 = vadd.f32 %v4469, %v4684
      %v4787 = vadd.f32 %v4470, %v4689
      %v4788 = vadd.f32 %v4471, %v4692
      %v4789 = vadd.f32 %v4472, %v4697
      %v4790 = vadd.f32 %v4473, %v4700
      %v4791 = vadd.f32 %v4474, %v4705
      %v4792 = vadd.f32 %v4475, %v4708
      %v4793 = vadd.f32 %v4476, %v4713
      %v4794 = vadd.f32 %v4477, %v4716
      %v4795 = vadd.f32 %v4478, %v4721
      %v4796 = vadd.f32 %v4479, %v4724
      %v4797 = vadd.f32 %v4480, %v4729
      %v4798 = vadd.f32 %v4481, %v4732
      %v4799 = vadd.f32 %v4482, %v4737
      %v4800 = vadd.f32 %v4483, %v4740
      %v4801 = vadd.f32 %v4484, %v4745
      %v4802 = vadd.f32 %v4485, %v4748
      %v4803 = vadd.f32 %v4486, %v4753
      %v4804 = vadd.f32 %v4487, %v4756
      %v4805 = vadd.f32 %v4488, %v4761
      %v4806 = vadd.f32 %v4489, %v4764
      %v4807 = vadd.f32 %v4490, %v4769
      %v4808 = vadd.f32 %v4491, %v4772
      %v4809 = vadd.f32 %v4492, %v4777
      %v4810 = vadd.f32 %v4493, %v4780
      %s4811 = scalar_lea.vmem %s3, 14
      %v4812 = vld [vmem:[%s4811] sm:$0x3]
      %v4813 = vshrl.u32 %v4262, 16
      %v4815 = vshll.u32 %v4262, 16
      %v4817 = vrot.slane %v4815, 1
      %v4818 = vor.u32 %v4813, %v4817
      %v4819 = vshll.u32 %v4263, 16
      %v4821 = vrot.slane %v4819, 1
      %v4822 = vsel %vm962, %v4818, %v4821
      %v4823 = vshrl.u32 %v4263, 16
      %v4825 = vor.u32 %v4823, %v4821
      %v4826 = vshll.u32 %v4264, 16
      %v4828 = vrot.slane %v4826, 1
      %v4829 = vsel %vm962, %v4825, %v4828
      %v4830 = vshrl.u32 %v4264, 16
      %v4832 = vor.u32 %v4830, %v4828
      %v4833 = vshll.u32 %v4265, 16
      %v4835 = vrot.slane %v4833, 1
      %v4836 = vsel %vm962, %v4832, %v4835
      %v4837 = vshrl.u32 %v4265, 16
      %v4839 = vor.u32 %v4837, %v4835
      %v4840 = vshll.u32 %v4266, 16
      %v4842 = vrot.slane %v4840, 1
      %v4843 = vsel %vm962, %v4839, %v4842
      %v4844 = vshrl.u32 %v4266, 16
      %v4846 = vor.u32 %v4844, %v4842
      %v4847 = vshll.u32 %v4267, 16
      %v4849 = vrot.slane %v4847, 1
      %v4850 = vsel %vm962, %v4846, %v4849
      %v4851 = vshrl.u32 %v4267, 16
      %v4853 = vor.u32 %v4851, %v4849
      %v4854 = vshll.u32 %v4268, 16
      %v4856 = vrot.slane %v4854, 1
      %v4857 = vsel %vm962, %v4853, %v4856
      %v4858 = vshrl.u32 %v4268, 16
      %v4860 = vor.u32 %v4858, %v4856
      %v4861 = vshll.u32 %v4269, 16
      %v4863 = vrot.slane %v4861, 1
      %v4864 = vsel %vm962, %v4860, %v4863
      %v4865 = vshrl.u32 %v4269, 16
      %v4867 = vor.u32 %v4865, %v4863
      %v4868 = vshll.u32 %v4270, 16
      %v4870 = vrot.slane %v4868, 1
      %v4871 = vsel %vm962, %v4867, %v4870
      %v4872 = vshrl.u32 %v4270, 16
      %v4874 = vor.u32 %v4872, %v4870
      %v4875 = vshll.u32 %v4271, 16
      %v4877 = vrot.slane %v4875, 1
      %v4878 = vsel %vm962, %v4874, %v4877
      %v4879 = vshrl.u32 %v4271, 16
      %v4881 = vor.u32 %v4879, %v4877
      %v4882 = vshll.u32 %v4272, 16
      %v4884 = vrot.slane %v4882, 1
      %v4885 = vsel %vm962, %v4881, %v4884
      %v4886 = vshrl.u32 %v4272, 16
      %v4888 = vor.u32 %v4886, %v4884
      %v4889 = vshll.u32 %v4273, 16
      %v4891 = vrot.slane %v4889, 1
      %v4892 = vsel %vm962, %v4888, %v4891
      %v4893 = vshrl.u32 %v4273, 16
      %v4895 = vor.u32 %v4893, %v4891
      %v4896 = vshll.u32 %v4274, 16
      %v4898 = vrot.slane %v4896, 1
      %v4899 = vsel %vm962, %v4895, %v4898
      %v4900 = vshrl.u32 %v4274, 16
      %v4902 = vor.u32 %v4900, %v4898
      %v4903 = vshll.u32 %v4275, 16
      %v4905 = vrot.slane %v4903, 1
      %v4906 = vsel %vm962, %v4902, %v4905
      %v4907 = vshrl.u32 %v4275, 16
      %v4909 = vor.u32 %v4907, %v4905
      %v4911 = vsel %vm451, %v4822, 0
      %v4914 = vsel %vm451, %v4829, 0
      %v4917 = vsel %vm451, %v4836, 0
      %v4920 = vsel %vm451, %v4843, 0
      %v4923 = vsel %vm451, %v4850, 0
      %v4926 = vsel %vm451, %v4857, 0
      %v4929 = vsel %vm451, %v4864, 0
      %v4932 = vsel %vm451, %v4871, 0
      %v4935 = vsel %vm451, %v4878, 0
      %v4938 = vsel %vm451, %v4885, 0
      %v4941 = vsel %vm451, %v4892, 0
      %v4944 = vsel %vm451, %v4899, 0
      %v4947 = vsel %vm451, %v4906, 0
      %v4950 = vsel %vm451, %v4909, 0
      %v4953 = vsel %vm494, %v4812, 0
      %4955 = vmatprep.subr.bf16.mxu0 0
      %4956 = vmatpush1.bf16.msra.mxu0 0
      %4957 = vmatprep.subr.bf16.mxu0 0
      %4958 = vmatpush1.bf16.msra.mxu0 0
      %4959 = vmatprep.subr.bf16.mxu0 0
      %4960 = vmatpush1.bf16.msra.mxu0 0
      %4961 = vmatprep.subr.bf16.mxu0 0
      %4962 = vmatpush1.bf16.msra.mxu0 0
      %4963 = vmatprep.subr.bf16.mxu0 0
      %4964 = vmatpush1.bf16.msra.mxu0 0
      %4965 = vmatprep.subr.bf16.mxu0 0
      %4966 = vmatpush1.bf16.msra.mxu0 0
      %4967 = vmatprep.subr.bf16.mxu0 0
      %4968 = vmatpush1.bf16.msra.mxu0 0
      %4969 = vmatprep.subr.bf16.mxu0 0
      %4970 = vmatpush1.bf16.msra.mxu0 %v4953
      %4971 = vmatprep.subr.bf16.mxu0 0
      %4972 = vmatpush2.bf16.msra.mxu0 0
      %4973 = vmatprep.subr.bf16.mxu0 0
      %4974 = vmatpush2.bf16.msra.mxu0 0
      %4975 = vmatprep.subr.bf16.mxu0 0
      %4976 = vmatpush2.bf16.msra.mxu0 0
      %4977 = vmatprep.subr.bf16.mxu0 0
      %4978 = vmatpush2.bf16.msra.mxu0 0
      %4979 = vmatprep.subr.bf16.mxu0 0
      %4980 = vmatpush2.bf16.msra.mxu0 0
      %4981 = vmatprep.subr.bf16.mxu0 0
      %4982 = vmatpush2.bf16.msra.mxu0 0
      %4983 = vmatprep.subr.bf16.mxu0 0
      %4984 = vmatpush2.bf16.msra.mxu0 0
      %4985 = vmatprep.subr.bf16.mxu0 0
      %4986 = vmatpush2.bf16.msra.mxu0 0
      %4987 = vmatprep.mubr.bf16.mxu0 0
      %4988 = vmatmul.mubr.bf16.gmra.mxu0 %v4911
      %v4989 = vpop.f32.mrf.mxu0
      %v4990 = vadd.f32 0.0, %v4989
      %v4991 = vpop.f32.mrf.mxu0
      %v4992 = vpop.f32.mrf.mxu0
      %v4993 = vadd.f32 0.0, %v4992
      %v4994 = vpop.f32.mrf.mxu0
      %4995 = vmatprep.mubr.bf16.mxu0 0
      %4996 = vmatmul.mubr.bf16.gmra.mxu0 %v4914
      %v4997 = vpop.f32.mrf.mxu0
      %v4998 = vadd.f32 0.0, %v4997
      %v4999 = vpop.f32.mrf.mxu0
      %v5000 = vpop.f32.mrf.mxu0
      %v5001 = vadd.f32 0.0, %v5000
      %v5002 = vpop.f32.mrf.mxu0
      %5003 = vmatprep.mubr.bf16.mxu0 0
      %5004 = vmatmul.mubr.bf16.gmra.mxu0 %v4917
      %v5005 = vpop.f32.mrf.mxu0
      %v5006 = vadd.f32 0.0, %v5005
      %v5007 = vpop.f32.mrf.mxu0
      %v5008 = vpop.f32.mrf.mxu0
      %v5009 = vadd.f32 0.0, %v5008
      %v5010 = vpop.f32.mrf.mxu0
      %5011 = vmatprep.mubr.bf16.mxu0 0
      %5012 = vmatmul.mubr.bf16.gmra.mxu0 %v4920
      %v5013 = vpop.f32.mrf.mxu0
      %v5014 = vadd.f32 0.0, %v5013
      %v5015 = vpop.f32.mrf.mxu0
      %v5016 = vpop.f32.mrf.mxu0
      %v5017 = vadd.f32 0.0, %v5016
      %v5018 = vpop.f32.mrf.mxu0
      %5019 = vmatprep.mubr.bf16.mxu0 0
      %5020 = vmatmul.mubr.bf16.gmra.mxu0 %v4923
      %v5021 = vpop.f32.mrf.mxu0
      %v5022 = vadd.f32 0.0, %v5021
      %v5023 = vpop.f32.mrf.mxu0
      %v5024 = vpop.f32.mrf.mxu0
      %v5025 = vadd.f32 0.0, %v5024
      %v5026 = vpop.f32.mrf.mxu0
      %5027 = vmatprep.mubr.bf16.mxu0 0
      %5028 = vmatmul.mubr.bf16.gmra.mxu0 %v4926
      %v5029 = vpop.f32.mrf.mxu0
      %v5030 = vadd.f32 0.0, %v5029
      %v5031 = vpop.f32.mrf.mxu0
      %v5032 = vpop.f32.mrf.mxu0
      %v5033 = vadd.f32 0.0, %v5032
      %v5034 = vpop.f32.mrf.mxu0
      %5035 = vmatprep.mubr.bf16.mxu0 0
      %5036 = vmatmul.mubr.bf16.gmra.mxu0 %v4929
      %v5037 = vpop.f32.mrf.mxu0
      %v5038 = vadd.f32 0.0, %v5037
      %v5039 = vpop.f32.mrf.mxu0
      %v5040 = vpop.f32.mrf.mxu0
      %v5041 = vadd.f32 0.0, %v5040
      %v5042 = vpop.f32.mrf.mxu0
      %5043 = vmatprep.mubr.bf16.mxu0 0
      %5044 = vmatmul.mubr.bf16.gmra.mxu0 %v4932
      %v5045 = vpop.f32.mrf.mxu0
      %v5046 = vadd.f32 0.0, %v5045
      %v5047 = vpop.f32.mrf.mxu0
      %v5048 = vpop.f32.mrf.mxu0
      %v5049 = vadd.f32 0.0, %v5048
      %v5050 = vpop.f32.mrf.mxu0
      %5051 = vmatprep.mubr.bf16.mxu0 0
      %5052 = vmatmul.mubr.bf16.gmra.mxu0 %v4935
      %v5053 = vpop.f32.mrf.mxu0
      %v5054 = vadd.f32 0.0, %v5053
      %v5055 = vpop.f32.mrf.mxu0
      %v5056 = vpop.f32.mrf.mxu0
      %v5057 = vadd.f32 0.0, %v5056
      %v5058 = vpop.f32.mrf.mxu0
      %5059 = vmatprep.mubr.bf16.mxu0 0
      %5060 = vmatmul.mubr.bf16.gmra.mxu0 %v4938
      %v5061 = vpop.f32.mrf.mxu0
      %v5062 = vadd.f32 0.0, %v5061
      %v5063 = vpop.f32.mrf.mxu0
      %v5064 = vpop.f32.mrf.mxu0
      %v5065 = vadd.f32 0.0, %v5064
      %v5066 = vpop.f32.mrf.mxu0
      %5067 = vmatprep.mubr.bf16.mxu0 0
      %5068 = vmatmul.mubr.bf16.gmra.mxu0 %v4941
      %v5069 = vpop.f32.mrf.mxu0
      %v5070 = vadd.f32 0.0, %v5069
      %v5071 = vpop.f32.mrf.mxu0
      %v5072 = vpop.f32.mrf.mxu0
      %v5073 = vadd.f32 0.0, %v5072
      %v5074 = vpop.f32.mrf.mxu0
      %5075 = vmatprep.mubr.bf16.mxu0 0
      %5076 = vmatmul.mubr.bf16.gmra.mxu0 %v4944
      %v5077 = vpop.f32.mrf.mxu0
      %v5078 = vadd.f32 0.0, %v5077
      %v5079 = vpop.f32.mrf.mxu0
      %v5080 = vpop.f32.mrf.mxu0
      %v5081 = vadd.f32 0.0, %v5080
      %v5082 = vpop.f32.mrf.mxu0
      %5083 = vmatprep.mubr.bf16.mxu0 0
      %5084 = vmatmul.mubr.bf16.gmra.mxu0 %v4947
      %v5085 = vpop.f32.mrf.mxu0
      %v5086 = vadd.f32 0.0, %v5085
      %v5087 = vpop.f32.mrf.mxu0
      %v5088 = vpop.f32.mrf.mxu0
      %v5089 = vadd.f32 0.0, %v5088
      %v5090 = vpop.f32.mrf.mxu0
      %5091 = vmatprep.mubr.bf16.mxu0 0
      %5092 = vmatmul.mubr.bf16.gmra.mxu0 %v4950
      %v5093 = vpop.f32.mrf.mxu0
      %v5094 = vadd.f32 0.0, %v5093
      %v5095 = vpop.f32.mrf.mxu0
      %v5096 = vpop.f32.mrf.mxu0
      %v5097 = vadd.f32 0.0, %v5096
      %v5098 = vpop.f32.mrf.mxu0
      %5099 = vdwg.mxu0
      %v5100 = vadd.f32 %v4783, %v4990
      %v5101 = vadd.f32 %v4784, %v4993
      %v5102 = vadd.f32 %v4785, %v4998
      %v5103 = vadd.f32 %v4786, %v5001
      %v5104 = vadd.f32 %v4787, %v5006
      %v5105 = vadd.f32 %v4788, %v5009
      %v5106 = vadd.f32 %v4789, %v5014
      %v5107 = vadd.f32 %v4790, %v5017
      %v5108 = vadd.f32 %v4791, %v5022
      %v5109 = vadd.f32 %v4792, %v5025
      %v5110 = vadd.f32 %v4793, %v5030
      %v5111 = vadd.f32 %v4794, %v5033
      %v5112 = vadd.f32 %v4795, %v5038
      %v5113 = vadd.f32 %v4796, %v5041
      %v5114 = vadd.f32 %v4797, %v5046
      %v5115 = vadd.f32 %v4798, %v5049
      %v5116 = vadd.f32 %v4799, %v5054
      %v5117 = vadd.f32 %v4800, %v5057
      %v5118 = vadd.f32 %v4801, %v5062
      %v5119 = vadd.f32 %v4802, %v5065
      %v5120 = vadd.f32 %v4803, %v5070
      %v5121 = vadd.f32 %v4804, %v5073
      %v5122 = vadd.f32 %v4805, %v5078
      %v5123 = vadd.f32 %v4806, %v5081
      %v5124 = vadd.f32 %v4807, %v5086
      %v5125 = vadd.f32 %v4808, %v5089
      %v5126 = vadd.f32 %v4809, %v5094
      %v5127 = vadd.f32 %v4810, %v5097
      %s5128 = scalar_lea.vmem %s2, 16
      %v5129 = vld [vmem:[%s5128] sm:$0x3]
      %v5130 = vrot.slane %v3972, 1
      %v5131 = vrot.slane %v3973, 1
      %v5132 = vsel %vm1597, %v5130, %v5131
      %v5133 = vrot.slane %v3974, 1
      %v5134 = vsel %vm1597, %v5131, %v5133
      %v5135 = vrot.slane %v3975, 1
      %v5136 = vsel %vm1597, %v5133, %v5135
      %v5137 = vrot.slane %v3976, 1
      %v5138 = vsel %vm1597, %v5135, %v5137
      %v5139 = vrot.slane %v3977, 1
      %v5140 = vsel %vm1597, %v5137, %v5139
      %v5141 = vrot.slane %v3978, 1
      %v5142 = vsel %vm1597, %v5139, %v5141
      %v5143 = vrot.slane %v3979, 1
      %v5144 = vsel %vm1597, %v5141, %v5143
      %v5145 = vrot.slane %v3980, 1
      %v5146 = vsel %vm1597, %v5143, %v5145
      %v5147 = vrot.slane %v3981, 1
      %v5148 = vsel %vm1597, %v5145, %v5147
      %v5149 = vrot.slane %v3982, 1
      %v5150 = vsel %vm1597, %v5147, %v5149
      %v5151 = vrot.slane %v3983, 1
      %v5152 = vsel %vm1597, %v5149, %v5151
      %v5153 = vrot.slane %v3984, 1
      %v5154 = vsel %vm1597, %v5151, %v5153
      %v5155 = vrot.slane %v3985, 1
      %v5156 = vsel %vm1597, %v5153, %v5155
      %v5158 = vsel %vm451, %v5132, 0
      %v5161 = vsel %vm451, %v5134, 0
      %v5164 = vsel %vm451, %v5136, 0
      %v5167 = vsel %vm451, %v5138, 0
      %v5170 = vsel %vm451, %v5140, 0
      %v5173 = vsel %vm451, %v5142, 0
      %v5176 = vsel %vm451, %v5144, 0
      %v5179 = vsel %vm451, %v5146, 0
      %v5182 = vsel %vm451, %v5148, 0
      %v5185 = vsel %vm451, %v5150, 0
      %v5188 = vsel %vm451, %v5152, 0
      %v5191 = vsel %vm451, %v5154, 0
      %v5194 = vsel %vm451, %v5156, 0
      %v5197 = vsel %vm451, %v5155, 0
      %v5200 = vsel %vm494, %v5129, 0
      %5202 = vmatprep.subr.bf16.mxu0 0
      %5203 = vmatpush1.bf16.msra.mxu0 0
      %5204 = vmatprep.subr.bf16.mxu0 0
      %5205 = vmatpush1.bf16.msra.mxu0 0
      %5206 = vmatprep.subr.bf16.mxu0 0
      %5207 = vmatpush1.bf16.msra.mxu0 0
      %5208 = vmatprep.subr.bf16.mxu0 0
      %5209 = vmatpush1.bf16.msra.mxu0 0
      %5210 = vmatprep.subr.bf16.mxu0 0
      %5211 = vmatpush1.bf16.msra.mxu0 0
      %5212 = vmatprep.subr.bf16.mxu0 0
      %5213 = vmatpush1.bf16.msra.mxu0 0
      %5214 = vmatprep.subr.bf16.mxu0 0
      %5215 = vmatpush1.bf16.msra.mxu0 0
      %5216 = vmatprep.subr.bf16.mxu0 0
      %5217 = vmatpush1.bf16.msra.mxu0 %v5200
      %5218 = vmatprep.subr.bf16.mxu0 0
      %5219 = vmatpush2.bf16.msra.mxu0 0
      %5220 = vmatprep.subr.bf16.mxu0 0
      %5221 = vmatpush2.bf16.msra.mxu0 0
      %5222 = vmatprep.subr.bf16.mxu0 0
      %5223 = vmatpush2.bf16.msra.mxu0 0
      %5224 = vmatprep.subr.bf16.mxu0 0
      %5225 = vmatpush2.bf16.msra.mxu0 0
      %5226 = vmatprep.subr.bf16.mxu0 0
      %5227 = vmatpush2.bf16.msra.mxu0 0
      %5228 = vmatprep.subr.bf16.mxu0 0
      %5229 = vmatpush2.bf16.msra.mxu0 0
      %5230 = vmatprep.subr.bf16.mxu0 0
      %5231 = vmatpush2.bf16.msra.mxu0 0
      %5232 = vmatprep.subr.bf16.mxu0 0
      %5233 = vmatpush2.bf16.msra.mxu0 0
      %5234 = vmatprep.mubr.bf16.mxu0 0
      %5235 = vmatmul.mubr.bf16.gmra.mxu0 %v5158
      %v5236 = vpop.f32.mrf.mxu0
      %v5237 = vadd.f32 0.0, %v5236
      %v5238 = vpop.f32.mrf.mxu0
      %v5239 = vpop.f32.mrf.mxu0
      %v5240 = vadd.f32 0.0, %v5239
      %v5241 = vpop.f32.mrf.mxu0
      %5242 = vmatprep.mubr.bf16.mxu0 0
      %5243 = vmatmul.mubr.bf16.gmra.mxu0 %v5161
      %v5244 = vpop.f32.mrf.mxu0
      %v5245 = vadd.f32 0.0, %v5244
      %v5246 = vpop.f32.mrf.mxu0
      %v5247 = vpop.f32.mrf.mxu0
      %v5248 = vadd.f32 0.0, %v5247
      %v5249 = vpop.f32.mrf.mxu0
      %5250 = vmatprep.mubr.bf16.mxu0 0
      %5251 = vmatmul.mubr.bf16.gmra.mxu0 %v5164
      %v5252 = vpop.f32.mrf.mxu0
      %v5253 = vadd.f32 0.0, %v5252
      %v5254 = vpop.f32.mrf.mxu0
      %v5255 = vpop.f32.mrf.mxu0
      %v5256 = vadd.f32 0.0, %v5255
      %v5257 = vpop.f32.mrf.mxu0
      %5258 = vmatprep.mubr.bf16.mxu0 0
      %5259 = vmatmul.mubr.bf16.gmra.mxu0 %v5167
      %v5260 = vpop.f32.mrf.mxu0
      %v5261 = vadd.f32 0.0, %v5260
      %v5262 = vpop.f32.mrf.mxu0
      %v5263 = vpop.f32.mrf.mxu0
      %v5264 = vadd.f32 0.0, %v5263
      %v5265 = vpop.f32.mrf.mxu0
      %5266 = vmatprep.mubr.bf16.mxu0 0
      %5267 = vmatmul.mubr.bf16.gmra.mxu0 %v5170
      %v5268 = vpop.f32.mrf.mxu0
      %v5269 = vadd.f32 0.0, %v5268
      %v5270 = vpop.f32.mrf.mxu0
      %v5271 = vpop.f32.mrf.mxu0
      %v5272 = vadd.f32 0.0, %v5271
      %v5273 = vpop.f32.mrf.mxu0
      %5274 = vmatprep.mubr.bf16.mxu0 0
      %5275 = vmatmul.mubr.bf16.gmra.mxu0 %v5173
      %v5276 = vpop.f32.mrf.mxu0
      %v5277 = vadd.f32 0.0, %v5276
      %v5278 = vpop.f32.mrf.mxu0
      %v5279 = vpop.f32.mrf.mxu0
      %v5280 = vadd.f32 0.0, %v5279
      %v5281 = vpop.f32.mrf.mxu0
      %5282 = vmatprep.mubr.bf16.mxu0 0
      %5283 = vmatmul.mubr.bf16.gmra.mxu0 %v5176
      %v5284 = vpop.f32.mrf.mxu0
      %v5285 = vadd.f32 0.0, %v5284
      %v5286 = vpop.f32.mrf.mxu0
      %v5287 = vpop.f32.mrf.mxu0
      %v5288 = vadd.f32 0.0, %v5287
      %v5289 = vpop.f32.mrf.mxu0
      %5290 = vmatprep.mubr.bf16.mxu0 0
      %5291 = vmatmul.mubr.bf16.gmra.mxu0 %v5179
      %v5292 = vpop.f32.mrf.mxu0
      %v5293 = vadd.f32 0.0, %v5292
      %v5294 = vpop.f32.mrf.mxu0
      %v5295 = vpop.f32.mrf.mxu0
      %v5296 = vadd.f32 0.0, %v5295
      %v5297 = vpop.f32.mrf.mxu0
      %5298 = vmatprep.mubr.bf16.mxu0 0
      %5299 = vmatmul.mubr.bf16.gmra.mxu0 %v5182
      %v5300 = vpop.f32.mrf.mxu0
      %v5301 = vadd.f32 0.0, %v5300
      %v5302 = vpop.f32.mrf.mxu0
      %v5303 = vpop.f32.mrf.mxu0
      %v5304 = vadd.f32 0.0, %v5303
      %v5305 = vpop.f32.mrf.mxu0
      %5306 = vmatprep.mubr.bf16.mxu0 0
      %5307 = vmatmul.mubr.bf16.gmra.mxu0 %v5185
      %v5308 = vpop.f32.mrf.mxu0
      %v5309 = vadd.f32 0.0, %v5308
      %v5310 = vpop.f32.mrf.mxu0
      %v5311 = vpop.f32.mrf.mxu0
      %v5312 = vadd.f32 0.0, %v5311
      %v5313 = vpop.f32.mrf.mxu0
      %5314 = vmatprep.mubr.bf16.mxu0 0
      %5315 = vmatmul.mubr.bf16.gmra.mxu0 %v5188
      %v5316 = vpop.f32.mrf.mxu0
      %v5317 = vadd.f32 0.0, %v5316
      %v5318 = vpop.f32.mrf.mxu0
      %v5319 = vpop.f32.mrf.mxu0
      %v5320 = vadd.f32 0.0, %v5319
      %v5321 = vpop.f32.mrf.mxu0
      %5322 = vmatprep.mubr.bf16.mxu0 0
      %5323 = vmatmul.mubr.bf16.gmra.mxu0 %v5191
      %v5324 = vpop.f32.mrf.mxu0
      %v5325 = vadd.f32 0.0, %v5324
      %v5326 = vpop.f32.mrf.mxu0
      %v5327 = vpop.f32.mrf.mxu0
      %v5328 = vadd.f32 0.0, %v5327
      %v5329 = vpop.f32.mrf.mxu0
      %5330 = vmatprep.mubr.bf16.mxu0 0
      %5331 = vmatmul.mubr.bf16.gmra.mxu0 %v5194
      %v5332 = vpop.f32.mrf.mxu0
      %v5333 = vadd.f32 0.0, %v5332
      %v5334 = vpop.f32.mrf.mxu0
      %v5335 = vpop.f32.mrf.mxu0
      %v5336 = vadd.f32 0.0, %v5335
      %v5337 = vpop.f32.mrf.mxu0
      %5338 = vmatprep.mubr.bf16.mxu0 0
      %5339 = vmatmul.mubr.bf16.gmra.mxu0 %v5197
      %v5340 = vpop.f32.mrf.mxu0
      %v5341 = vadd.f32 0.0, %v5340
      %v5342 = vpop.f32.mrf.mxu0
      %v5343 = vpop.f32.mrf.mxu0
      %v5344 = vadd.f32 0.0, %v5343
      %v5345 = vpop.f32.mrf.mxu0
      %5346 = vdwg.mxu0
      %v5347 = vadd.f32 %v5100, %v5237
      %v5348 = vadd.f32 %v5101, %v5240
      %v5349 = vadd.f32 %v5102, %v5245
      %v5350 = vadd.f32 %v5103, %v5248
      %v5351 = vadd.f32 %v5104, %v5253
      %v5352 = vadd.f32 %v5105, %v5256
      %v5353 = vadd.f32 %v5106, %v5261
      %v5354 = vadd.f32 %v5107, %v5264
      %v5355 = vadd.f32 %v5108, %v5269
      %v5356 = vadd.f32 %v5109, %v5272
      %v5357 = vadd.f32 %v5110, %v5277
      %v5358 = vadd.f32 %v5111, %v5280
      %v5359 = vadd.f32 %v5112, %v5285
      %v5360 = vadd.f32 %v5113, %v5288
      %v5361 = vadd.f32 %v5114, %v5293
      %v5362 = vadd.f32 %v5115, %v5296
      %v5363 = vadd.f32 %v5116, %v5301
      %v5364 = vadd.f32 %v5117, %v5304
      %v5365 = vadd.f32 %v5118, %v5309
      %v5366 = vadd.f32 %v5119, %v5312
      %v5367 = vadd.f32 %v5120, %v5317
      %v5368 = vadd.f32 %v5121, %v5320
      %v5369 = vadd.f32 %v5122, %v5325
      %v5370 = vadd.f32 %v5123, %v5328
      %v5371 = vadd.f32 %v5124, %v5333
      %v5372 = vadd.f32 %v5125, %v5336
      %v5373 = vadd.f32 %v5126, %v5341
      %v5374 = vadd.f32 %v5127, %v5344
      %s5375 = scalar_lea.vmem %s3, 16
      %v5376 = vld [vmem:[%s5375] sm:$0x3]
      %v5377 = vrot.slane %v4262, 1
      %v5378 = vrot.slane %v4263, 1
      %v5379 = vsel %vm1597, %v5377, %v5378
      %v5380 = vrot.slane %v4264, 1
      %v5381 = vsel %vm1597, %v5378, %v5380
      %v5382 = vrot.slane %v4265, 1
      %v5383 = vsel %vm1597, %v5380, %v5382
      %v5384 = vrot.slane %v4266, 1
      %v5385 = vsel %vm1597, %v5382, %v5384
      %v5386 = vrot.slane %v4267, 1
      %v5387 = vsel %vm1597, %v5384, %v5386
      %v5388 = vrot.slane %v4268, 1
      %v5389 = vsel %vm1597, %v5386, %v5388
      %v5390 = vrot.slane %v4269, 1
      %v5391 = vsel %vm1597, %v5388, %v5390
      %v5392 = vrot.slane %v4270, 1
      %v5393 = vsel %vm1597, %v5390, %v5392
      %v5394 = vrot.slane %v4271, 1
      %v5395 = vsel %vm1597, %v5392, %v5394
      %v5396 = vrot.slane %v4272, 1
      %v5397 = vsel %vm1597, %v5394, %v5396
      %v5398 = vrot.slane %v4273, 1
      %v5399 = vsel %vm1597, %v5396, %v5398
      %v5400 = vrot.slane %v4274, 1
      %v5401 = vsel %vm1597, %v5398, %v5400
      %v5402 = vrot.slane %v4275, 1
      %v5403 = vsel %vm1597, %v5400, %v5402
      %v5405 = vsel %vm451, %v5379, 0
      %v5408 = vsel %vm451, %v5381, 0
      %v5411 = vsel %vm451, %v5383, 0
      %v5414 = vsel %vm451, %v5385, 0
      %v5417 = vsel %vm451, %v5387, 0
      %v5420 = vsel %vm451, %v5389, 0
      %v5423 = vsel %vm451, %v5391, 0
      %v5426 = vsel %vm451, %v5393, 0
      %v5429 = vsel %vm451, %v5395, 0
      %v5432 = vsel %vm451, %v5397, 0
      %v5435 = vsel %vm451, %v5399, 0
      %v5438 = vsel %vm451, %v5401, 0
      %v5441 = vsel %vm451, %v5403, 0
      %v5444 = vsel %vm451, %v5402, 0
      %v5447 = vsel %vm494, %v5376, 0
      %5449 = vmatprep.subr.bf16.mxu0 0
      %5450 = vmatpush1.bf16.msra.mxu0 0
      %5451 = vmatprep.subr.bf16.mxu0 0
      %5452 = vmatpush1.bf16.msra.mxu0 0
      %5453 = vmatprep.subr.bf16.mxu0 0
      %5454 = vmatpush1.bf16.msra.mxu0 0
      %5455 = vmatprep.subr.bf16.mxu0 0
      %5456 = vmatpush1.bf16.msra.mxu0 0
      %5457 = vmatprep.subr.bf16.mxu0 0
      %5458 = vmatpush1.bf16.msra.mxu0 0
      %5459 = vmatprep.subr.bf16.mxu0 0
      %5460 = vmatpush1.bf16.msra.mxu0 0
      %5461 = vmatprep.subr.bf16.mxu0 0
      %5462 = vmatpush1.bf16.msra.mxu0 0
      %5463 = vmatprep.subr.bf16.mxu0 0
      %5464 = vmatpush1.bf16.msra.mxu0 %v5447
      %5465 = vmatprep.subr.bf16.mxu0 0
      %5466 = vmatpush2.bf16.msra.mxu0 0
      %5467 = vmatprep.subr.bf16.mxu0 0
      %5468 = vmatpush2.bf16.msra.mxu0 0
      %5469 = vmatprep.subr.bf16.mxu0 0
      %5470 = vmatpush2.bf16.msra.mxu0 0
      %5471 = vmatprep.subr.bf16.mxu0 0
      %5472 = vmatpush2.bf16.msra.mxu0 0
      %5473 = vmatprep.subr.bf16.mxu0 0
      %5474 = vmatpush2.bf16.msra.mxu0 0
      %5475 = vmatprep.subr.bf16.mxu0 0
      %5476 = vmatpush2.bf16.msra.mxu0 0
      %5477 = vmatprep.subr.bf16.mxu0 0
      %5478 = vmatpush2.bf16.msra.mxu0 0
      %5479 = vmatprep.subr.bf16.mxu0 0
      %5480 = vmatpush2.bf16.msra.mxu0 0
      %5481 = vmatprep.mubr.bf16.mxu0 0
      %5482 = vmatmul.mubr.bf16.gmra.mxu0 %v5405
      %v5483 = vpop.f32.mrf.mxu0
      %v5484 = vadd.f32 0.0, %v5483
      %v5485 = vpop.f32.mrf.mxu0
      %v5486 = vpop.f32.mrf.mxu0
      %v5487 = vadd.f32 0.0, %v5486
      %v5488 = vpop.f32.mrf.mxu0
      %5489 = vmatprep.mubr.bf16.mxu0 0
      %5490 = vmatmul.mubr.bf16.gmra.mxu0 %v5408
      %v5491 = vpop.f32.mrf.mxu0
      %v5492 = vadd.f32 0.0, %v5491
      %v5493 = vpop.f32.mrf.mxu0
      %v5494 = vpop.f32.mrf.mxu0
      %v5495 = vadd.f32 0.0, %v5494
      %v5496 = vpop.f32.mrf.mxu0
      %5497 = vmatprep.mubr.bf16.mxu0 0
      %5498 = vmatmul.mubr.bf16.gmra.mxu0 %v5411
      %v5499 = vpop.f32.mrf.mxu0
      %v5500 = vadd.f32 0.0, %v5499
      %v5501 = vpop.f32.mrf.mxu0
      %v5502 = vpop.f32.mrf.mxu0
      %v5503 = vadd.f32 0.0, %v5502
      %v5504 = vpop.f32.mrf.mxu0
      %5505 = vmatprep.mubr.bf16.mxu0 0
      %5506 = vmatmul.mubr.bf16.gmra.mxu0 %v5414
      %v5507 = vpop.f32.mrf.mxu0
      %v5508 = vadd.f32 0.0, %v5507
      %v5509 = vpop.f32.mrf.mxu0
      %v5510 = vpop.f32.mrf.mxu0
      %v5511 = vadd.f32 0.0, %v5510
      %v5512 = vpop.f32.mrf.mxu0
      %5513 = vmatprep.mubr.bf16.mxu0 0
      %5514 = vmatmul.mubr.bf16.gmra.mxu0 %v5417
      %v5515 = vpop.f32.mrf.mxu0
      %v5516 = vadd.f32 0.0, %v5515
      %v5517 = vpop.f32.mrf.mxu0
      %v5518 = vpop.f32.mrf.mxu0
      %v5519 = vadd.f32 0.0, %v5518
      %v5520 = vpop.f32.mrf.mxu0
      %5521 = vmatprep.mubr.bf16.mxu0 0
      %5522 = vmatmul.mubr.bf16.gmra.mxu0 %v5420
      %v5523 = vpop.f32.mrf.mxu0
      %v5524 = vadd.f32 0.0, %v5523
      %v5525 = vpop.f32.mrf.mxu0
      %v5526 = vpop.f32.mrf.mxu0
      %v5527 = vadd.f32 0.0, %v5526
      %v5528 = vpop.f32.mrf.mxu0
      %5529 = vmatprep.mubr.bf16.mxu0 0
      %5530 = vmatmul.mubr.bf16.gmra.mxu0 %v5423
      %v5531 = vpop.f32.mrf.mxu0
      %v5532 = vadd.f32 0.0, %v5531
      %v5533 = vpop.f32.mrf.mxu0
      %v5534 = vpop.f32.mrf.mxu0
      %v5535 = vadd.f32 0.0, %v5534
      %v5536 = vpop.f32.mrf.mxu0
      %5537 = vmatprep.mubr.bf16.mxu0 0
      %5538 = vmatmul.mubr.bf16.gmra.mxu0 %v5426
      %v5539 = vpop.f32.mrf.mxu0
      %v5540 = vadd.f32 0.0, %v5539
      %v5541 = vpop.f32.mrf.mxu0
      %v5542 = vpop.f32.mrf.mxu0
      %v5543 = vadd.f32 0.0, %v5542
      %v5544 = vpop.f32.mrf.mxu0
      %5545 = vmatprep.mubr.bf16.mxu0 0
      %5546 = vmatmul.mubr.bf16.gmra.mxu0 %v5429
      %v5547 = vpop.f32.mrf.mxu0
      %v5548 = vadd.f32 0.0, %v5547
      %v5549 = vpop.f32.mrf.mxu0
      %v5550 = vpop.f32.mrf.mxu0
      %v5551 = vadd.f32 0.0, %v5550
      %v5552 = vpop.f32.mrf.mxu0
      %5553 = vmatprep.mubr.bf16.mxu0 0
      %5554 = vmatmul.mubr.bf16.gmra.mxu0 %v5432
      %v5555 = vpop.f32.mrf.mxu0
      %v5556 = vadd.f32 0.0, %v5555
      %v5557 = vpop.f32.mrf.mxu0
      %v5558 = vpop.f32.mrf.mxu0
      %v5559 = vadd.f32 0.0, %v5558
      %v5560 = vpop.f32.mrf.mxu0
      %5561 = vmatprep.mubr.bf16.mxu0 0
      %5562 = vmatmul.mubr.bf16.gmra.mxu0 %v5435
      %v5563 = vpop.f32.mrf.mxu0
      %v5564 = vadd.f32 0.0, %v5563
      %v5565 = vpop.f32.mrf.mxu0
      %v5566 = vpop.f32.mrf.mxu0
      %v5567 = vadd.f32 0.0, %v5566
      %v5568 = vpop.f32.mrf.mxu0
      %5569 = vmatprep.mubr.bf16.mxu0 0
      %5570 = vmatmul.mubr.bf16.gmra.mxu0 %v5438
      %v5571 = vpop.f32.mrf.mxu0
      %v5572 = vadd.f32 0.0, %v5571
      %v5573 = vpop.f32.mrf.mxu0
      %v5574 = vpop.f32.mrf.mxu0
      %v5575 = vadd.f32 0.0, %v5574
      %v5576 = vpop.f32.mrf.mxu0
      %5577 = vmatprep.mubr.bf16.mxu0 0
      %5578 = vmatmul.mubr.bf16.gmra.mxu0 %v5441
      %v5579 = vpop.f32.mrf.mxu0
      %v5580 = vadd.f32 0.0, %v5579
      %v5581 = vpop.f32.mrf.mxu0
      %v5582 = vpop.f32.mrf.mxu0
      %v5583 = vadd.f32 0.0, %v5582
      %v5584 = vpop.f32.mrf.mxu0
      %5585 = vmatprep.mubr.bf16.mxu0 0
      %5586 = vmatmul.mubr.bf16.gmra.mxu0 %v5444
      %v5587 = vpop.f32.mrf.mxu0
      %v5588 = vadd.f32 0.0, %v5587
      %v5589 = vpop.f32.mrf.mxu0
      %v5590 = vpop.f32.mrf.mxu0
      %v5591 = vadd.f32 0.0, %v5590
      %v5592 = vpop.f32.mrf.mxu0
      %5593 = vdwg.mxu0
      %v5594 = vadd.f32 %v5347, %v5484
      %v5595 = vadd.f32 %v5348, %v5487
      %v5596 = vadd.f32 %v5349, %v5492
      %v5597 = vadd.f32 %v5350, %v5495
      %v5598 = vadd.f32 %v5351, %v5500
      %v5599 = vadd.f32 %v5352, %v5503
      %v5600 = vadd.f32 %v5353, %v5508
      %v5601 = vadd.f32 %v5354, %v5511
      %v5602 = vadd.f32 %v5355, %v5516
      %v5603 = vadd.f32 %v5356, %v5519
      %v5604 = vadd.f32 %v5357, %v5524
      %v5605 = vadd.f32 %v5358, %v5527
      %v5606 = vadd.f32 %v5359, %v5532
      %v5607 = vadd.f32 %v5360, %v5535
      %v5608 = vadd.f32 %v5361, %v5540
      %v5609 = vadd.f32 %v5362, %v5543
      %v5610 = vadd.f32 %v5363, %v5548
      %v5611 = vadd.f32 %v5364, %v5551
      %v5612 = vadd.f32 %v5365, %v5556
      %v5613 = vadd.f32 %v5366, %v5559
      %v5614 = vadd.f32 %v5367, %v5564
      %v5615 = vadd.f32 %v5368, %v5567
      %v5616 = vadd.f32 %v5369, %v5572
      %v5617 = vadd.f32 %v5370, %v5575
      %v5618 = vadd.f32 %v5371, %v5580
      %v5619 = vadd.f32 %v5372, %v5583
      %v5620 = vadd.f32 %v5373, %v5588
      %v5621 = vadd.f32 %v5374, %v5591
      %v5622 = vlaneseq
      %v5623 = vshrl.u32 %v5622, 7
      %v5624 = vadd.s32 %v5623, 8
      %v5625 = vadd.s32 %v5623, 16
      %v5626 = vadd.s32 %v5623, 24
      %v5627 = vadd.s32 %v5623, 32
      %v5628 = vadd.s32 %v5623, 40
      %v5629 = vadd.s32 %v5623, 48
      %v5630 = vadd.s32 %v5623, 56
      %v5631 = vadd.s32 %v5623, 64
      %v5632 = vadd.s32 %v5623, 72
      %v5633 = vadd.s32 %v5623, 80
      %v5634 = vadd.s32 %v5623, 88
      %v5635 = vadd.s32 %v5623, 96
      %v5636 = vadd.s32 %v5623, 104
      %v5637 = vadd.s32 %v5623, 112
      %v5638 = vadd.s32 %v5623, 120
      %v5639 = vadd.s32 %v5623, 128
      %v5640 = vadd.s32 %v5623, 136
      %v5641 = vadd.s32 %v5623, 144
      %v5642 = vadd.s32 %v5623, 152
      %v5643 = vadd.s32 %v5623, 160
      %v5644 = vadd.s32 %v5623, 168
      %v5645 = vadd.s32 %v5623, 176
      %v5646 = vadd.s32 %v5623, 184
      %v5647 = vadd.s32 %v5623, 192
      %v5648 = vadd.s32 %v5623, 200
      %v5649 = vadd.s32 %v5623, 208
      %v5650 = vadd.s32 %v5623, 216
      %vm5651 = vcmp.lt.s32.totalorder %v5623, 0
      %v5652 = vsub.s32 0, %v5623
      %v5653 = vsel %vm5651, %v5652, %v5623
      %v5654 = vshrl.u32 %v5653, 4
      %v5655 = vand.u32 %v5653, 15
      %v5656 = vsub.s32 0, %v5655
      %v5657 = vsel %vm5651, %v5656, %v5655
      %vm5658 = vcmp.lt.s32.totalorder %v5624, 0
      %v5659 = vsub.s32 0, %v5624
      %v5660 = vsel %vm5658, %v5659, %v5624
      %v5661 = vshrl.u32 %v5660, 4
      %v5662 = vand.u32 %v5660, 15
      %v5663 = vsub.s32 0, %v5662
      %v5664 = vsel %vm5658, %v5663, %v5662
      %vm5665 = vcmp.lt.s32.totalorder %v5625, 0
      %v5666 = vsub.s32 0, %v5625
      %v5667 = vsel %vm5665, %v5666, %v5625
      %v5668 = vshrl.u32 %v5667, 4
      %v5669 = vand.u32 %v5667, 15
      %v5670 = vsub.s32 0, %v5669
      %v5671 = vsel %vm5665, %v5670, %v5669
      %vm5672 = vcmp.lt.s32.totalorder %v5626, 0
      %v5673 = vsub.s32 0, %v5626
      %v5674 = vsel %vm5672, %v5673, %v5626
      %v5675 = vshrl.u32 %v5674, 4
      %v5676 = vand.u32 %v5674, 15
      %v5677 = vsub.s32 0, %v5676
      %v5678 = vsel %vm5672, %v5677, %v5676
      %vm5679 = vcmp.lt.s32.totalorder %v5627, 0
      %v5680 = vsub.s32 0, %v5627
      %v5681 = vsel %vm5679, %v5680, %v5627
      %v5682 = vshrl.u32 %v5681, 4
      %v5683 = vand.u32 %v5681, 15
      %v5684 = vsub.s32 0, %v5683
      %v5685 = vsel %vm5679, %v5684, %v5683
      %vm5686 = vcmp.lt.s32.totalorder %v5628, 0
      %v5687 = vsub.s32 0, %v5628
      %v5688 = vsel %vm5686, %v5687, %v5628
      %v5689 = vshrl.u32 %v5688, 4
      %v5690 = vand.u32 %v5688, 15
      %v5691 = vsub.s32 0, %v5690
      %v5692 = vsel %vm5686, %v5691, %v5690
      %vm5693 = vcmp.lt.s32.totalorder %v5629, 0
      %v5694 = vsub.s32 0, %v5629
      %v5695 = vsel %vm5693, %v5694, %v5629
      %v5696 = vshrl.u32 %v5695, 4
      %v5697 = vand.u32 %v5695, 15
      %v5698 = vsub.s32 0, %v5697
      %v5699 = vsel %vm5693, %v5698, %v5697
      %vm5700 = vcmp.lt.s32.totalorder %v5630, 0
      %v5701 = vsub.s32 0, %v5630
      %v5702 = vsel %vm5700, %v5701, %v5630
      %v5703 = vshrl.u32 %v5702, 4
      %v5704 = vand.u32 %v5702, 15
      %v5705 = vsub.s32 0, %v5704
      %v5706 = vsel %vm5700, %v5705, %v5704
      %vm5707 = vcmp.lt.s32.totalorder %v5631, 0
      %v5708 = vsub.s32 0, %v5631
      %v5709 = vsel %vm5707, %v5708, %v5631
      %v5710 = vshrl.u32 %v5709, 4
      %v5711 = vand.u32 %v5709, 15
      %v5712 = vsub.s32 0, %v5711
      %v5713 = vsel %vm5707, %v5712, %v5711
      %vm5714 = vcmp.lt.s32.totalorder %v5632, 0
      %v5715 = vsub.s32 0, %v5632
      %v5716 = vsel %vm5714, %v5715, %v5632
      %v5717 = vshrl.u32 %v5716, 4
      %v5718 = vand.u32 %v5716, 15
      %v5719 = vsub.s32 0, %v5718
      %v5720 = vsel %vm5714, %v5719, %v5718
      %vm5721 = vcmp.lt.s32.totalorder %v5633, 0
      %v5722 = vsub.s32 0, %v5633
      %v5723 = vsel %vm5721, %v5722, %v5633
      %v5724 = vshrl.u32 %v5723, 4
      %v5725 = vand.u32 %v5723, 15
      %v5726 = vsub.s32 0, %v5725
      %v5727 = vsel %vm5721, %v5726, %v5725
      %vm5728 = vcmp.lt.s32.totalorder %v5634, 0
      %v5729 = vsub.s32 0, %v5634
      %v5730 = vsel %vm5728, %v5729, %v5634
      %v5731 = vshrl.u32 %v5730, 4
      %v5732 = vand.u32 %v5730, 15
      %v5733 = vsub.s32 0, %v5732
      %v5734 = vsel %vm5728, %v5733, %v5732
      %vm5735 = vcmp.lt.s32.totalorder %v5635, 0
      %v5736 = vsub.s32 0, %v5635
      %v5737 = vsel %vm5735, %v5736, %v5635
      %v5738 = vshrl.u32 %v5737, 4
      %v5739 = vand.u32 %v5737, 15
      %v5740 = vsub.s32 0, %v5739
      %v5741 = vsel %vm5735, %v5740, %v5739
      %vm5742 = vcmp.lt.s32.totalorder %v5636, 0
      %v5743 = vsub.s32 0, %v5636
      %v5744 = vsel %vm5742, %v5743, %v5636
      %v5745 = vshrl.u32 %v5744, 4
      %v5746 = vand.u32 %v5744, 15
      %v5747 = vsub.s32 0, %v5746
      %v5748 = vsel %vm5742, %v5747, %v5746
      %vm5749 = vcmp.lt.s32.totalorder %v5637, 0
      %v5750 = vsub.s32 0, %v5637
      %v5751 = vsel %vm5749, %v5750, %v5637
      %v5752 = vshrl.u32 %v5751, 4
      %v5753 = vand.u32 %v5751, 15
      %v5754 = vsub.s32 0, %v5753
      %v5755 = vsel %vm5749, %v5754, %v5753
      %vm5756 = vcmp.lt.s32.totalorder %v5638, 0
      %v5757 = vsub.s32 0, %v5638
      %v5758 = vsel %vm5756, %v5757, %v5638
      %v5759 = vshrl.u32 %v5758, 4
      %v5760 = vand.u32 %v5758, 15
      %v5761 = vsub.s32 0, %v5760
      %v5762 = vsel %vm5756, %v5761, %v5760
      %vm5763 = vcmp.lt.s32.totalorder %v5639, 0
      %v5764 = vsub.s32 0, %v5639
      %v5765 = vsel %vm5763, %v5764, %v5639
      %v5766 = vshrl.u32 %v5765, 4
      %v5767 = vand.u32 %v5765, 15
      %v5768 = vsub.s32 0, %v5767
      %v5769 = vsel %vm5763, %v5768, %v5767
      %vm5770 = vcmp.lt.s32.totalorder %v5640, 0
      %v5771 = vsub.s32 0, %v5640
      %v5772 = vsel %vm5770, %v5771, %v5640
      %v5773 = vshrl.u32 %v5772, 4
      %v5774 = vand.u32 %v5772, 15
      %v5775 = vsub.s32 0, %v5774
      %v5776 = vsel %vm5770, %v5775, %v5774
      %vm5777 = vcmp.lt.s32.totalorder %v5641, 0
      %v5778 = vsub.s32 0, %v5641
      %v5779 = vsel %vm5777, %v5778, %v5641
      %v5780 = vshrl.u32 %v5779, 4
      %v5781 = vand.u32 %v5779, 15
      %v5782 = vsub.s32 0, %v5781
      %v5783 = vsel %vm5777, %v5782, %v5781
      %vm5784 = vcmp.lt.s32.totalorder %v5642, 0
      %v5785 = vsub.s32 0, %v5642
      %v5786 = vsel %vm5784, %v5785, %v5642
      %v5787 = vshrl.u32 %v5786, 4
      %v5788 = vand.u32 %v5786, 15
      %v5789 = vsub.s32 0, %v5788
      %v5790 = vsel %vm5784, %v5789, %v5788
      %vm5791 = vcmp.lt.s32.totalorder %v5643, 0
      %v5792 = vsub.s32 0, %v5643
      %v5793 = vsel %vm5791, %v5792, %v5643
      %v5794 = vshrl.u32 %v5793, 4
      %v5795 = vand.u32 %v5793, 15
      %v5796 = vsub.s32 0, %v5795
      %v5797 = vsel %vm5791, %v5796, %v5795
      %vm5798 = vcmp.lt.s32.totalorder %v5644, 0
      %v5799 = vsub.s32 0, %v5644
      %v5800 = vsel %vm5798, %v5799, %v5644
      %v5801 = vshrl.u32 %v5800, 4
      %v5802 = vand.u32 %v5800, 15
      %v5803 = vsub.s32 0, %v5802
      %v5804 = vsel %vm5798, %v5803, %v5802
      %vm5805 = vcmp.lt.s32.totalorder %v5645, 0
      %v5806 = vsub.s32 0, %v5645
      %v5807 = vsel %vm5805, %v5806, %v5645
      %v5808 = vshrl.u32 %v5807, 4
      %v5809 = vand.u32 %v5807, 15
      %v5810 = vsub.s32 0, %v5809
      %v5811 = vsel %vm5805, %v5810, %v5809
      %vm5812 = vcmp.lt.s32.totalorder %v5646, 0
      %v5813 = vsub.s32 0, %v5646
      %v5814 = vsel %vm5812, %v5813, %v5646
      %v5815 = vshrl.u32 %v5814, 4
      %v5816 = vand.u32 %v5814, 15
      %v5817 = vsub.s32 0, %v5816
      %v5818 = vsel %vm5812, %v5817, %v5816
      %vm5819 = vcmp.lt.s32.totalorder %v5647, 0
      %v5820 = vsub.s32 0, %v5647
      %v5821 = vsel %vm5819, %v5820, %v5647
      %v5822 = vshrl.u32 %v5821, 4
      %v5823 = vand.u32 %v5821, 15
      %v5824 = vsub.s32 0, %v5823
      %v5825 = vsel %vm5819, %v5824, %v5823
      %vm5826 = vcmp.lt.s32.totalorder %v5648, 0
      %v5827 = vsub.s32 0, %v5648
      %v5828 = vsel %vm5826, %v5827, %v5648
      %v5829 = vshrl.u32 %v5828, 4
      %v5830 = vand.u32 %v5828, 15
      %v5831 = vsub.s32 0, %v5830
      %v5832 = vsel %vm5826, %v5831, %v5830
      %vm5833 = vcmp.lt.s32.totalorder %v5649, 0
      %v5834 = vsub.s32 0, %v5649
      %v5835 = vsel %vm5833, %v5834, %v5649
      %v5836 = vshrl.u32 %v5835, 4
      %v5837 = vand.u32 %v5835, 15
      %v5838 = vsub.s32 0, %v5837
      %v5839 = vsel %vm5833, %v5838, %v5837
      %vm5840 = vcmp.lt.s32.totalorder %v5650, 0
      %v5841 = vsub.s32 0, %v5650
      %v5842 = vsel %vm5840, %v5841, %v5650
      %v5843 = vshrl.u32 %v5842, 4
      %v5844 = vand.u32 %v5842, 15
      %v5845 = vsub.s32 0, %v5844
      %v5846 = vsel %vm5840, %v5845, %v5844
      %vm5847 = vcmp.ne.s32.totalorder %v5657, 0
      %vm5848 = vcmp.ne.s32.totalorder %v5664, 0
      %vm5849 = vcmp.ne.s32.totalorder %v5671, 0
      %vm5850 = vcmp.ne.s32.totalorder %v5678, 0
      %vm5851 = vcmp.ne.s32.totalorder %v5685, 0
      %vm5852 = vcmp.ne.s32.totalorder %v5692, 0
      %vm5853 = vcmp.ne.s32.totalorder %v5699, 0
      %vm5854 = vcmp.ne.s32.totalorder %v5706, 0
      %vm5855 = vcmp.ne.s32.totalorder %v5713, 0
      %vm5856 = vcmp.ne.s32.totalorder %v5720, 0
      %vm5857 = vcmp.ne.s32.totalorder %v5727, 0
      %vm5858 = vcmp.ne.s32.totalorder %v5734, 0
      %vm5859 = vcmp.ne.s32.totalorder %v5741, 0
      %vm5860 = vcmp.ne.s32.totalorder %v5748, 0
      %vm5861 = vcmp.ne.s32.totalorder %v5755, 0
      %vm5862 = vcmp.ne.s32.totalorder %v5762, 0
      %vm5863 = vcmp.ne.s32.totalorder %v5769, 0
      %vm5864 = vcmp.ne.s32.totalorder %v5776, 0
      %vm5865 = vcmp.ne.s32.totalorder %v5783, 0
      %vm5866 = vcmp.ne.s32.totalorder %v5790, 0
      %vm5867 = vcmp.ne.s32.totalorder %v5797, 0
      %vm5868 = vcmp.ne.s32.totalorder %v5804, 0
      %vm5869 = vcmp.ne.s32.totalorder %v5811, 0
      %vm5870 = vcmp.ne.s32.totalorder %v5818, 0
      %vm5871 = vcmp.ne.s32.totalorder %v5825, 0
      %vm5872 = vcmp.ne.s32.totalorder %v5832, 0
      %vm5873 = vcmp.ne.s32.totalorder %v5839, 0
      %vm5874 = vcmp.ne.s32.totalorder %v5846, 0
      %vm5875 = vcmp.lt.s32.totalorder %v5657, 0
      %vm5876 = vcmp.lt.s32.totalorder %v5664, 0
      %vm5877 = vcmp.lt.s32.totalorder %v5671, 0
      %vm5878 = vcmp.lt.s32.totalorder %v5678, 0
      %vm5879 = vcmp.lt.s32.totalorder %v5685, 0
      %vm5880 = vcmp.lt.s32.totalorder %v5692, 0
      %vm5881 = vcmp.lt.s32.totalorder %v5699, 0
      %vm5882 = vcmp.lt.s32.totalorder %v5706, 0
      %vm5883 = vcmp.lt.s32.totalorder %v5713, 0
      %vm5884 = vcmp.lt.s32.totalorder %v5720, 0
      %vm5885 = vcmp.lt.s32.totalorder %v5727, 0
      %vm5886 = vcmp.lt.s32.totalorder %v5734, 0
      %vm5887 = vcmp.lt.s32.totalorder %v5741, 0
      %vm5888 = vcmp.lt.s32.totalorder %v5748, 0
      %vm5889 = vcmp.lt.s32.totalorder %v5755, 0
      %vm5890 = vcmp.lt.s32.totalorder %v5762, 0
      %vm5891 = vcmp.lt.s32.totalorder %v5769, 0
      %vm5892 = vcmp.lt.s32.totalorder %v5776, 0
      %vm5893 = vcmp.lt.s32.totalorder %v5783, 0
      %vm5894 = vcmp.lt.s32.totalorder %v5790, 0
      %vm5895 = vcmp.lt.s32.totalorder %v5797, 0
      %vm5896 = vcmp.lt.s32.totalorder %v5804, 0
      %vm5897 = vcmp.lt.s32.totalorder %v5811, 0
      %vm5898 = vcmp.lt.s32.totalorder %v5818, 0
      %vm5899 = vcmp.lt.s32.totalorder %v5825, 0
      %vm5900 = vcmp.lt.s32.totalorder %v5832, 0
      %vm5901 = vcmp.lt.s32.totalorder %v5839, 0
      %vm5902 = vcmp.lt.s32.totalorder %v5846, 0
      %vm5903 = vmand %vm5875, %vm5847
      %vm5904 = vmand %vm5876, %vm5848
      %vm5905 = vmand %vm5877, %vm5849
      %vm5906 = vmand %vm5878, %vm5850
      %vm5907 = vmand %vm5879, %vm5851
      %vm5908 = vmand %vm5880, %vm5852
      %vm5909 = vmand %vm5881, %vm5853
      %vm5910 = vmand %vm5882, %vm5854
      %vm5911 = vmand %vm5883, %vm5855
      %vm5912 = vmand %vm5884, %vm5856
      %vm5913 = vmand %vm5885, %vm5857
      %vm5914 = vmand %vm5886, %vm5858
      %vm5915 = vmand %vm5887, %vm5859
      %vm5916 = vmand %vm5888, %vm5860
      %vm5917 = vmand %vm5889, %vm5861
      %vm5918 = vmand %vm5890, %vm5862
      %vm5919 = vmand %vm5891, %vm5863
      %vm5920 = vmand %vm5892, %vm5864
      %vm5921 = vmand %vm5893, %vm5865
      %vm5922 = vmand %vm5894, %vm5866
      %vm5923 = vmand %vm5895, %vm5867
      %vm5924 = vmand %vm5896, %vm5868
      %vm5925 = vmand %vm5897, %vm5869
      %vm5926 = vmand %vm5898, %vm5870
      %vm5927 = vmand %vm5899, %vm5871
      %vm5928 = vmand %vm5900, %vm5872
      %vm5929 = vmand %vm5901, %vm5873
      %vm5930 = vmand %vm5902, %vm5874
      %v5931 = vadd.s32 %v5657, 16
      %v5932 = vadd.s32 %v5664, 16
      %v5933 = vadd.s32 %v5671, 16
      %v5934 = vadd.s32 %v5678, 16
      %v5935 = vadd.s32 %v5685, 16
      %v5936 = vadd.s32 %v5692, 16
      %v5937 = vadd.s32 %v5699, 16
      %v5938 = vadd.s32 %v5706, 16
      %v5939 = vadd.s32 %v5713, 16
      %v5940 = vadd.s32 %v5720, 16
      %v5941 = vadd.s32 %v5727, 16
      %v5942 = vadd.s32 %v5734, 16
      %v5943 = vadd.s32 %v5741, 16
      %v5944 = vadd.s32 %v5748, 16
      %v5945 = vadd.s32 %v5755, 16
      %v5946 = vadd.s32 %v5762, 16
      %v5947 = vadd.s32 %v5769, 16
      %v5948 = vadd.s32 %v5776, 16
      %v5949 = vadd.s32 %v5783, 16
      %v5950 = vadd.s32 %v5790, 16
      %v5951 = vadd.s32 %v5797, 16
      %v5952 = vadd.s32 %v5804, 16
      %v5953 = vadd.s32 %v5811, 16
      %v5954 = vadd.s32 %v5818, 16
      %v5955 = vadd.s32 %v5825, 16
      %v5956 = vadd.s32 %v5832, 16
      %v5957 = vadd.s32 %v5839, 16
      %v5958 = vadd.s32 %v5846, 16
      %v5959 = vsel %vm5903, %v5931, %v5657
      %v5960 = vsel %vm5904, %v5932, %v5664
      %v5961 = vsel %vm5905, %v5933, %v5671
      %v5962 = vsel %vm5906, %v5934, %v5678
      %v5963 = vsel %vm5907, %v5935, %v5685
      %v5964 = vsel %vm5908, %v5936, %v5692
      %v5965 = vsel %vm5909, %v5937, %v5699
      %v5966 = vsel %vm5910, %v5938, %v5706
      %v5967 = vsel %vm5911, %v5939, %v5713
      %v5968 = vsel %vm5912, %v5940, %v5720
      %v5969 = vsel %vm5913, %v5941, %v5727
      %v5970 = vsel %vm5914, %v5942, %v5734
      %v5971 = vsel %vm5915, %v5943, %v5741
      %v5972 = vsel %vm5916, %v5944, %v5748
      %v5973 = vsel %vm5917, %v5945, %v5755
      %v5974 = vsel %vm5918, %v5946, %v5762
      %v5975 = vsel %vm5919, %v5947, %v5769
      %v5976 = vsel %vm5920, %v5948, %v5776
      %v5977 = vsel %vm5921, %v5949, %v5783
      %v5978 = vsel %vm5922, %v5950, %v5790
      %v5979 = vsel %vm5923, %v5951, %v5797
      %v5980 = vsel %vm5924, %v5952, %v5804
      %v5981 = vsel %vm5925, %v5953, %v5811
      %v5982 = vsel %vm5926, %v5954, %v5818
      %v5983 = vsel %vm5927, %v5955, %v5825
      %v5984 = vsel %vm5928, %v5956, %v5832
      %v5985 = vsel %vm5929, %v5957, %v5839
      %v5986 = vsel %vm5930, %v5958, %v5846
      %vm5987 = vcmp.lt.s32.totalorder %v5959, 14
      %vm5988 = vcmp.lt.s32.totalorder %v5960, 14
      %vm5989 = vcmp.lt.s32.totalorder %v5961, 14
      %vm5990 = vcmp.lt.s32.totalorder %v5962, 14
      %vm5991 = vcmp.lt.s32.totalorder %v5963, 14
      %vm5992 = vcmp.lt.s32.totalorder %v5964, 14
      %vm5993 = vcmp.lt.s32.totalorder %v5965, 14
      %vm5994 = vcmp.lt.s32.totalorder %v5966, 14
      %vm5995 = vcmp.lt.s32.totalorder %v5967, 14
      %vm5996 = vcmp.lt.s32.totalorder %v5968, 14
      %vm5997 = vcmp.lt.s32.totalorder %v5969, 14
      %vm5998 = vcmp.lt.s32.totalorder %v5970, 14
      %vm5999 = vcmp.lt.s32.totalorder %v5971, 14
      %vm6000 = vcmp.lt.s32.totalorder %v5972, 14
      %vm6001 = vcmp.lt.s32.totalorder %v5973, 14
      %vm6002 = vcmp.lt.s32.totalorder %v5974, 14
      %vm6003 = vcmp.lt.s32.totalorder %v5975, 14
      %vm6004 = vcmp.lt.s32.totalorder %v5976, 14
      %vm6005 = vcmp.lt.s32.totalorder %v5977, 14
      %vm6006 = vcmp.lt.s32.totalorder %v5978, 14
      %vm6007 = vcmp.lt.s32.totalorder %v5979, 14
      %vm6008 = vcmp.lt.s32.totalorder %v5980, 14
      %vm6009 = vcmp.lt.s32.totalorder %v5981, 14
      %vm6010 = vcmp.lt.s32.totalorder %v5982, 14
      %vm6011 = vcmp.lt.s32.totalorder %v5983, 14
      %vm6012 = vcmp.lt.s32.totalorder %v5984, 14
      %vm6013 = vcmp.lt.s32.totalorder %v5985, 14
      %vm6014 = vcmp.lt.s32.totalorder %v5986, 14
      %v6015 = vsel %vm5987, 1, 0
      %v6016 = vsel %vm5988, 1, 0
      %v6017 = vsel %vm5989, 1, 0
      %v6018 = vsel %vm5990, 1, 0
      %v6019 = vsel %vm5991, 1, 0
      %v6020 = vsel %vm5992, 1, 0
      %v6021 = vsel %vm5993, 1, 0
      %v6022 = vsel %vm5994, 1, 0
      %v6023 = vsel %vm5995, 1, 0
      %v6024 = vsel %vm5996, 1, 0
      %v6025 = vsel %vm5997, 1, 0
      %v6026 = vsel %vm5998, 1, 0
      %v6027 = vsel %vm5999, 1, 0
      %v6028 = vsel %vm6000, 1, 0
      %v6029 = vsel %vm6001, 1, 0
      %v6030 = vsel %vm6002, 1, 0
      %v6031 = vsel %vm6003, 1, 0
      %v6032 = vsel %vm6004, 1, 0
      %v6033 = vsel %vm6005, 1, 0
      %v6034 = vsel %vm6006, 1, 0
      %v6035 = vsel %vm6007, 1, 0
      %v6036 = vsel %vm6008, 1, 0
      %v6037 = vsel %vm6009, 1, 0
      %v6038 = vsel %vm6010, 1, 0
      %v6039 = vsel %vm6011, 1, 0
      %v6040 = vsel %vm6012, 1, 0
      %v6041 = vsel %vm6013, 1, 0
      %v6042 = vsel %vm6014, 1, 0
      %vm6043 = vcmp.eq.s32.totalorder %v6015, 1
      %vm6044 = vcmp.eq.s32.totalorder %v6016, 1
      %vm6045 = vcmp.eq.s32.totalorder %v6017, 1
      %vm6046 = vcmp.eq.s32.totalorder %v6018, 1
      %vm6047 = vcmp.eq.s32.totalorder %v6019, 1
      %vm6048 = vcmp.eq.s32.totalorder %v6020, 1
      %vm6049 = vcmp.eq.s32.totalorder %v6021, 1
      %vm6050 = vcmp.eq.s32.totalorder %v6022, 1
      %vm6051 = vcmp.eq.s32.totalorder %v6023, 1
      %vm6052 = vcmp.eq.s32.totalorder %v6024, 1
      %vm6053 = vcmp.eq.s32.totalorder %v6025, 1
      %vm6054 = vcmp.eq.s32.totalorder %v6026, 1
      %vm6055 = vcmp.eq.s32.totalorder %v6027, 1
      %vm6056 = vcmp.eq.s32.totalorder %v6028, 1
      %vm6057 = vcmp.eq.s32.totalorder %v6029, 1
      %vm6058 = vcmp.eq.s32.totalorder %v6030, 1
      %vm6059 = vcmp.eq.s32.totalorder %v6031, 1
      %vm6060 = vcmp.eq.s32.totalorder %v6032, 1
      %vm6061 = vcmp.eq.s32.totalorder %v6033, 1
      %vm6062 = vcmp.eq.s32.totalorder %v6034, 1
      %vm6063 = vcmp.eq.s32.totalorder %v6035, 1
      %vm6064 = vcmp.eq.s32.totalorder %v6036, 1
      %vm6065 = vcmp.eq.s32.totalorder %v6037, 1
      %vm6066 = vcmp.eq.s32.totalorder %v6038, 1
      %vm6067 = vcmp.eq.s32.totalorder %v6039, 1
      %vm6068 = vcmp.eq.s32.totalorder %v6040, 1
      %vm6069 = vcmp.eq.s32.totalorder %v6041, 1
      %vm6070 = vcmp.eq.s32.totalorder %v6042, 1
      %v6071 = vsel %vm6043, %v5594, 0.0
      %v6072 = vsel %vm6044, %v5595, 0.0
      %v6073 = vsel %vm6045, %v5596, 0.0
      %v6074 = vsel %vm6046, %v5597, 0.0
      %v6075 = vsel %vm6047, %v5598, 0.0
      %v6076 = vsel %vm6048, %v5599, 0.0
      %v6077 = vsel %vm6049, %v5600, 0.0
      %v6078 = vsel %vm6050, %v5601, 0.0
      %v6079 = vsel %vm6051, %v5602, 0.0
      %v6080 = vsel %vm6052, %v5603, 0.0
      %v6081 = vsel %vm6053, %v5604, 0.0
      %v6082 = vsel %vm6054, %v5605, 0.0
      %v6083 = vsel %vm6055, %v5606, 0.0
      %v6084 = vsel %vm6056, %v5607, 0.0
      %v6085 = vsel %vm6057, %v5608, 0.0
      %v6086 = vsel %vm6058, %v5609, 0.0
      %v6087 = vsel %vm6059, %v5610, 0.0
      %v6088 = vsel %vm6060, %v5611, 0.0
      %v6089 = vsel %vm6061, %v5612, 0.0
      %v6090 = vsel %vm6062, %v5613, 0.0
      %v6091 = vsel %vm6063, %v5614, 0.0
      %v6092 = vsel %vm6064, %v5615, 0.0
      %v6093 = vsel %vm6065, %v5616, 0.0
      %v6094 = vsel %vm6066, %v5617, 0.0
      %v6095 = vsel %vm6067, %v5618, 0.0
      %v6096 = vsel %vm6068, %v5619, 0.0
      %v6097 = vsel %vm6069, %v5620, 0.0
      %v6098 = vsel %vm6070, %v5621, 0.0
      %v6099 = vadd.f32 %v6071, %v6072
      %v6100 = vadd.f32 %v6099, %v6073
      %v6101 = vadd.f32 %v6100, %v6074
      %v6102 = vadd.f32 %v6101, %v6075
      %v6103 = vadd.f32 %v6102, %v6076
      %v6104 = vadd.f32 %v6103, %v6077
      %v6105 = vadd.f32 %v6104, %v6078
      %v6106 = vadd.f32 %v6105, %v6079
      %v6107 = vadd.f32 %v6106, %v6080
      %v6108 = vadd.f32 %v6107, %v6081
      %v6109 = vadd.f32 %v6108, %v6082
      %v6110 = vadd.f32 %v6109, %v6083
      %v6111 = vadd.f32 %v6110, %v6084
      %v6112 = vadd.f32 %v6111, %v6085
      %v6113 = vadd.f32 %v6112, %v6086
      %v6114 = vadd.f32 %v6113, %v6087
      %v6115 = vadd.f32 %v6114, %v6088
      %v6116 = vadd.f32 %v6115, %v6089
      %v6117 = vadd.f32 %v6116, %v6090
      %v6118 = vadd.f32 %v6117, %v6091
      %v6119 = vadd.f32 %v6118, %v6092
      %v6120 = vadd.f32 %v6119, %v6093
      %v6121 = vadd.f32 %v6120, %v6094
      %v6122 = vadd.f32 %v6121, %v6095
      %v6123 = vadd.f32 %v6122, %v6096
      %v6124 = vadd.f32 %v6123, %v6097
      %vm6125 = vcmask 1045504
      %v6126 = vsel %vm6125, %v6098, 0.0
      %v6127 = vadd.f32 %v6124, %v6126
      %v6128 = vrot.slane %v6127, 4
      %v6129 = vadd.f32 %v6127, %v6128
      %v6130 = vrot.slane %v6129, 2
      %v6131 = vadd.f32 %v6129, %v6130
      %v6132 = vrot.slane %v6131, 1
      %v6133 = vadd.f32 %v6131, %v6132
      %v6134 = vadd.f32 %v6133, 0.0
      %v6135 = vmul.f32 %v6071, %v6071
      %v6136 = vmul.f32 %v6072, %v6072
      %v6137 = vmul.f32 %v6073, %v6073
      %v6138 = vmul.f32 %v6074, %v6074
      %v6139 = vmul.f32 %v6075, %v6075
      %v6140 = vmul.f32 %v6076, %v6076
      %v6141 = vmul.f32 %v6077, %v6077
      %v6142 = vmul.f32 %v6078, %v6078
      %v6143 = vmul.f32 %v6079, %v6079
      %v6144 = vmul.f32 %v6080, %v6080
      %v6145 = vmul.f32 %v6081, %v6081
      %v6146 = vmul.f32 %v6082, %v6082
      %v6147 = vmul.f32 %v6083, %v6083
      %v6148 = vmul.f32 %v6084, %v6084
      %v6149 = vmul.f32 %v6085, %v6085
      %v6150 = vmul.f32 %v6086, %v6086
      %v6151 = vmul.f32 %v6087, %v6087
      %v6152 = vmul.f32 %v6088, %v6088
      %v6153 = vmul.f32 %v6089, %v6089
      %v6154 = vmul.f32 %v6090, %v6090
      %v6155 = vmul.f32 %v6091, %v6091
      %v6156 = vmul.f32 %v6092, %v6092
      %v6157 = vmul.f32 %v6093, %v6093
      %v6158 = vmul.f32 %v6094, %v6094
      %v6159 = vmul.f32 %v6095, %v6095
      %v6160 = vmul.f32 %v6096, %v6096
      %v6161 = vmul.f32 %v6097, %v6097
      %v6162 = vmul.f32 %v6098, %v6098
      %v6163 = vadd.f32 %v6135, %v6136
      %v6164 = vadd.f32 %v6163, %v6137
      %v6165 = vadd.f32 %v6164, %v6138
      %v6166 = vadd.f32 %v6165, %v6139
      %v6167 = vadd.f32 %v6166, %v6140
      %v6168 = vadd.f32 %v6167, %v6141
      %v6169 = vadd.f32 %v6168, %v6142
      %v6170 = vadd.f32 %v6169, %v6143
      %v6171 = vadd.f32 %v6170, %v6144
      %v6172 = vadd.f32 %v6171, %v6145
      %v6173 = vadd.f32 %v6172, %v6146
      %v6174 = vadd.f32 %v6173, %v6147
      %v6175 = vadd.f32 %v6174, %v6148
      %v6176 = vadd.f32 %v6175, %v6149
      %v6177 = vadd.f32 %v6176, %v6150
      %v6178 = vadd.f32 %v6177, %v6151
      %v6179 = vadd.f32 %v6178, %v6152
      %v6180 = vadd.f32 %v6179, %v6153
      %v6181 = vadd.f32 %v6180, %v6154
      %v6182 = vadd.f32 %v6181, %v6155
      %v6183 = vadd.f32 %v6182, %v6156
      %v6184 = vadd.f32 %v6183, %v6157
      %v6185 = vadd.f32 %v6184, %v6158
      %v6186 = vadd.f32 %v6185, %v6159
      %v6187 = vadd.f32 %v6186, %v6160
      %v6188 = vadd.f32 %v6187, %v6161
      %v6189 = vsel %vm6125, %v6162, 0.0
      %v6190 = vadd.f32 %v6188, %v6189
      %v6191 = vrot.slane %v6190, 4
      %v6192 = vadd.f32 %v6190, %v6191
      %v6193 = vrot.slane %v6192, 2
      %v6194 = vadd.f32 %v6192, %v6193
      %v6195 = vrot.slane %v6194, 1
      %v6196 = vadd.f32 %v6194, %v6195
      %v6197 = vadd.f32 %v6196, 0.0
      %v6198 = vpack.c.bf16 %v5595, %v5594
      %v6199 = vpack.c.bf16 %v5597, %v5596
      %v6200 = vpack.c.bf16 %v5599, %v5598
      %v6201 = vpack.c.bf16 %v5601, %v5600
      %v6202 = vpack.c.bf16 %v5603, %v5602
      %v6203 = vpack.c.bf16 %v5605, %v5604
      %v6204 = vpack.c.bf16 %v5607, %v5606
      %v6205 = vpack.c.bf16 %v5609, %v5608
      %v6206 = vpack.c.bf16 %v5611, %v5610
      %v6207 = vpack.c.bf16 %v5613, %v5612
      %v6208 = vpack.c.bf16 %v5615, %v5614
      %v6209 = vpack.c.bf16 %v5617, %v5616
      %v6210 = vpack.c.bf16 %v5619, %v5618
      %v6211 = vpack.c.bf16 %v5621, %v5620
      %vm6212 = vcmask 1046528
      %v6215 = vsel %vm6212, %v6198, 0
      %v6217 = vunpack.c.l.b16 %v6215
      %v6218 = vunpack.c.h.b16 %v6215
      %v6219 = vpack.c.b16 %v6217, %v6217
      %v6220 = vpack.c.b16 %v6218, %v6218
      %6223 = vst [vmem:[%s309] sm:$0xf] %v6219
      %6224 = vst [vmem:[%s309 + $0x4] sm:$0xf] %v6220
      %v6226 = vsel %vm6212, %v6199, 0
      %v6228 = vunpack.c.l.b16 %v6226
      %v6229 = vunpack.c.h.b16 %v6226
      %v6230 = vpack.c.b16 %v6228, %v6228
      %v6231 = vpack.c.b16 %v6229, %v6229
      %s6234 = scalar_lea.vmem %s309, 8
      %6235 = vst [vmem:[%s6234] sm:$0xf] %v6230
      %6236 = vst [vmem:[%s6234 + $0x4] sm:$0xf] %v6231
      %v6238 = vsel %vm6212, %v6200, 0
      %v6240 = vunpack.c.l.b16 %v6238
      %v6241 = vunpack.c.h.b16 %v6238
      %v6242 = vpack.c.b16 %v6240, %v6240
      %v6243 = vpack.c.b16 %v6241, %v6241
      %s6246 = scalar_lea.vmem %s309, 16
      %6247 = vst [vmem:[%s6246] sm:$0xf] %v6242
      %6248 = vst [vmem:[%s6246 + $0x4] sm:$0xf] %v6243
      %v6250 = vsel %vm6212, %v6201, 0
      %v6252 = vunpack.c.l.b16 %v6250
      %v6253 = vunpack.c.h.b16 %v6250
      %v6254 = vpack.c.b16 %v6252, %v6252
      %v6255 = vpack.c.b16 %v6253, %v6253
      %s6258 = scalar_lea.vmem %s309, 24
      %6259 = vst [vmem:[%s6258] sm:$0xf] %v6254
      %6260 = vst [vmem:[%s6258 + $0x4] sm:$0xf] %v6255
      %v6262 = vsel %vm6212, %v6202, 0
      %v6264 = vunpack.c.l.b16 %v6262
      %v6265 = vunpack.c.h.b16 %v6262
      %v6266 = vpack.c.b16 %v6264, %v6264
      %v6267 = vpack.c.b16 %v6265, %v6265
      %s6270 = scalar_lea.vmem %s309, 32
      %6271 = vst [vmem:[%s6270] sm:$0xf] %v6266
      %6272 = vst [vmem:[%s6270 + $0x4] sm:$0xf] %v6267
      %v6274 = vsel %vm6212, %v6203, 0
      %v6276 = vunpack.c.l.b16 %v6274
      %v6277 = vunpack.c.h.b16 %v6274
      %v6278 = vpack.c.b16 %v6276, %v6276
      %v6279 = vpack.c.b16 %v6277, %v6277
      %s6282 = scalar_lea.vmem %s309, 40
      %6283 = vst [vmem:[%s6282] sm:$0xf] %v6278
      %6284 = vst [vmem:[%s6282 + $0x4] sm:$0xf] %v6279
      %v6286 = vsel %vm6212, %v6204, 0
      %v6288 = vunpack.c.l.b16 %v6286
      %v6289 = vunpack.c.h.b16 %v6286
      %v6290 = vpack.c.b16 %v6288, %v6288
      %v6291 = vpack.c.b16 %v6289, %v6289
      %s6294 = scalar_lea.vmem %s309, 48
      %6295 = vst [vmem:[%s6294] sm:$0xf] %v6290
      %6296 = vst [vmem:[%s6294 + $0x4] sm:$0xf] %v6291
      %v6298 = vsel %vm6212, %v6205, 0
      %v6300 = vunpack.c.l.b16 %v6298
      %v6301 = vunpack.c.h.b16 %v6298
      %v6302 = vpack.c.b16 %v6300, %v6300
      %v6303 = vpack.c.b16 %v6301, %v6301
      %s6306 = scalar_lea.vmem %s309, 56
      %6307 = vst [vmem:[%s6306] sm:$0xf] %v6302
      %6308 = vst [vmem:[%s6306 + $0x4] sm:$0xf] %v6303
      %v6310 = vsel %vm6212, %v6206, 0
      %v6312 = vunpack.c.l.b16 %v6310
      %v6313 = vunpack.c.h.b16 %v6310
      %v6314 = vpack.c.b16 %v6312, %v6312
      %v6315 = vpack.c.b16 %v6313, %v6313
      %s6318 = scalar_lea.vmem %s309, 64
      %6319 = vst [vmem:[%s6318] sm:$0xf] %v6314
      %6320 = vst [vmem:[%s6318 + $0x4] sm:$0xf] %v6315
      %v6322 = vsel %vm6212, %v6207, 0
      %v6324 = vunpack.c.l.b16 %v6322
      %v6325 = vunpack.c.h.b16 %v6322
      %v6326 = vpack.c.b16 %v6324, %v6324
      %v6327 = vpack.c.b16 %v6325, %v6325
      %s6330 = scalar_lea.vmem %s309, 72
      %6331 = vst [vmem:[%s6330] sm:$0xf] %v6326
      %6332 = vst [vmem:[%s6330 + $0x4] sm:$0xf] %v6327
      %v6334 = vsel %vm6212, %v6208, 0
      %v6336 = vunpack.c.l.b16 %v6334
      %v6337 = vunpack.c.h.b16 %v6334
      %v6338 = vpack.c.b16 %v6336, %v6336
      %v6339 = vpack.c.b16 %v6337, %v6337
      %s6342 = scalar_lea.vmem %s309, 80
      %6343 = vst [vmem:[%s6342] sm:$0xf] %v6338
      %6344 = vst [vmem:[%s6342 + $0x4] sm:$0xf] %v6339
      %v6346 = vsel %vm6212, %v6209, 0
      %v6348 = vunpack.c.l.b16 %v6346
      %v6349 = vunpack.c.h.b16 %v6346
      %v6350 = vpack.c.b16 %v6348, %v6348
      %v6351 = vpack.c.b16 %v6349, %v6349
      %s6354 = scalar_lea.vmem %s309, 88
      %6355 = vst [vmem:[%s6354] sm:$0xf] %v6350
      %6356 = vst [vmem:[%s6354 + $0x4] sm:$0xf] %v6351
      %v6358 = vsel %vm6212, %v6210, 0
      %v6360 = vunpack.c.l.b16 %v6358
      %v6361 = vunpack.c.h.b16 %v6358
      %v6362 = vpack.c.b16 %v6360, %v6360
      %v6363 = vpack.c.b16 %v6361, %v6361
      %s6366 = scalar_lea.vmem %s309, 96
      %6367 = vst [vmem:[%s6366] sm:$0xf] %v6362
      %6368 = vst [vmem:[%s6366 + $0x4] sm:$0xf] %v6363
      %v6370 = vsel %vm6212, %v6211, 0
      %v6372 = vunpack.c.l.b16 %v6370
      %v6373 = vunpack.c.h.b16 %v6370
      %v6374 = vpack.c.b16 %v6372, %v6372
      %v6375 = vpack.c.b16 %v6373, %v6373
      %s6378 = scalar_lea.vmem %s309, 104
      %6379 = vst [vmem:[%s6378] sm:$0xf] %v6374
      %6380 = vst [vmem:[%s6378 + $0x4] sm:$0xf] %v6375
      %6381 = vst [vmem:[%s312] sm:$0x1] %v6134
      %6382 = vst [vmem:[%s315] sm:$0x1] %v6197
      %p6383 = scmp.lt.s32.totalorder %s19, 1
      %s6384 = scalar_select %p6383, %s19, 1
      %s6385 = smul.addr %s6384, 28
      %s6386 = smul.addr %s6385, 4
      %s6387 = scalar_lea.vmem %s5, %s6386
      %p6388 = scmp.lt.s32.totalorder %s19, 1
      %s6389 = scalar_select %p6388, %s19, 1
      %s6390 = scalar_lea.vmem %s6, %s6389
      %p6391 = scmp.lt.s32.totalorder %s19, 1
      %s6392 = scalar_select %p6391, %s19, 1
      %s6393 = scalar_lea.vmem %s7, %s6392
      // Predicated region
      $region41: #{up_step_forward.4} parent=39 // pred_check
        %p6394 = pneg %p152
      $region42: #{up_step_forward.4} parent=39 // pred_check_branch
        %6396 = sbr.rel (%p6394) target = $region44
      $region43: #{up_step_forward.4} parent=39 // pred_region
        _
      $region44: #{up_step_forward.4} parent=39 // pred_fallthru
        _
      // Predicated region
      $region45: #{up_step_forward.4} parent=39 // pred_check
        %p6397 = pneg %p178
      $region46: #{up_step_forward.4} parent=39 // pred_check_branch
        %6399 = sbr.rel (%p6397) target = $region48
      $region47: #{up_step_forward.4} parent=39 // pred_region
        _
      $region48: #{up_step_forward.4} parent=39 // pred_fallthru
        _
      // Predicated region
      $region49: #{up_step_forward.4} parent=39 // pred_check
        %p6400 = pneg %p204
      $region50: #{up_step_forward.4} parent=39 // pred_check_branch
        %6402 = sbr.rel (%p6400) target = $region52
      $region51: #{up_step_forward.4} parent=39 // pred_region
        _
      $region52: #{up_step_forward.4} parent=39 // pred_fallthru
        _
    $region40: #{up_step_forward.4} parent=5 // pred_fallthru
      _
    %p6403 = scmp.le.s32.totalorder 2, %s14
    // Predicated region
    $region53: #{up_step_forward.4} parent=5 // pred_check
      %p6404 = pneg %p6403
    $region54: #{up_step_forward.4} parent=5 // pred_check_branch
      %6406 = sbr.rel (%p6404) target = $region56
    $region55: #{up_step_forward.4} parent=5 // pred_region
      %s6407 = ssub.s32 %s14, 2
      // Predicated region
      $region57: #{up_step_forward.4} parent=55 // pred_check
        %p6408 = pneg %p158
      $region58: #{up_step_forward.4} parent=55 // pred_check_branch
        %6410 = sbr.rel (%p6408) target = $region60
      $region59: #{up_step_forward.4} parent=55 // pred_region
        %p6411 = scmp.lt.s32.totalorder %s20, 1
        %s6412 = scalar_select %p6411, %s20, 1
        %s6413 = smul.addr %s6412, 28
        %s6414 = smul.addr %s6413, 4
        %s6415 = scalar_lea.vmem %s5, %s6414
      $region60: #{up_step_forward.4} parent=55 // pred_fallthru
        _
      // Predicated region
      $region61: #{up_step_forward.4} parent=55 // pred_check
        %p6416 = pneg %p184
      $region62: #{up_step_forward.4} parent=55 // pred_check_branch
        %6418 = sbr.rel (%p6416) target = $region64
      $region63: #{up_step_forward.4} parent=55 // pred_region
        %p6419 = scmp.lt.s32.totalorder %s20, 1
        %s6420 = scalar_select %p6419, %s20, 1
        %s6421 = scalar_lea.vmem %s6, %s6420
      $region64: #{up_step_forward.4} parent=55 // pred_fallthru
        _
      // Predicated region
      $region65: #{up_step_forward.4} parent=55 // pred_check
        %p6422 = pneg %p210
      $region66: #{up_step_forward.4} parent=55 // pred_check_branch
        %6424 = sbr.rel (%p6422) target = $region68
      $region67: #{up_step_forward.4} parent=55 // pred_region
        %p6425 = scmp.lt.s32.totalorder %s20, 1
        %s6426 = scalar_select %p6425, %s20, 1
        %s6427 = scalar_lea.vmem %s7, %s6426
      $region68: #{up_step_forward.4} parent=55 // pred_fallthru
        _
    $region56: #{up_step_forward.4} parent=5 // pred_fallthru
      _
  $region6: #{up_step_forward.4} parent=0 // loop_footer
    %s18 = sadd.s32 1, %s14
  $region7: #{up_step_forward.4} parent=0 // loop_footer_branch
    %13 = sbr.rel target = $region3
  $region8: #{up_step_forward.4} parent=0 // loop_exit
    _

</llo_original>
